<compile_context>
chip_gen: v7x
topology: tpu7x:2x2x1
jax: 0.10.0
libtpu: 0.0.40
codegen_flags: <defaults>
</compile_context>

<pallas_src>
import functools

import numpy as np
import jax
import jax.numpy as jnp
from jax.experimental import pallas as pl
from jax.experimental.pallas import tpu as pltpu


# ---------------------------------------------------------------------------
# Fused Pallas kernel
# ---------------------------------------------------------------------------
def _deep_snn_kernel(x_ref, w1_ref, w2_ref, a1_ref, g2_ref, a2_ref, o_ref, *,
                     t1, t2, shifts, frame_len):
    """conv1+fire -> pool -> pad -> conv2+fire -> pool, all resident in VMEM.

    x_ref  : (KR, FPAD)          bf16  padded input "frame": channel-major, (t,y,x) on lanes
    w1_ref : (25, C2, KR)        bf16  conv1 weights, one (C2, KR) slab per 5x5 tap
    w2_ref : (4, CO, C2)         bf16  conv2 weights, one slab per 2x2 tap
    a1_ref : (FR, T*9*9)         bf16  0/1 pool-1 window-membership (gather) matrix
    g2_ref : (4, T*9*9, T*10*10) bf16  0/1 conv2 patch-gather matrices (incl. pad-1 border)
    a2_ref : (T*10*10, T*6*6)    bf16  0/1 pool-2 window-membership matrix
    o_ref  : (CO, T*6*6)         f32   final spike map (lane-dense, channel-major)
    """
    f32 = jnp.float32
    bf16 = jnp.bfloat16

    xe = x_ref[...]                                    # (KR, FPAD) bf16

    # --- conv1 (k=5, valid on the pad-2 input): 25 shifted lane slices into the MXU ------
    n_hid = w1_ref.shape[1]
    v1 = jnp.zeros((n_hid, frame_len), f32)
    for i, d in enumerate(shifts):
        xs = xe[:, d:d + frame_len]                    # static lane-offset slice, stays in vregs
        v1 = v1 + jnp.dot(w1_ref[i], xs, preferred_element_type=f32)
    # sf.fire(v, conv1_t): only spikes are needed in eval; v is never written to HBM.
    s1 = jnp.where(v1 > t1, 1.0, 0.0).astype(bf16)     # (C2, FR) binary
    # (columns of the frame that are not valid conv1 outputs hold garbage; a1's rows for
    #  those columns are all-zero, so they never propagate.)

    # --- pooling(s1, 2, 2, 1): binary max == (0/1 window-sum > 0) via gather matmul ------
    p1 = jnp.dot(s1, a1_ref[...], preferred_element_type=f32)
    p1 = jnp.where(p1 > 0.5, 1.0, 0.0).astype(bf16)    # (C2, T*9*9) pooled spikes

    # --- pad(1,1,1,1) + conv2 (k=2): per-tap patch gather + weight matmul ------------------
    co = w2_ref.shape[1]
    n2 = g2_ref.shape[2]
    v2 = jnp.zeros((co, n2), f32)
    for j in range(w2_ref.shape[0]):
        q = jnp.dot(p1, g2_ref[j], preferred_element_type=f32).astype(bf16)  # exact 0/1
        v2 = v2 + jnp.dot(w2_ref[j], q, preferred_element_type=f32)
    s2 = jnp.where(v2 > t2, 1.0, 0.0).astype(bf16)     # sf.fire(v, conv2_t)

    # --- final pooling(s2, 2, 2, 1) ---------------------------------------------------------
    o = jnp.dot(s2, a2_ref[...], preferred_element_type=f32)
    o_ref[...] = jnp.where(o > 0.5, 1.0, 0.0).astype(o_ref.dtype)


def deep_snn_fused(xflat, w1s, w2s, a1, g2, a2, *, t1, t2, shifts, frame_len):
    co = w2s.shape[1]
    n_out = a2.shape[1]
    kernel = functools.partial(
        _deep_snn_kernel, t1=float(t1), t2=float(t2),
        shifts=tuple(int(s) for s in shifts), frame_len=int(frame_len))

    def fullspec(shape):
        nd = len(shape)
        return pl.BlockSpec(shape, lambda i, nd=nd: (0,) * nd)

    return pl.pallas_call(
        kernel,
        grid=(1,),
        out_shape=jax.ShapeDtypeStruct((co, n_out), jnp.float32),
        in_specs=[fullspec(xflat.shape), fullspec(w1s.shape), fullspec(w2s.shape),
                  fullspec(a1.shape), fullspec(g2.shape), fullspec(a2.shape)],
        out_specs=fullspec((co, n_out)),
        compiler_params=pltpu.CompilerParams(dimension_semantics=("arbitrary",)),
    )(xflat, w1s, w2s, a1, g2, a2)


# ---------------------------------------------------------------------------
# Model wrapper (precomputes the weight slabs and 0/1 gather matrices once)
# ---------------------------------------------------------------------------
class DeepSNNPallas:
    def __init__(self, prop, key, time_steps=2, height=16, width=16):
        c1, c2, co = prop['in_channel1'], prop['in_channel2'], prop['out_channel']
        wm, ws = prop['weight_mean'], prop['weight_std']
        k1, k2 = jax.random.split(key)
        # snn.Convolution initializes weights ~ N(weight_mean, weight_std), no bias.
        self.w1 = (wm + ws * jax.random.normal(k1, (c2, c1, 5, 5))).astype(jnp.float32)
        self.w2 = (wm + ws * jax.random.normal(k2, (co, c2, 2, 2))).astype(jnp.float32)
        self.conv1_t = 10.0
        self.conv2_t = 1.0
        self.max_ap = jnp.float32(0.15)   # STDP training knob; unused in eval forward
        self.c1, self.c2, self.co = c1, c2, co
        self.T, self.H, self.W = time_steps, height, width
        self._build_static()

    def _build_static(self):
        T, H, W = self.T, self.H, self.W
        c1, c2, co = self.c1, self.c2, self.co
        assert H % 4 == 0 and W % 4 == 0, "spatial size must keep both pooling stages even"

        HP, WP = H + 4, W + 4                     # sf.pad(x, (2,2,2,2))
        H1, W1 = H, W                             # conv1 (k=5, valid) output
        P1H, P1W = H1 // 2 + 1, W1 // 2 + 1       # pooling(2, 2, 1)
        H2, W2 = P1H + 1, P1W + 1                 # conv2 (k=2) on the pad-1 pooled map
        P2H, P2W = H2 // 2 + 1, W2 // 2 + 1       # final pooling(2, 2, 1)

        FR = T * HP * WP                          # flattened (t, y, x) padded-input frame
        max_shift = 4 * WP + 4
        FPAD = ((FR + max_shift + 127) // 128) * 128
        KR = ((c1 + 7) // 8) * 8                  # zero-pad conv1 contraction dim to 8

        # conv1 weights: one (c2, KR) slab per (ky, kx) tap, matching the 25 frame shifts.
        w1np = np.asarray(self.w1)
        w1s = np.zeros((25, c2, KR), np.float32)
        for ky in range(5):
            for kx in range(5):
                w1s[ky * 5 + kx, :, :c1] = w1np[:, :, ky, kx]
        shifts = tuple(ky * WP + kx for ky in range(5) for kx in range(5))

        # conv2 weights: one (co, c2) slab per (ky, kx) tap (same order as G2 below).
        w2np = np.asarray(self.w2)
        w2s = np.stack([w2np[:, :, ky, kx] for ky in range(2) for kx in range(2)], axis=0)

        NP1, N2, NO = T * P1H * P1W, T * H2 * W2, T * P2H * P2W

        # A1: conv1-output frame position -> pool-1 window membership (0/1).
        A1 = np.zeros((FR, NP1), np.float32)
        for t in range(T):
            for py in range(P1H):
                for px in range(P1W):
                    o = t * P1H * P1W + py * P1W + px
                    for yy in (2 * py - 1, 2 * py):
                        for xx in (2 * px - 1, 2 * px):
                            if 0 <= yy < H1 and 0 <= xx < W1:
                                A1[t * HP * WP + yy * WP + xx, o] = 1.0

        # G2[j]: pooled-1 position -> conv2 patch row for tap (ky, kx), incl. the pad-1 border.
        G2 = np.zeros((4, NP1, N2), np.float32)
        for j, (ky, kx) in enumerate([(ky, kx) for ky in range(2) for kx in range(2)]):
            for t in range(T):
                for oy in range(H2):
                    for ox in range(W2):
                        py, px = oy + ky - 1, ox + kx - 1
                        if 0 <= py < P1H and 0 <= px < P1W:
                            G2[j, t * P1H * P1W + py * P1W + px,
                               t * H2 * W2 + oy * W2 + ox] = 1.0

        # A2: conv2-output position -> final pool window membership (0/1).
        A2 = np.zeros((N2, NO), np.float32)
        for t in range(T):
            for qy in range(P2H):
                for qx in range(P2W):
                    o = t * P2H * P2W + qy * P2W + qx
                    for yy in (2 * qy - 1, 2 * qy):
                        for xx in (2 * qx - 1, 2 * qx):
                            if 0 <= yy < H2 and 0 <= xx < W2:
                                A2[t * H2 * W2 + yy * W2 + xx, o] = 1.0

        self.dims = dict(HP=HP, WP=WP, FR=FR, FPAD=FPAD, KR=KR, P2H=P2H, P2W=P2W)
        self.shifts = shifts
        bf = jnp.bfloat16
        self.w1s = jnp.asarray(w1s, bf)
        self.w2s = jnp.asarray(w2s, bf)
        self.A1 = jnp.asarray(A1, bf)
        self.G2 = jnp.asarray(G2, bf)
        self.A2 = jnp.asarray(A2, bf)

    def forward_eval(self, x, layer_idx=None):
        """Eval branch of DeepSNN.forward: returns the final binary spike map (T, CO, 6, 6)."""
        d = self.dims
        T, c1 = self.T, self.c1
        assert x.shape == (T, c1, self.H, self.W), x.shape
        # sf.pad(input.float(), (2, 2, 2, 2)) + channel-major lane-dense flattening.
        xp = jnp.pad(x.astype(jnp.float32), ((0, 0), (0, 0), (2, 2), (2, 2)))
        xflat = xp.transpose(1, 0, 2, 3).reshape(c1, d['FR'])
        xflat = jnp.pad(xflat, ((0, d['KR'] - c1), (0, d['FPAD'] - d['FR'])))
        out = deep_snn_fused(xflat.astype(jnp.bfloat16), self.w1s, self.w2s,
                             self.A1, self.G2, self.A2,
                             t1=self.conv1_t, t2=self.conv2_t,
                             shifts=self.shifts, frame_len=d['FR'])
        # (CO, T*6*6) -> (T, CO, 6, 6); tiny (few KB) layout fix-up in the wrapper.
        return out.reshape(self.co, T, d['P2H'], d['P2W']).transpose(1, 0, 2, 3)


# ---------------------------------------------------------------------------
# float64 numpy reference of the whole eval path (self-test only)
# ---------------------------------------------------------------------------
def _ref_forward(x, w1, w2, t1, t2):
    def conv_valid(a, w):
        n, c, h, wd = a.shape
        co, _, k, _ = w.shape
        ho, wo = h - k + 1, wd - k + 1
        out = np.zeros((n, co, ho, wo), np.float64)
        for ky in range(k):
            for kx in range(k):
                out += np.einsum('nchw,oc->nohw',
                                 a[:, :, ky:ky + ho, kx:kx + wo], w[:, :, ky, kx])
        return out

    def pool(a):   # max_pool2d(kernel=2, stride=2, padding=1); zero pad is fine for spikes >= 0
        ap = np.pad(a, ((0, 0), (0, 0), (1, 1), (1, 1)))
        return np.maximum.reduce([ap[:, :, i::2, j::2] for i in (0, 1) for j in (0, 1)])

    xp = np.pad(x, ((0, 0), (0, 0), (2, 2), (2, 2)))
    s1 = (conv_valid(xp, w1) > t1).astype(np.float64)
    p1 = np.pad(pool(s1), ((0, 0), (0, 0), (1, 1), (1, 1)))
    s2 = (conv_valid(p1, w2) > t2).astype(np.float64)
    return pool(s2)


if __name__ == "__main__":
    key = jax.random.PRNGKey(0)
    k_w, k_x = jax.random.split(key)

    prop = {
        'in_channel1': 4, 'in_channel2': 8, 'out_channel': 16,
        'weight_mean': 0.25, 'weight_std': 0.05,
        'lr': (0.004, -0.003), 'k1': 5, 'k2': 1, 'r1': 3, 'r2': 0,
    }

    T, C, H, W = 2, 4, 16, 16
    model = DeepSNNPallas(prop, k_w, time_steps=T, height=H, width=W)

    # Input spike-wave tensor: (T=2 time steps, C=4 channels, 16x16 spatial), binary.
    x = jax.random.bernoulli(k_x, 0.3, (T, C, H, W)).astype(jnp.float32)

    out = jax.block_until_ready(jax.jit(model.forward_eval)(x))

    # --- sanity checks -----------------------------------------------------
    assert out.shape == (T, prop['out_channel'], 6, 6), out.shape
    assert out.dtype == jnp.float32
    out_np = np.asarray(out, dtype=np.float64)
    assert set(np.unique(out_np)).issubset({0.0, 1.0})

    # Reference uses the same bf16-rounded weights the kernel consumes, so the only
    # kernel-vs-reference difference is f32 accumulation order (<~1e-4 on the potentials).
    # Sandwich the output between references with thresholds nudged by +/-eps and demand
    # exact agreement wherever the nudge does not change the reference output.
    w1q = np.asarray(jnp.asarray(model.w1, jnp.bfloat16).astype(jnp.float32), np.float64)
    w2q = np.asarray(jnp.asarray(model.w2, jnp.bfloat16).astype(jnp.float32), np.float64)
    x64 = np.asarray(x, np.float64)
    eps = 1e-3

    ref = _ref_forward(x64, w1q, w2q, 10.0, 1.0)
    if (w2q >= 0).all():   # network is monotone in its thresholds -> sandwich bound is exact
        hi = _ref_forward(x64, w1q, w2q, 10.0 - eps, 1.0 - eps)
        lo = _ref_forward(x64, w1q, w2q, 10.0 + eps, 1.0 + eps)
        certain = hi == lo
        assert certain.mean() > 0.8, certain.mean()
        np.testing.assert_array_equal(out_np[certain], ref[certain])
        assert np.all(out_np >= lo) and np.all(out_np <= hi)
    else:                   # (essentially impossible with these weight stats) lenient fallback
        assert np.mean(out_np == ref) > 0.99

    print("KERNEL_OK")
</pallas_src>

<mosaic_0001>
module attributes {stable_mosaic.version = 11 : i64} {
  func.func @_deep_snn_kernel(%arg0: i32, %arg1: memref<8x896xbf16, #tpu.memory_space<vmem>>, %arg2: memref<25x8x8xbf16, #tpu.memory_space<vmem>>, %arg3: memref<4x16x8xbf16, #tpu.memory_space<vmem>>, %arg4: memref<800x162xbf16, #tpu.memory_space<vmem>>, %arg5: memref<4x162x200xbf16, #tpu.memory_space<vmem>>, %arg6: memref<200x72xbf16, #tpu.memory_space<vmem>>, %arg7: memref<16x72xf32, #tpu.memory_space<vmem>>) attributes {dimension_semantics = [#tpu.dimension_semantics<arbitrary>], iteration_bounds = array<i64: 1>, scalar_prefetch = 0 : i64, scratch_operands = 0 : i64, tpu.core_type = #tpu.core_type<tc>, window_params = [{pipeline_mode = #tpu.pipeline_mode<synchronous>, transform_indices = @transform_0, window_bounds = array<i64: 8, 896>}, {pipeline_mode = #tpu.pipeline_mode<synchronous>, transform_indices = @transform_1, window_bounds = array<i64: 25, 8, 8>}, {pipeline_mode = #tpu.pipeline_mode<synchronous>, transform_indices = @transform_2, window_bounds = array<i64: 4, 16, 8>}, {pipeline_mode = #tpu.pipeline_mode<synchronous>, transform_indices = @transform_3, window_bounds = array<i64: 800, 162>}, {pipeline_mode = #tpu.pipeline_mode<synchronous>, transform_indices = @transform_4, window_bounds = array<i64: 4, 162, 200>}, {pipeline_mode = #tpu.pipeline_mode<synchronous>, transform_indices = @transform_5, window_bounds = array<i64: 200, 72>}, {pipeline_mode = #tpu.pipeline_mode<synchronous>, transform_indices = @transform_6, window_bounds = array<i64: 16, 72>}]} {
    %c0 = arith.constant 0 : index
    %c0_0 = arith.constant 0 : index
    %0 = vector.load %arg1[%c0, %c0_0] : memref<8x896xbf16, #tpu.memory_space<vmem>>, vector<8x896xbf16>
    %cst = arith.constant 0.000000e+00 : f32
    %1 = vector.broadcast %cst : f32 to vector<8x800xf32>
    %2 = vector.extract_strided_slice %0 {offsets = [0, 0], sizes = [8, 800], strides = [1, 1]} : vector<8x896xbf16> to vector<8x800xbf16>
    %c0_1 = arith.constant 0 : index
    %c0_2 = arith.constant 0 : index
    %c0_3 = arith.constant 0 : index
    %3 = vector.load %arg2[%c0_1, %c0_2, %c0_3] : memref<25x8x8xbf16, #tpu.memory_space<vmem>>, vector<1x8x8xbf16>
    %4 = vector.shape_cast %3 : vector<1x8x8xbf16> to vector<8x8xbf16>
    %cst_4 = arith.constant dense<0.000000e+00> : vector<8x800xf32>
    %5 = tpu.matmul %4, %2, %cst_4 {dimension_numbers = #tpu.dot_dimension_numbers<[1], [0], [0], [1], [0, 0, 1, 1], [], []>} : vector<8x8xbf16>, vector<8x800xbf16>, vector<8x800xf32> -> vector<8x800xf32>
    %6 = arith.addf %1, %5 : vector<8x800xf32>
    %7 = vector.extract_strided_slice %0 {offsets = [0, 1], sizes = [8, 800], strides = [1, 1]} : vector<8x896xbf16> to vector<8x800xbf16>
    %c1 = arith.constant 1 : index
    %c0_5 = arith.constant 0 : index
    %c0_6 = arith.constant 0 : index
    %8 = vector.load %arg2[%c1, %c0_5, %c0_6] : memref<25x8x8xbf16, #tpu.memory_space<vmem>>, vector<1x8x8xbf16>
    %9 = vector.shape_cast %8 : vector<1x8x8xbf16> to vector<8x8xbf16>
    %cst_7 = arith.constant dense<0.000000e+00> : vector<8x800xf32>
    %10 = tpu.matmul %9, %7, %cst_7 {dimension_numbers = #tpu.dot_dimension_numbers<[1], [0], [0], [1], [0, 0, 1, 1], [], []>} : vector<8x8xbf16>, vector<8x800xbf16>, vector<8x800xf32> -> vector<8x800xf32>
    %11 = arith.addf %6, %10 : vector<8x800xf32>
    %12 = vector.extract_strided_slice %0 {offsets = [0, 2], sizes = [8, 800], strides = [1, 1]} : vector<8x896xbf16> to vector<8x800xbf16>
    %c2 = arith.constant 2 : index
    %c0_8 = arith.constant 0 : index
    %c0_9 = arith.constant 0 : index
    %13 = vector.load %arg2[%c2, %c0_8, %c0_9] : memref<25x8x8xbf16, #tpu.memory_space<vmem>>, vector<1x8x8xbf16>
    %14 = vector.shape_cast %13 : vector<1x8x8xbf16> to vector<8x8xbf16>
    %cst_10 = arith.constant dense<0.000000e+00> : vector<8x800xf32>
    %15 = tpu.matmul %14, %12, %cst_10 {dimension_numbers = #tpu.dot_dimension_numbers<[1], [0], [0], [1], [0, 0, 1, 1], [], []>} : vector<8x8xbf16>, vector<8x800xbf16>, vector<8x800xf32> -> vector<8x800xf32>
    %16 = arith.addf %11, %15 : vector<8x800xf32>
    %17 = vector.extract_strided_slice %0 {offsets = [0, 3], sizes = [8, 800], strides = [1, 1]} : vector<8x896xbf16> to vector<8x800xbf16>
    %c3 = arith.constant 3 : index
    %c0_11 = arith.constant 0 : index
    %c0_12 = arith.constant 0 : index
    %18 = vector.load %arg2[%c3, %c0_11, %c0_12] : memref<25x8x8xbf16, #tpu.memory_space<vmem>>, vector<1x8x8xbf16>
    %19 = vector.shape_cast %18 : vector<1x8x8xbf16> to vector<8x8xbf16>
    %cst_13 = arith.constant dense<0.000000e+00> : vector<8x800xf32>
    %20 = tpu.matmul %19, %17, %cst_13 {dimension_numbers = #tpu.dot_dimension_numbers<[1], [0], [0], [1], [0, 0, 1, 1], [], []>} : vector<8x8xbf16>, vector<8x800xbf16>, vector<8x800xf32> -> vector<8x800xf32>
    %21 = arith.addf %16, %20 : vector<8x800xf32>
    %22 = vector.extract_strided_slice %0 {offsets = [0, 4], sizes = [8, 800], strides = [1, 1]} : vector<8x896xbf16> to vector<8x800xbf16>
    %c4 = arith.constant 4 : index
    %c0_14 = arith.constant 0 : index
    %c0_15 = arith.constant 0 : index
    %23 = vector.load %arg2[%c4, %c0_14, %c0_15] : memref<25x8x8xbf16, #tpu.memory_space<vmem>>, vector<1x8x8xbf16>
    %24 = vector.shape_cast %23 : vector<1x8x8xbf16> to vector<8x8xbf16>
    %cst_16 = arith.constant dense<0.000000e+00> : vector<8x800xf32>
    %25 = tpu.matmul %24, %22, %cst_16 {dimension_numbers = #tpu.dot_dimension_numbers<[1], [0], [0], [1], [0, 0, 1, 1], [], []>} : vector<8x8xbf16>, vector<8x800xbf16>, vector<8x800xf32> -> vector<8x800xf32>
    %26 = arith.addf %21, %25 : vector<8x800xf32>
    %27 = vector.extract_strided_slice %0 {offsets = [0, 20], sizes = [8, 800], strides = [1, 1]} : vector<8x896xbf16> to vector<8x800xbf16>
    %c5 = arith.constant 5 : index
    %c0_17 = arith.constant 0 : index
    %c0_18 = arith.constant 0 : index
    %28 = vector.load %arg2[%c5, %c0_17, %c0_18] : memref<25x8x8xbf16, #tpu.memory_space<vmem>>, vector<1x8x8xbf16>
    %29 = vector.shape_cast %28 : vector<1x8x8xbf16> to vector<8x8xbf16>
    %cst_19 = arith.constant dense<0.000000e+00> : vector<8x800xf32>
    %30 = tpu.matmul %29, %27, %cst_19 {dimension_numbers = #tpu.dot_dimension_numbers<[1], [0], [0], [1], [0, 0, 1, 1], [], []>} : vector<8x8xbf16>, vector<8x800xbf16>, vector<8x800xf32> -> vector<8x800xf32>
    %31 = arith.addf %26, %30 : vector<8x800xf32>
    %32 = vector.extract_strided_slice %0 {offsets = [0, 21], sizes = [8, 800], strides = [1, 1]} : vector<8x896xbf16> to vector<8x800xbf16>
    %c6 = arith.constant 6 : index
    %c0_20 = arith.constant 0 : index
    %c0_21 = arith.constant 0 : index
    %33 = vector.load %arg2[%c6, %c0_20, %c0_21] : memref<25x8x8xbf16, #tpu.memory_space<vmem>>, vector<1x8x8xbf16>
    %34 = vector.shape_cast %33 : vector<1x8x8xbf16> to vector<8x8xbf16>
    %cst_22 = arith.constant dense<0.000000e+00> : vector<8x800xf32>
    %35 = tpu.matmul %34, %32, %cst_22 {dimension_numbers = #tpu.dot_dimension_numbers<[1], [0], [0], [1], [0, 0, 1, 1], [], []>} : vector<8x8xbf16>, vector<8x800xbf16>, vector<8x800xf32> -> vector<8x800xf32>
    %36 = arith.addf %31, %35 : vector<8x800xf32>
    %37 = vector.extract_strided_slice %0 {offsets = [0, 22], sizes = [8, 800], strides = [1, 1]} : vector<8x896xbf16> to vector<8x800xbf16>
    %c7 = arith.constant 7 : index
    %c0_23 = arith.constant 0 : index
    %c0_24 = arith.constant 0 : index
    %38 = vector.load %arg2[%c7, %c0_23, %c0_24] : memref<25x8x8xbf16, #tpu.memory_space<vmem>>, vector<1x8x8xbf16>
    %39 = vector.shape_cast %38 : vector<1x8x8xbf16> to vector<8x8xbf16>
    %cst_25 = arith.constant dense<0.000000e+00> : vector<8x800xf32>
    %40 = tpu.matmul %39, %37, %cst_25 {dimension_numbers = #tpu.dot_dimension_numbers<[1], [0], [0], [1], [0, 0, 1, 1], [], []>} : vector<8x8xbf16>, vector<8x800xbf16>, vector<8x800xf32> -> vector<8x800xf32>
    %41 = arith.addf %36, %40 : vector<8x800xf32>
    %42 = vector.extract_strided_slice %0 {offsets = [0, 23], sizes = [8, 800], strides = [1, 1]} : vector<8x896xbf16> to vector<8x800xbf16>
    %c8 = arith.constant 8 : index
    %c0_26 = arith.constant 0 : index
    %c0_27 = arith.constant 0 : index
    %43 = vector.load %arg2[%c8, %c0_26, %c0_27] : memref<25x8x8xbf16, #tpu.memory_space<vmem>>, vector<1x8x8xbf16>
    %44 = vector.shape_cast %43 : vector<1x8x8xbf16> to vector<8x8xbf16>
    %cst_28 = arith.constant dense<0.000000e+00> : vector<8x800xf32>
    %45 = tpu.matmul %44, %42, %cst_28 {dimension_numbers = #tpu.dot_dimension_numbers<[1], [0], [0], [1], [0, 0, 1, 1], [], []>} : vector<8x8xbf16>, vector<8x800xbf16>, vector<8x800xf32> -> vector<8x800xf32>
    %46 = arith.addf %41, %45 : vector<8x800xf32>
    %47 = vector.extract_strided_slice %0 {offsets = [0, 24], sizes = [8, 800], strides = [1, 1]} : vector<8x896xbf16> to vector<8x800xbf16>
    %c9 = arith.constant 9 : index
    %c0_29 = arith.constant 0 : index
    %c0_30 = arith.constant 0 : index
    %48 = vector.load %arg2[%c9, %c0_29, %c0_30] : memref<25x8x8xbf16, #tpu.memory_space<vmem>>, vector<1x8x8xbf16>
    %49 = vector.shape_cast %48 : vector<1x8x8xbf16> to vector<8x8xbf16>
    %cst_31 = arith.constant dense<0.000000e+00> : vector<8x800xf32>
    %50 = tpu.matmul %49, %47, %cst_31 {dimension_numbers = #tpu.dot_dimension_numbers<[1], [0], [0], [1], [0, 0, 1, 1], [], []>} : vector<8x8xbf16>, vector<8x800xbf16>, vector<8x800xf32> -> vector<8x800xf32>
    %51 = arith.addf %46, %50 : vector<8x800xf32>
    %52 = vector.extract_strided_slice %0 {offsets = [0, 40], sizes = [8, 800], strides = [1, 1]} : vector<8x896xbf16> to vector<8x800xbf16>
    %c10 = arith.constant 10 : index
    %c0_32 = arith.constant 0 : index
    %c0_33 = arith.constant 0 : index
    %53 = vector.load %arg2[%c10, %c0_32, %c0_33] : memref<25x8x8xbf16, #tpu.memory_space<vmem>>, vector<1x8x8xbf16>
    %54 = vector.shape_cast %53 : vector<1x8x8xbf16> to vector<8x8xbf16>
    %cst_34 = arith.constant dense<0.000000e+00> : vector<8x800xf32>
    %55 = tpu.matmul %54, %52, %cst_34 {dimension_numbers = #tpu.dot_dimension_numbers<[1], [0], [0], [1], [0, 0, 1, 1], [], []>} : vector<8x8xbf16>, vector<8x800xbf16>, vector<8x800xf32> -> vector<8x800xf32>
    %56 = arith.addf %51, %55 : vector<8x800xf32>
    %57 = vector.extract_strided_slice %0 {offsets = [0, 41], sizes = [8, 800], strides = [1, 1]} : vector<8x896xbf16> to vector<8x800xbf16>
    %c11 = arith.constant 11 : index
    %c0_35 = arith.constant 0 : index
    %c0_36 = arith.constant 0 : index
    %58 = vector.load %arg2[%c11, %c0_35, %c0_36] : memref<25x8x8xbf16, #tpu.memory_space<vmem>>, vector<1x8x8xbf16>
    %59 = vector.shape_cast %58 : vector<1x8x8xbf16> to vector<8x8xbf16>
    %cst_37 = arith.constant dense<0.000000e+00> : vector<8x800xf32>
    %60 = tpu.matmul %59, %57, %cst_37 {dimension_numbers = #tpu.dot_dimension_numbers<[1], [0], [0], [1], [0, 0, 1, 1], [], []>} : vector<8x8xbf16>, vector<8x800xbf16>, vector<8x800xf32> -> vector<8x800xf32>
    %61 = arith.addf %56, %60 : vector<8x800xf32>
    %62 = vector.extract_strided_slice %0 {offsets = [0, 42], sizes = [8, 800], strides = [1, 1]} : vector<8x896xbf16> to vector<8x800xbf16>
    %c12 = arith.constant 12 : index
    %c0_38 = arith.constant 0 : index
    %c0_39 = arith.constant 0 : index
    %63 = vector.load %arg2[%c12, %c0_38, %c0_39] : memref<25x8x8xbf16, #tpu.memory_space<vmem>>, vector<1x8x8xbf16>
    %64 = vector.shape_cast %63 : vector<1x8x8xbf16> to vector<8x8xbf16>
    %cst_40 = arith.constant dense<0.000000e+00> : vector<8x800xf32>
    %65 = tpu.matmul %64, %62, %cst_40 {dimension_numbers = #tpu.dot_dimension_numbers<[1], [0], [0], [1], [0, 0, 1, 1], [], []>} : vector<8x8xbf16>, vector<8x800xbf16>, vector<8x800xf32> -> vector<8x800xf32>
    %66 = arith.addf %61, %65 : vector<8x800xf32>
    %67 = vector.extract_strided_slice %0 {offsets = [0, 43], sizes = [8, 800], strides = [1, 1]} : vector<8x896xbf16> to vector<8x800xbf16>
    %c13 = arith.constant 13 : index
    %c0_41 = arith.constant 0 : index
    %c0_42 = arith.constant 0 : index
    %68 = vector.load %arg2[%c13, %c0_41, %c0_42] : memref<25x8x8xbf16, #tpu.memory_space<vmem>>, vector<1x8x8xbf16>
    %69 = vector.shape_cast %68 : vector<1x8x8xbf16> to vector<8x8xbf16>
    %cst_43 = arith.constant dense<0.000000e+00> : vector<8x800xf32>
    %70 = tpu.matmul %69, %67, %cst_43 {dimension_numbers = #tpu.dot_dimension_numbers<[1], [0], [0], [1], [0, 0, 1, 1], [], []>} : vector<8x8xbf16>, vector<8x800xbf16>, vector<8x800xf32> -> vector<8x800xf32>
    %71 = arith.addf %66, %70 : vector<8x800xf32>
    %72 = vector.extract_strided_slice %0 {offsets = [0, 44], sizes = [8, 800], strides = [1, 1]} : vector<8x896xbf16> to vector<8x800xbf16>
    %c14 = arith.constant 14 : index
    %c0_44 = arith.constant 0 : index
    %c0_45 = arith.constant 0 : index
    %73 = vector.load %arg2[%c14, %c0_44, %c0_45] : memref<25x8x8xbf16, #tpu.memory_space<vmem>>, vector<1x8x8xbf16>
    %74 = vector.shape_cast %73 : vector<1x8x8xbf16> to vector<8x8xbf16>
    %cst_46 = arith.constant dense<0.000000e+00> : vector<8x800xf32>
    %75 = tpu.matmul %74, %72, %cst_46 {dimension_numbers = #tpu.dot_dimension_numbers<[1], [0], [0], [1], [0, 0, 1, 1], [], []>} : vector<8x8xbf16>, vector<8x800xbf16>, vector<8x800xf32> -> vector<8x800xf32>
    %76 = arith.addf %71, %75 : vector<8x800xf32>
    %77 = vector.extract_strided_slice %0 {offsets = [0, 60], sizes = [8, 800], strides = [1, 1]} : vector<8x896xbf16> to vector<8x800xbf16>
    %c15 = arith.constant 15 : index
    %c0_47 = arith.constant 0 : index
    %c0_48 = arith.constant 0 : index
    %78 = vector.load %arg2[%c15, %c0_47, %c0_48] : memref<25x8x8xbf16, #tpu.memory_space<vmem>>, vector<1x8x8xbf16>
    %79 = vector.shape_cast %78 : vector<1x8x8xbf16> to vector<8x8xbf16>
    %cst_49 = arith.constant dense<0.000000e+00> : vector<8x800xf32>
    %80 = tpu.matmul %79, %77, %cst_49 {dimension_numbers = #tpu.dot_dimension_numbers<[1], [0], [0], [1], [0, 0, 1, 1], [], []>} : vector<8x8xbf16>, vector<8x800xbf16>, vector<8x800xf32> -> vector<8x800xf32>
    %81 = arith.addf %76, %80 : vector<8x800xf32>
    %82 = vector.extract_strided_slice %0 {offsets = [0, 61], sizes = [8, 800], strides = [1, 1]} : vector<8x896xbf16> to vector<8x800xbf16>
    %c16 = arith.constant 16 : index
    %c0_50 = arith.constant 0 : index
    %c0_51 = arith.constant 0 : index
    %83 = vector.load %arg2[%c16, %c0_50, %c0_51] : memref<25x8x8xbf16, #tpu.memory_space<vmem>>, vector<1x8x8xbf16>
    %84 = vector.shape_cast %83 : vector<1x8x8xbf16> to vector<8x8xbf16>
    %cst_52 = arith.constant dense<0.000000e+00> : vector<8x800xf32>
    %85 = tpu.matmul %84, %82, %cst_52 {dimension_numbers = #tpu.dot_dimension_numbers<[1], [0], [0], [1], [0, 0, 1, 1], [], []>} : vector<8x8xbf16>, vector<8x800xbf16>, vector<8x800xf32> -> vector<8x800xf32>
    %86 = arith.addf %81, %85 : vector<8x800xf32>
    %87 = vector.extract_strided_slice %0 {offsets = [0, 62], sizes = [8, 800], strides = [1, 1]} : vector<8x896xbf16> to vector<8x800xbf16>
    %c17 = arith.constant 17 : index
    %c0_53 = arith.constant 0 : index
    %c0_54 = arith.constant 0 : index
    %88 = vector.load %arg2[%c17, %c0_53, %c0_54] : memref<25x8x8xbf16, #tpu.memory_space<vmem>>, vector<1x8x8xbf16>
    %89 = vector.shape_cast %88 : vector<1x8x8xbf16> to vector<8x8xbf16>
    %cst_55 = arith.constant dense<0.000000e+00> : vector<8x800xf32>
    %90 = tpu.matmul %89, %87, %cst_55 {dimension_numbers = #tpu.dot_dimension_numbers<[1], [0], [0], [1], [0, 0, 1, 1], [], []>} : vector<8x8xbf16>, vector<8x800xbf16>, vector<8x800xf32> -> vector<8x800xf32>
    %91 = arith.addf %86, %90 : vector<8x800xf32>
    %92 = vector.extract_strided_slice %0 {offsets = [0, 63], sizes = [8, 800], strides = [1, 1]} : vector<8x896xbf16> to vector<8x800xbf16>
    %c18 = arith.constant 18 : index
    %c0_56 = arith.constant 0 : index
    %c0_57 = arith.constant 0 : index
    %93 = vector.load %arg2[%c18, %c0_56, %c0_57] : memref<25x8x8xbf16, #tpu.memory_space<vmem>>, vector<1x8x8xbf16>
    %94 = vector.shape_cast %93 : vector<1x8x8xbf16> to vector<8x8xbf16>
    %cst_58 = arith.constant dense<0.000000e+00> : vector<8x800xf32>
    %95 = tpu.matmul %94, %92, %cst_58 {dimension_numbers = #tpu.dot_dimension_numbers<[1], [0], [0], [1], [0, 0, 1, 1], [], []>} : vector<8x8xbf16>, vector<8x800xbf16>, vector<8x800xf32> -> vector<8x800xf32>
    %96 = arith.addf %91, %95 : vector<8x800xf32>
    %97 = vector.extract_strided_slice %0 {offsets = [0, 64], sizes = [8, 800], strides = [1, 1]} : vector<8x896xbf16> to vector<8x800xbf16>
    %c19 = arith.constant 19 : index
    %c0_59 = arith.constant 0 : index
    %c0_60 = arith.constant 0 : index
    %98 = vector.load %arg2[%c19, %c0_59, %c0_60] : memref<25x8x8xbf16, #tpu.memory_space<vmem>>, vector<1x8x8xbf16>
    %99 = vector.shape_cast %98 : vector<1x8x8xbf16> to vector<8x8xbf16>
    %cst_61 = arith.constant dense<0.000000e+00> : vector<8x800xf32>
    %100 = tpu.matmul %99, %97, %cst_61 {dimension_numbers = #tpu.dot_dimension_numbers<[1], [0], [0], [1], [0, 0, 1, 1], [], []>} : vector<8x8xbf16>, vector<8x800xbf16>, vector<8x800xf32> -> vector<8x800xf32>
    %101 = arith.addf %96, %100 : vector<8x800xf32>
    %102 = vector.extract_strided_slice %0 {offsets = [0, 80], sizes = [8, 800], strides = [1, 1]} : vector<8x896xbf16> to vector<8x800xbf16>
    %c20 = arith.constant 20 : index
    %c0_62 = arith.constant 0 : index
    %c0_63 = arith.constant 0 : index
    %103 = vector.load %arg2[%c20, %c0_62, %c0_63] : memref<25x8x8xbf16, #tpu.memory_space<vmem>>, vector<1x8x8xbf16>
    %104 = vector.shape_cast %103 : vector<1x8x8xbf16> to vector<8x8xbf16>
    %cst_64 = arith.constant dense<0.000000e+00> : vector<8x800xf32>
    %105 = tpu.matmul %104, %102, %cst_64 {dimension_numbers = #tpu.dot_dimension_numbers<[1], [0], [0], [1], [0, 0, 1, 1], [], []>} : vector<8x8xbf16>, vector<8x800xbf16>, vector<8x800xf32> -> vector<8x800xf32>
    %106 = arith.addf %101, %105 : vector<8x800xf32>
    %107 = vector.extract_strided_slice %0 {offsets = [0, 81], sizes = [8, 800], strides = [1, 1]} : vector<8x896xbf16> to vector<8x800xbf16>
    %c21 = arith.constant 21 : index
    %c0_65 = arith.constant 0 : index
    %c0_66 = arith.constant 0 : index
    %108 = vector.load %arg2[%c21, %c0_65, %c0_66] : memref<25x8x8xbf16, #tpu.memory_space<vmem>>, vector<1x8x8xbf16>
    %109 = vector.shape_cast %108 : vector<1x8x8xbf16> to vector<8x8xbf16>
    %cst_67 = arith.constant dense<0.000000e+00> : vector<8x800xf32>
    %110 = tpu.matmul %109, %107, %cst_67 {dimension_numbers = #tpu.dot_dimension_numbers<[1], [0], [0], [1], [0, 0, 1, 1], [], []>} : vector<8x8xbf16>, vector<8x800xbf16>, vector<8x800xf32> -> vector<8x800xf32>
    %111 = arith.addf %106, %110 : vector<8x800xf32>
    %112 = vector.extract_strided_slice %0 {offsets = [0, 82], sizes = [8, 800], strides = [1, 1]} : vector<8x896xbf16> to vector<8x800xbf16>
    %c22 = arith.constant 22 : index
    %c0_68 = arith.constant 0 : index
    %c0_69 = arith.constant 0 : index
    %113 = vector.load %arg2[%c22, %c0_68, %c0_69] : memref<25x8x8xbf16, #tpu.memory_space<vmem>>, vector<1x8x8xbf16>
    %114 = vector.shape_cast %113 : vector<1x8x8xbf16> to vector<8x8xbf16>
    %cst_70 = arith.constant dense<0.000000e+00> : vector<8x800xf32>
    %115 = tpu.matmul %114, %112, %cst_70 {dimension_numbers = #tpu.dot_dimension_numbers<[1], [0], [0], [1], [0, 0, 1, 1], [], []>} : vector<8x8xbf16>, vector<8x800xbf16>, vector<8x800xf32> -> vector<8x800xf32>
    %116 = arith.addf %111, %115 : vector<8x800xf32>
    %117 = vector.extract_strided_slice %0 {offsets = [0, 83], sizes = [8, 800], strides = [1, 1]} : vector<8x896xbf16> to vector<8x800xbf16>
    %c23 = arith.constant 23 : index
    %c0_71 = arith.constant 0 : index
    %c0_72 = arith.constant 0 : index
    %118 = vector.load %arg2[%c23, %c0_71, %c0_72] : memref<25x8x8xbf16, #tpu.memory_space<vmem>>, vector<1x8x8xbf16>
    %119 = vector.shape_cast %118 : vector<1x8x8xbf16> to vector<8x8xbf16>
    %cst_73 = arith.constant dense<0.000000e+00> : vector<8x800xf32>
    %120 = tpu.matmul %119, %117, %cst_73 {dimension_numbers = #tpu.dot_dimension_numbers<[1], [0], [0], [1], [0, 0, 1, 1], [], []>} : vector<8x8xbf16>, vector<8x800xbf16>, vector<8x800xf32> -> vector<8x800xf32>
    %121 = arith.addf %116, %120 : vector<8x800xf32>
    %122 = vector.extract_strided_slice %0 {offsets = [0, 84], sizes = [8, 800], strides = [1, 1]} : vector<8x896xbf16> to vector<8x800xbf16>
    %c24 = arith.constant 24 : index
    %c0_74 = arith.constant 0 : index
    %c0_75 = arith.constant 0 : index
    %123 = vector.load %arg2[%c24, %c0_74, %c0_75] : memref<25x8x8xbf16, #tpu.memory_space<vmem>>, vector<1x8x8xbf16>
    %124 = vector.shape_cast %123 : vector<1x8x8xbf16> to vector<8x8xbf16>
    %cst_76 = arith.constant dense<0.000000e+00> : vector<8x800xf32>
    %125 = tpu.matmul %124, %122, %cst_76 {dimension_numbers = #tpu.dot_dimension_numbers<[1], [0], [0], [1], [0, 0, 1, 1], [], []>} : vector<8x8xbf16>, vector<8x800xbf16>, vector<8x800xf32> -> vector<8x800xf32>
    %126 = arith.addf %121, %125 : vector<8x800xf32>
    %cst_77 = arith.constant 1.000000e+01 : f32
    %127 = vector.broadcast %cst_77 : f32 to vector<8x800xf32>
    %128 = arith.cmpf ogt, %126, %127 : vector<8x800xf32>
    %cst_78 = arith.constant 1.000000e+00 : f32
    %cst_79 = arith.constant 0.000000e+00 : f32
    %129 = vector.broadcast %cst_78 : f32 to vector<8x800xf32>
    %130 = vector.broadcast %cst_79 : f32 to vector<8x800xf32>
    %131 = arith.select %128, %129, %130 : vector<8x800xi1>, vector<8x800xf32>
    %132 = arith.truncf %131 : vector<8x800xf32> to vector<8x800xbf16>
    %c0_80 = arith.constant 0 : index
    %c0_81 = arith.constant 0 : index
    %133 = vector.load %arg4[%c0_80, %c0_81] : memref<800x162xbf16, #tpu.memory_space<vmem>>, vector<800x162xbf16>
    %cst_82 = arith.constant dense<0.000000e+00> : vector<8x162xf32>
    %134 = tpu.matmul %132, %133, %cst_82 {dimension_numbers = #tpu.dot_dimension_numbers<[1], [0], [0], [1], [0, 0, 1, 1], [], []>} : vector<8x800xbf16>, vector<800x162xbf16>, vector<8x162xf32> -> vector<8x162xf32>
    %cst_83 = arith.constant 5.000000e-01 : f32
    %135 = vector.broadcast %cst_83 : f32 to vector<8x162xf32>
    %136 = arith.cmpf ogt, %134, %135 : vector<8x162xf32>
    %cst_84 = arith.constant 1.000000e+00 : f32
    %cst_85 = arith.constant 0.000000e+00 : f32
    %137 = vector.broadcast %cst_84 : f32 to vector<8x162xf32>
    %138 = vector.broadcast %cst_85 : f32 to vector<8x162xf32>
    %139 = arith.select %136, %137, %138 : vector<8x162xi1>, vector<8x162xf32>
    %140 = arith.truncf %139 : vector<8x162xf32> to vector<8x162xbf16>
    %cst_86 = arith.constant 0.000000e+00 : f32
    %141 = vector.broadcast %cst_86 : f32 to vector<16x200xf32>
    %c0_87 = arith.constant 0 : index
    %c0_88 = arith.constant 0 : index
    %c0_89 = arith.constant 0 : index
    %142 = vector.load %arg5[%c0_87, %c0_88, %c0_89] : memref<4x162x200xbf16, #tpu.memory_space<vmem>>, vector<1x162x200xbf16>
    %143 = vector.shape_cast %142 : vector<1x162x200xbf16> to vector<162x200xbf16>
    %cst_90 = arith.constant dense<0.000000e+00> : vector<8x200xf32>
    %144 = tpu.matmul %140, %143, %cst_90 {dimension_numbers = #tpu.dot_dimension_numbers<[1], [0], [0], [1], [0, 0, 1, 1], [], []>} : vector<8x162xbf16>, vector<162x200xbf16>, vector<8x200xf32> -> vector<8x200xf32>
    %145 = arith.truncf %144 : vector<8x200xf32> to vector<8x200xbf16>
    %c0_91 = arith.constant 0 : index
    %c0_92 = arith.constant 0 : index
    %c0_93 = arith.constant 0 : index
    %146 = vector.load %arg3[%c0_91, %c0_92, %c0_93] : memref<4x16x8xbf16, #tpu.memory_space<vmem>>, vector<1x16x8xbf16>
    %147 = vector.shape_cast %146 : vector<1x16x8xbf16> to vector<16x8xbf16>
    %cst_94 = arith.constant dense<0.000000e+00> : vector<16x200xf32>
    %148 = tpu.matmul %147, %145, %cst_94 {dimension_numbers = #tpu.dot_dimension_numbers<[1], [0], [0], [1], [0, 0, 1, 1], [], []>} : vector<16x8xbf16>, vector<8x200xbf16>, vector<16x200xf32> -> vector<16x200xf32>
    %149 = arith.addf %141, %148 : vector<16x200xf32>
    %c1_95 = arith.constant 1 : index
    %c0_96 = arith.constant 0 : index
    %c0_97 = arith.constant 0 : index
    %150 = vector.load %arg5[%c1_95, %c0_96, %c0_97] : memref<4x162x200xbf16, #tpu.memory_space<vmem>>, vector<1x162x200xbf16>
    %151 = vector.shape_cast %150 : vector<1x162x200xbf16> to vector<162x200xbf16>
    %cst_98 = arith.constant dense<0.000000e+00> : vector<8x200xf32>
    %152 = tpu.matmul %140, %151, %cst_98 {dimension_numbers = #tpu.dot_dimension_numbers<[1], [0], [0], [1], [0, 0, 1, 1], [], []>} : vector<8x162xbf16>, vector<162x200xbf16>, vector<8x200xf32> -> vector<8x200xf32>
    %153 = arith.truncf %152 : vector<8x200xf32> to vector<8x200xbf16>
    %c1_99 = arith.constant 1 : index
    %c0_100 = arith.constant 0 : index
    %c0_101 = arith.constant 0 : index
    %154 = vector.load %arg3[%c1_99, %c0_100, %c0_101] : memref<4x16x8xbf16, #tpu.memory_space<vmem>>, vector<1x16x8xbf16>
    %155 = vector.shape_cast %154 : vector<1x16x8xbf16> to vector<16x8xbf16>
    %cst_102 = arith.constant dense<0.000000e+00> : vector<16x200xf32>
    %156 = tpu.matmul %155, %153, %cst_102 {dimension_numbers = #tpu.dot_dimension_numbers<[1], [0], [0], [1], [0, 0, 1, 1], [], []>} : vector<16x8xbf16>, vector<8x200xbf16>, vector<16x200xf32> -> vector<16x200xf32>
    %157 = arith.addf %149, %156 : vector<16x200xf32>
    %c2_103 = arith.constant 2 : index
    %c0_104 = arith.constant 0 : index
    %c0_105 = arith.constant 0 : index
    %158 = vector.load %arg5[%c2_103, %c0_104, %c0_105] : memref<4x162x200xbf16, #tpu.memory_space<vmem>>, vector<1x162x200xbf16>
    %159 = vector.shape_cast %158 : vector<1x162x200xbf16> to vector<162x200xbf16>
    %cst_106 = arith.constant dense<0.000000e+00> : vector<8x200xf32>
    %160 = tpu.matmul %140, %159, %cst_106 {dimension_numbers = #tpu.dot_dimension_numbers<[1], [0], [0], [1], [0, 0, 1, 1], [], []>} : vector<8x162xbf16>, vector<162x200xbf16>, vector<8x200xf32> -> vector<8x200xf32>
    %161 = arith.truncf %160 : vector<8x200xf32> to vector<8x200xbf16>
    %c2_107 = arith.constant 2 : index
    %c0_108 = arith.constant 0 : index
    %c0_109 = arith.constant 0 : index
    %162 = vector.load %arg3[%c2_107, %c0_108, %c0_109] : memref<4x16x8xbf16, #tpu.memory_space<vmem>>, vector<1x16x8xbf16>
    %163 = vector.shape_cast %162 : vector<1x16x8xbf16> to vector<16x8xbf16>
    %cst_110 = arith.constant dense<0.000000e+00> : vector<16x200xf32>
    %164 = tpu.matmul %163, %161, %cst_110 {dimension_numbers = #tpu.dot_dimension_numbers<[1], [0], [0], [1], [0, 0, 1, 1], [], []>} : vector<16x8xbf16>, vector<8x200xbf16>, vector<16x200xf32> -> vector<16x200xf32>
    %165 = arith.addf %157, %164 : vector<16x200xf32>
    %c3_111 = arith.constant 3 : index
    %c0_112 = arith.constant 0 : index
    %c0_113 = arith.constant 0 : index
    %166 = vector.load %arg5[%c3_111, %c0_112, %c0_113] : memref<4x162x200xbf16, #tpu.memory_space<vmem>>, vector<1x162x200xbf16>
    %167 = vector.shape_cast %166 : vector<1x162x200xbf16> to vector<162x200xbf16>
    %cst_114 = arith.constant dense<0.000000e+00> : vector<8x200xf32>
    %168 = tpu.matmul %140, %167, %cst_114 {dimension_numbers = #tpu.dot_dimension_numbers<[1], [0], [0], [1], [0, 0, 1, 1], [], []>} : vector<8x162xbf16>, vector<162x200xbf16>, vector<8x200xf32> -> vector<8x200xf32>
    %169 = arith.truncf %168 : vector<8x200xf32> to vector<8x200xbf16>
    %c3_115 = arith.constant 3 : index
    %c0_116 = arith.constant 0 : index
    %c0_117 = arith.constant 0 : index
    %170 = vector.load %arg3[%c3_115, %c0_116, %c0_117] : memref<4x16x8xbf16, #tpu.memory_space<vmem>>, vector<1x16x8xbf16>
    %171 = vector.shape_cast %170 : vector<1x16x8xbf16> to vector<16x8xbf16>
    %cst_118 = arith.constant dense<0.000000e+00> : vector<16x200xf32>
    %172 = tpu.matmul %171, %169, %cst_118 {dimension_numbers = #tpu.dot_dimension_numbers<[1], [0], [0], [1], [0, 0, 1, 1], [], []>} : vector<16x8xbf16>, vector<8x200xbf16>, vector<16x200xf32> -> vector<16x200xf32>
    %173 = arith.addf %165, %172 : vector<16x200xf32>
    %cst_119 = arith.constant 1.000000e+00 : f32
    %174 = vector.broadcast %cst_119 : f32 to vector<16x200xf32>
    %175 = arith.cmpf ogt, %173, %174 : vector<16x200xf32>
    %cst_120 = arith.constant 1.000000e+00 : f32
    %cst_121 = arith.constant 0.000000e+00 : f32
    %176 = vector.broadcast %cst_120 : f32 to vector<16x200xf32>
    %177 = vector.broadcast %cst_121 : f32 to vector<16x200xf32>
    %178 = arith.select %175, %176, %177 : vector<16x200xi1>, vector<16x200xf32>
    %179 = arith.truncf %178 : vector<16x200xf32> to vector<16x200xbf16>
    %c0_122 = arith.constant 0 : index
    %c0_123 = arith.constant 0 : index
    %180 = vector.load %arg6[%c0_122, %c0_123] : memref<200x72xbf16, #tpu.memory_space<vmem>>, vector<200x72xbf16>
    %cst_124 = arith.constant dense<0.000000e+00> : vector<16x72xf32>
    %181 = tpu.matmul %179, %180, %cst_124 {dimension_numbers = #tpu.dot_dimension_numbers<[1], [0], [0], [1], [0, 0, 1, 1], [], []>} : vector<16x200xbf16>, vector<200x72xbf16>, vector<16x72xf32> -> vector<16x72xf32>
    %cst_125 = arith.constant 5.000000e-01 : f32
    %182 = vector.broadcast %cst_125 : f32 to vector<16x72xf32>
    %183 = arith.cmpf ogt, %181, %182 : vector<16x72xf32>
    %cst_126 = arith.constant 1.000000e+00 : f32
    %cst_127 = arith.constant 0.000000e+00 : f32
    %184 = vector.broadcast %cst_126 : f32 to vector<16x72xf32>
    %185 = vector.broadcast %cst_127 : f32 to vector<16x72xf32>
    %186 = arith.select %183, %184, %185 : vector<16x72xi1>, vector<16x72xf32>
    %c0_128 = arith.constant 0 : index
    %c0_129 = arith.constant 0 : index
    %187 = vector.load %arg7[%c0_128, %c0_129] : memref<16x72xf32, #tpu.memory_space<vmem>>, vector<16x72xf32>
    tpu.vector_store %arg7[%c0_128, %c0_129], %186 {strides = array<i32>} : memref<16x72xf32, #tpu.memory_space<vmem>>, vector<16x72xf32>,
    return
  }
  func.func @transform_0(%arg0: i32) -> (i32, i32) {
    %c0_i32 = arith.constant 0 : i32
    %c0_i32_0 = arith.constant 0 : i32
    %c0_i32_1 = arith.constant 0 : i32
    return %c0_i32, %c0_i32_0 : i32, i32
  }
  func.func @transform_1(%arg0: i32) -> (i32, i32, i32) {
    %c0_i32 = arith.constant 0 : i32
    %c0_i32_0 = arith.constant 0 : i32
    %c0_i32_1 = arith.constant 0 : i32
    %c0_i32_2 = arith.constant 0 : i32
    return %c0_i32, %c0_i32_0, %c0_i32_1 : i32, i32, i32
  }
  func.func @transform_2(%arg0: i32) -> (i32, i32, i32) {
    %c0_i32 = arith.constant 0 : i32
    %c0_i32_0 = arith.constant 0 : i32
    %c0_i32_1 = arith.constant 0 : i32
    %c0_i32_2 = arith.constant 0 : i32
    return %c0_i32, %c0_i32_0, %c0_i32_1 : i32, i32, i32
  }
  func.func @transform_3(%arg0: i32) -> (i32, i32) {
    %c0_i32 = arith.constant 0 : i32
    %c0_i32_0 = arith.constant 0 : i32
    %c0_i32_1 = arith.constant 0 : i32
    return %c0_i32, %c0_i32_0 : i32, i32
  }
  func.func @transform_4(%arg0: i32) -> (i32, i32, i32) {
    %c0_i32 = arith.constant 0 : i32
    %c0_i32_0 = arith.constant 0 : i32
    %c0_i32_1 = arith.constant 0 : i32
    %c0_i32_2 = arith.constant 0 : i32
    return %c0_i32, %c0_i32_0, %c0_i32_1 : i32, i32, i32
  }
  func.func @transform_5(%arg0: i32) -> (i32, i32) {
    %c0_i32 = arith.constant 0 : i32
    %c0_i32_0 = arith.constant 0 : i32
    %c0_i32_1 = arith.constant 0 : i32
    return %c0_i32, %c0_i32_0 : i32, i32
  }
  func.func @transform_6(%arg0: i32) -> (i32, i32) {
    %c0_i32 = arith.constant 0 : i32
    %c0_i32_0 = arith.constant 0 : i32
    %c0_i32_1 = arith.constant 0 : i32
    return %c0_i32, %c0_i32_0 : i32, i32
  }
}

</mosaic_0001>

<llo_original>
// kernel: forward_eval.1
$region0: #{forward_eval.1}
  #allocation0 [shape = 'u32[]', space=smem, size = 0x4, offset = 0x4, fixed_abs, tag = 'smem constant byte address 0x4 - core index']
  #allocation1 [shape = 'u32[144,128]{1,0:T(1,128)}', space=vmem, size = 0x12000, scoped, tag = 'internal scratch']
  %s0 = inlined_call_operand.vmem [shape: bf16[8,896], index: 0, kind: input, shape index: {}]
  %s1 = inlined_call_operand.vmem [shape: bf16[25,8,8], index: 1, kind: input, shape index: {}]
  %s2 = inlined_call_operand.vmem [shape: bf16[4,16,8], index: 2, kind: input, shape index: {}]
  %s3 = inlined_call_operand.vmem [shape: bf16[800,162], index: 3, kind: input, shape index: {}]
  %s4 = inlined_call_operand.vmem [shape: bf16[4,162,200], index: 4, kind: input, shape index: {}]
  %s5 = inlined_call_operand.vmem [shape: bf16[200,72], index: 5, kind: input, shape index: {}]
  %s6 = inlined_call_operand.vmem [shape: f32[16,72], index: 6, kind: output, shape index: {}]
  %s7 = sld [smem:[#allocation0]]
  $region34: #{forward_eval.1} parent=0
    _
  %s9 = ssub.s32 1, %s7
  %s10 = scalar_select 0, %s9, %s7
  // Predicated region
  $region2: #{forward_eval.1} parent=0 // pred_check
    _
  $region3: #{forward_eval.1} parent=0 // pred_check_branch
    %12 = sbr.rel (0) target = $region5
  $region4: #{forward_eval.1} parent=0 // pred_region
    _
  $region5: #{forward_eval.1} parent=0 // pred_fallthru
    _
  // Predicated region
  $region6: #{forward_eval.1} parent=0 // pred_check
    _
  $region7: #{forward_eval.1} parent=0 // pred_check_branch
    %14 = sbr.rel (0) target = $region9
  $region8: #{forward_eval.1} parent=0 // pred_region
    _
  $region9: #{forward_eval.1} parent=0 // pred_fallthru
    _
  // Predicated region
  $region10: #{forward_eval.1} parent=0 // pred_check
    _
  $region11: #{forward_eval.1} parent=0 // pred_check_branch
    %16 = sbr.rel (0) target = $region13
  $region12: #{forward_eval.1} parent=0 // pred_region
    _
  $region13: #{forward_eval.1} parent=0 // pred_fallthru
    _
  // Predicated region
  $region14: #{forward_eval.1} parent=0 // pred_check
    _
  $region15: #{forward_eval.1} parent=0 // pred_check_branch
    %18 = sbr.rel (0) target = $region17
  $region16: #{forward_eval.1} parent=0 // pred_region
    _
  $region17: #{forward_eval.1} parent=0 // pred_fallthru
    _
  // Predicated region
  $region18: #{forward_eval.1} parent=0 // pred_check
    _
  $region19: #{forward_eval.1} parent=0 // pred_check_branch
    %20 = sbr.rel (0) target = $region21
  $region20: #{forward_eval.1} parent=0 // pred_region
    _
  $region21: #{forward_eval.1} parent=0 // pred_fallthru
    _
  // Predicated region
  $region22: #{forward_eval.1} parent=0 // pred_check
    _
  $region23: #{forward_eval.1} parent=0 // pred_check_branch
    %22 = sbr.rel (0) target = $region25
  $region24: #{forward_eval.1} parent=0 // pred_region
    _
  $region25: #{forward_eval.1} parent=0 // pred_fallthru
    _
  %v24 = vld [vmem:[%s0] sm:$0xff]
  %v25 = vld [vmem:[%s0 + $0x8] sm:$0xff]
  %v26 = vld [vmem:[%s0 + $0x10] sm:$0xff]
  %v27 = vld [vmem:[%s0 + $0x18] sm:$0xf]
  %v28 = vld [vmem:[%s1] sm:$0xf]
  %s29 = scalar_lea.vmem %s1, 4
  %v30 = vld [vmem:[%s29] sm:$0xf]
  %v35 = vunpack.c.l.b16 %v24
  %v36 = vunpack.c.h.b16 %v24
  %v37 = vunpack.c.l.b16 %v25
  %v38 = vunpack.c.h.b16 %v25
  %v39 = vunpack.c.l.b16 %v26
  %v40 = vunpack.c.h.b16 %v26
  %v41 = vunpack.c.l.b16 %v27
  %v42 = vpack.c.b16 %v35, %v35
  %v43 = vpack.c.b16 %v36, %v36
  %v44 = vpack.c.b16 %v37, %v37
  %v45 = vpack.c.b16 %v38, %v38
  %v46 = vpack.c.b16 %v39, %v39
  %v47 = vpack.c.b16 %v40, %v40
  %v48 = vpack.c.b16 %v41, %v41
  %49 = vrot.lane.b32.xlu0 %v42, 127
  %v50 = vpop.permute.xlu0 %49
  %51 = vrot.lane.b32.xlu0 %v43, 127
  %v52 = vpop.permute.xlu0 %51
  %53 = vrot.lane.b32.xlu0 %v44, 127
  %v54 = vpop.permute.xlu0 %53
  %55 = vrot.lane.b32.xlu0 %v45, 127
  %v56 = vpop.permute.xlu0 %55
  %57 = vrot.lane.b32.xlu0 %v46, 127
  %v58 = vpop.permute.xlu0 %57
  %59 = vrot.lane.b32.xlu0 %v47, 127
  %v60 = vpop.permute.xlu0 %59
  %61 = vrot.lane.b32.xlu0 %v48, 127
  %v62 = vpop.permute.xlu0 %61
  %vm63 = vcmask 1039360
  %v64 = vsel %vm63, %v50, %v52
  %v65 = vsel %vm63, %v52, %v54
  %v66 = vsel %vm63, %v54, %v56
  %v67 = vsel %vm63, %v56, %v58
  %v68 = vsel %vm63, %v58, %v60
  %v69 = vsel %vm63, %v60, %v62
  %vm70 = vcmask 64512
  %v72 = vsel %vm70, %v30, 0
  %vm74 = vcmask 1043456
  %v76 = vsel %vm74, %v64, 0
  %v79 = vsel %vm74, %v65, 0
  %v82 = vsel %vm74, %v66, 0
  %v85 = vsel %vm74, %v67, 0
  %v88 = vsel %vm74, %v68, 0
  %v91 = vsel %vm74, %v69, 0
  %v94 = vsel %vm74, %v62, 0
  %96 = vmatprep.subr.bf16.mxu0 %v79
  %97 = vmatpush1.bf16.msra.mxu0 %v76
  %98 = vmatprep.subr.bf16.mxu0 0
  %99 = vmatpush1.bf16.msra.mxu0 0
  %100 = vmatprep.subr.bf16.mxu0 0
  %101 = vmatpush1.bf16.msra.mxu0 0
  %102 = vmatprep.subr.bf16.mxu0 0
  %103 = vmatpush1.bf16.msra.mxu0 0
  %104 = vmatprep.subr.bf16.mxu0 0
  %105 = vmatpush1.bf16.msra.mxu0 0
  %106 = vmatprep.subr.bf16.mxu0 0
  %107 = vmatpush1.bf16.msra.mxu0 0
  %108 = vmatprep.subr.bf16.mxu0 0
  %109 = vmatpush1.bf16.msra.mxu0 0
  %110 = vmatprep.subr.bf16.mxu0 0
  %111 = vmatpush1.bf16.msra.mxu0 0
  %112 = vmatprep.subr.bf16.mxu0 0
  %113 = vmatpush1.bf16.msra.mxu0 0
  %114 = vmatprep.subr.bf16.mxu0 0
  %115 = vmatpush1.bf16.msra.mxu0 0
  %116 = vmatprep.subr.bf16.mxu0 0
  %117 = vmatpush1.bf16.msra.mxu0 0
  %118 = vmatprep.subr.bf16.mxu0 0
  %119 = vmatpush1.bf16.msra.mxu0 0
  %120 = vmatprep.subr.bf16.mxu0 0
  %121 = vmatpush1.bf16.msra.mxu0 0
  %122 = vmatprep.subr.bf16.mxu0 0
  %123 = vmatpush1.bf16.msra.mxu0 0
  %124 = vmatprep.subr.bf16.mxu0 0
  %125 = vmatpush1.bf16.msra.mxu0 0
  %126 = vmatprep.subr.bf16.mxu0 0
  %127 = vmatpush1.bf16.msra.mxu0 0
  %128 = vmatprep.mubr.bf16.mxu0 0
  %129 = vmatmul.mubr.bf16.gmra.mrb[0].mxu0 %v72
  %v130 = vpop.f32.mrb[0].mxu0
  %v131 = vadd.f32 0.0, %v130
  %v132 = vpop.f32.mrb[0].mxu0
  %v133 = vadd.f32 0.0, %v132
  %v134 = vpop.f32.mrb[0].mxu0
  %v135 = vpop.f32.mrb[0].mxu0
  %136 = vdwg.mxu0
  %137 = vmatprep.subr.bf16.mxu0 %v85
  %138 = vmatpush1.bf16.msra.mxu0 %v82
  %139 = vmatprep.subr.bf16.mxu0 0
  %140 = vmatpush1.bf16.msra.mxu0 0
  %141 = vmatprep.subr.bf16.mxu0 0
  %142 = vmatpush1.bf16.msra.mxu0 0
  %143 = vmatprep.subr.bf16.mxu0 0
  %144 = vmatpush1.bf16.msra.mxu0 0
  %145 = vmatprep.subr.bf16.mxu0 0
  %146 = vmatpush1.bf16.msra.mxu0 0
  %147 = vmatprep.subr.bf16.mxu0 0
  %148 = vmatpush1.bf16.msra.mxu0 0
  %149 = vmatprep.subr.bf16.mxu0 0
  %150 = vmatpush1.bf16.msra.mxu0 0
  %151 = vmatprep.subr.bf16.mxu0 0
  %152 = vmatpush1.bf16.msra.mxu0 0
  %153 = vmatprep.subr.bf16.mxu0 0
  %154 = vmatpush1.bf16.msra.mxu0 0
  %155 = vmatprep.subr.bf16.mxu0 0
  %156 = vmatpush1.bf16.msra.mxu0 0
  %157 = vmatprep.subr.bf16.mxu0 0
  %158 = vmatpush1.bf16.msra.mxu0 0
  %159 = vmatprep.subr.bf16.mxu0 0
  %160 = vmatpush1.bf16.msra.mxu0 0
  %161 = vmatprep.subr.bf16.mxu0 0
  %162 = vmatpush1.bf16.msra.mxu0 0
  %163 = vmatprep.subr.bf16.mxu0 0
  %164 = vmatpush1.bf16.msra.mxu0 0
  %165 = vmatprep.subr.bf16.mxu0 0
  %166 = vmatpush1.bf16.msra.mxu0 0
  %167 = vmatprep.subr.bf16.mxu0 0
  %168 = vmatpush1.bf16.msra.mxu0 0
  %169 = vmatprep.mubr.bf16.mxu0 0
  %170 = vmatmul.mubr.bf16.gmra.mrb[0].mxu0 %v72
  %v171 = vpop.f32.mrb[0].mxu0
  %v172 = vadd.f32 0.0, %v171
  %v173 = vpop.f32.mrb[0].mxu0
  %v174 = vadd.f32 0.0, %v173
  %v175 = vpop.f32.mrb[0].mxu0
  %v176 = vpop.f32.mrb[0].mxu0
  %177 = vdwg.mxu0
  %178 = vmatprep.subr.bf16.mxu0 %v91
  %179 = vmatpush1.bf16.msra.mxu0 %v88
  %180 = vmatprep.subr.bf16.mxu0 0
  %181 = vmatpush1.bf16.msra.mxu0 0
  %182 = vmatprep.subr.bf16.mxu0 0
  %183 = vmatpush1.bf16.msra.mxu0 0
  %184 = vmatprep.subr.bf16.mxu0 0
  %185 = vmatpush1.bf16.msra.mxu0 0
  %186 = vmatprep.subr.bf16.mxu0 0
  %187 = vmatpush1.bf16.msra.mxu0 0
  %188 = vmatprep.subr.bf16.mxu0 0
  %189 = vmatpush1.bf16.msra.mxu0 0
  %190 = vmatprep.subr.bf16.mxu0 0
  %191 = vmatpush1.bf16.msra.mxu0 0
  %192 = vmatprep.subr.bf16.mxu0 0
  %193 = vmatpush1.bf16.msra.mxu0 0
  %194 = vmatprep.subr.bf16.mxu0 0
  %195 = vmatpush1.bf16.msra.mxu0 0
  %196 = vmatprep.subr.bf16.mxu0 0
  %197 = vmatpush1.bf16.msra.mxu0 0
  %198 = vmatprep.subr.bf16.mxu0 0
  %199 = vmatpush1.bf16.msra.mxu0 0
  %200 = vmatprep.subr.bf16.mxu0 0
  %201 = vmatpush1.bf16.msra.mxu0 0
  %202 = vmatprep.subr.bf16.mxu0 0
  %203 = vmatpush1.bf16.msra.mxu0 0
  %204 = vmatprep.subr.bf16.mxu0 0
  %205 = vmatpush1.bf16.msra.mxu0 0
  %206 = vmatprep.subr.bf16.mxu0 0
  %207 = vmatpush1.bf16.msra.mxu0 0
  %208 = vmatprep.subr.bf16.mxu0 0
  %209 = vmatpush1.bf16.msra.mxu0 0
  %210 = vmatprep.mubr.bf16.mxu0 0
  %211 = vmatmul.mubr.bf16.gmra.mrb[0].mxu0 %v72
  %v212 = vpop.f32.mrb[0].mxu0
  %v213 = vadd.f32 0.0, %v212
  %v214 = vpop.f32.mrb[0].mxu0
  %v215 = vadd.f32 0.0, %v214
  %v216 = vpop.f32.mrb[0].mxu0
  %v217 = vpop.f32.mrb[0].mxu0
  %218 = vdwg.mxu0
  %219 = vmatprep.subr.bf16.mxu0 0
  %220 = vmatpush1.bf16.msra.mxu0 %v94
  %221 = vmatprep.subr.bf16.mxu0 0
  %222 = vmatpush1.bf16.msra.mxu0 0
  %223 = vmatprep.subr.bf16.mxu0 0
  %224 = vmatpush1.bf16.msra.mxu0 0
  %225 = vmatprep.subr.bf16.mxu0 0
  %226 = vmatpush1.bf16.msra.mxu0 0
  %227 = vmatprep.subr.bf16.mxu0 0
  %228 = vmatpush1.bf16.msra.mxu0 0
  %229 = vmatprep.subr.bf16.mxu0 0
  %230 = vmatpush1.bf16.msra.mxu0 0
  %231 = vmatprep.subr.bf16.mxu0 0
  %232 = vmatpush1.bf16.msra.mxu0 0
  %233 = vmatprep.subr.bf16.mxu0 0
  %234 = vmatpush1.bf16.msra.mxu0 0
  %235 = vmatprep.subr.bf16.mxu0 0
  %236 = vmatpush1.bf16.msra.mxu0 0
  %237 = vmatprep.subr.bf16.mxu0 0
  %238 = vmatpush1.bf16.msra.mxu0 0
  %239 = vmatprep.subr.bf16.mxu0 0
  %240 = vmatpush1.bf16.msra.mxu0 0
  %241 = vmatprep.subr.bf16.mxu0 0
  %242 = vmatpush1.bf16.msra.mxu0 0
  %243 = vmatprep.subr.bf16.mxu0 0
  %244 = vmatpush1.bf16.msra.mxu0 0
  %245 = vmatprep.subr.bf16.mxu0 0
  %246 = vmatpush1.bf16.msra.mxu0 0
  %247 = vmatprep.subr.bf16.mxu0 0
  %248 = vmatpush1.bf16.msra.mxu0 0
  %249 = vmatprep.subr.bf16.mxu0 0
  %250 = vmatpush1.bf16.msra.mxu0 0
  %251 = vmatprep.mubr.bf16.mxu0 0
  %252 = vmatmul.mubr.bf16.gmra.mrb[0].mxu0 %v72
  %v253 = vpop.f32.mrb[0].mxu0
  %v254 = vadd.f32 0.0, %v253
  %v255 = vpop.f32.mrb[0].mxu0
  %v256 = vpop.f32.mrb[0].mxu0
  %v257 = vpop.f32.mrb[0].mxu0
  %258 = vdwg.mxu0
  %v260 = vsel %vm70, %v28, 0
  %v263 = vsel %vm74, %v42, 0
  %v266 = vsel %vm74, %v43, 0
  %v269 = vsel %vm74, %v44, 0
  %v272 = vsel %vm74, %v45, 0
  %v275 = vsel %vm74, %v46, 0
  %v278 = vsel %vm74, %v47, 0
  %v281 = vsel %vm74, %v48, 0
  %283 = vmatprep.subr.bf16.mxu0 %v266
  %284 = vmatpush1.bf16.msra.mxu0 %v263
  %285 = vmatprep.subr.bf16.mxu0 0
  %286 = vmatpush1.bf16.msra.mxu0 0
  %287 = vmatprep.subr.bf16.mxu0 0
  %288 = vmatpush1.bf16.msra.mxu0 0
  %289 = vmatprep.subr.bf16.mxu0 0
  %290 = vmatpush1.bf16.msra.mxu0 0
  %291 = vmatprep.subr.bf16.mxu0 0
  %292 = vmatpush1.bf16.msra.mxu0 0
  %293 = vmatprep.subr.bf16.mxu0 0
  %294 = vmatpush1.bf16.msra.mxu0 0
  %295 = vmatprep.subr.bf16.mxu0 0
  %296 = vmatpush1.bf16.msra.mxu0 0
  %297 = vmatprep.subr.bf16.mxu0 0
  %298 = vmatpush1.bf16.msra.mxu0 0
  %299 = vmatprep.subr.bf16.mxu0 0
  %300 = vmatpush1.bf16.msra.mxu0 0
  %301 = vmatprep.subr.bf16.mxu0 0
  %302 = vmatpush1.bf16.msra.mxu0 0
  %303 = vmatprep.subr.bf16.mxu0 0
  %304 = vmatpush1.bf16.msra.mxu0 0
  %305 = vmatprep.subr.bf16.mxu0 0
  %306 = vmatpush1.bf16.msra.mxu0 0
  %307 = vmatprep.subr.bf16.mxu0 0
  %308 = vmatpush1.bf16.msra.mxu0 0
  %309 = vmatprep.subr.bf16.mxu0 0
  %310 = vmatpush1.bf16.msra.mxu0 0
  %311 = vmatprep.subr.bf16.mxu0 0
  %312 = vmatpush1.bf16.msra.mxu0 0
  %313 = vmatprep.subr.bf16.mxu0 0
  %314 = vmatpush1.bf16.msra.mxu0 0
  %315 = vmatprep.mubr.bf16.mxu0 0
  %316 = vmatmul.mubr.bf16.gmra.mrb[0].mxu0 %v260
  %v317 = vpop.f32.mrb[0].mxu0
  %v318 = vadd.f32 %v131, %v317
  %v319 = vpop.f32.mrb[0].mxu0
  %v320 = vadd.f32 %v133, %v319
  %v321 = vpop.f32.mrb[0].mxu0
  %v322 = vpop.f32.mrb[0].mxu0
  %323 = vdwg.mxu0
  %324 = vmatprep.subr.bf16.mxu0 %v272
  %325 = vmatpush1.bf16.msra.mxu0 %v269
  %326 = vmatprep.subr.bf16.mxu0 0
  %327 = vmatpush1.bf16.msra.mxu0 0
  %328 = vmatprep.subr.bf16.mxu0 0
  %329 = vmatpush1.bf16.msra.mxu0 0
  %330 = vmatprep.subr.bf16.mxu0 0
  %331 = vmatpush1.bf16.msra.mxu0 0
  %332 = vmatprep.subr.bf16.mxu0 0
  %333 = vmatpush1.bf16.msra.mxu0 0
  %334 = vmatprep.subr.bf16.mxu0 0
  %335 = vmatpush1.bf16.msra.mxu0 0
  %336 = vmatprep.subr.bf16.mxu0 0
  %337 = vmatpush1.bf16.msra.mxu0 0
  %338 = vmatprep.subr.bf16.mxu0 0
  %339 = vmatpush1.bf16.msra.mxu0 0
  %340 = vmatprep.subr.bf16.mxu0 0
  %341 = vmatpush1.bf16.msra.mxu0 0
  %342 = vmatprep.subr.bf16.mxu0 0
  %343 = vmatpush1.bf16.msra.mxu0 0
  %344 = vmatprep.subr.bf16.mxu0 0
  %345 = vmatpush1.bf16.msra.mxu0 0
  %346 = vmatprep.subr.bf16.mxu0 0
  %347 = vmatpush1.bf16.msra.mxu0 0
  %348 = vmatprep.subr.bf16.mxu0 0
  %349 = vmatpush1.bf16.msra.mxu0 0
  %350 = vmatprep.subr.bf16.mxu0 0
  %351 = vmatpush1.bf16.msra.mxu0 0
  %352 = vmatprep.subr.bf16.mxu0 0
  %353 = vmatpush1.bf16.msra.mxu0 0
  %354 = vmatprep.subr.bf16.mxu0 0
  %355 = vmatpush1.bf16.msra.mxu0 0
  %356 = vmatprep.mubr.bf16.mxu0 0
  %357 = vmatmul.mubr.bf16.gmra.mrb[0].mxu0 %v260
  %v358 = vpop.f32.mrb[0].mxu0
  %v359 = vadd.f32 %v172, %v358
  %v360 = vpop.f32.mrb[0].mxu0
  %v361 = vadd.f32 %v174, %v360
  %v362 = vpop.f32.mrb[0].mxu0
  %v363 = vpop.f32.mrb[0].mxu0
  %364 = vdwg.mxu0
  %365 = vmatprep.subr.bf16.mxu0 %v278
  %366 = vmatpush1.bf16.msra.mxu0 %v275
  %367 = vmatprep.subr.bf16.mxu0 0
  %368 = vmatpush1.bf16.msra.mxu0 0
  %369 = vmatprep.subr.bf16.mxu0 0
  %370 = vmatpush1.bf16.msra.mxu0 0
  %371 = vmatprep.subr.bf16.mxu0 0
  %372 = vmatpush1.bf16.msra.mxu0 0
  %373 = vmatprep.subr.bf16.mxu0 0
  %374 = vmatpush1.bf16.msra.mxu0 0
  %375 = vmatprep.subr.bf16.mxu0 0
  %376 = vmatpush1.bf16.msra.mxu0 0
  %377 = vmatprep.subr.bf16.mxu0 0
  %378 = vmatpush1.bf16.msra.mxu0 0
  %379 = vmatprep.subr.bf16.mxu0 0
  %380 = vmatpush1.bf16.msra.mxu0 0
  %381 = vmatprep.subr.bf16.mxu0 0
  %382 = vmatpush1.bf16.msra.mxu0 0
  %383 = vmatprep.subr.bf16.mxu0 0
  %384 = vmatpush1.bf16.msra.mxu0 0
  %385 = vmatprep.subr.bf16.mxu0 0
  %386 = vmatpush1.bf16.msra.mxu0 0
  %387 = vmatprep.subr.bf16.mxu0 0
  %388 = vmatpush1.bf16.msra.mxu0 0
  %389 = vmatprep.subr.bf16.mxu0 0
  %390 = vmatpush1.bf16.msra.mxu0 0
  %391 = vmatprep.subr.bf16.mxu0 0
  %392 = vmatpush1.bf16.msra.mxu0 0
  %393 = vmatprep.subr.bf16.mxu0 0
  %394 = vmatpush1.bf16.msra.mxu0 0
  %395 = vmatprep.subr.bf16.mxu0 0
  %396 = vmatpush1.bf16.msra.mxu0 0
  %397 = vmatprep.mubr.bf16.mxu0 0
  %398 = vmatmul.mubr.bf16.gmra.mrb[0].mxu0 %v260
  %v399 = vpop.f32.mrb[0].mxu0
  %v400 = vadd.f32 %v213, %v399
  %v401 = vpop.f32.mrb[0].mxu0
  %v402 = vadd.f32 %v215, %v401
  %v403 = vpop.f32.mrb[0].mxu0
  %v404 = vpop.f32.mrb[0].mxu0
  %405 = vdwg.mxu0
  %406 = vmatprep.subr.bf16.mxu0 0
  %407 = vmatpush1.bf16.msra.mxu0 %v281
  %408 = vmatprep.subr.bf16.mxu0 0
  %409 = vmatpush1.bf16.msra.mxu0 0
  %410 = vmatprep.subr.bf16.mxu0 0
  %411 = vmatpush1.bf16.msra.mxu0 0
  %412 = vmatprep.subr.bf16.mxu0 0
  %413 = vmatpush1.bf16.msra.mxu0 0
  %414 = vmatprep.subr.bf16.mxu0 0
  %415 = vmatpush1.bf16.msra.mxu0 0
  %416 = vmatprep.subr.bf16.mxu0 0
  %417 = vmatpush1.bf16.msra.mxu0 0
  %418 = vmatprep.subr.bf16.mxu0 0
  %419 = vmatpush1.bf16.msra.mxu0 0
  %420 = vmatprep.subr.bf16.mxu0 0
  %421 = vmatpush1.bf16.msra.mxu0 0
  %422 = vmatprep.subr.bf16.mxu0 0
  %423 = vmatpush1.bf16.msra.mxu0 0
  %424 = vmatprep.subr.bf16.mxu0 0
  %425 = vmatpush1.bf16.msra.mxu0 0
  %426 = vmatprep.subr.bf16.mxu0 0
  %427 = vmatpush1.bf16.msra.mxu0 0
  %428 = vmatprep.subr.bf16.mxu0 0
  %429 = vmatpush1.bf16.msra.mxu0 0
  %430 = vmatprep.subr.bf16.mxu0 0
  %431 = vmatpush1.bf16.msra.mxu0 0
  %432 = vmatprep.subr.bf16.mxu0 0
  %433 = vmatpush1.bf16.msra.mxu0 0
  %434 = vmatprep.subr.bf16.mxu0 0
  %435 = vmatpush1.bf16.msra.mxu0 0
  %436 = vmatprep.subr.bf16.mxu0 0
  %437 = vmatpush1.bf16.msra.mxu0 0
  %438 = vmatprep.mubr.bf16.mxu0 0
  %439 = vmatmul.mubr.bf16.gmra.mrb[0].mxu0 %v260
  %v440 = vpop.f32.mrb[0].mxu0
  %v441 = vadd.f32 %v254, %v440
  %v442 = vpop.f32.mrb[0].mxu0
  %v443 = vpop.f32.mrb[0].mxu0
  %v444 = vpop.f32.mrb[0].mxu0
  %445 = vdwg.mxu0
  %s446 = scalar_lea.vmem %s1, 8
  %v447 = vld [vmem:[%s446] sm:$0xf]
  %448 = vrot.lane.b32.xlu0 %v42, 126
  %v449 = vpop.permute.xlu0 %448
  %450 = vrot.lane.b32.xlu0 %v43, 126
  %v451 = vpop.permute.xlu0 %450
  %452 = vrot.lane.b32.xlu0 %v44, 126
  %v453 = vpop.permute.xlu0 %452
  %454 = vrot.lane.b32.xlu0 %v45, 126
  %v455 = vpop.permute.xlu0 %454
  %456 = vrot.lane.b32.xlu0 %v46, 126
  %v457 = vpop.permute.xlu0 %456
  %458 = vrot.lane.b32.xlu0 %v47, 126
  %v459 = vpop.permute.xlu0 %458
  %460 = vrot.lane.b32.xlu0 %v48, 126
  %v461 = vpop.permute.xlu0 %460
  %vm462 = vcmask 1031168
  %v463 = vsel %vm462, %v449, %v451
  %v464 = vsel %vm462, %v451, %v453
  %v465 = vsel %vm462, %v453, %v455
  %v466 = vsel %vm462, %v455, %v457
  %v467 = vsel %vm462, %v457, %v459
  %v468 = vsel %vm462, %v459, %v461
  %v470 = vsel %vm70, %v447, 0
  %v473 = vsel %vm74, %v463, 0
  %v476 = vsel %vm74, %v464, 0
  %v479 = vsel %vm74, %v465, 0
  %v482 = vsel %vm74, %v466, 0
  %v485 = vsel %vm74, %v467, 0
  %v488 = vsel %vm74, %v468, 0
  %v491 = vsel %vm74, %v461, 0
  %493 = vmatprep.subr.bf16.mxu0 %v476
  %494 = vmatpush1.bf16.msra.mxu0 %v473
  %495 = vmatprep.subr.bf16.mxu0 0
  %496 = vmatpush1.bf16.msra.mxu0 0
  %497 = vmatprep.subr.bf16.mxu0 0
  %498 = vmatpush1.bf16.msra.mxu0 0
  %499 = vmatprep.subr.bf16.mxu0 0
  %500 = vmatpush1.bf16.msra.mxu0 0
  %501 = vmatprep.subr.bf16.mxu0 0
  %502 = vmatpush1.bf16.msra.mxu0 0
  %503 = vmatprep.subr.bf16.mxu0 0
  %504 = vmatpush1.bf16.msra.mxu0 0
  %505 = vmatprep.subr.bf16.mxu0 0
  %506 = vmatpush1.bf16.msra.mxu0 0
  %507 = vmatprep.subr.bf16.mxu0 0
  %508 = vmatpush1.bf16.msra.mxu0 0
  %509 = vmatprep.subr.bf16.mxu0 0
  %510 = vmatpush1.bf16.msra.mxu0 0
  %511 = vmatprep.subr.bf16.mxu0 0
  %512 = vmatpush1.bf16.msra.mxu0 0
  %513 = vmatprep.subr.bf16.mxu0 0
  %514 = vmatpush1.bf16.msra.mxu0 0
  %515 = vmatprep.subr.bf16.mxu0 0
  %516 = vmatpush1.bf16.msra.mxu0 0
  %517 = vmatprep.subr.bf16.mxu0 0
  %518 = vmatpush1.bf16.msra.mxu0 0
  %519 = vmatprep.subr.bf16.mxu0 0
  %520 = vmatpush1.bf16.msra.mxu0 0
  %521 = vmatprep.subr.bf16.mxu0 0
  %522 = vmatpush1.bf16.msra.mxu0 0
  %523 = vmatprep.subr.bf16.mxu0 0
  %524 = vmatpush1.bf16.msra.mxu0 0
  %525 = vmatprep.mubr.bf16.mxu0 0
  %526 = vmatmul.mubr.bf16.gmra.mrb[0].mxu0 %v470
  %v527 = vpop.f32.mrb[0].mxu0
  %v528 = vadd.f32 0.0, %v527
  %v529 = vpop.f32.mrb[0].mxu0
  %v530 = vadd.f32 0.0, %v529
  %v531 = vpop.f32.mrb[0].mxu0
  %v532 = vpop.f32.mrb[0].mxu0
  %533 = vdwg.mxu0
  %534 = vmatprep.subr.bf16.mxu0 %v482
  %535 = vmatpush1.bf16.msra.mxu0 %v479
  %536 = vmatprep.subr.bf16.mxu0 0
  %537 = vmatpush1.bf16.msra.mxu0 0
  %538 = vmatprep.subr.bf16.mxu0 0
  %539 = vmatpush1.bf16.msra.mxu0 0
  %540 = vmatprep.subr.bf16.mxu0 0
  %541 = vmatpush1.bf16.msra.mxu0 0
  %542 = vmatprep.subr.bf16.mxu0 0
  %543 = vmatpush1.bf16.msra.mxu0 0
  %544 = vmatprep.subr.bf16.mxu0 0
  %545 = vmatpush1.bf16.msra.mxu0 0
  %546 = vmatprep.subr.bf16.mxu0 0
  %547 = vmatpush1.bf16.msra.mxu0 0
  %548 = vmatprep.subr.bf16.mxu0 0
  %549 = vmatpush1.bf16.msra.mxu0 0
  %550 = vmatprep.subr.bf16.mxu0 0
  %551 = vmatpush1.bf16.msra.mxu0 0
  %552 = vmatprep.subr.bf16.mxu0 0
  %553 = vmatpush1.bf16.msra.mxu0 0
  %554 = vmatprep.subr.bf16.mxu0 0
  %555 = vmatpush1.bf16.msra.mxu0 0
  %556 = vmatprep.subr.bf16.mxu0 0
  %557 = vmatpush1.bf16.msra.mxu0 0
  %558 = vmatprep.subr.bf16.mxu0 0
  %559 = vmatpush1.bf16.msra.mxu0 0
  %560 = vmatprep.subr.bf16.mxu0 0
  %561 = vmatpush1.bf16.msra.mxu0 0
  %562 = vmatprep.subr.bf16.mxu0 0
  %563 = vmatpush1.bf16.msra.mxu0 0
  %564 = vmatprep.subr.bf16.mxu0 0
  %565 = vmatpush1.bf16.msra.mxu0 0
  %566 = vmatprep.mubr.bf16.mxu0 0
  %567 = vmatmul.mubr.bf16.gmra.mrb[0].mxu0 %v470
  %v568 = vpop.f32.mrb[0].mxu0
  %v569 = vadd.f32 0.0, %v568
  %v570 = vpop.f32.mrb[0].mxu0
  %v571 = vadd.f32 0.0, %v570
  %v572 = vpop.f32.mrb[0].mxu0
  %v573 = vpop.f32.mrb[0].mxu0
  %574 = vdwg.mxu0
  %575 = vmatprep.subr.bf16.mxu0 %v488
  %576 = vmatpush1.bf16.msra.mxu0 %v485
  %577 = vmatprep.subr.bf16.mxu0 0
  %578 = vmatpush1.bf16.msra.mxu0 0
  %579 = vmatprep.subr.bf16.mxu0 0
  %580 = vmatpush1.bf16.msra.mxu0 0
  %581 = vmatprep.subr.bf16.mxu0 0
  %582 = vmatpush1.bf16.msra.mxu0 0
  %583 = vmatprep.subr.bf16.mxu0 0
  %584 = vmatpush1.bf16.msra.mxu0 0
  %585 = vmatprep.subr.bf16.mxu0 0
  %586 = vmatpush1.bf16.msra.mxu0 0
  %587 = vmatprep.subr.bf16.mxu0 0
  %588 = vmatpush1.bf16.msra.mxu0 0
  %589 = vmatprep.subr.bf16.mxu0 0
  %590 = vmatpush1.bf16.msra.mxu0 0
  %591 = vmatprep.subr.bf16.mxu0 0
  %592 = vmatpush1.bf16.msra.mxu0 0
  %593 = vmatprep.subr.bf16.mxu0 0
  %594 = vmatpush1.bf16.msra.mxu0 0
  %595 = vmatprep.subr.bf16.mxu0 0
  %596 = vmatpush1.bf16.msra.mxu0 0
  %597 = vmatprep.subr.bf16.mxu0 0
  %598 = vmatpush1.bf16.msra.mxu0 0
  %599 = vmatprep.subr.bf16.mxu0 0
  %600 = vmatpush1.bf16.msra.mxu0 0
  %601 = vmatprep.subr.bf16.mxu0 0
  %602 = vmatpush1.bf16.msra.mxu0 0
  %603 = vmatprep.subr.bf16.mxu0 0
  %604 = vmatpush1.bf16.msra.mxu0 0
  %605 = vmatprep.subr.bf16.mxu0 0
  %606 = vmatpush1.bf16.msra.mxu0 0
  %607 = vmatprep.mubr.bf16.mxu0 0
  %608 = vmatmul.mubr.bf16.gmra.mrb[0].mxu0 %v470
  %v609 = vpop.f32.mrb[0].mxu0
  %v610 = vadd.f32 0.0, %v609
  %v611 = vpop.f32.mrb[0].mxu0
  %v612 = vadd.f32 0.0, %v611
  %v613 = vpop.f32.mrb[0].mxu0
  %v614 = vpop.f32.mrb[0].mxu0
  %615 = vdwg.mxu0
  %616 = vmatprep.subr.bf16.mxu0 0
  %617 = vmatpush1.bf16.msra.mxu0 %v491
  %618 = vmatprep.subr.bf16.mxu0 0
  %619 = vmatpush1.bf16.msra.mxu0 0
  %620 = vmatprep.subr.bf16.mxu0 0
  %621 = vmatpush1.bf16.msra.mxu0 0
  %622 = vmatprep.subr.bf16.mxu0 0
  %623 = vmatpush1.bf16.msra.mxu0 0
  %624 = vmatprep.subr.bf16.mxu0 0
  %625 = vmatpush1.bf16.msra.mxu0 0
  %626 = vmatprep.subr.bf16.mxu0 0
  %627 = vmatpush1.bf16.msra.mxu0 0
  %628 = vmatprep.subr.bf16.mxu0 0
  %629 = vmatpush1.bf16.msra.mxu0 0
  %630 = vmatprep.subr.bf16.mxu0 0
  %631 = vmatpush1.bf16.msra.mxu0 0
  %632 = vmatprep.subr.bf16.mxu0 0
  %633 = vmatpush1.bf16.msra.mxu0 0
  %634 = vmatprep.subr.bf16.mxu0 0
  %635 = vmatpush1.bf16.msra.mxu0 0
  %636 = vmatprep.subr.bf16.mxu0 0
  %637 = vmatpush1.bf16.msra.mxu0 0
  %638 = vmatprep.subr.bf16.mxu0 0
  %639 = vmatpush1.bf16.msra.mxu0 0
  %640 = vmatprep.subr.bf16.mxu0 0
  %641 = vmatpush1.bf16.msra.mxu0 0
  %642 = vmatprep.subr.bf16.mxu0 0
  %643 = vmatpush1.bf16.msra.mxu0 0
  %644 = vmatprep.subr.bf16.mxu0 0
  %645 = vmatpush1.bf16.msra.mxu0 0
  %646 = vmatprep.subr.bf16.mxu0 0
  %647 = vmatpush1.bf16.msra.mxu0 0
  %648 = vmatprep.mubr.bf16.mxu0 0
  %649 = vmatmul.mubr.bf16.gmra.mrb[0].mxu0 %v470
  %v650 = vpop.f32.mrb[0].mxu0
  %v651 = vadd.f32 0.0, %v650
  %v652 = vpop.f32.mrb[0].mxu0
  %v653 = vpop.f32.mrb[0].mxu0
  %v654 = vpop.f32.mrb[0].mxu0
  %655 = vdwg.mxu0
  %v656 = vadd.f32 %v318, %v528
  %v657 = vadd.f32 %v320, %v530
  %v658 = vadd.f32 %v359, %v569
  %v659 = vadd.f32 %v361, %v571
  %v660 = vadd.f32 %v400, %v610
  %v661 = vadd.f32 %v402, %v612
  %v662 = vadd.f32 %v441, %v651
  %s663 = scalar_lea.vmem %s1, 12
  %v664 = vld [vmem:[%s663] sm:$0xf]
  %665 = vrot.lane.b32.xlu0 %v42, 125
  %v666 = vpop.permute.xlu0 %665
  %667 = vrot.lane.b32.xlu0 %v43, 125
  %v668 = vpop.permute.xlu0 %667
  %669 = vrot.lane.b32.xlu0 %v44, 125
  %v670 = vpop.permute.xlu0 %669
  %671 = vrot.lane.b32.xlu0 %v45, 125
  %v672 = vpop.permute.xlu0 %671
  %673 = vrot.lane.b32.xlu0 %v46, 125
  %v674 = vpop.permute.xlu0 %673
  %675 = vrot.lane.b32.xlu0 %v47, 125
  %v676 = vpop.permute.xlu0 %675
  %677 = vrot.lane.b32.xlu0 %v48, 125
  %v678 = vpop.permute.xlu0 %677
  %vm679 = vcmask 1022976
  %v680 = vsel %vm679, %v666, %v668
  %v681 = vsel %vm679, %v668, %v670
  %v682 = vsel %vm679, %v670, %v672
  %v683 = vsel %vm679, %v672, %v674
  %v684 = vsel %vm679, %v674, %v676
  %v685 = vsel %vm679, %v676, %v678
  %v687 = vsel %vm70, %v664, 0
  %v690 = vsel %vm74, %v680, 0
  %v693 = vsel %vm74, %v681, 0
  %v696 = vsel %vm74, %v682, 0
  %v699 = vsel %vm74, %v683, 0
  %v702 = vsel %vm74, %v684, 0
  %v705 = vsel %vm74, %v685, 0
  %v708 = vsel %vm74, %v678, 0
  %710 = vmatprep.subr.bf16.mxu0 %v693
  %711 = vmatpush1.bf16.msra.mxu0 %v690
  %712 = vmatprep.subr.bf16.mxu0 0
  %713 = vmatpush1.bf16.msra.mxu0 0
  %714 = vmatprep.subr.bf16.mxu0 0
  %715 = vmatpush1.bf16.msra.mxu0 0
  %716 = vmatprep.subr.bf16.mxu0 0
  %717 = vmatpush1.bf16.msra.mxu0 0
  %718 = vmatprep.subr.bf16.mxu0 0
  %719 = vmatpush1.bf16.msra.mxu0 0
  %720 = vmatprep.subr.bf16.mxu0 0
  %721 = vmatpush1.bf16.msra.mxu0 0
  %722 = vmatprep.subr.bf16.mxu0 0
  %723 = vmatpush1.bf16.msra.mxu0 0
  %724 = vmatprep.subr.bf16.mxu0 0
  %725 = vmatpush1.bf16.msra.mxu0 0
  %726 = vmatprep.subr.bf16.mxu0 0
  %727 = vmatpush1.bf16.msra.mxu0 0
  %728 = vmatprep.subr.bf16.mxu0 0
  %729 = vmatpush1.bf16.msra.mxu0 0
  %730 = vmatprep.subr.bf16.mxu0 0
  %731 = vmatpush1.bf16.msra.mxu0 0
  %732 = vmatprep.subr.bf16.mxu0 0
  %733 = vmatpush1.bf16.msra.mxu0 0
  %734 = vmatprep.subr.bf16.mxu0 0
  %735 = vmatpush1.bf16.msra.mxu0 0
  %736 = vmatprep.subr.bf16.mxu0 0
  %737 = vmatpush1.bf16.msra.mxu0 0
  %738 = vmatprep.subr.bf16.mxu0 0
  %739 = vmatpush1.bf16.msra.mxu0 0
  %740 = vmatprep.subr.bf16.mxu0 0
  %741 = vmatpush1.bf16.msra.mxu0 0
  %742 = vmatprep.mubr.bf16.mxu0 0
  %743 = vmatmul.mubr.bf16.gmra.mrb[0].mxu0 %v687
  %v744 = vpop.f32.mrb[0].mxu0
  %v745 = vadd.f32 0.0, %v744
  %v746 = vpop.f32.mrb[0].mxu0
  %v747 = vadd.f32 0.0, %v746
  %v748 = vpop.f32.mrb[0].mxu0
  %v749 = vpop.f32.mrb[0].mxu0
  %750 = vdwg.mxu0
  %751 = vmatprep.subr.bf16.mxu0 %v699
  %752 = vmatpush1.bf16.msra.mxu0 %v696
  %753 = vmatprep.subr.bf16.mxu0 0
  %754 = vmatpush1.bf16.msra.mxu0 0
  %755 = vmatprep.subr.bf16.mxu0 0
  %756 = vmatpush1.bf16.msra.mxu0 0
  %757 = vmatprep.subr.bf16.mxu0 0
  %758 = vmatpush1.bf16.msra.mxu0 0
  %759 = vmatprep.subr.bf16.mxu0 0
  %760 = vmatpush1.bf16.msra.mxu0 0
  %761 = vmatprep.subr.bf16.mxu0 0
  %762 = vmatpush1.bf16.msra.mxu0 0
  %763 = vmatprep.subr.bf16.mxu0 0
  %764 = vmatpush1.bf16.msra.mxu0 0
  %765 = vmatprep.subr.bf16.mxu0 0
  %766 = vmatpush1.bf16.msra.mxu0 0
  %767 = vmatprep.subr.bf16.mxu0 0
  %768 = vmatpush1.bf16.msra.mxu0 0
  %769 = vmatprep.subr.bf16.mxu0 0
  %770 = vmatpush1.bf16.msra.mxu0 0
  %771 = vmatprep.subr.bf16.mxu0 0
  %772 = vmatpush1.bf16.msra.mxu0 0
  %773 = vmatprep.subr.bf16.mxu0 0
  %774 = vmatpush1.bf16.msra.mxu0 0
  %775 = vmatprep.subr.bf16.mxu0 0
  %776 = vmatpush1.bf16.msra.mxu0 0
  %777 = vmatprep.subr.bf16.mxu0 0
  %778 = vmatpush1.bf16.msra.mxu0 0
  %779 = vmatprep.subr.bf16.mxu0 0
  %780 = vmatpush1.bf16.msra.mxu0 0
  %781 = vmatprep.subr.bf16.mxu0 0
  %782 = vmatpush1.bf16.msra.mxu0 0
  %783 = vmatprep.mubr.bf16.mxu0 0
  %784 = vmatmul.mubr.bf16.gmra.mrb[0].mxu0 %v687
  %v785 = vpop.f32.mrb[0].mxu0
  %v786 = vadd.f32 0.0, %v785
  %v787 = vpop.f32.mrb[0].mxu0
  %v788 = vadd.f32 0.0, %v787
  %v789 = vpop.f32.mrb[0].mxu0
  %v790 = vpop.f32.mrb[0].mxu0
  %791 = vdwg.mxu0
  %792 = vmatprep.subr.bf16.mxu0 %v705
  %793 = vmatpush1.bf16.msra.mxu0 %v702
  %794 = vmatprep.subr.bf16.mxu0 0
  %795 = vmatpush1.bf16.msra.mxu0 0
  %796 = vmatprep.subr.bf16.mxu0 0
  %797 = vmatpush1.bf16.msra.mxu0 0
  %798 = vmatprep.subr.bf16.mxu0 0
  %799 = vmatpush1.bf16.msra.mxu0 0
  %800 = vmatprep.subr.bf16.mxu0 0
  %801 = vmatpush1.bf16.msra.mxu0 0
  %802 = vmatprep.subr.bf16.mxu0 0
  %803 = vmatpush1.bf16.msra.mxu0 0
  %804 = vmatprep.subr.bf16.mxu0 0
  %805 = vmatpush1.bf16.msra.mxu0 0
  %806 = vmatprep.subr.bf16.mxu0 0
  %807 = vmatpush1.bf16.msra.mxu0 0
  %808 = vmatprep.subr.bf16.mxu0 0
  %809 = vmatpush1.bf16.msra.mxu0 0
  %810 = vmatprep.subr.bf16.mxu0 0
  %811 = vmatpush1.bf16.msra.mxu0 0
  %812 = vmatprep.subr.bf16.mxu0 0
  %813 = vmatpush1.bf16.msra.mxu0 0
  %814 = vmatprep.subr.bf16.mxu0 0
  %815 = vmatpush1.bf16.msra.mxu0 0
  %816 = vmatprep.subr.bf16.mxu0 0
  %817 = vmatpush1.bf16.msra.mxu0 0
  %818 = vmatprep.subr.bf16.mxu0 0
  %819 = vmatpush1.bf16.msra.mxu0 0
  %820 = vmatprep.subr.bf16.mxu0 0
  %821 = vmatpush1.bf16.msra.mxu0 0
  %822 = vmatprep.subr.bf16.mxu0 0
  %823 = vmatpush1.bf16.msra.mxu0 0
  %824 = vmatprep.mubr.bf16.mxu0 0
  %825 = vmatmul.mubr.bf16.gmra.mrb[0].mxu0 %v687
  %v826 = vpop.f32.mrb[0].mxu0
  %v827 = vadd.f32 0.0, %v826
  %v828 = vpop.f32.mrb[0].mxu0
  %v829 = vadd.f32 0.0, %v828
  %v830 = vpop.f32.mrb[0].mxu0
  %v831 = vpop.f32.mrb[0].mxu0
  %832 = vdwg.mxu0
  %833 = vmatprep.subr.bf16.mxu0 0
  %834 = vmatpush1.bf16.msra.mxu0 %v708
  %835 = vmatprep.subr.bf16.mxu0 0
  %836 = vmatpush1.bf16.msra.mxu0 0
  %837 = vmatprep.subr.bf16.mxu0 0
  %838 = vmatpush1.bf16.msra.mxu0 0
  %839 = vmatprep.subr.bf16.mxu0 0
  %840 = vmatpush1.bf16.msra.mxu0 0
  %841 = vmatprep.subr.bf16.mxu0 0
  %842 = vmatpush1.bf16.msra.mxu0 0
  %843 = vmatprep.subr.bf16.mxu0 0
  %844 = vmatpush1.bf16.msra.mxu0 0
  %845 = vmatprep.subr.bf16.mxu0 0
  %846 = vmatpush1.bf16.msra.mxu0 0
  %847 = vmatprep.subr.bf16.mxu0 0
  %848 = vmatpush1.bf16.msra.mxu0 0
  %849 = vmatprep.subr.bf16.mxu0 0
  %850 = vmatpush1.bf16.msra.mxu0 0
  %851 = vmatprep.subr.bf16.mxu0 0
  %852 = vmatpush1.bf16.msra.mxu0 0
  %853 = vmatprep.subr.bf16.mxu0 0
  %854 = vmatpush1.bf16.msra.mxu0 0
  %855 = vmatprep.subr.bf16.mxu0 0
  %856 = vmatpush1.bf16.msra.mxu0 0
  %857 = vmatprep.subr.bf16.mxu0 0
  %858 = vmatpush1.bf16.msra.mxu0 0
  %859 = vmatprep.subr.bf16.mxu0 0
  %860 = vmatpush1.bf16.msra.mxu0 0
  %861 = vmatprep.subr.bf16.mxu0 0
  %862 = vmatpush1.bf16.msra.mxu0 0
  %863 = vmatprep.subr.bf16.mxu0 0
  %864 = vmatpush1.bf16.msra.mxu0 0
  %865 = vmatprep.mubr.bf16.mxu0 0
  %866 = vmatmul.mubr.bf16.gmra.mrb[0].mxu0 %v687
  %v867 = vpop.f32.mrb[0].mxu0
  %v868 = vadd.f32 0.0, %v867
  %v869 = vpop.f32.mrb[0].mxu0
  %v870 = vpop.f32.mrb[0].mxu0
  %v871 = vpop.f32.mrb[0].mxu0
  %872 = vdwg.mxu0
  %v873 = vadd.f32 %v656, %v745
  %v874 = vadd.f32 %v657, %v747
  %v875 = vadd.f32 %v658, %v786
  %v876 = vadd.f32 %v659, %v788
  %v877 = vadd.f32 %v660, %v827
  %v878 = vadd.f32 %v661, %v829
  %v879 = vadd.f32 %v662, %v868
  %s880 = scalar_lea.vmem %s1, 16
  %v881 = vld [vmem:[%s880] sm:$0xf]
  %882 = vrot.lane.b32.xlu0 %v42, 124
  %v883 = vpop.permute.xlu0 %882
  %884 = vrot.lane.b32.xlu0 %v43, 124
  %v885 = vpop.permute.xlu0 %884
  %886 = vrot.lane.b32.xlu0 %v44, 124
  %v887 = vpop.permute.xlu0 %886
  %888 = vrot.lane.b32.xlu0 %v45, 124
  %v889 = vpop.permute.xlu0 %888
  %890 = vrot.lane.b32.xlu0 %v46, 124
  %v891 = vpop.permute.xlu0 %890
  %892 = vrot.lane.b32.xlu0 %v47, 124
  %v893 = vpop.permute.xlu0 %892
  %894 = vrot.lane.b32.xlu0 %v48, 124
  %v895 = vpop.permute.xlu0 %894
  %vm896 = vcmask 1014784
  %v897 = vsel %vm896, %v883, %v885
  %v898 = vsel %vm896, %v885, %v887
  %v899 = vsel %vm896, %v887, %v889
  %v900 = vsel %vm896, %v889, %v891
  %v901 = vsel %vm896, %v891, %v893
  %v902 = vsel %vm896, %v893, %v895
  %v904 = vsel %vm70, %v881, 0
  %v907 = vsel %vm74, %v897, 0
  %v910 = vsel %vm74, %v898, 0
  %v913 = vsel %vm74, %v899, 0
  %v916 = vsel %vm74, %v900, 0
  %v919 = vsel %vm74, %v901, 0
  %v922 = vsel %vm74, %v902, 0
  %v925 = vsel %vm74, %v895, 0
  %927 = vmatprep.subr.bf16.mxu0 %v910
  %928 = vmatpush1.bf16.msra.mxu0 %v907
  %929 = vmatprep.subr.bf16.mxu0 0
  %930 = vmatpush1.bf16.msra.mxu0 0
  %931 = vmatprep.subr.bf16.mxu0 0
  %932 = vmatpush1.bf16.msra.mxu0 0
  %933 = vmatprep.subr.bf16.mxu0 0
  %934 = vmatpush1.bf16.msra.mxu0 0
  %935 = vmatprep.subr.bf16.mxu0 0
  %936 = vmatpush1.bf16.msra.mxu0 0
  %937 = vmatprep.subr.bf16.mxu0 0
  %938 = vmatpush1.bf16.msra.mxu0 0
  %939 = vmatprep.subr.bf16.mxu0 0
  %940 = vmatpush1.bf16.msra.mxu0 0
  %941 = vmatprep.subr.bf16.mxu0 0
  %942 = vmatpush1.bf16.msra.mxu0 0
  %943 = vmatprep.subr.bf16.mxu0 0
  %944 = vmatpush1.bf16.msra.mxu0 0
  %945 = vmatprep.subr.bf16.mxu0 0
  %946 = vmatpush1.bf16.msra.mxu0 0
  %947 = vmatprep.subr.bf16.mxu0 0
  %948 = vmatpush1.bf16.msra.mxu0 0
  %949 = vmatprep.subr.bf16.mxu0 0
  %950 = vmatpush1.bf16.msra.mxu0 0
  %951 = vmatprep.subr.bf16.mxu0 0
  %952 = vmatpush1.bf16.msra.mxu0 0
  %953 = vmatprep.subr.bf16.mxu0 0
  %954 = vmatpush1.bf16.msra.mxu0 0
  %955 = vmatprep.subr.bf16.mxu0 0
  %956 = vmatpush1.bf16.msra.mxu0 0
  %957 = vmatprep.subr.bf16.mxu0 0
  %958 = vmatpush1.bf16.msra.mxu0 0
  %959 = vmatprep.mubr.bf16.mxu0 0
  %960 = vmatmul.mubr.bf16.gmra.mrb[0].mxu0 %v904
  %v961 = vpop.f32.mrb[0].mxu0
  %v962 = vadd.f32 0.0, %v961
  %v963 = vpop.f32.mrb[0].mxu0
  %v964 = vadd.f32 0.0, %v963
  %v965 = vpop.f32.mrb[0].mxu0
  %v966 = vpop.f32.mrb[0].mxu0
  %967 = vdwg.mxu0
  %968 = vmatprep.subr.bf16.mxu0 %v916
  %969 = vmatpush1.bf16.msra.mxu0 %v913
  %970 = vmatprep.subr.bf16.mxu0 0
  %971 = vmatpush1.bf16.msra.mxu0 0
  %972 = vmatprep.subr.bf16.mxu0 0
  %973 = vmatpush1.bf16.msra.mxu0 0
  %974 = vmatprep.subr.bf16.mxu0 0
  %975 = vmatpush1.bf16.msra.mxu0 0
  %976 = vmatprep.subr.bf16.mxu0 0
  %977 = vmatpush1.bf16.msra.mxu0 0
  %978 = vmatprep.subr.bf16.mxu0 0
  %979 = vmatpush1.bf16.msra.mxu0 0
  %980 = vmatprep.subr.bf16.mxu0 0
  %981 = vmatpush1.bf16.msra.mxu0 0
  %982 = vmatprep.subr.bf16.mxu0 0
  %983 = vmatpush1.bf16.msra.mxu0 0
  %984 = vmatprep.subr.bf16.mxu0 0
  %985 = vmatpush1.bf16.msra.mxu0 0
  %986 = vmatprep.subr.bf16.mxu0 0
  %987 = vmatpush1.bf16.msra.mxu0 0
  %988 = vmatprep.subr.bf16.mxu0 0
  %989 = vmatpush1.bf16.msra.mxu0 0
  %990 = vmatprep.subr.bf16.mxu0 0
  %991 = vmatpush1.bf16.msra.mxu0 0
  %992 = vmatprep.subr.bf16.mxu0 0
  %993 = vmatpush1.bf16.msra.mxu0 0
  %994 = vmatprep.subr.bf16.mxu0 0
  %995 = vmatpush1.bf16.msra.mxu0 0
  %996 = vmatprep.subr.bf16.mxu0 0
  %997 = vmatpush1.bf16.msra.mxu0 0
  %998 = vmatprep.subr.bf16.mxu0 0
  %999 = vmatpush1.bf16.msra.mxu0 0
  %1000 = vmatprep.mubr.bf16.mxu0 0
  %1001 = vmatmul.mubr.bf16.gmra.mrb[0].mxu0 %v904
  %v1002 = vpop.f32.mrb[0].mxu0
  %v1003 = vadd.f32 0.0, %v1002
  %v1004 = vpop.f32.mrb[0].mxu0
  %v1005 = vadd.f32 0.0, %v1004
  %v1006 = vpop.f32.mrb[0].mxu0
  %v1007 = vpop.f32.mrb[0].mxu0
  %1008 = vdwg.mxu0
  %1009 = vmatprep.subr.bf16.mxu0 %v922
  %1010 = vmatpush1.bf16.msra.mxu0 %v919
  %1011 = vmatprep.subr.bf16.mxu0 0
  %1012 = vmatpush1.bf16.msra.mxu0 0
  %1013 = vmatprep.subr.bf16.mxu0 0
  %1014 = vmatpush1.bf16.msra.mxu0 0
  %1015 = vmatprep.subr.bf16.mxu0 0
  %1016 = vmatpush1.bf16.msra.mxu0 0
  %1017 = vmatprep.subr.bf16.mxu0 0
  %1018 = vmatpush1.bf16.msra.mxu0 0
  %1019 = vmatprep.subr.bf16.mxu0 0
  %1020 = vmatpush1.bf16.msra.mxu0 0
  %1021 = vmatprep.subr.bf16.mxu0 0
  %1022 = vmatpush1.bf16.msra.mxu0 0
  %1023 = vmatprep.subr.bf16.mxu0 0
  %1024 = vmatpush1.bf16.msra.mxu0 0
  %1025 = vmatprep.subr.bf16.mxu0 0
  %1026 = vmatpush1.bf16.msra.mxu0 0
  %1027 = vmatprep.subr.bf16.mxu0 0
  %1028 = vmatpush1.bf16.msra.mxu0 0
  %1029 = vmatprep.subr.bf16.mxu0 0
  %1030 = vmatpush1.bf16.msra.mxu0 0
  %1031 = vmatprep.subr.bf16.mxu0 0
  %1032 = vmatpush1.bf16.msra.mxu0 0
  %1033 = vmatprep.subr.bf16.mxu0 0
  %1034 = vmatpush1.bf16.msra.mxu0 0
  %1035 = vmatprep.subr.bf16.mxu0 0
  %1036 = vmatpush1.bf16.msra.mxu0 0
  %1037 = vmatprep.subr.bf16.mxu0 0
  %1038 = vmatpush1.bf16.msra.mxu0 0
  %1039 = vmatprep.subr.bf16.mxu0 0
  %1040 = vmatpush1.bf16.msra.mxu0 0
  %1041 = vmatprep.mubr.bf16.mxu0 0
  %1042 = vmatmul.mubr.bf16.gmra.mrb[0].mxu0 %v904
  %v1043 = vpop.f32.mrb[0].mxu0
  %v1044 = vadd.f32 0.0, %v1043
  %v1045 = vpop.f32.mrb[0].mxu0
  %v1046 = vadd.f32 0.0, %v1045
  %v1047 = vpop.f32.mrb[0].mxu0
  %v1048 = vpop.f32.mrb[0].mxu0
  %1049 = vdwg.mxu0
  %1050 = vmatprep.subr.bf16.mxu0 0
  %1051 = vmatpush1.bf16.msra.mxu0 %v925
  %1052 = vmatprep.subr.bf16.mxu0 0
  %1053 = vmatpush1.bf16.msra.mxu0 0
  %1054 = vmatprep.subr.bf16.mxu0 0
  %1055 = vmatpush1.bf16.msra.mxu0 0
  %1056 = vmatprep.subr.bf16.mxu0 0
  %1057 = vmatpush1.bf16.msra.mxu0 0
  %1058 = vmatprep.subr.bf16.mxu0 0
  %1059 = vmatpush1.bf16.msra.mxu0 0
  %1060 = vmatprep.subr.bf16.mxu0 0
  %1061 = vmatpush1.bf16.msra.mxu0 0
  %1062 = vmatprep.subr.bf16.mxu0 0
  %1063 = vmatpush1.bf16.msra.mxu0 0
  %1064 = vmatprep.subr.bf16.mxu0 0
  %1065 = vmatpush1.bf16.msra.mxu0 0
  %1066 = vmatprep.subr.bf16.mxu0 0
  %1067 = vmatpush1.bf16.msra.mxu0 0
  %1068 = vmatprep.subr.bf16.mxu0 0
  %1069 = vmatpush1.bf16.msra.mxu0 0
  %1070 = vmatprep.subr.bf16.mxu0 0
  %1071 = vmatpush1.bf16.msra.mxu0 0
  %1072 = vmatprep.subr.bf16.mxu0 0
  %1073 = vmatpush1.bf16.msra.mxu0 0
  %1074 = vmatprep.subr.bf16.mxu0 0
  %1075 = vmatpush1.bf16.msra.mxu0 0
  %1076 = vmatprep.subr.bf16.mxu0 0
  %1077 = vmatpush1.bf16.msra.mxu0 0
  %1078 = vmatprep.subr.bf16.mxu0 0
  %1079 = vmatpush1.bf16.msra.mxu0 0
  %1080 = vmatprep.subr.bf16.mxu0 0
  %1081 = vmatpush1.bf16.msra.mxu0 0
  %1082 = vmatprep.mubr.bf16.mxu0 0
  %1083 = vmatmul.mubr.bf16.gmra.mrb[0].mxu0 %v904
  %v1084 = vpop.f32.mrb[0].mxu0
  %v1085 = vadd.f32 0.0, %v1084
  %v1086 = vpop.f32.mrb[0].mxu0
  %v1087 = vpop.f32.mrb[0].mxu0
  %v1088 = vpop.f32.mrb[0].mxu0
  %1089 = vdwg.mxu0
  %v1090 = vadd.f32 %v873, %v962
  %v1091 = vadd.f32 %v874, %v964
  %v1092 = vadd.f32 %v875, %v1003
  %v1093 = vadd.f32 %v876, %v1005
  %v1094 = vadd.f32 %v877, %v1044
  %v1095 = vadd.f32 %v878, %v1046
  %v1096 = vadd.f32 %v879, %v1085
  %s1097 = scalar_lea.vmem %s1, 20
  %v1098 = vld [vmem:[%s1097] sm:$0xf]
  %1099 = vrot.lane.b32.xlu0 %v42, 108
  %v1100 = vpop.permute.xlu0 %1099
  %1101 = vrot.lane.b32.xlu0 %v43, 108
  %v1102 = vpop.permute.xlu0 %1101
  %1103 = vrot.lane.b32.xlu0 %v44, 108
  %v1104 = vpop.permute.xlu0 %1103
  %1105 = vrot.lane.b32.xlu0 %v45, 108
  %v1106 = vpop.permute.xlu0 %1105
  %1107 = vrot.lane.b32.xlu0 %v46, 108
  %v1108 = vpop.permute.xlu0 %1107
  %1109 = vrot.lane.b32.xlu0 %v47, 108
  %v1110 = vpop.permute.xlu0 %1109
  %1111 = vrot.lane.b32.xlu0 %v48, 108
  %v1112 = vpop.permute.xlu0 %1111
  %vm1113 = vcmask 883712
  %v1114 = vsel %vm1113, %v1100, %v1102
  %v1115 = vsel %vm1113, %v1102, %v1104
  %v1116 = vsel %vm1113, %v1104, %v1106
  %v1117 = vsel %vm1113, %v1106, %v1108
  %v1118 = vsel %vm1113, %v1108, %v1110
  %v1119 = vsel %vm1113, %v1110, %v1112
  %v1121 = vsel %vm70, %v1098, 0
  %v1124 = vsel %vm74, %v1114, 0
  %v1127 = vsel %vm74, %v1115, 0
  %v1130 = vsel %vm74, %v1116, 0
  %v1133 = vsel %vm74, %v1117, 0
  %v1136 = vsel %vm74, %v1118, 0
  %v1139 = vsel %vm74, %v1119, 0
  %v1142 = vsel %vm74, %v1112, 0
  %1144 = vmatprep.subr.bf16.mxu0 %v1127
  %1145 = vmatpush1.bf16.msra.mxu0 %v1124
  %1146 = vmatprep.subr.bf16.mxu0 0
  %1147 = vmatpush1.bf16.msra.mxu0 0
  %1148 = vmatprep.subr.bf16.mxu0 0
  %1149 = vmatpush1.bf16.msra.mxu0 0
  %1150 = vmatprep.subr.bf16.mxu0 0
  %1151 = vmatpush1.bf16.msra.mxu0 0
  %1152 = vmatprep.subr.bf16.mxu0 0
  %1153 = vmatpush1.bf16.msra.mxu0 0
  %1154 = vmatprep.subr.bf16.mxu0 0
  %1155 = vmatpush1.bf16.msra.mxu0 0
  %1156 = vmatprep.subr.bf16.mxu0 0
  %1157 = vmatpush1.bf16.msra.mxu0 0
  %1158 = vmatprep.subr.bf16.mxu0 0
  %1159 = vmatpush1.bf16.msra.mxu0 0
  %1160 = vmatprep.subr.bf16.mxu0 0
  %1161 = vmatpush1.bf16.msra.mxu0 0
  %1162 = vmatprep.subr.bf16.mxu0 0
  %1163 = vmatpush1.bf16.msra.mxu0 0
  %1164 = vmatprep.subr.bf16.mxu0 0
  %1165 = vmatpush1.bf16.msra.mxu0 0
  %1166 = vmatprep.subr.bf16.mxu0 0
  %1167 = vmatpush1.bf16.msra.mxu0 0
  %1168 = vmatprep.subr.bf16.mxu0 0
  %1169 = vmatpush1.bf16.msra.mxu0 0
  %1170 = vmatprep.subr.bf16.mxu0 0
  %1171 = vmatpush1.bf16.msra.mxu0 0
  %1172 = vmatprep.subr.bf16.mxu0 0
  %1173 = vmatpush1.bf16.msra.mxu0 0
  %1174 = vmatprep.subr.bf16.mxu0 0
  %1175 = vmatpush1.bf16.msra.mxu0 0
  %1176 = vmatprep.mubr.bf16.mxu0 0
  %1177 = vmatmul.mubr.bf16.gmra.mrb[0].mxu0 %v1121
  %v1178 = vpop.f32.mrb[0].mxu0
  %v1179 = vadd.f32 0.0, %v1178
  %v1180 = vpop.f32.mrb[0].mxu0
  %v1181 = vadd.f32 0.0, %v1180
  %v1182 = vpop.f32.mrb[0].mxu0
  %v1183 = vpop.f32.mrb[0].mxu0
  %1184 = vdwg.mxu0
  %1185 = vmatprep.subr.bf16.mxu0 %v1133
  %1186 = vmatpush1.bf16.msra.mxu0 %v1130
  %1187 = vmatprep.subr.bf16.mxu0 0
  %1188 = vmatpush1.bf16.msra.mxu0 0
  %1189 = vmatprep.subr.bf16.mxu0 0
  %1190 = vmatpush1.bf16.msra.mxu0 0
  %1191 = vmatprep.subr.bf16.mxu0 0
  %1192 = vmatpush1.bf16.msra.mxu0 0
  %1193 = vmatprep.subr.bf16.mxu0 0
  %1194 = vmatpush1.bf16.msra.mxu0 0
  %1195 = vmatprep.subr.bf16.mxu0 0
  %1196 = vmatpush1.bf16.msra.mxu0 0
  %1197 = vmatprep.subr.bf16.mxu0 0
  %1198 = vmatpush1.bf16.msra.mxu0 0
  %1199 = vmatprep.subr.bf16.mxu0 0
  %1200 = vmatpush1.bf16.msra.mxu0 0
  %1201 = vmatprep.subr.bf16.mxu0 0
  %1202 = vmatpush1.bf16.msra.mxu0 0
  %1203 = vmatprep.subr.bf16.mxu0 0
  %1204 = vmatpush1.bf16.msra.mxu0 0
  %1205 = vmatprep.subr.bf16.mxu0 0
  %1206 = vmatpush1.bf16.msra.mxu0 0
  %1207 = vmatprep.subr.bf16.mxu0 0
  %1208 = vmatpush1.bf16.msra.mxu0 0
  %1209 = vmatprep.subr.bf16.mxu0 0
  %1210 = vmatpush1.bf16.msra.mxu0 0
  %1211 = vmatprep.subr.bf16.mxu0 0
  %1212 = vmatpush1.bf16.msra.mxu0 0
  %1213 = vmatprep.subr.bf16.mxu0 0
  %1214 = vmatpush1.bf16.msra.mxu0 0
  %1215 = vmatprep.subr.bf16.mxu0 0
  %1216 = vmatpush1.bf16.msra.mxu0 0
  %1217 = vmatprep.mubr.bf16.mxu0 0
  %1218 = vmatmul.mubr.bf16.gmra.mrb[0].mxu0 %v1121
  %v1219 = vpop.f32.mrb[0].mxu0
  %v1220 = vadd.f32 0.0, %v1219
  %v1221 = vpop.f32.mrb[0].mxu0
  %v1222 = vadd.f32 0.0, %v1221
  %v1223 = vpop.f32.mrb[0].mxu0
  %v1224 = vpop.f32.mrb[0].mxu0
  %1225 = vdwg.mxu0
  %1226 = vmatprep.subr.bf16.mxu0 %v1139
  %1227 = vmatpush1.bf16.msra.mxu0 %v1136
  %1228 = vmatprep.subr.bf16.mxu0 0
  %1229 = vmatpush1.bf16.msra.mxu0 0
  %1230 = vmatprep.subr.bf16.mxu0 0
  %1231 = vmatpush1.bf16.msra.mxu0 0
  %1232 = vmatprep.subr.bf16.mxu0 0
  %1233 = vmatpush1.bf16.msra.mxu0 0
  %1234 = vmatprep.subr.bf16.mxu0 0
  %1235 = vmatpush1.bf16.msra.mxu0 0
  %1236 = vmatprep.subr.bf16.mxu0 0
  %1237 = vmatpush1.bf16.msra.mxu0 0
  %1238 = vmatprep.subr.bf16.mxu0 0
  %1239 = vmatpush1.bf16.msra.mxu0 0
  %1240 = vmatprep.subr.bf16.mxu0 0
  %1241 = vmatpush1.bf16.msra.mxu0 0
  %1242 = vmatprep.subr.bf16.mxu0 0
  %1243 = vmatpush1.bf16.msra.mxu0 0
  %1244 = vmatprep.subr.bf16.mxu0 0
  %1245 = vmatpush1.bf16.msra.mxu0 0
  %1246 = vmatprep.subr.bf16.mxu0 0
  %1247 = vmatpush1.bf16.msra.mxu0 0
  %1248 = vmatprep.subr.bf16.mxu0 0
  %1249 = vmatpush1.bf16.msra.mxu0 0
  %1250 = vmatprep.subr.bf16.mxu0 0
  %1251 = vmatpush1.bf16.msra.mxu0 0
  %1252 = vmatprep.subr.bf16.mxu0 0
  %1253 = vmatpush1.bf16.msra.mxu0 0
  %1254 = vmatprep.subr.bf16.mxu0 0
  %1255 = vmatpush1.bf16.msra.mxu0 0
  %1256 = vmatprep.subr.bf16.mxu0 0
  %1257 = vmatpush1.bf16.msra.mxu0 0
  %1258 = vmatprep.mubr.bf16.mxu0 0
  %1259 = vmatmul.mubr.bf16.gmra.mrb[0].mxu0 %v1121
  %v1260 = vpop.f32.mrb[0].mxu0
  %v1261 = vadd.f32 0.0, %v1260
  %v1262 = vpop.f32.mrb[0].mxu0
  %v1263 = vadd.f32 0.0, %v1262
  %v1264 = vpop.f32.mrb[0].mxu0
  %v1265 = vpop.f32.mrb[0].mxu0
  %1266 = vdwg.mxu0
  %1267 = vmatprep.subr.bf16.mxu0 0
  %1268 = vmatpush1.bf16.msra.mxu0 %v1142
  %1269 = vmatprep.subr.bf16.mxu0 0
  %1270 = vmatpush1.bf16.msra.mxu0 0
  %1271 = vmatprep.subr.bf16.mxu0 0
  %1272 = vmatpush1.bf16.msra.mxu0 0
  %1273 = vmatprep.subr.bf16.mxu0 0
  %1274 = vmatpush1.bf16.msra.mxu0 0
  %1275 = vmatprep.subr.bf16.mxu0 0
  %1276 = vmatpush1.bf16.msra.mxu0 0
  %1277 = vmatprep.subr.bf16.mxu0 0
  %1278 = vmatpush1.bf16.msra.mxu0 0
  %1279 = vmatprep.subr.bf16.mxu0 0
  %1280 = vmatpush1.bf16.msra.mxu0 0
  %1281 = vmatprep.subr.bf16.mxu0 0
  %1282 = vmatpush1.bf16.msra.mxu0 0
  %1283 = vmatprep.subr.bf16.mxu0 0
  %1284 = vmatpush1.bf16.msra.mxu0 0
  %1285 = vmatprep.subr.bf16.mxu0 0
  %1286 = vmatpush1.bf16.msra.mxu0 0
  %1287 = vmatprep.subr.bf16.mxu0 0
  %1288 = vmatpush1.bf16.msra.mxu0 0
  %1289 = vmatprep.subr.bf16.mxu0 0
  %1290 = vmatpush1.bf16.msra.mxu0 0
  %1291 = vmatprep.subr.bf16.mxu0 0
  %1292 = vmatpush1.bf16.msra.mxu0 0
  %1293 = vmatprep.subr.bf16.mxu0 0
  %1294 = vmatpush1.bf16.msra.mxu0 0
  %1295 = vmatprep.subr.bf16.mxu0 0
  %1296 = vmatpush1.bf16.msra.mxu0 0
  %1297 = vmatprep.subr.bf16.mxu0 0
  %1298 = vmatpush1.bf16.msra.mxu0 0
  %1299 = vmatprep.mubr.bf16.mxu0 0
  %1300 = vmatmul.mubr.bf16.gmra.mrb[0].mxu0 %v1121
  %v1301 = vpop.f32.mrb[0].mxu0
  %v1302 = vadd.f32 0.0, %v1301
  %v1303 = vpop.f32.mrb[0].mxu0
  %v1304 = vpop.f32.mrb[0].mxu0
  %v1305 = vpop.f32.mrb[0].mxu0
  %1306 = vdwg.mxu0
  %v1307 = vadd.f32 %v1090, %v1179
  %v1308 = vadd.f32 %v1091, %v1181
  %v1309 = vadd.f32 %v1092, %v1220
  %v1310 = vadd.f32 %v1093, %v1222
  %v1311 = vadd.f32 %v1094, %v1261
  %v1312 = vadd.f32 %v1095, %v1263
  %v1313 = vadd.f32 %v1096, %v1302
  %s1314 = scalar_lea.vmem %s1, 24
  %v1315 = vld [vmem:[%s1314] sm:$0xf]
  %1316 = vrot.lane.b32.xlu0 %v42, 107
  %v1317 = vpop.permute.xlu0 %1316
  %1318 = vrot.lane.b32.xlu0 %v43, 107
  %v1319 = vpop.permute.xlu0 %1318
  %1320 = vrot.lane.b32.xlu0 %v44, 107
  %v1321 = vpop.permute.xlu0 %1320
  %1322 = vrot.lane.b32.xlu0 %v45, 107
  %v1323 = vpop.permute.xlu0 %1322
  %1324 = vrot.lane.b32.xlu0 %v46, 107
  %v1325 = vpop.permute.xlu0 %1324
  %1326 = vrot.lane.b32.xlu0 %v47, 107
  %v1327 = vpop.permute.xlu0 %1326
  %1328 = vrot.lane.b32.xlu0 %v48, 107
  %v1329 = vpop.permute.xlu0 %1328
  %vm1330 = vcmask 875520
  %v1331 = vsel %vm1330, %v1317, %v1319
  %v1332 = vsel %vm1330, %v1319, %v1321
  %v1333 = vsel %vm1330, %v1321, %v1323
  %v1334 = vsel %vm1330, %v1323, %v1325
  %v1335 = vsel %vm1330, %v1325, %v1327
  %v1336 = vsel %vm1330, %v1327, %v1329
  %v1338 = vsel %vm70, %v1315, 0
  %v1341 = vsel %vm74, %v1331, 0
  %v1344 = vsel %vm74, %v1332, 0
  %v1347 = vsel %vm74, %v1333, 0
  %v1350 = vsel %vm74, %v1334, 0
  %v1353 = vsel %vm74, %v1335, 0
  %v1356 = vsel %vm74, %v1336, 0
  %v1359 = vsel %vm74, %v1329, 0
  %1361 = vmatprep.subr.bf16.mxu0 %v1344
  %1362 = vmatpush1.bf16.msra.mxu0 %v1341
  %1363 = vmatprep.subr.bf16.mxu0 0
  %1364 = vmatpush1.bf16.msra.mxu0 0
  %1365 = vmatprep.subr.bf16.mxu0 0
  %1366 = vmatpush1.bf16.msra.mxu0 0
  %1367 = vmatprep.subr.bf16.mxu0 0
  %1368 = vmatpush1.bf16.msra.mxu0 0
  %1369 = vmatprep.subr.bf16.mxu0 0
  %1370 = vmatpush1.bf16.msra.mxu0 0
  %1371 = vmatprep.subr.bf16.mxu0 0
  %1372 = vmatpush1.bf16.msra.mxu0 0
  %1373 = vmatprep.subr.bf16.mxu0 0
  %1374 = vmatpush1.bf16.msra.mxu0 0
  %1375 = vmatprep.subr.bf16.mxu0 0
  %1376 = vmatpush1.bf16.msra.mxu0 0
  %1377 = vmatprep.subr.bf16.mxu0 0
  %1378 = vmatpush1.bf16.msra.mxu0 0
  %1379 = vmatprep.subr.bf16.mxu0 0
  %1380 = vmatpush1.bf16.msra.mxu0 0
  %1381 = vmatprep.subr.bf16.mxu0 0
  %1382 = vmatpush1.bf16.msra.mxu0 0
  %1383 = vmatprep.subr.bf16.mxu0 0
  %1384 = vmatpush1.bf16.msra.mxu0 0
  %1385 = vmatprep.subr.bf16.mxu0 0
  %1386 = vmatpush1.bf16.msra.mxu0 0
  %1387 = vmatprep.subr.bf16.mxu0 0
  %1388 = vmatpush1.bf16.msra.mxu0 0
  %1389 = vmatprep.subr.bf16.mxu0 0
  %1390 = vmatpush1.bf16.msra.mxu0 0
  %1391 = vmatprep.subr.bf16.mxu0 0
  %1392 = vmatpush1.bf16.msra.mxu0 0
  %1393 = vmatprep.mubr.bf16.mxu0 0
  %1394 = vmatmul.mubr.bf16.gmra.mrb[0].mxu0 %v1338
  %v1395 = vpop.f32.mrb[0].mxu0
  %v1396 = vadd.f32 0.0, %v1395
  %v1397 = vpop.f32.mrb[0].mxu0
  %v1398 = vadd.f32 0.0, %v1397
  %v1399 = vpop.f32.mrb[0].mxu0
  %v1400 = vpop.f32.mrb[0].mxu0
  %1401 = vdwg.mxu0
  %1402 = vmatprep.subr.bf16.mxu0 %v1350
  %1403 = vmatpush1.bf16.msra.mxu0 %v1347
  %1404 = vmatprep.subr.bf16.mxu0 0
  %1405 = vmatpush1.bf16.msra.mxu0 0
  %1406 = vmatprep.subr.bf16.mxu0 0
  %1407 = vmatpush1.bf16.msra.mxu0 0
  %1408 = vmatprep.subr.bf16.mxu0 0
  %1409 = vmatpush1.bf16.msra.mxu0 0
  %1410 = vmatprep.subr.bf16.mxu0 0
  %1411 = vmatpush1.bf16.msra.mxu0 0
  %1412 = vmatprep.subr.bf16.mxu0 0
  %1413 = vmatpush1.bf16.msra.mxu0 0
  %1414 = vmatprep.subr.bf16.mxu0 0
  %1415 = vmatpush1.bf16.msra.mxu0 0
  %1416 = vmatprep.subr.bf16.mxu0 0
  %1417 = vmatpush1.bf16.msra.mxu0 0
  %1418 = vmatprep.subr.bf16.mxu0 0
  %1419 = vmatpush1.bf16.msra.mxu0 0
  %1420 = vmatprep.subr.bf16.mxu0 0
  %1421 = vmatpush1.bf16.msra.mxu0 0
  %1422 = vmatprep.subr.bf16.mxu0 0
  %1423 = vmatpush1.bf16.msra.mxu0 0
  %1424 = vmatprep.subr.bf16.mxu0 0
  %1425 = vmatpush1.bf16.msra.mxu0 0
  %1426 = vmatprep.subr.bf16.mxu0 0
  %1427 = vmatpush1.bf16.msra.mxu0 0
  %1428 = vmatprep.subr.bf16.mxu0 0
  %1429 = vmatpush1.bf16.msra.mxu0 0
  %1430 = vmatprep.subr.bf16.mxu0 0
  %1431 = vmatpush1.bf16.msra.mxu0 0
  %1432 = vmatprep.subr.bf16.mxu0 0
  %1433 = vmatpush1.bf16.msra.mxu0 0
  %1434 = vmatprep.mubr.bf16.mxu0 0
  %1435 = vmatmul.mubr.bf16.gmra.mrb[0].mxu0 %v1338
  %v1436 = vpop.f32.mrb[0].mxu0
  %v1437 = vadd.f32 0.0, %v1436
  %v1438 = vpop.f32.mrb[0].mxu0
  %v1439 = vadd.f32 0.0, %v1438
  %v1440 = vpop.f32.mrb[0].mxu0
  %v1441 = vpop.f32.mrb[0].mxu0
  %1442 = vdwg.mxu0
  %1443 = vmatprep.subr.bf16.mxu0 %v1356
  %1444 = vmatpush1.bf16.msra.mxu0 %v1353
  %1445 = vmatprep.subr.bf16.mxu0 0
  %1446 = vmatpush1.bf16.msra.mxu0 0
  %1447 = vmatprep.subr.bf16.mxu0 0
  %1448 = vmatpush1.bf16.msra.mxu0 0
  %1449 = vmatprep.subr.bf16.mxu0 0
  %1450 = vmatpush1.bf16.msra.mxu0 0
  %1451 = vmatprep.subr.bf16.mxu0 0
  %1452 = vmatpush1.bf16.msra.mxu0 0
  %1453 = vmatprep.subr.bf16.mxu0 0
  %1454 = vmatpush1.bf16.msra.mxu0 0
  %1455 = vmatprep.subr.bf16.mxu0 0
  %1456 = vmatpush1.bf16.msra.mxu0 0
  %1457 = vmatprep.subr.bf16.mxu0 0
  %1458 = vmatpush1.bf16.msra.mxu0 0
  %1459 = vmatprep.subr.bf16.mxu0 0
  %1460 = vmatpush1.bf16.msra.mxu0 0
  %1461 = vmatprep.subr.bf16.mxu0 0
  %1462 = vmatpush1.bf16.msra.mxu0 0
  %1463 = vmatprep.subr.bf16.mxu0 0
  %1464 = vmatpush1.bf16.msra.mxu0 0
  %1465 = vmatprep.subr.bf16.mxu0 0
  %1466 = vmatpush1.bf16.msra.mxu0 0
  %1467 = vmatprep.subr.bf16.mxu0 0
  %1468 = vmatpush1.bf16.msra.mxu0 0
  %1469 = vmatprep.subr.bf16.mxu0 0
  %1470 = vmatpush1.bf16.msra.mxu0 0
  %1471 = vmatprep.subr.bf16.mxu0 0
  %1472 = vmatpush1.bf16.msra.mxu0 0
  %1473 = vmatprep.subr.bf16.mxu0 0
  %1474 = vmatpush1.bf16.msra.mxu0 0
  %1475 = vmatprep.mubr.bf16.mxu0 0
  %1476 = vmatmul.mubr.bf16.gmra.mrb[0].mxu0 %v1338
  %v1477 = vpop.f32.mrb[0].mxu0
  %v1478 = vadd.f32 0.0, %v1477
  %v1479 = vpop.f32.mrb[0].mxu0
  %v1480 = vadd.f32 0.0, %v1479
  %v1481 = vpop.f32.mrb[0].mxu0
  %v1482 = vpop.f32.mrb[0].mxu0
  %1483 = vdwg.mxu0
  %1484 = vmatprep.subr.bf16.mxu0 0
  %1485 = vmatpush1.bf16.msra.mxu0 %v1359
  %1486 = vmatprep.subr.bf16.mxu0 0
  %1487 = vmatpush1.bf16.msra.mxu0 0
  %1488 = vmatprep.subr.bf16.mxu0 0
  %1489 = vmatpush1.bf16.msra.mxu0 0
  %1490 = vmatprep.subr.bf16.mxu0 0
  %1491 = vmatpush1.bf16.msra.mxu0 0
  %1492 = vmatprep.subr.bf16.mxu0 0
  %1493 = vmatpush1.bf16.msra.mxu0 0
  %1494 = vmatprep.subr.bf16.mxu0 0
  %1495 = vmatpush1.bf16.msra.mxu0 0
  %1496 = vmatprep.subr.bf16.mxu0 0
  %1497 = vmatpush1.bf16.msra.mxu0 0
  %1498 = vmatprep.subr.bf16.mxu0 0
  %1499 = vmatpush1.bf16.msra.mxu0 0
  %1500 = vmatprep.subr.bf16.mxu0 0
  %1501 = vmatpush1.bf16.msra.mxu0 0
  %1502 = vmatprep.subr.bf16.mxu0 0
  %1503 = vmatpush1.bf16.msra.mxu0 0
  %1504 = vmatprep.subr.bf16.mxu0 0
  %1505 = vmatpush1.bf16.msra.mxu0 0
  %1506 = vmatprep.subr.bf16.mxu0 0
  %1507 = vmatpush1.bf16.msra.mxu0 0
  %1508 = vmatprep.subr.bf16.mxu0 0
  %1509 = vmatpush1.bf16.msra.mxu0 0
  %1510 = vmatprep.subr.bf16.mxu0 0
  %1511 = vmatpush1.bf16.msra.mxu0 0
  %1512 = vmatprep.subr.bf16.mxu0 0
  %1513 = vmatpush1.bf16.msra.mxu0 0
  %1514 = vmatprep.subr.bf16.mxu0 0
  %1515 = vmatpush1.bf16.msra.mxu0 0
  %1516 = vmatprep.mubr.bf16.mxu0 0
  %1517 = vmatmul.mubr.bf16.gmra.mrb[0].mxu0 %v1338
  %v1518 = vpop.f32.mrb[0].mxu0
  %v1519 = vadd.f32 0.0, %v1518
  %v1520 = vpop.f32.mrb[0].mxu0
  %v1521 = vpop.f32.mrb[0].mxu0
  %v1522 = vpop.f32.mrb[0].mxu0
  %1523 = vdwg.mxu0
  %v1524 = vadd.f32 %v1307, %v1396
  %v1525 = vadd.f32 %v1308, %v1398
  %v1526 = vadd.f32 %v1309, %v1437
  %v1527 = vadd.f32 %v1310, %v1439
  %v1528 = vadd.f32 %v1311, %v1478
  %v1529 = vadd.f32 %v1312, %v1480
  %v1530 = vadd.f32 %v1313, %v1519
  %s1531 = scalar_lea.vmem %s1, 28
  %v1532 = vld [vmem:[%s1531] sm:$0xf]
  %1533 = vrot.lane.b32.xlu0 %v42, 106
  %v1534 = vpop.permute.xlu0 %1533
  %1535 = vrot.lane.b32.xlu0 %v43, 106
  %v1536 = vpop.permute.xlu0 %1535
  %1537 = vrot.lane.b32.xlu0 %v44, 106
  %v1538 = vpop.permute.xlu0 %1537
  %1539 = vrot.lane.b32.xlu0 %v45, 106
  %v1540 = vpop.permute.xlu0 %1539
  %1541 = vrot.lane.b32.xlu0 %v46, 106
  %v1542 = vpop.permute.xlu0 %1541
  %1543 = vrot.lane.b32.xlu0 %v47, 106
  %v1544 = vpop.permute.xlu0 %1543
  %1545 = vrot.lane.b32.xlu0 %v48, 106
  %v1546 = vpop.permute.xlu0 %1545
  %vm1547 = vcmask 867328
  %v1548 = vsel %vm1547, %v1534, %v1536
  %v1549 = vsel %vm1547, %v1536, %v1538
  %v1550 = vsel %vm1547, %v1538, %v1540
  %v1551 = vsel %vm1547, %v1540, %v1542
  %v1552 = vsel %vm1547, %v1542, %v1544
  %v1553 = vsel %vm1547, %v1544, %v1546
  %v1555 = vsel %vm70, %v1532, 0
  %v1558 = vsel %vm74, %v1548, 0
  %v1561 = vsel %vm74, %v1549, 0
  %v1564 = vsel %vm74, %v1550, 0
  %v1567 = vsel %vm74, %v1551, 0
  %v1570 = vsel %vm74, %v1552, 0
  %v1573 = vsel %vm74, %v1553, 0
  %v1576 = vsel %vm74, %v1546, 0
  %1578 = vmatprep.subr.bf16.mxu0 %v1561
  %1579 = vmatpush1.bf16.msra.mxu0 %v1558
  %1580 = vmatprep.subr.bf16.mxu0 0
  %1581 = vmatpush1.bf16.msra.mxu0 0
  %1582 = vmatprep.subr.bf16.mxu0 0
  %1583 = vmatpush1.bf16.msra.mxu0 0
  %1584 = vmatprep.subr.bf16.mxu0 0
  %1585 = vmatpush1.bf16.msra.mxu0 0
  %1586 = vmatprep.subr.bf16.mxu0 0
  %1587 = vmatpush1.bf16.msra.mxu0 0
  %1588 = vmatprep.subr.bf16.mxu0 0
  %1589 = vmatpush1.bf16.msra.mxu0 0
  %1590 = vmatprep.subr.bf16.mxu0 0
  %1591 = vmatpush1.bf16.msra.mxu0 0
  %1592 = vmatprep.subr.bf16.mxu0 0
  %1593 = vmatpush1.bf16.msra.mxu0 0
  %1594 = vmatprep.subr.bf16.mxu0 0
  %1595 = vmatpush1.bf16.msra.mxu0 0
  %1596 = vmatprep.subr.bf16.mxu0 0
  %1597 = vmatpush1.bf16.msra.mxu0 0
  %1598 = vmatprep.subr.bf16.mxu0 0
  %1599 = vmatpush1.bf16.msra.mxu0 0
  %1600 = vmatprep.subr.bf16.mxu0 0
  %1601 = vmatpush1.bf16.msra.mxu0 0
  %1602 = vmatprep.subr.bf16.mxu0 0
  %1603 = vmatpush1.bf16.msra.mxu0 0
  %1604 = vmatprep.subr.bf16.mxu0 0
  %1605 = vmatpush1.bf16.msra.mxu0 0
  %1606 = vmatprep.subr.bf16.mxu0 0
  %1607 = vmatpush1.bf16.msra.mxu0 0
  %1608 = vmatprep.subr.bf16.mxu0 0
  %1609 = vmatpush1.bf16.msra.mxu0 0
  %1610 = vmatprep.mubr.bf16.mxu0 0
  %1611 = vmatmul.mubr.bf16.gmra.mrb[0].mxu0 %v1555
  %v1612 = vpop.f32.mrb[0].mxu0
  %v1613 = vadd.f32 0.0, %v1612
  %v1614 = vpop.f32.mrb[0].mxu0
  %v1615 = vadd.f32 0.0, %v1614
  %v1616 = vpop.f32.mrb[0].mxu0
  %v1617 = vpop.f32.mrb[0].mxu0
  %1618 = vdwg.mxu0
  %1619 = vmatprep.subr.bf16.mxu0 %v1567
  %1620 = vmatpush1.bf16.msra.mxu0 %v1564
  %1621 = vmatprep.subr.bf16.mxu0 0
  %1622 = vmatpush1.bf16.msra.mxu0 0
  %1623 = vmatprep.subr.bf16.mxu0 0
  %1624 = vmatpush1.bf16.msra.mxu0 0
  %1625 = vmatprep.subr.bf16.mxu0 0
  %1626 = vmatpush1.bf16.msra.mxu0 0
  %1627 = vmatprep.subr.bf16.mxu0 0
  %1628 = vmatpush1.bf16.msra.mxu0 0
  %1629 = vmatprep.subr.bf16.mxu0 0
  %1630 = vmatpush1.bf16.msra.mxu0 0
  %1631 = vmatprep.subr.bf16.mxu0 0
  %1632 = vmatpush1.bf16.msra.mxu0 0
  %1633 = vmatprep.subr.bf16.mxu0 0
  %1634 = vmatpush1.bf16.msra.mxu0 0
  %1635 = vmatprep.subr.bf16.mxu0 0
  %1636 = vmatpush1.bf16.msra.mxu0 0
  %1637 = vmatprep.subr.bf16.mxu0 0
  %1638 = vmatpush1.bf16.msra.mxu0 0
  %1639 = vmatprep.subr.bf16.mxu0 0
  %1640 = vmatpush1.bf16.msra.mxu0 0
  %1641 = vmatprep.subr.bf16.mxu0 0
  %1642 = vmatpush1.bf16.msra.mxu0 0
  %1643 = vmatprep.subr.bf16.mxu0 0
  %1644 = vmatpush1.bf16.msra.mxu0 0
  %1645 = vmatprep.subr.bf16.mxu0 0
  %1646 = vmatpush1.bf16.msra.mxu0 0
  %1647 = vmatprep.subr.bf16.mxu0 0
  %1648 = vmatpush1.bf16.msra.mxu0 0
  %1649 = vmatprep.subr.bf16.mxu0 0
  %1650 = vmatpush1.bf16.msra.mxu0 0
  %1651 = vmatprep.mubr.bf16.mxu0 0
  %1652 = vmatmul.mubr.bf16.gmra.mrb[0].mxu0 %v1555
  %v1653 = vpop.f32.mrb[0].mxu0
  %v1654 = vadd.f32 0.0, %v1653
  %v1655 = vpop.f32.mrb[0].mxu0
  %v1656 = vadd.f32 0.0, %v1655
  %v1657 = vpop.f32.mrb[0].mxu0
  %v1658 = vpop.f32.mrb[0].mxu0
  %1659 = vdwg.mxu0
  %1660 = vmatprep.subr.bf16.mxu0 %v1573
  %1661 = vmatpush1.bf16.msra.mxu0 %v1570
  %1662 = vmatprep.subr.bf16.mxu0 0
  %1663 = vmatpush1.bf16.msra.mxu0 0
  %1664 = vmatprep.subr.bf16.mxu0 0
  %1665 = vmatpush1.bf16.msra.mxu0 0
  %1666 = vmatprep.subr.bf16.mxu0 0
  %1667 = vmatpush1.bf16.msra.mxu0 0
  %1668 = vmatprep.subr.bf16.mxu0 0
  %1669 = vmatpush1.bf16.msra.mxu0 0
  %1670 = vmatprep.subr.bf16.mxu0 0
  %1671 = vmatpush1.bf16.msra.mxu0 0
  %1672 = vmatprep.subr.bf16.mxu0 0
  %1673 = vmatpush1.bf16.msra.mxu0 0
  %1674 = vmatprep.subr.bf16.mxu0 0
  %1675 = vmatpush1.bf16.msra.mxu0 0
  %1676 = vmatprep.subr.bf16.mxu0 0
  %1677 = vmatpush1.bf16.msra.mxu0 0
  %1678 = vmatprep.subr.bf16.mxu0 0
  %1679 = vmatpush1.bf16.msra.mxu0 0
  %1680 = vmatprep.subr.bf16.mxu0 0
  %1681 = vmatpush1.bf16.msra.mxu0 0
  %1682 = vmatprep.subr.bf16.mxu0 0
  %1683 = vmatpush1.bf16.msra.mxu0 0
  %1684 = vmatprep.subr.bf16.mxu0 0
  %1685 = vmatpush1.bf16.msra.mxu0 0
  %1686 = vmatprep.subr.bf16.mxu0 0
  %1687 = vmatpush1.bf16.msra.mxu0 0
  %1688 = vmatprep.subr.bf16.mxu0 0
  %1689 = vmatpush1.bf16.msra.mxu0 0
  %1690 = vmatprep.subr.bf16.mxu0 0
  %1691 = vmatpush1.bf16.msra.mxu0 0
  %1692 = vmatprep.mubr.bf16.mxu0 0
  %1693 = vmatmul.mubr.bf16.gmra.mrb[0].mxu0 %v1555
  %v1694 = vpop.f32.mrb[0].mxu0
  %v1695 = vadd.f32 0.0, %v1694
  %v1696 = vpop.f32.mrb[0].mxu0
  %v1697 = vadd.f32 0.0, %v1696
  %v1698 = vpop.f32.mrb[0].mxu0
  %v1699 = vpop.f32.mrb[0].mxu0
  %1700 = vdwg.mxu0
  %1701 = vmatprep.subr.bf16.mxu0 0
  %1702 = vmatpush1.bf16.msra.mxu0 %v1576
  %1703 = vmatprep.subr.bf16.mxu0 0
  %1704 = vmatpush1.bf16.msra.mxu0 0
  %1705 = vmatprep.subr.bf16.mxu0 0
  %1706 = vmatpush1.bf16.msra.mxu0 0
  %1707 = vmatprep.subr.bf16.mxu0 0
  %1708 = vmatpush1.bf16.msra.mxu0 0
  %1709 = vmatprep.subr.bf16.mxu0 0
  %1710 = vmatpush1.bf16.msra.mxu0 0
  %1711 = vmatprep.subr.bf16.mxu0 0
  %1712 = vmatpush1.bf16.msra.mxu0 0
  %1713 = vmatprep.subr.bf16.mxu0 0
  %1714 = vmatpush1.bf16.msra.mxu0 0
  %1715 = vmatprep.subr.bf16.mxu0 0
  %1716 = vmatpush1.bf16.msra.mxu0 0
  %1717 = vmatprep.subr.bf16.mxu0 0
  %1718 = vmatpush1.bf16.msra.mxu0 0
  %1719 = vmatprep.subr.bf16.mxu0 0
  %1720 = vmatpush1.bf16.msra.mxu0 0
  %1721 = vmatprep.subr.bf16.mxu0 0
  %1722 = vmatpush1.bf16.msra.mxu0 0
  %1723 = vmatprep.subr.bf16.mxu0 0
  %1724 = vmatpush1.bf16.msra.mxu0 0
  %1725 = vmatprep.subr.bf16.mxu0 0
  %1726 = vmatpush1.bf16.msra.mxu0 0
  %1727 = vmatprep.subr.bf16.mxu0 0
  %1728 = vmatpush1.bf16.msra.mxu0 0
  %1729 = vmatprep.subr.bf16.mxu0 0
  %1730 = vmatpush1.bf16.msra.mxu0 0
  %1731 = vmatprep.subr.bf16.mxu0 0
  %1732 = vmatpush1.bf16.msra.mxu0 0
  %1733 = vmatprep.mubr.bf16.mxu0 0
  %1734 = vmatmul.mubr.bf16.gmra.mrb[0].mxu0 %v1555
  %v1735 = vpop.f32.mrb[0].mxu0
  %v1736 = vadd.f32 0.0, %v1735
  %v1737 = vpop.f32.mrb[0].mxu0
  %v1738 = vpop.f32.mrb[0].mxu0
  %v1739 = vpop.f32.mrb[0].mxu0
  %1740 = vdwg.mxu0
  %v1741 = vadd.f32 %v1524, %v1613
  %v1742 = vadd.f32 %v1525, %v1615
  %v1743 = vadd.f32 %v1526, %v1654
  %v1744 = vadd.f32 %v1527, %v1656
  %v1745 = vadd.f32 %v1528, %v1695
  %v1746 = vadd.f32 %v1529, %v1697
  %v1747 = vadd.f32 %v1530, %v1736
  %s1748 = scalar_lea.vmem %s1, 32
  %v1749 = vld [vmem:[%s1748] sm:$0xf]
  %1750 = vrot.lane.b32.xlu0 %v42, 105
  %v1751 = vpop.permute.xlu0 %1750
  %1752 = vrot.lane.b32.xlu0 %v43, 105
  %v1753 = vpop.permute.xlu0 %1752
  %1754 = vrot.lane.b32.xlu0 %v44, 105
  %v1755 = vpop.permute.xlu0 %1754
  %1756 = vrot.lane.b32.xlu0 %v45, 105
  %v1757 = vpop.permute.xlu0 %1756
  %1758 = vrot.lane.b32.xlu0 %v46, 105
  %v1759 = vpop.permute.xlu0 %1758
  %1760 = vrot.lane.b32.xlu0 %v47, 105
  %v1761 = vpop.permute.xlu0 %1760
  %1762 = vrot.lane.b32.xlu0 %v48, 105
  %v1763 = vpop.permute.xlu0 %1762
  %vm1764 = vcmask 859136
  %v1765 = vsel %vm1764, %v1751, %v1753
  %v1766 = vsel %vm1764, %v1753, %v1755
  %v1767 = vsel %vm1764, %v1755, %v1757
  %v1768 = vsel %vm1764, %v1757, %v1759
  %v1769 = vsel %vm1764, %v1759, %v1761
  %v1770 = vsel %vm1764, %v1761, %v1763
  %v1772 = vsel %vm70, %v1749, 0
  %v1775 = vsel %vm74, %v1765, 0
  %v1778 = vsel %vm74, %v1766, 0
  %v1781 = vsel %vm74, %v1767, 0
  %v1784 = vsel %vm74, %v1768, 0
  %v1787 = vsel %vm74, %v1769, 0
  %v1790 = vsel %vm74, %v1770, 0
  %v1793 = vsel %vm74, %v1763, 0
  %1795 = vmatprep.subr.bf16.mxu0 %v1778
  %1796 = vmatpush1.bf16.msra.mxu0 %v1775
  %1797 = vmatprep.subr.bf16.mxu0 0
  %1798 = vmatpush1.bf16.msra.mxu0 0
  %1799 = vmatprep.subr.bf16.mxu0 0
  %1800 = vmatpush1.bf16.msra.mxu0 0
  %1801 = vmatprep.subr.bf16.mxu0 0
  %1802 = vmatpush1.bf16.msra.mxu0 0
  %1803 = vmatprep.subr.bf16.mxu0 0
  %1804 = vmatpush1.bf16.msra.mxu0 0
  %1805 = vmatprep.subr.bf16.mxu0 0
  %1806 = vmatpush1.bf16.msra.mxu0 0
  %1807 = vmatprep.subr.bf16.mxu0 0
  %1808 = vmatpush1.bf16.msra.mxu0 0
  %1809 = vmatprep.subr.bf16.mxu0 0
  %1810 = vmatpush1.bf16.msra.mxu0 0
  %1811 = vmatprep.subr.bf16.mxu0 0
  %1812 = vmatpush1.bf16.msra.mxu0 0
  %1813 = vmatprep.subr.bf16.mxu0 0
  %1814 = vmatpush1.bf16.msra.mxu0 0
  %1815 = vmatprep.subr.bf16.mxu0 0
  %1816 = vmatpush1.bf16.msra.mxu0 0
  %1817 = vmatprep.subr.bf16.mxu0 0
  %1818 = vmatpush1.bf16.msra.mxu0 0
  %1819 = vmatprep.subr.bf16.mxu0 0
  %1820 = vmatpush1.bf16.msra.mxu0 0
  %1821 = vmatprep.subr.bf16.mxu0 0
  %1822 = vmatpush1.bf16.msra.mxu0 0
  %1823 = vmatprep.subr.bf16.mxu0 0
  %1824 = vmatpush1.bf16.msra.mxu0 0
  %1825 = vmatprep.subr.bf16.mxu0 0
  %1826 = vmatpush1.bf16.msra.mxu0 0
  %1827 = vmatprep.mubr.bf16.mxu0 0
  %1828 = vmatmul.mubr.bf16.gmra.mrb[0].mxu0 %v1772
  %v1829 = vpop.f32.mrb[0].mxu0
  %v1830 = vadd.f32 0.0, %v1829
  %v1831 = vpop.f32.mrb[0].mxu0
  %v1832 = vadd.f32 0.0, %v1831
  %v1833 = vpop.f32.mrb[0].mxu0
  %v1834 = vpop.f32.mrb[0].mxu0
  %1835 = vdwg.mxu0
  %1836 = vmatprep.subr.bf16.mxu0 %v1784
  %1837 = vmatpush1.bf16.msra.mxu0 %v1781
  %1838 = vmatprep.subr.bf16.mxu0 0
  %1839 = vmatpush1.bf16.msra.mxu0 0
  %1840 = vmatprep.subr.bf16.mxu0 0
  %1841 = vmatpush1.bf16.msra.mxu0 0
  %1842 = vmatprep.subr.bf16.mxu0 0
  %1843 = vmatpush1.bf16.msra.mxu0 0
  %1844 = vmatprep.subr.bf16.mxu0 0
  %1845 = vmatpush1.bf16.msra.mxu0 0
  %1846 = vmatprep.subr.bf16.mxu0 0
  %1847 = vmatpush1.bf16.msra.mxu0 0
  %1848 = vmatprep.subr.bf16.mxu0 0
  %1849 = vmatpush1.bf16.msra.mxu0 0
  %1850 = vmatprep.subr.bf16.mxu0 0
  %1851 = vmatpush1.bf16.msra.mxu0 0
  %1852 = vmatprep.subr.bf16.mxu0 0
  %1853 = vmatpush1.bf16.msra.mxu0 0
  %1854 = vmatprep.subr.bf16.mxu0 0
  %1855 = vmatpush1.bf16.msra.mxu0 0
  %1856 = vmatprep.subr.bf16.mxu0 0
  %1857 = vmatpush1.bf16.msra.mxu0 0
  %1858 = vmatprep.subr.bf16.mxu0 0
  %1859 = vmatpush1.bf16.msra.mxu0 0
  %1860 = vmatprep.subr.bf16.mxu0 0
  %1861 = vmatpush1.bf16.msra.mxu0 0
  %1862 = vmatprep.subr.bf16.mxu0 0
  %1863 = vmatpush1.bf16.msra.mxu0 0
  %1864 = vmatprep.subr.bf16.mxu0 0
  %1865 = vmatpush1.bf16.msra.mxu0 0
  %1866 = vmatprep.subr.bf16.mxu0 0
  %1867 = vmatpush1.bf16.msra.mxu0 0
  %1868 = vmatprep.mubr.bf16.mxu0 0
  %1869 = vmatmul.mubr.bf16.gmra.mrb[0].mxu0 %v1772
  %v1870 = vpop.f32.mrb[0].mxu0
  %v1871 = vadd.f32 0.0, %v1870
  %v1872 = vpop.f32.mrb[0].mxu0
  %v1873 = vadd.f32 0.0, %v1872
  %v1874 = vpop.f32.mrb[0].mxu0
  %v1875 = vpop.f32.mrb[0].mxu0
  %1876 = vdwg.mxu0
  %1877 = vmatprep.subr.bf16.mxu0 %v1790
  %1878 = vmatpush1.bf16.msra.mxu0 %v1787
  %1879 = vmatprep.subr.bf16.mxu0 0
  %1880 = vmatpush1.bf16.msra.mxu0 0
  %1881 = vmatprep.subr.bf16.mxu0 0
  %1882 = vmatpush1.bf16.msra.mxu0 0
  %1883 = vmatprep.subr.bf16.mxu0 0
  %1884 = vmatpush1.bf16.msra.mxu0 0
  %1885 = vmatprep.subr.bf16.mxu0 0
  %1886 = vmatpush1.bf16.msra.mxu0 0
  %1887 = vmatprep.subr.bf16.mxu0 0
  %1888 = vmatpush1.bf16.msra.mxu0 0
  %1889 = vmatprep.subr.bf16.mxu0 0
  %1890 = vmatpush1.bf16.msra.mxu0 0
  %1891 = vmatprep.subr.bf16.mxu0 0
  %1892 = vmatpush1.bf16.msra.mxu0 0
  %1893 = vmatprep.subr.bf16.mxu0 0
  %1894 = vmatpush1.bf16.msra.mxu0 0
  %1895 = vmatprep.subr.bf16.mxu0 0
  %1896 = vmatpush1.bf16.msra.mxu0 0
  %1897 = vmatprep.subr.bf16.mxu0 0
  %1898 = vmatpush1.bf16.msra.mxu0 0
  %1899 = vmatprep.subr.bf16.mxu0 0
  %1900 = vmatpush1.bf16.msra.mxu0 0
  %1901 = vmatprep.subr.bf16.mxu0 0
  %1902 = vmatpush1.bf16.msra.mxu0 0
  %1903 = vmatprep.subr.bf16.mxu0 0
  %1904 = vmatpush1.bf16.msra.mxu0 0
  %1905 = vmatprep.subr.bf16.mxu0 0
  %1906 = vmatpush1.bf16.msra.mxu0 0
  %1907 = vmatprep.subr.bf16.mxu0 0
  %1908 = vmatpush1.bf16.msra.mxu0 0
  %1909 = vmatprep.mubr.bf16.mxu0 0
  %1910 = vmatmul.mubr.bf16.gmra.mrb[0].mxu0 %v1772
  %v1911 = vpop.f32.mrb[0].mxu0
  %v1912 = vadd.f32 0.0, %v1911
  %v1913 = vpop.f32.mrb[0].mxu0
  %v1914 = vadd.f32 0.0, %v1913
  %v1915 = vpop.f32.mrb[0].mxu0
  %v1916 = vpop.f32.mrb[0].mxu0
  %1917 = vdwg.mxu0
  %1918 = vmatprep.subr.bf16.mxu0 0
  %1919 = vmatpush1.bf16.msra.mxu0 %v1793
  %1920 = vmatprep.subr.bf16.mxu0 0
  %1921 = vmatpush1.bf16.msra.mxu0 0
  %1922 = vmatprep.subr.bf16.mxu0 0
  %1923 = vmatpush1.bf16.msra.mxu0 0
  %1924 = vmatprep.subr.bf16.mxu0 0
  %1925 = vmatpush1.bf16.msra.mxu0 0
  %1926 = vmatprep.subr.bf16.mxu0 0
  %1927 = vmatpush1.bf16.msra.mxu0 0
  %1928 = vmatprep.subr.bf16.mxu0 0
  %1929 = vmatpush1.bf16.msra.mxu0 0
  %1930 = vmatprep.subr.bf16.mxu0 0
  %1931 = vmatpush1.bf16.msra.mxu0 0
  %1932 = vmatprep.subr.bf16.mxu0 0
  %1933 = vmatpush1.bf16.msra.mxu0 0
  %1934 = vmatprep.subr.bf16.mxu0 0
  %1935 = vmatpush1.bf16.msra.mxu0 0
  %1936 = vmatprep.subr.bf16.mxu0 0
  %1937 = vmatpush1.bf16.msra.mxu0 0
  %1938 = vmatprep.subr.bf16.mxu0 0
  %1939 = vmatpush1.bf16.msra.mxu0 0
  %1940 = vmatprep.subr.bf16.mxu0 0
  %1941 = vmatpush1.bf16.msra.mxu0 0
  %1942 = vmatprep.subr.bf16.mxu0 0
  %1943 = vmatpush1.bf16.msra.mxu0 0
  %1944 = vmatprep.subr.bf16.mxu0 0
  %1945 = vmatpush1.bf16.msra.mxu0 0
  %1946 = vmatprep.subr.bf16.mxu0 0
  %1947 = vmatpush1.bf16.msra.mxu0 0
  %1948 = vmatprep.subr.bf16.mxu0 0
  %1949 = vmatpush1.bf16.msra.mxu0 0
  %1950 = vmatprep.mubr.bf16.mxu0 0
  %1951 = vmatmul.mubr.bf16.gmra.mrb[0].mxu0 %v1772
  %v1952 = vpop.f32.mrb[0].mxu0
  %v1953 = vadd.f32 0.0, %v1952
  %v1954 = vpop.f32.mrb[0].mxu0
  %v1955 = vpop.f32.mrb[0].mxu0
  %v1956 = vpop.f32.mrb[0].mxu0
  %1957 = vdwg.mxu0
  %v1958 = vadd.f32 %v1741, %v1830
  %v1959 = vadd.f32 %v1742, %v1832
  %v1960 = vadd.f32 %v1743, %v1871
  %v1961 = vadd.f32 %v1744, %v1873
  %v1962 = vadd.f32 %v1745, %v1912
  %v1963 = vadd.f32 %v1746, %v1914
  %v1964 = vadd.f32 %v1747, %v1953
  %s1965 = scalar_lea.vmem %s1, 36
  %v1966 = vld [vmem:[%s1965] sm:$0xf]
  %1967 = vrot.lane.b32.xlu0 %v42, 104
  %v1968 = vpop.permute.xlu0 %1967
  %1969 = vrot.lane.b32.xlu0 %v43, 104
  %v1970 = vpop.permute.xlu0 %1969
  %1971 = vrot.lane.b32.xlu0 %v44, 104
  %v1972 = vpop.permute.xlu0 %1971
  %1973 = vrot.lane.b32.xlu0 %v45, 104
  %v1974 = vpop.permute.xlu0 %1973
  %1975 = vrot.lane.b32.xlu0 %v46, 104
  %v1976 = vpop.permute.xlu0 %1975
  %1977 = vrot.lane.b32.xlu0 %v47, 104
  %v1978 = vpop.permute.xlu0 %1977
  %1979 = vrot.lane.b32.xlu0 %v48, 104
  %v1980 = vpop.permute.xlu0 %1979
  %vm1981 = vcmask 850944
  %v1982 = vsel %vm1981, %v1968, %v1970
  %v1983 = vsel %vm1981, %v1970, %v1972
  %v1984 = vsel %vm1981, %v1972, %v1974
  %v1985 = vsel %vm1981, %v1974, %v1976
  %v1986 = vsel %vm1981, %v1976, %v1978
  %v1987 = vsel %vm1981, %v1978, %v1980
  %v1989 = vsel %vm70, %v1966, 0
  %v1992 = vsel %vm74, %v1982, 0
  %v1995 = vsel %vm74, %v1983, 0
  %v1998 = vsel %vm74, %v1984, 0
  %v2001 = vsel %vm74, %v1985, 0
  %v2004 = vsel %vm74, %v1986, 0
  %v2007 = vsel %vm74, %v1987, 0
  %v2010 = vsel %vm74, %v1980, 0
  %2012 = vmatprep.subr.bf16.mxu0 %v1995
  %2013 = vmatpush1.bf16.msra.mxu0 %v1992
  %2014 = vmatprep.subr.bf16.mxu0 0
  %2015 = vmatpush1.bf16.msra.mxu0 0
  %2016 = vmatprep.subr.bf16.mxu0 0
  %2017 = vmatpush1.bf16.msra.mxu0 0
  %2018 = vmatprep.subr.bf16.mxu0 0
  %2019 = vmatpush1.bf16.msra.mxu0 0
  %2020 = vmatprep.subr.bf16.mxu0 0
  %2021 = vmatpush1.bf16.msra.mxu0 0
  %2022 = vmatprep.subr.bf16.mxu0 0
  %2023 = vmatpush1.bf16.msra.mxu0 0
  %2024 = vmatprep.subr.bf16.mxu0 0
  %2025 = vmatpush1.bf16.msra.mxu0 0
  %2026 = vmatprep.subr.bf16.mxu0 0
  %2027 = vmatpush1.bf16.msra.mxu0 0
  %2028 = vmatprep.subr.bf16.mxu0 0
  %2029 = vmatpush1.bf16.msra.mxu0 0
  %2030 = vmatprep.subr.bf16.mxu0 0
  %2031 = vmatpush1.bf16.msra.mxu0 0
  %2032 = vmatprep.subr.bf16.mxu0 0
  %2033 = vmatpush1.bf16.msra.mxu0 0
  %2034 = vmatprep.subr.bf16.mxu0 0
  %2035 = vmatpush1.bf16.msra.mxu0 0
  %2036 = vmatprep.subr.bf16.mxu0 0
  %2037 = vmatpush1.bf16.msra.mxu0 0
  %2038 = vmatprep.subr.bf16.mxu0 0
  %2039 = vmatpush1.bf16.msra.mxu0 0
  %2040 = vmatprep.subr.bf16.mxu0 0
  %2041 = vmatpush1.bf16.msra.mxu0 0
  %2042 = vmatprep.subr.bf16.mxu0 0
  %2043 = vmatpush1.bf16.msra.mxu0 0
  %2044 = vmatprep.mubr.bf16.mxu0 0
  %2045 = vmatmul.mubr.bf16.gmra.mrb[0].mxu0 %v1989
  %v2046 = vpop.f32.mrb[0].mxu0
  %v2047 = vadd.f32 0.0, %v2046
  %v2048 = vpop.f32.mrb[0].mxu0
  %v2049 = vadd.f32 0.0, %v2048
  %v2050 = vpop.f32.mrb[0].mxu0
  %v2051 = vpop.f32.mrb[0].mxu0
  %2052 = vdwg.mxu0
  %2053 = vmatprep.subr.bf16.mxu0 %v2001
  %2054 = vmatpush1.bf16.msra.mxu0 %v1998
  %2055 = vmatprep.subr.bf16.mxu0 0
  %2056 = vmatpush1.bf16.msra.mxu0 0
  %2057 = vmatprep.subr.bf16.mxu0 0
  %2058 = vmatpush1.bf16.msra.mxu0 0
  %2059 = vmatprep.subr.bf16.mxu0 0
  %2060 = vmatpush1.bf16.msra.mxu0 0
  %2061 = vmatprep.subr.bf16.mxu0 0
  %2062 = vmatpush1.bf16.msra.mxu0 0
  %2063 = vmatprep.subr.bf16.mxu0 0
  %2064 = vmatpush1.bf16.msra.mxu0 0
  %2065 = vmatprep.subr.bf16.mxu0 0
  %2066 = vmatpush1.bf16.msra.mxu0 0
  %2067 = vmatprep.subr.bf16.mxu0 0
  %2068 = vmatpush1.bf16.msra.mxu0 0
  %2069 = vmatprep.subr.bf16.mxu0 0
  %2070 = vmatpush1.bf16.msra.mxu0 0
  %2071 = vmatprep.subr.bf16.mxu0 0
  %2072 = vmatpush1.bf16.msra.mxu0 0
  %2073 = vmatprep.subr.bf16.mxu0 0
  %2074 = vmatpush1.bf16.msra.mxu0 0
  %2075 = vmatprep.subr.bf16.mxu0 0
  %2076 = vmatpush1.bf16.msra.mxu0 0
  %2077 = vmatprep.subr.bf16.mxu0 0
  %2078 = vmatpush1.bf16.msra.mxu0 0
  %2079 = vmatprep.subr.bf16.mxu0 0
  %2080 = vmatpush1.bf16.msra.mxu0 0
  %2081 = vmatprep.subr.bf16.mxu0 0
  %2082 = vmatpush1.bf16.msra.mxu0 0
  %2083 = vmatprep.subr.bf16.mxu0 0
  %2084 = vmatpush1.bf16.msra.mxu0 0
  %2085 = vmatprep.mubr.bf16.mxu0 0
  %2086 = vmatmul.mubr.bf16.gmra.mrb[0].mxu0 %v1989
  %v2087 = vpop.f32.mrb[0].mxu0
  %v2088 = vadd.f32 0.0, %v2087
  %v2089 = vpop.f32.mrb[0].mxu0
  %v2090 = vadd.f32 0.0, %v2089
  %v2091 = vpop.f32.mrb[0].mxu0
  %v2092 = vpop.f32.mrb[0].mxu0
  %2093 = vdwg.mxu0
  %2094 = vmatprep.subr.bf16.mxu0 %v2007
  %2095 = vmatpush1.bf16.msra.mxu0 %v2004
  %2096 = vmatprep.subr.bf16.mxu0 0
  %2097 = vmatpush1.bf16.msra.mxu0 0
  %2098 = vmatprep.subr.bf16.mxu0 0
  %2099 = vmatpush1.bf16.msra.mxu0 0
  %2100 = vmatprep.subr.bf16.mxu0 0
  %2101 = vmatpush1.bf16.msra.mxu0 0
  %2102 = vmatprep.subr.bf16.mxu0 0
  %2103 = vmatpush1.bf16.msra.mxu0 0
  %2104 = vmatprep.subr.bf16.mxu0 0
  %2105 = vmatpush1.bf16.msra.mxu0 0
  %2106 = vmatprep.subr.bf16.mxu0 0
  %2107 = vmatpush1.bf16.msra.mxu0 0
  %2108 = vmatprep.subr.bf16.mxu0 0
  %2109 = vmatpush1.bf16.msra.mxu0 0
  %2110 = vmatprep.subr.bf16.mxu0 0
  %2111 = vmatpush1.bf16.msra.mxu0 0
  %2112 = vmatprep.subr.bf16.mxu0 0
  %2113 = vmatpush1.bf16.msra.mxu0 0
  %2114 = vmatprep.subr.bf16.mxu0 0
  %2115 = vmatpush1.bf16.msra.mxu0 0
  %2116 = vmatprep.subr.bf16.mxu0 0
  %2117 = vmatpush1.bf16.msra.mxu0 0
  %2118 = vmatprep.subr.bf16.mxu0 0
  %2119 = vmatpush1.bf16.msra.mxu0 0
  %2120 = vmatprep.subr.bf16.mxu0 0
  %2121 = vmatpush1.bf16.msra.mxu0 0
  %2122 = vmatprep.subr.bf16.mxu0 0
  %2123 = vmatpush1.bf16.msra.mxu0 0
  %2124 = vmatprep.subr.bf16.mxu0 0
  %2125 = vmatpush1.bf16.msra.mxu0 0
  %2126 = vmatprep.mubr.bf16.mxu0 0
  %2127 = vmatmul.mubr.bf16.gmra.mrb[0].mxu0 %v1989
  %v2128 = vpop.f32.mrb[0].mxu0
  %v2129 = vadd.f32 0.0, %v2128
  %v2130 = vpop.f32.mrb[0].mxu0
  %v2131 = vadd.f32 0.0, %v2130
  %v2132 = vpop.f32.mrb[0].mxu0
  %v2133 = vpop.f32.mrb[0].mxu0
  %2134 = vdwg.mxu0
  %2135 = vmatprep.subr.bf16.mxu0 0
  %2136 = vmatpush1.bf16.msra.mxu0 %v2010
  %2137 = vmatprep.subr.bf16.mxu0 0
  %2138 = vmatpush1.bf16.msra.mxu0 0
  %2139 = vmatprep.subr.bf16.mxu0 0
  %2140 = vmatpush1.bf16.msra.mxu0 0
  %2141 = vmatprep.subr.bf16.mxu0 0
  %2142 = vmatpush1.bf16.msra.mxu0 0
  %2143 = vmatprep.subr.bf16.mxu0 0
  %2144 = vmatpush1.bf16.msra.mxu0 0
  %2145 = vmatprep.subr.bf16.mxu0 0
  %2146 = vmatpush1.bf16.msra.mxu0 0
  %2147 = vmatprep.subr.bf16.mxu0 0
  %2148 = vmatpush1.bf16.msra.mxu0 0
  %2149 = vmatprep.subr.bf16.mxu0 0
  %2150 = vmatpush1.bf16.msra.mxu0 0
  %2151 = vmatprep.subr.bf16.mxu0 0
  %2152 = vmatpush1.bf16.msra.mxu0 0
  %2153 = vmatprep.subr.bf16.mxu0 0
  %2154 = vmatpush1.bf16.msra.mxu0 0
  %2155 = vmatprep.subr.bf16.mxu0 0
  %2156 = vmatpush1.bf16.msra.mxu0 0
  %2157 = vmatprep.subr.bf16.mxu0 0
  %2158 = vmatpush1.bf16.msra.mxu0 0
  %2159 = vmatprep.subr.bf16.mxu0 0
  %2160 = vmatpush1.bf16.msra.mxu0 0
  %2161 = vmatprep.subr.bf16.mxu0 0
  %2162 = vmatpush1.bf16.msra.mxu0 0
  %2163 = vmatprep.subr.bf16.mxu0 0
  %2164 = vmatpush1.bf16.msra.mxu0 0
  %2165 = vmatprep.subr.bf16.mxu0 0
  %2166 = vmatpush1.bf16.msra.mxu0 0
  %2167 = vmatprep.mubr.bf16.mxu0 0
  %2168 = vmatmul.mubr.bf16.gmra.mrb[0].mxu0 %v1989
  %v2169 = vpop.f32.mrb[0].mxu0
  %v2170 = vadd.f32 0.0, %v2169
  %v2171 = vpop.f32.mrb[0].mxu0
  %v2172 = vpop.f32.mrb[0].mxu0
  %v2173 = vpop.f32.mrb[0].mxu0
  %2174 = vdwg.mxu0
  %v2175 = vadd.f32 %v1958, %v2047
  %v2176 = vadd.f32 %v1959, %v2049
  %v2177 = vadd.f32 %v1960, %v2088
  %v2178 = vadd.f32 %v1961, %v2090
  %v2179 = vadd.f32 %v1962, %v2129
  %v2180 = vadd.f32 %v1963, %v2131
  %v2181 = vadd.f32 %v1964, %v2170
  %s2182 = scalar_lea.vmem %s1, 40
  %v2183 = vld [vmem:[%s2182] sm:$0xf]
  %2184 = vrot.lane.b32.xlu0 %v42, 88
  %v2185 = vpop.permute.xlu0 %2184
  %2186 = vrot.lane.b32.xlu0 %v43, 88
  %v2187 = vpop.permute.xlu0 %2186
  %2188 = vrot.lane.b32.xlu0 %v44, 88
  %v2189 = vpop.permute.xlu0 %2188
  %2190 = vrot.lane.b32.xlu0 %v45, 88
  %v2191 = vpop.permute.xlu0 %2190
  %2192 = vrot.lane.b32.xlu0 %v46, 88
  %v2193 = vpop.permute.xlu0 %2192
  %2194 = vrot.lane.b32.xlu0 %v47, 88
  %v2195 = vpop.permute.xlu0 %2194
  %2196 = vrot.lane.b32.xlu0 %v48, 88
  %v2197 = vpop.permute.xlu0 %2196
  %vm2198 = vcmask 719872
  %v2199 = vsel %vm2198, %v2185, %v2187
  %v2200 = vsel %vm2198, %v2187, %v2189
  %v2201 = vsel %vm2198, %v2189, %v2191
  %v2202 = vsel %vm2198, %v2191, %v2193
  %v2203 = vsel %vm2198, %v2193, %v2195
  %v2204 = vsel %vm2198, %v2195, %v2197
  %v2206 = vsel %vm70, %v2183, 0
  %v2209 = vsel %vm74, %v2199, 0
  %v2212 = vsel %vm74, %v2200, 0
  %v2215 = vsel %vm74, %v2201, 0
  %v2218 = vsel %vm74, %v2202, 0
  %v2221 = vsel %vm74, %v2203, 0
  %v2224 = vsel %vm74, %v2204, 0
  %v2227 = vsel %vm74, %v2197, 0
  %2229 = vmatprep.subr.bf16.mxu0 %v2212
  %2230 = vmatpush1.bf16.msra.mxu0 %v2209
  %2231 = vmatprep.subr.bf16.mxu0 0
  %2232 = vmatpush1.bf16.msra.mxu0 0
  %2233 = vmatprep.subr.bf16.mxu0 0
  %2234 = vmatpush1.bf16.msra.mxu0 0
  %2235 = vmatprep.subr.bf16.mxu0 0
  %2236 = vmatpush1.bf16.msra.mxu0 0
  %2237 = vmatprep.subr.bf16.mxu0 0
  %2238 = vmatpush1.bf16.msra.mxu0 0
  %2239 = vmatprep.subr.bf16.mxu0 0
  %2240 = vmatpush1.bf16.msra.mxu0 0
  %2241 = vmatprep.subr.bf16.mxu0 0
  %2242 = vmatpush1.bf16.msra.mxu0 0
  %2243 = vmatprep.subr.bf16.mxu0 0
  %2244 = vmatpush1.bf16.msra.mxu0 0
  %2245 = vmatprep.subr.bf16.mxu0 0
  %2246 = vmatpush1.bf16.msra.mxu0 0
  %2247 = vmatprep.subr.bf16.mxu0 0
  %2248 = vmatpush1.bf16.msra.mxu0 0
  %2249 = vmatprep.subr.bf16.mxu0 0
  %2250 = vmatpush1.bf16.msra.mxu0 0
  %2251 = vmatprep.subr.bf16.mxu0 0
  %2252 = vmatpush1.bf16.msra.mxu0 0
  %2253 = vmatprep.subr.bf16.mxu0 0
  %2254 = vmatpush1.bf16.msra.mxu0 0
  %2255 = vmatprep.subr.bf16.mxu0 0
  %2256 = vmatpush1.bf16.msra.mxu0 0
  %2257 = vmatprep.subr.bf16.mxu0 0
  %2258 = vmatpush1.bf16.msra.mxu0 0
  %2259 = vmatprep.subr.bf16.mxu0 0
  %2260 = vmatpush1.bf16.msra.mxu0 0
  %2261 = vmatprep.mubr.bf16.mxu0 0
  %2262 = vmatmul.mubr.bf16.gmra.mrb[0].mxu0 %v2206
  %v2263 = vpop.f32.mrb[0].mxu0
  %v2264 = vadd.f32 0.0, %v2263
  %v2265 = vpop.f32.mrb[0].mxu0
  %v2266 = vadd.f32 0.0, %v2265
  %v2267 = vpop.f32.mrb[0].mxu0
  %v2268 = vpop.f32.mrb[0].mxu0
  %2269 = vdwg.mxu0
  %2270 = vmatprep.subr.bf16.mxu0 %v2218
  %2271 = vmatpush1.bf16.msra.mxu0 %v2215
  %2272 = vmatprep.subr.bf16.mxu0 0
  %2273 = vmatpush1.bf16.msra.mxu0 0
  %2274 = vmatprep.subr.bf16.mxu0 0
  %2275 = vmatpush1.bf16.msra.mxu0 0
  %2276 = vmatprep.subr.bf16.mxu0 0
  %2277 = vmatpush1.bf16.msra.mxu0 0
  %2278 = vmatprep.subr.bf16.mxu0 0
  %2279 = vmatpush1.bf16.msra.mxu0 0
  %2280 = vmatprep.subr.bf16.mxu0 0
  %2281 = vmatpush1.bf16.msra.mxu0 0
  %2282 = vmatprep.subr.bf16.mxu0 0
  %2283 = vmatpush1.bf16.msra.mxu0 0
  %2284 = vmatprep.subr.bf16.mxu0 0
  %2285 = vmatpush1.bf16.msra.mxu0 0
  %2286 = vmatprep.subr.bf16.mxu0 0
  %2287 = vmatpush1.bf16.msra.mxu0 0
  %2288 = vmatprep.subr.bf16.mxu0 0
  %2289 = vmatpush1.bf16.msra.mxu0 0
  %2290 = vmatprep.subr.bf16.mxu0 0
  %2291 = vmatpush1.bf16.msra.mxu0 0
  %2292 = vmatprep.subr.bf16.mxu0 0
  %2293 = vmatpush1.bf16.msra.mxu0 0
  %2294 = vmatprep.subr.bf16.mxu0 0
  %2295 = vmatpush1.bf16.msra.mxu0 0
  %2296 = vmatprep.subr.bf16.mxu0 0
  %2297 = vmatpush1.bf16.msra.mxu0 0
  %2298 = vmatprep.subr.bf16.mxu0 0
  %2299 = vmatpush1.bf16.msra.mxu0 0
  %2300 = vmatprep.subr.bf16.mxu0 0
  %2301 = vmatpush1.bf16.msra.mxu0 0
  %2302 = vmatprep.mubr.bf16.mxu0 0
  %2303 = vmatmul.mubr.bf16.gmra.mrb[0].mxu0 %v2206
  %v2304 = vpop.f32.mrb[0].mxu0
  %v2305 = vadd.f32 0.0, %v2304
  %v2306 = vpop.f32.mrb[0].mxu0
  %v2307 = vadd.f32 0.0, %v2306
  %v2308 = vpop.f32.mrb[0].mxu0
  %v2309 = vpop.f32.mrb[0].mxu0
  %2310 = vdwg.mxu0
  %2311 = vmatprep.subr.bf16.mxu0 %v2224
  %2312 = vmatpush1.bf16.msra.mxu0 %v2221
  %2313 = vmatprep.subr.bf16.mxu0 0
  %2314 = vmatpush1.bf16.msra.mxu0 0
  %2315 = vmatprep.subr.bf16.mxu0 0
  %2316 = vmatpush1.bf16.msra.mxu0 0
  %2317 = vmatprep.subr.bf16.mxu0 0
  %2318 = vmatpush1.bf16.msra.mxu0 0
  %2319 = vmatprep.subr.bf16.mxu0 0
  %2320 = vmatpush1.bf16.msra.mxu0 0
  %2321 = vmatprep.subr.bf16.mxu0 0
  %2322 = vmatpush1.bf16.msra.mxu0 0
  %2323 = vmatprep.subr.bf16.mxu0 0
  %2324 = vmatpush1.bf16.msra.mxu0 0
  %2325 = vmatprep.subr.bf16.mxu0 0
  %2326 = vmatpush1.bf16.msra.mxu0 0
  %2327 = vmatprep.subr.bf16.mxu0 0
  %2328 = vmatpush1.bf16.msra.mxu0 0
  %2329 = vmatprep.subr.bf16.mxu0 0
  %2330 = vmatpush1.bf16.msra.mxu0 0
  %2331 = vmatprep.subr.bf16.mxu0 0
  %2332 = vmatpush1.bf16.msra.mxu0 0
  %2333 = vmatprep.subr.bf16.mxu0 0
  %2334 = vmatpush1.bf16.msra.mxu0 0
  %2335 = vmatprep.subr.bf16.mxu0 0
  %2336 = vmatpush1.bf16.msra.mxu0 0
  %2337 = vmatprep.subr.bf16.mxu0 0
  %2338 = vmatpush1.bf16.msra.mxu0 0
  %2339 = vmatprep.subr.bf16.mxu0 0
  %2340 = vmatpush1.bf16.msra.mxu0 0
  %2341 = vmatprep.subr.bf16.mxu0 0
  %2342 = vmatpush1.bf16.msra.mxu0 0
  %2343 = vmatprep.mubr.bf16.mxu0 0
  %2344 = vmatmul.mubr.bf16.gmra.mrb[0].mxu0 %v2206
  %v2345 = vpop.f32.mrb[0].mxu0
  %v2346 = vadd.f32 0.0, %v2345
  %v2347 = vpop.f32.mrb[0].mxu0
  %v2348 = vadd.f32 0.0, %v2347
  %v2349 = vpop.f32.mrb[0].mxu0
  %v2350 = vpop.f32.mrb[0].mxu0
  %2351 = vdwg.mxu0
  %2352 = vmatprep.subr.bf16.mxu0 0
  %2353 = vmatpush1.bf16.msra.mxu0 %v2227
  %2354 = vmatprep.subr.bf16.mxu0 0
  %2355 = vmatpush1.bf16.msra.mxu0 0
  %2356 = vmatprep.subr.bf16.mxu0 0
  %2357 = vmatpush1.bf16.msra.mxu0 0
  %2358 = vmatprep.subr.bf16.mxu0 0
  %2359 = vmatpush1.bf16.msra.mxu0 0
  %2360 = vmatprep.subr.bf16.mxu0 0
  %2361 = vmatpush1.bf16.msra.mxu0 0
  %2362 = vmatprep.subr.bf16.mxu0 0
  %2363 = vmatpush1.bf16.msra.mxu0 0
  %2364 = vmatprep.subr.bf16.mxu0 0
  %2365 = vmatpush1.bf16.msra.mxu0 0
  %2366 = vmatprep.subr.bf16.mxu0 0
  %2367 = vmatpush1.bf16.msra.mxu0 0
  %2368 = vmatprep.subr.bf16.mxu0 0
  %2369 = vmatpush1.bf16.msra.mxu0 0
  %2370 = vmatprep.subr.bf16.mxu0 0
  %2371 = vmatpush1.bf16.msra.mxu0 0
  %2372 = vmatprep.subr.bf16.mxu0 0
  %2373 = vmatpush1.bf16.msra.mxu0 0
  %2374 = vmatprep.subr.bf16.mxu0 0
  %2375 = vmatpush1.bf16.msra.mxu0 0
  %2376 = vmatprep.subr.bf16.mxu0 0
  %2377 = vmatpush1.bf16.msra.mxu0 0
  %2378 = vmatprep.subr.bf16.mxu0 0
  %2379 = vmatpush1.bf16.msra.mxu0 0
  %2380 = vmatprep.subr.bf16.mxu0 0
  %2381 = vmatpush1.bf16.msra.mxu0 0
  %2382 = vmatprep.subr.bf16.mxu0 0
  %2383 = vmatpush1.bf16.msra.mxu0 0
  %2384 = vmatprep.mubr.bf16.mxu0 0
  %2385 = vmatmul.mubr.bf16.gmra.mrb[0].mxu0 %v2206
  %v2386 = vpop.f32.mrb[0].mxu0
  %v2387 = vadd.f32 0.0, %v2386
  %v2388 = vpop.f32.mrb[0].mxu0
  %v2389 = vpop.f32.mrb[0].mxu0
  %v2390 = vpop.f32.mrb[0].mxu0
  %2391 = vdwg.mxu0
  %v2392 = vadd.f32 %v2175, %v2264
  %v2393 = vadd.f32 %v2176, %v2266
  %v2394 = vadd.f32 %v2177, %v2305
  %v2395 = vadd.f32 %v2178, %v2307
  %v2396 = vadd.f32 %v2179, %v2346
  %v2397 = vadd.f32 %v2180, %v2348
  %v2398 = vadd.f32 %v2181, %v2387
  %s2399 = scalar_lea.vmem %s1, 44
  %v2400 = vld [vmem:[%s2399] sm:$0xf]
  %2401 = vrot.lane.b32.xlu0 %v42, 87
  %v2402 = vpop.permute.xlu0 %2401
  %2403 = vrot.lane.b32.xlu0 %v43, 87
  %v2404 = vpop.permute.xlu0 %2403
  %2405 = vrot.lane.b32.xlu0 %v44, 87
  %v2406 = vpop.permute.xlu0 %2405
  %2407 = vrot.lane.b32.xlu0 %v45, 87
  %v2408 = vpop.permute.xlu0 %2407
  %2409 = vrot.lane.b32.xlu0 %v46, 87
  %v2410 = vpop.permute.xlu0 %2409
  %2411 = vrot.lane.b32.xlu0 %v47, 87
  %v2412 = vpop.permute.xlu0 %2411
  %2413 = vrot.lane.b32.xlu0 %v48, 87
  %v2414 = vpop.permute.xlu0 %2413
  %vm2415 = vcmask 711680
  %v2416 = vsel %vm2415, %v2402, %v2404
  %v2417 = vsel %vm2415, %v2404, %v2406
  %v2418 = vsel %vm2415, %v2406, %v2408
  %v2419 = vsel %vm2415, %v2408, %v2410
  %v2420 = vsel %vm2415, %v2410, %v2412
  %v2421 = vsel %vm2415, %v2412, %v2414
  %v2423 = vsel %vm70, %v2400, 0
  %v2426 = vsel %vm74, %v2416, 0
  %v2429 = vsel %vm74, %v2417, 0
  %v2432 = vsel %vm74, %v2418, 0
  %v2435 = vsel %vm74, %v2419, 0
  %v2438 = vsel %vm74, %v2420, 0
  %v2441 = vsel %vm74, %v2421, 0
  %v2444 = vsel %vm74, %v2414, 0
  %2446 = vmatprep.subr.bf16.mxu0 %v2429
  %2447 = vmatpush1.bf16.msra.mxu0 %v2426
  %2448 = vmatprep.subr.bf16.mxu0 0
  %2449 = vmatpush1.bf16.msra.mxu0 0
  %2450 = vmatprep.subr.bf16.mxu0 0
  %2451 = vmatpush1.bf16.msra.mxu0 0
  %2452 = vmatprep.subr.bf16.mxu0 0
  %2453 = vmatpush1.bf16.msra.mxu0 0
  %2454 = vmatprep.subr.bf16.mxu0 0
  %2455 = vmatpush1.bf16.msra.mxu0 0
  %2456 = vmatprep.subr.bf16.mxu0 0
  %2457 = vmatpush1.bf16.msra.mxu0 0
  %2458 = vmatprep.subr.bf16.mxu0 0
  %2459 = vmatpush1.bf16.msra.mxu0 0
  %2460 = vmatprep.subr.bf16.mxu0 0
  %2461 = vmatpush1.bf16.msra.mxu0 0
  %2462 = vmatprep.subr.bf16.mxu0 0
  %2463 = vmatpush1.bf16.msra.mxu0 0
  %2464 = vmatprep.subr.bf16.mxu0 0
  %2465 = vmatpush1.bf16.msra.mxu0 0
  %2466 = vmatprep.subr.bf16.mxu0 0
  %2467 = vmatpush1.bf16.msra.mxu0 0
  %2468 = vmatprep.subr.bf16.mxu0 0
  %2469 = vmatpush1.bf16.msra.mxu0 0
  %2470 = vmatprep.subr.bf16.mxu0 0
  %2471 = vmatpush1.bf16.msra.mxu0 0
  %2472 = vmatprep.subr.bf16.mxu0 0
  %2473 = vmatpush1.bf16.msra.mxu0 0
  %2474 = vmatprep.subr.bf16.mxu0 0
  %2475 = vmatpush1.bf16.msra.mxu0 0
  %2476 = vmatprep.subr.bf16.mxu0 0
  %2477 = vmatpush1.bf16.msra.mxu0 0
  %2478 = vmatprep.mubr.bf16.mxu0 0
  %2479 = vmatmul.mubr.bf16.gmra.mrb[0].mxu0 %v2423
  %v2480 = vpop.f32.mrb[0].mxu0
  %v2481 = vadd.f32 0.0, %v2480
  %v2482 = vpop.f32.mrb[0].mxu0
  %v2483 = vadd.f32 0.0, %v2482
  %v2484 = vpop.f32.mrb[0].mxu0
  %v2485 = vpop.f32.mrb[0].mxu0
  %2486 = vdwg.mxu0
  %2487 = vmatprep.subr.bf16.mxu0 %v2435
  %2488 = vmatpush1.bf16.msra.mxu0 %v2432
  %2489 = vmatprep.subr.bf16.mxu0 0
  %2490 = vmatpush1.bf16.msra.mxu0 0
  %2491 = vmatprep.subr.bf16.mxu0 0
  %2492 = vmatpush1.bf16.msra.mxu0 0
  %2493 = vmatprep.subr.bf16.mxu0 0
  %2494 = vmatpush1.bf16.msra.mxu0 0
  %2495 = vmatprep.subr.bf16.mxu0 0
  %2496 = vmatpush1.bf16.msra.mxu0 0
  %2497 = vmatprep.subr.bf16.mxu0 0
  %2498 = vmatpush1.bf16.msra.mxu0 0
  %2499 = vmatprep.subr.bf16.mxu0 0
  %2500 = vmatpush1.bf16.msra.mxu0 0
  %2501 = vmatprep.subr.bf16.mxu0 0
  %2502 = vmatpush1.bf16.msra.mxu0 0
  %2503 = vmatprep.subr.bf16.mxu0 0
  %2504 = vmatpush1.bf16.msra.mxu0 0
  %2505 = vmatprep.subr.bf16.mxu0 0
  %2506 = vmatpush1.bf16.msra.mxu0 0
  %2507 = vmatprep.subr.bf16.mxu0 0
  %2508 = vmatpush1.bf16.msra.mxu0 0
  %2509 = vmatprep.subr.bf16.mxu0 0
  %2510 = vmatpush1.bf16.msra.mxu0 0
  %2511 = vmatprep.subr.bf16.mxu0 0
  %2512 = vmatpush1.bf16.msra.mxu0 0
  %2513 = vmatprep.subr.bf16.mxu0 0
  %2514 = vmatpush1.bf16.msra.mxu0 0
  %2515 = vmatprep.subr.bf16.mxu0 0
  %2516 = vmatpush1.bf16.msra.mxu0 0
  %2517 = vmatprep.subr.bf16.mxu0 0
  %2518 = vmatpush1.bf16.msra.mxu0 0
  %2519 = vmatprep.mubr.bf16.mxu0 0
  %2520 = vmatmul.mubr.bf16.gmra.mrb[0].mxu0 %v2423
  %v2521 = vpop.f32.mrb[0].mxu0
  %v2522 = vadd.f32 0.0, %v2521
  %v2523 = vpop.f32.mrb[0].mxu0
  %v2524 = vadd.f32 0.0, %v2523
  %v2525 = vpop.f32.mrb[0].mxu0
  %v2526 = vpop.f32.mrb[0].mxu0
  %2527 = vdwg.mxu0
  %2528 = vmatprep.subr.bf16.mxu0 %v2441
  %2529 = vmatpush1.bf16.msra.mxu0 %v2438
  %2530 = vmatprep.subr.bf16.mxu0 0
  %2531 = vmatpush1.bf16.msra.mxu0 0
  %2532 = vmatprep.subr.bf16.mxu0 0
  %2533 = vmatpush1.bf16.msra.mxu0 0
  %2534 = vmatprep.subr.bf16.mxu0 0
  %2535 = vmatpush1.bf16.msra.mxu0 0
  %2536 = vmatprep.subr.bf16.mxu0 0
  %2537 = vmatpush1.bf16.msra.mxu0 0
  %2538 = vmatprep.subr.bf16.mxu0 0
  %2539 = vmatpush1.bf16.msra.mxu0 0
  %2540 = vmatprep.subr.bf16.mxu0 0
  %2541 = vmatpush1.bf16.msra.mxu0 0
  %2542 = vmatprep.subr.bf16.mxu0 0
  %2543 = vmatpush1.bf16.msra.mxu0 0
  %2544 = vmatprep.subr.bf16.mxu0 0
  %2545 = vmatpush1.bf16.msra.mxu0 0
  %2546 = vmatprep.subr.bf16.mxu0 0
  %2547 = vmatpush1.bf16.msra.mxu0 0
  %2548 = vmatprep.subr.bf16.mxu0 0
  %2549 = vmatpush1.bf16.msra.mxu0 0
  %2550 = vmatprep.subr.bf16.mxu0 0
  %2551 = vmatpush1.bf16.msra.mxu0 0
  %2552 = vmatprep.subr.bf16.mxu0 0
  %2553 = vmatpush1.bf16.msra.mxu0 0
  %2554 = vmatprep.subr.bf16.mxu0 0
  %2555 = vmatpush1.bf16.msra.mxu0 0
  %2556 = vmatprep.subr.bf16.mxu0 0
  %2557 = vmatpush1.bf16.msra.mxu0 0
  %2558 = vmatprep.subr.bf16.mxu0 0
  %2559 = vmatpush1.bf16.msra.mxu0 0
  %2560 = vmatprep.mubr.bf16.mxu0 0
  %2561 = vmatmul.mubr.bf16.gmra.mrb[0].mxu0 %v2423
  %v2562 = vpop.f32.mrb[0].mxu0
  %v2563 = vadd.f32 0.0, %v2562
  %v2564 = vpop.f32.mrb[0].mxu0
  %v2565 = vadd.f32 0.0, %v2564
  %v2566 = vpop.f32.mrb[0].mxu0
  %v2567 = vpop.f32.mrb[0].mxu0
  %2568 = vdwg.mxu0
  %2569 = vmatprep.subr.bf16.mxu0 0
  %2570 = vmatpush1.bf16.msra.mxu0 %v2444
  %2571 = vmatprep.subr.bf16.mxu0 0
  %2572 = vmatpush1.bf16.msra.mxu0 0
  %2573 = vmatprep.subr.bf16.mxu0 0
  %2574 = vmatpush1.bf16.msra.mxu0 0
  %2575 = vmatprep.subr.bf16.mxu0 0
  %2576 = vmatpush1.bf16.msra.mxu0 0
  %2577 = vmatprep.subr.bf16.mxu0 0
  %2578 = vmatpush1.bf16.msra.mxu0 0
  %2579 = vmatprep.subr.bf16.mxu0 0
  %2580 = vmatpush1.bf16.msra.mxu0 0
  %2581 = vmatprep.subr.bf16.mxu0 0
  %2582 = vmatpush1.bf16.msra.mxu0 0
  %2583 = vmatprep.subr.bf16.mxu0 0
  %2584 = vmatpush1.bf16.msra.mxu0 0
  %2585 = vmatprep.subr.bf16.mxu0 0
  %2586 = vmatpush1.bf16.msra.mxu0 0
  %2587 = vmatprep.subr.bf16.mxu0 0
  %2588 = vmatpush1.bf16.msra.mxu0 0
  %2589 = vmatprep.subr.bf16.mxu0 0
  %2590 = vmatpush1.bf16.msra.mxu0 0
  %2591 = vmatprep.subr.bf16.mxu0 0
  %2592 = vmatpush1.bf16.msra.mxu0 0
  %2593 = vmatprep.subr.bf16.mxu0 0
  %2594 = vmatpush1.bf16.msra.mxu0 0
  %2595 = vmatprep.subr.bf16.mxu0 0
  %2596 = vmatpush1.bf16.msra.mxu0 0
  %2597 = vmatprep.subr.bf16.mxu0 0
  %2598 = vmatpush1.bf16.msra.mxu0 0
  %2599 = vmatprep.subr.bf16.mxu0 0
  %2600 = vmatpush1.bf16.msra.mxu0 0
  %2601 = vmatprep.mubr.bf16.mxu0 0
  %2602 = vmatmul.mubr.bf16.gmra.mrb[0].mxu0 %v2423
  %v2603 = vpop.f32.mrb[0].mxu0
  %v2604 = vadd.f32 0.0, %v2603
  %v2605 = vpop.f32.mrb[0].mxu0
  %v2606 = vpop.f32.mrb[0].mxu0
  %v2607 = vpop.f32.mrb[0].mxu0
  %2608 = vdwg.mxu0
  %v2609 = vadd.f32 %v2392, %v2481
  %v2610 = vadd.f32 %v2393, %v2483
  %v2611 = vadd.f32 %v2394, %v2522
  %v2612 = vadd.f32 %v2395, %v2524
  %v2613 = vadd.f32 %v2396, %v2563
  %v2614 = vadd.f32 %v2397, %v2565
  %v2615 = vadd.f32 %v2398, %v2604
  %s2616 = scalar_lea.vmem %s1, 48
  %v2617 = vld [vmem:[%s2616] sm:$0xf]
  %2618 = vrot.lane.b32.xlu0 %v42, 86
  %v2619 = vpop.permute.xlu0 %2618
  %2620 = vrot.lane.b32.xlu0 %v43, 86
  %v2621 = vpop.permute.xlu0 %2620
  %2622 = vrot.lane.b32.xlu0 %v44, 86
  %v2623 = vpop.permute.xlu0 %2622
  %2624 = vrot.lane.b32.xlu0 %v45, 86
  %v2625 = vpop.permute.xlu0 %2624
  %2626 = vrot.lane.b32.xlu0 %v46, 86
  %v2627 = vpop.permute.xlu0 %2626
  %2628 = vrot.lane.b32.xlu0 %v47, 86
  %v2629 = vpop.permute.xlu0 %2628
  %2630 = vrot.lane.b32.xlu0 %v48, 86
  %v2631 = vpop.permute.xlu0 %2630
  %vm2632 = vcmask 703488
  %v2633 = vsel %vm2632, %v2619, %v2621
  %v2634 = vsel %vm2632, %v2621, %v2623
  %v2635 = vsel %vm2632, %v2623, %v2625
  %v2636 = vsel %vm2632, %v2625, %v2627
  %v2637 = vsel %vm2632, %v2627, %v2629
  %v2638 = vsel %vm2632, %v2629, %v2631
  %v2640 = vsel %vm70, %v2617, 0
  %v2643 = vsel %vm74, %v2633, 0
  %v2646 = vsel %vm74, %v2634, 0
  %v2649 = vsel %vm74, %v2635, 0
  %v2652 = vsel %vm74, %v2636, 0
  %v2655 = vsel %vm74, %v2637, 0
  %v2658 = vsel %vm74, %v2638, 0
  %v2661 = vsel %vm74, %v2631, 0
  %2663 = vmatprep.subr.bf16.mxu0 %v2646
  %2664 = vmatpush1.bf16.msra.mxu0 %v2643
  %2665 = vmatprep.subr.bf16.mxu0 0
  %2666 = vmatpush1.bf16.msra.mxu0 0
  %2667 = vmatprep.subr.bf16.mxu0 0
  %2668 = vmatpush1.bf16.msra.mxu0 0
  %2669 = vmatprep.subr.bf16.mxu0 0
  %2670 = vmatpush1.bf16.msra.mxu0 0
  %2671 = vmatprep.subr.bf16.mxu0 0
  %2672 = vmatpush1.bf16.msra.mxu0 0
  %2673 = vmatprep.subr.bf16.mxu0 0
  %2674 = vmatpush1.bf16.msra.mxu0 0
  %2675 = vmatprep.subr.bf16.mxu0 0
  %2676 = vmatpush1.bf16.msra.mxu0 0
  %2677 = vmatprep.subr.bf16.mxu0 0
  %2678 = vmatpush1.bf16.msra.mxu0 0
  %2679 = vmatprep.subr.bf16.mxu0 0
  %2680 = vmatpush1.bf16.msra.mxu0 0
  %2681 = vmatprep.subr.bf16.mxu0 0
  %2682 = vmatpush1.bf16.msra.mxu0 0
  %2683 = vmatprep.subr.bf16.mxu0 0
  %2684 = vmatpush1.bf16.msra.mxu0 0
  %2685 = vmatprep.subr.bf16.mxu0 0
  %2686 = vmatpush1.bf16.msra.mxu0 0
  %2687 = vmatprep.subr.bf16.mxu0 0
  %2688 = vmatpush1.bf16.msra.mxu0 0
  %2689 = vmatprep.subr.bf16.mxu0 0
  %2690 = vmatpush1.bf16.msra.mxu0 0
  %2691 = vmatprep.subr.bf16.mxu0 0
  %2692 = vmatpush1.bf16.msra.mxu0 0
  %2693 = vmatprep.subr.bf16.mxu0 0
  %2694 = vmatpush1.bf16.msra.mxu0 0
  %2695 = vmatprep.mubr.bf16.mxu0 0
  %2696 = vmatmul.mubr.bf16.gmra.mrb[0].mxu0 %v2640
  %v2697 = vpop.f32.mrb[0].mxu0
  %v2698 = vadd.f32 0.0, %v2697
  %v2699 = vpop.f32.mrb[0].mxu0
  %v2700 = vadd.f32 0.0, %v2699
  %v2701 = vpop.f32.mrb[0].mxu0
  %v2702 = vpop.f32.mrb[0].mxu0
  %2703 = vdwg.mxu0
  %2704 = vmatprep.subr.bf16.mxu0 %v2652
  %2705 = vmatpush1.bf16.msra.mxu0 %v2649
  %2706 = vmatprep.subr.bf16.mxu0 0
  %2707 = vmatpush1.bf16.msra.mxu0 0
  %2708 = vmatprep.subr.bf16.mxu0 0
  %2709 = vmatpush1.bf16.msra.mxu0 0
  %2710 = vmatprep.subr.bf16.mxu0 0
  %2711 = vmatpush1.bf16.msra.mxu0 0
  %2712 = vmatprep.subr.bf16.mxu0 0
  %2713 = vmatpush1.bf16.msra.mxu0 0
  %2714 = vmatprep.subr.bf16.mxu0 0
  %2715 = vmatpush1.bf16.msra.mxu0 0
  %2716 = vmatprep.subr.bf16.mxu0 0
  %2717 = vmatpush1.bf16.msra.mxu0 0
  %2718 = vmatprep.subr.bf16.mxu0 0
  %2719 = vmatpush1.bf16.msra.mxu0 0
  %2720 = vmatprep.subr.bf16.mxu0 0
  %2721 = vmatpush1.bf16.msra.mxu0 0
  %2722 = vmatprep.subr.bf16.mxu0 0
  %2723 = vmatpush1.bf16.msra.mxu0 0
  %2724 = vmatprep.subr.bf16.mxu0 0
  %2725 = vmatpush1.bf16.msra.mxu0 0
  %2726 = vmatprep.subr.bf16.mxu0 0
  %2727 = vmatpush1.bf16.msra.mxu0 0
  %2728 = vmatprep.subr.bf16.mxu0 0
  %2729 = vmatpush1.bf16.msra.mxu0 0
  %2730 = vmatprep.subr.bf16.mxu0 0
  %2731 = vmatpush1.bf16.msra.mxu0 0
  %2732 = vmatprep.subr.bf16.mxu0 0
  %2733 = vmatpush1.bf16.msra.mxu0 0
  %2734 = vmatprep.subr.bf16.mxu0 0
  %2735 = vmatpush1.bf16.msra.mxu0 0
  %2736 = vmatprep.mubr.bf16.mxu0 0
  %2737 = vmatmul.mubr.bf16.gmra.mrb[0].mxu0 %v2640
  %v2738 = vpop.f32.mrb[0].mxu0
  %v2739 = vadd.f32 0.0, %v2738
  %v2740 = vpop.f32.mrb[0].mxu0
  %v2741 = vadd.f32 0.0, %v2740
  %v2742 = vpop.f32.mrb[0].mxu0
  %v2743 = vpop.f32.mrb[0].mxu0
  %2744 = vdwg.mxu0
  %2745 = vmatprep.subr.bf16.mxu0 %v2658
  %2746 = vmatpush1.bf16.msra.mxu0 %v2655
  %2747 = vmatprep.subr.bf16.mxu0 0
  %2748 = vmatpush1.bf16.msra.mxu0 0
  %2749 = vmatprep.subr.bf16.mxu0 0
  %2750 = vmatpush1.bf16.msra.mxu0 0
  %2751 = vmatprep.subr.bf16.mxu0 0
  %2752 = vmatpush1.bf16.msra.mxu0 0
  %2753 = vmatprep.subr.bf16.mxu0 0
  %2754 = vmatpush1.bf16.msra.mxu0 0
  %2755 = vmatprep.subr.bf16.mxu0 0
  %2756 = vmatpush1.bf16.msra.mxu0 0
  %2757 = vmatprep.subr.bf16.mxu0 0
  %2758 = vmatpush1.bf16.msra.mxu0 0
  %2759 = vmatprep.subr.bf16.mxu0 0
  %2760 = vmatpush1.bf16.msra.mxu0 0
  %2761 = vmatprep.subr.bf16.mxu0 0
  %2762 = vmatpush1.bf16.msra.mxu0 0
  %2763 = vmatprep.subr.bf16.mxu0 0
  %2764 = vmatpush1.bf16.msra.mxu0 0
  %2765 = vmatprep.subr.bf16.mxu0 0
  %2766 = vmatpush1.bf16.msra.mxu0 0
  %2767 = vmatprep.subr.bf16.mxu0 0
  %2768 = vmatpush1.bf16.msra.mxu0 0
  %2769 = vmatprep.subr.bf16.mxu0 0
  %2770 = vmatpush1.bf16.msra.mxu0 0
  %2771 = vmatprep.subr.bf16.mxu0 0
  %2772 = vmatpush1.bf16.msra.mxu0 0
  %2773 = vmatprep.subr.bf16.mxu0 0
  %2774 = vmatpush1.bf16.msra.mxu0 0
  %2775 = vmatprep.subr.bf16.mxu0 0
  %2776 = vmatpush1.bf16.msra.mxu0 0
  %2777 = vmatprep.mubr.bf16.mxu0 0
  %2778 = vmatmul.mubr.bf16.gmra.mrb[0].mxu0 %v2640
  %v2779 = vpop.f32.mrb[0].mxu0
  %v2780 = vadd.f32 0.0, %v2779
  %v2781 = vpop.f32.mrb[0].mxu0
  %v2782 = vadd.f32 0.0, %v2781
  %v2783 = vpop.f32.mrb[0].mxu0
  %v2784 = vpop.f32.mrb[0].mxu0
  %2785 = vdwg.mxu0
  %2786 = vmatprep.subr.bf16.mxu0 0
  %2787 = vmatpush1.bf16.msra.mxu0 %v2661
  %2788 = vmatprep.subr.bf16.mxu0 0
  %2789 = vmatpush1.bf16.msra.mxu0 0
  %2790 = vmatprep.subr.bf16.mxu0 0
  %2791 = vmatpush1.bf16.msra.mxu0 0
  %2792 = vmatprep.subr.bf16.mxu0 0
  %2793 = vmatpush1.bf16.msra.mxu0 0
  %2794 = vmatprep.subr.bf16.mxu0 0
  %2795 = vmatpush1.bf16.msra.mxu0 0
  %2796 = vmatprep.subr.bf16.mxu0 0
  %2797 = vmatpush1.bf16.msra.mxu0 0
  %2798 = vmatprep.subr.bf16.mxu0 0
  %2799 = vmatpush1.bf16.msra.mxu0 0
  %2800 = vmatprep.subr.bf16.mxu0 0
  %2801 = vmatpush1.bf16.msra.mxu0 0
  %2802 = vmatprep.subr.bf16.mxu0 0
  %2803 = vmatpush1.bf16.msra.mxu0 0
  %2804 = vmatprep.subr.bf16.mxu0 0
  %2805 = vmatpush1.bf16.msra.mxu0 0
  %2806 = vmatprep.subr.bf16.mxu0 0
  %2807 = vmatpush1.bf16.msra.mxu0 0
  %2808 = vmatprep.subr.bf16.mxu0 0
  %2809 = vmatpush1.bf16.msra.mxu0 0
  %2810 = vmatprep.subr.bf16.mxu0 0
  %2811 = vmatpush1.bf16.msra.mxu0 0
  %2812 = vmatprep.subr.bf16.mxu0 0
  %2813 = vmatpush1.bf16.msra.mxu0 0
  %2814 = vmatprep.subr.bf16.mxu0 0
  %2815 = vmatpush1.bf16.msra.mxu0 0
  %2816 = vmatprep.subr.bf16.mxu0 0
  %2817 = vmatpush1.bf16.msra.mxu0 0
  %2818 = vmatprep.mubr.bf16.mxu0 0
  %2819 = vmatmul.mubr.bf16.gmra.mrb[0].mxu0 %v2640
  %v2820 = vpop.f32.mrb[0].mxu0
  %v2821 = vadd.f32 0.0, %v2820
  %v2822 = vpop.f32.mrb[0].mxu0
  %v2823 = vpop.f32.mrb[0].mxu0
  %v2824 = vpop.f32.mrb[0].mxu0
  %2825 = vdwg.mxu0
  %v2826 = vadd.f32 %v2609, %v2698
  %v2827 = vadd.f32 %v2610, %v2700
  %v2828 = vadd.f32 %v2611, %v2739
  %v2829 = vadd.f32 %v2612, %v2741
  %v2830 = vadd.f32 %v2613, %v2780
  %v2831 = vadd.f32 %v2614, %v2782
  %v2832 = vadd.f32 %v2615, %v2821
  %s2833 = scalar_lea.vmem %s1, 52
  %v2834 = vld [vmem:[%s2833] sm:$0xf]
  %2835 = vrot.lane.b32.xlu0 %v42, 85
  %v2836 = vpop.permute.xlu0 %2835
  %2837 = vrot.lane.b32.xlu0 %v43, 85
  %v2838 = vpop.permute.xlu0 %2837
  %2839 = vrot.lane.b32.xlu0 %v44, 85
  %v2840 = vpop.permute.xlu0 %2839
  %2841 = vrot.lane.b32.xlu0 %v45, 85
  %v2842 = vpop.permute.xlu0 %2841
  %2843 = vrot.lane.b32.xlu0 %v46, 85
  %v2844 = vpop.permute.xlu0 %2843
  %2845 = vrot.lane.b32.xlu0 %v47, 85
  %v2846 = vpop.permute.xlu0 %2845
  %2847 = vrot.lane.b32.xlu0 %v48, 85
  %v2848 = vpop.permute.xlu0 %2847
  %vm2849 = vcmask 695296
  %v2850 = vsel %vm2849, %v2836, %v2838
  %v2851 = vsel %vm2849, %v2838, %v2840
  %v2852 = vsel %vm2849, %v2840, %v2842
  %v2853 = vsel %vm2849, %v2842, %v2844
  %v2854 = vsel %vm2849, %v2844, %v2846
  %v2855 = vsel %vm2849, %v2846, %v2848
  %v2857 = vsel %vm70, %v2834, 0
  %v2860 = vsel %vm74, %v2850, 0
  %v2863 = vsel %vm74, %v2851, 0
  %v2866 = vsel %vm74, %v2852, 0
  %v2869 = vsel %vm74, %v2853, 0
  %v2872 = vsel %vm74, %v2854, 0
  %v2875 = vsel %vm74, %v2855, 0
  %v2878 = vsel %vm74, %v2848, 0
  %2880 = vmatprep.subr.bf16.mxu0 %v2863
  %2881 = vmatpush1.bf16.msra.mxu0 %v2860
  %2882 = vmatprep.subr.bf16.mxu0 0
  %2883 = vmatpush1.bf16.msra.mxu0 0
  %2884 = vmatprep.subr.bf16.mxu0 0
  %2885 = vmatpush1.bf16.msra.mxu0 0
  %2886 = vmatprep.subr.bf16.mxu0 0
  %2887 = vmatpush1.bf16.msra.mxu0 0
  %2888 = vmatprep.subr.bf16.mxu0 0
  %2889 = vmatpush1.bf16.msra.mxu0 0
  %2890 = vmatprep.subr.bf16.mxu0 0
  %2891 = vmatpush1.bf16.msra.mxu0 0
  %2892 = vmatprep.subr.bf16.mxu0 0
  %2893 = vmatpush1.bf16.msra.mxu0 0
  %2894 = vmatprep.subr.bf16.mxu0 0
  %2895 = vmatpush1.bf16.msra.mxu0 0
  %2896 = vmatprep.subr.bf16.mxu0 0
  %2897 = vmatpush1.bf16.msra.mxu0 0
  %2898 = vmatprep.subr.bf16.mxu0 0
  %2899 = vmatpush1.bf16.msra.mxu0 0
  %2900 = vmatprep.subr.bf16.mxu0 0
  %2901 = vmatpush1.bf16.msra.mxu0 0
  %2902 = vmatprep.subr.bf16.mxu0 0
  %2903 = vmatpush1.bf16.msra.mxu0 0
  %2904 = vmatprep.subr.bf16.mxu0 0
  %2905 = vmatpush1.bf16.msra.mxu0 0
  %2906 = vmatprep.subr.bf16.mxu0 0
  %2907 = vmatpush1.bf16.msra.mxu0 0
  %2908 = vmatprep.subr.bf16.mxu0 0
  %2909 = vmatpush1.bf16.msra.mxu0 0
  %2910 = vmatprep.subr.bf16.mxu0 0
  %2911 = vmatpush1.bf16.msra.mxu0 0
  %2912 = vmatprep.mubr.bf16.mxu0 0
  %2913 = vmatmul.mubr.bf16.gmra.mrb[0].mxu0 %v2857
  %v2914 = vpop.f32.mrb[0].mxu0
  %v2915 = vadd.f32 0.0, %v2914
  %v2916 = vpop.f32.mrb[0].mxu0
  %v2917 = vadd.f32 0.0, %v2916
  %v2918 = vpop.f32.mrb[0].mxu0
  %v2919 = vpop.f32.mrb[0].mxu0
  %2920 = vdwg.mxu0
  %2921 = vmatprep.subr.bf16.mxu0 %v2869
  %2922 = vmatpush1.bf16.msra.mxu0 %v2866
  %2923 = vmatprep.subr.bf16.mxu0 0
  %2924 = vmatpush1.bf16.msra.mxu0 0
  %2925 = vmatprep.subr.bf16.mxu0 0
  %2926 = vmatpush1.bf16.msra.mxu0 0
  %2927 = vmatprep.subr.bf16.mxu0 0
  %2928 = vmatpush1.bf16.msra.mxu0 0
  %2929 = vmatprep.subr.bf16.mxu0 0
  %2930 = vmatpush1.bf16.msra.mxu0 0
  %2931 = vmatprep.subr.bf16.mxu0 0
  %2932 = vmatpush1.bf16.msra.mxu0 0
  %2933 = vmatprep.subr.bf16.mxu0 0
  %2934 = vmatpush1.bf16.msra.mxu0 0
  %2935 = vmatprep.subr.bf16.mxu0 0
  %2936 = vmatpush1.bf16.msra.mxu0 0
  %2937 = vmatprep.subr.bf16.mxu0 0
  %2938 = vmatpush1.bf16.msra.mxu0 0
  %2939 = vmatprep.subr.bf16.mxu0 0
  %2940 = vmatpush1.bf16.msra.mxu0 0
  %2941 = vmatprep.subr.bf16.mxu0 0
  %2942 = vmatpush1.bf16.msra.mxu0 0
  %2943 = vmatprep.subr.bf16.mxu0 0
  %2944 = vmatpush1.bf16.msra.mxu0 0
  %2945 = vmatprep.subr.bf16.mxu0 0
  %2946 = vmatpush1.bf16.msra.mxu0 0
  %2947 = vmatprep.subr.bf16.mxu0 0
  %2948 = vmatpush1.bf16.msra.mxu0 0
  %2949 = vmatprep.subr.bf16.mxu0 0
  %2950 = vmatpush1.bf16.msra.mxu0 0
  %2951 = vmatprep.subr.bf16.mxu0 0
  %2952 = vmatpush1.bf16.msra.mxu0 0
  %2953 = vmatprep.mubr.bf16.mxu0 0
  %2954 = vmatmul.mubr.bf16.gmra.mrb[0].mxu0 %v2857
  %v2955 = vpop.f32.mrb[0].mxu0
  %v2956 = vadd.f32 0.0, %v2955
  %v2957 = vpop.f32.mrb[0].mxu0
  %v2958 = vadd.f32 0.0, %v2957
  %v2959 = vpop.f32.mrb[0].mxu0
  %v2960 = vpop.f32.mrb[0].mxu0
  %2961 = vdwg.mxu0
  %2962 = vmatprep.subr.bf16.mxu0 %v2875
  %2963 = vmatpush1.bf16.msra.mxu0 %v2872
  %2964 = vmatprep.subr.bf16.mxu0 0
  %2965 = vmatpush1.bf16.msra.mxu0 0
  %2966 = vmatprep.subr.bf16.mxu0 0
  %2967 = vmatpush1.bf16.msra.mxu0 0
  %2968 = vmatprep.subr.bf16.mxu0 0
  %2969 = vmatpush1.bf16.msra.mxu0 0
  %2970 = vmatprep.subr.bf16.mxu0 0
  %2971 = vmatpush1.bf16.msra.mxu0 0
  %2972 = vmatprep.subr.bf16.mxu0 0
  %2973 = vmatpush1.bf16.msra.mxu0 0
  %2974 = vmatprep.subr.bf16.mxu0 0
  %2975 = vmatpush1.bf16.msra.mxu0 0
  %2976 = vmatprep.subr.bf16.mxu0 0
  %2977 = vmatpush1.bf16.msra.mxu0 0
  %2978 = vmatprep.subr.bf16.mxu0 0
  %2979 = vmatpush1.bf16.msra.mxu0 0
  %2980 = vmatprep.subr.bf16.mxu0 0
  %2981 = vmatpush1.bf16.msra.mxu0 0
  %2982 = vmatprep.subr.bf16.mxu0 0
  %2983 = vmatpush1.bf16.msra.mxu0 0
  %2984 = vmatprep.subr.bf16.mxu0 0
  %2985 = vmatpush1.bf16.msra.mxu0 0
  %2986 = vmatprep.subr.bf16.mxu0 0
  %2987 = vmatpush1.bf16.msra.mxu0 0
  %2988 = vmatprep.subr.bf16.mxu0 0
  %2989 = vmatpush1.bf16.msra.mxu0 0
  %2990 = vmatprep.subr.bf16.mxu0 0
  %2991 = vmatpush1.bf16.msra.mxu0 0
  %2992 = vmatprep.subr.bf16.mxu0 0
  %2993 = vmatpush1.bf16.msra.mxu0 0
  %2994 = vmatprep.mubr.bf16.mxu0 0
  %2995 = vmatmul.mubr.bf16.gmra.mrb[0].mxu0 %v2857
  %v2996 = vpop.f32.mrb[0].mxu0
  %v2997 = vadd.f32 0.0, %v2996
  %v2998 = vpop.f32.mrb[0].mxu0
  %v2999 = vadd.f32 0.0, %v2998
  %v3000 = vpop.f32.mrb[0].mxu0
  %v3001 = vpop.f32.mrb[0].mxu0
  %3002 = vdwg.mxu0
  %3003 = vmatprep.subr.bf16.mxu0 0
  %3004 = vmatpush1.bf16.msra.mxu0 %v2878
  %3005 = vmatprep.subr.bf16.mxu0 0
  %3006 = vmatpush1.bf16.msra.mxu0 0
  %3007 = vmatprep.subr.bf16.mxu0 0
  %3008 = vmatpush1.bf16.msra.mxu0 0
  %3009 = vmatprep.subr.bf16.mxu0 0
  %3010 = vmatpush1.bf16.msra.mxu0 0
  %3011 = vmatprep.subr.bf16.mxu0 0
  %3012 = vmatpush1.bf16.msra.mxu0 0
  %3013 = vmatprep.subr.bf16.mxu0 0
  %3014 = vmatpush1.bf16.msra.mxu0 0
  %3015 = vmatprep.subr.bf16.mxu0 0
  %3016 = vmatpush1.bf16.msra.mxu0 0
  %3017 = vmatprep.subr.bf16.mxu0 0
  %3018 = vmatpush1.bf16.msra.mxu0 0
  %3019 = vmatprep.subr.bf16.mxu0 0
  %3020 = vmatpush1.bf16.msra.mxu0 0
  %3021 = vmatprep.subr.bf16.mxu0 0
  %3022 = vmatpush1.bf16.msra.mxu0 0
  %3023 = vmatprep.subr.bf16.mxu0 0
  %3024 = vmatpush1.bf16.msra.mxu0 0
  %3025 = vmatprep.subr.bf16.mxu0 0
  %3026 = vmatpush1.bf16.msra.mxu0 0
  %3027 = vmatprep.subr.bf16.mxu0 0
  %3028 = vmatpush1.bf16.msra.mxu0 0
  %3029 = vmatprep.subr.bf16.mxu0 0
  %3030 = vmatpush1.bf16.msra.mxu0 0
  %3031 = vmatprep.subr.bf16.mxu0 0
  %3032 = vmatpush1.bf16.msra.mxu0 0
  %3033 = vmatprep.subr.bf16.mxu0 0
  %3034 = vmatpush1.bf16.msra.mxu0 0
  %3035 = vmatprep.mubr.bf16.mxu0 0
  %3036 = vmatmul.mubr.bf16.gmra.mrb[0].mxu0 %v2857
  %v3037 = vpop.f32.mrb[0].mxu0
  %v3038 = vadd.f32 0.0, %v3037
  %v3039 = vpop.f32.mrb[0].mxu0
  %v3040 = vpop.f32.mrb[0].mxu0
  %v3041 = vpop.f32.mrb[0].mxu0
  %3042 = vdwg.mxu0
  %v3043 = vadd.f32 %v2826, %v2915
  %v3044 = vadd.f32 %v2827, %v2917
  %v3045 = vadd.f32 %v2828, %v2956
  %v3046 = vadd.f32 %v2829, %v2958
  %v3047 = vadd.f32 %v2830, %v2997
  %v3048 = vadd.f32 %v2831, %v2999
  %v3049 = vadd.f32 %v2832, %v3038
  %s3050 = scalar_lea.vmem %s1, 56
  %v3051 = vld [vmem:[%s3050] sm:$0xf]
  %3052 = vrot.lane.b32.xlu0 %v42, 84
  %v3053 = vpop.permute.xlu0 %3052
  %3054 = vrot.lane.b32.xlu0 %v43, 84
  %v3055 = vpop.permute.xlu0 %3054
  %3056 = vrot.lane.b32.xlu0 %v44, 84
  %v3057 = vpop.permute.xlu0 %3056
  %3058 = vrot.lane.b32.xlu0 %v45, 84
  %v3059 = vpop.permute.xlu0 %3058
  %3060 = vrot.lane.b32.xlu0 %v46, 84
  %v3061 = vpop.permute.xlu0 %3060
  %3062 = vrot.lane.b32.xlu0 %v47, 84
  %v3063 = vpop.permute.xlu0 %3062
  %3064 = vrot.lane.b32.xlu0 %v48, 84
  %v3065 = vpop.permute.xlu0 %3064
  %vm3066 = vcmask 687104
  %v3067 = vsel %vm3066, %v3053, %v3055
  %v3068 = vsel %vm3066, %v3055, %v3057
  %v3069 = vsel %vm3066, %v3057, %v3059
  %v3070 = vsel %vm3066, %v3059, %v3061
  %v3071 = vsel %vm3066, %v3061, %v3063
  %v3072 = vsel %vm3066, %v3063, %v3065
  %v3074 = vsel %vm70, %v3051, 0
  %v3077 = vsel %vm74, %v3067, 0
  %v3080 = vsel %vm74, %v3068, 0
  %v3083 = vsel %vm74, %v3069, 0
  %v3086 = vsel %vm74, %v3070, 0
  %v3089 = vsel %vm74, %v3071, 0
  %v3092 = vsel %vm74, %v3072, 0
  %v3095 = vsel %vm74, %v3065, 0
  %3097 = vmatprep.subr.bf16.mxu0 %v3080
  %3098 = vmatpush1.bf16.msra.mxu0 %v3077
  %3099 = vmatprep.subr.bf16.mxu0 0
  %3100 = vmatpush1.bf16.msra.mxu0 0
  %3101 = vmatprep.subr.bf16.mxu0 0
  %3102 = vmatpush1.bf16.msra.mxu0 0
  %3103 = vmatprep.subr.bf16.mxu0 0
  %3104 = vmatpush1.bf16.msra.mxu0 0
  %3105 = vmatprep.subr.bf16.mxu0 0
  %3106 = vmatpush1.bf16.msra.mxu0 0
  %3107 = vmatprep.subr.bf16.mxu0 0
  %3108 = vmatpush1.bf16.msra.mxu0 0
  %3109 = vmatprep.subr.bf16.mxu0 0
  %3110 = vmatpush1.bf16.msra.mxu0 0
  %3111 = vmatprep.subr.bf16.mxu0 0
  %3112 = vmatpush1.bf16.msra.mxu0 0
  %3113 = vmatprep.subr.bf16.mxu0 0
  %3114 = vmatpush1.bf16.msra.mxu0 0
  %3115 = vmatprep.subr.bf16.mxu0 0
  %3116 = vmatpush1.bf16.msra.mxu0 0
  %3117 = vmatprep.subr.bf16.mxu0 0
  %3118 = vmatpush1.bf16.msra.mxu0 0
  %3119 = vmatprep.subr.bf16.mxu0 0
  %3120 = vmatpush1.bf16.msra.mxu0 0
  %3121 = vmatprep.subr.bf16.mxu0 0
  %3122 = vmatpush1.bf16.msra.mxu0 0
  %3123 = vmatprep.subr.bf16.mxu0 0
  %3124 = vmatpush1.bf16.msra.mxu0 0
  %3125 = vmatprep.subr.bf16.mxu0 0
  %3126 = vmatpush1.bf16.msra.mxu0 0
  %3127 = vmatprep.subr.bf16.mxu0 0
  %3128 = vmatpush1.bf16.msra.mxu0 0
  %3129 = vmatprep.mubr.bf16.mxu0 0
  %3130 = vmatmul.mubr.bf16.gmra.mrb[0].mxu0 %v3074
  %v3131 = vpop.f32.mrb[0].mxu0
  %v3132 = vadd.f32 0.0, %v3131
  %v3133 = vpop.f32.mrb[0].mxu0
  %v3134 = vadd.f32 0.0, %v3133
  %v3135 = vpop.f32.mrb[0].mxu0
  %v3136 = vpop.f32.mrb[0].mxu0
  %3137 = vdwg.mxu0
  %3138 = vmatprep.subr.bf16.mxu0 %v3086
  %3139 = vmatpush1.bf16.msra.mxu0 %v3083
  %3140 = vmatprep.subr.bf16.mxu0 0
  %3141 = vmatpush1.bf16.msra.mxu0 0
  %3142 = vmatprep.subr.bf16.mxu0 0
  %3143 = vmatpush1.bf16.msra.mxu0 0
  %3144 = vmatprep.subr.bf16.mxu0 0
  %3145 = vmatpush1.bf16.msra.mxu0 0
  %3146 = vmatprep.subr.bf16.mxu0 0
  %3147 = vmatpush1.bf16.msra.mxu0 0
  %3148 = vmatprep.subr.bf16.mxu0 0
  %3149 = vmatpush1.bf16.msra.mxu0 0
  %3150 = vmatprep.subr.bf16.mxu0 0
  %3151 = vmatpush1.bf16.msra.mxu0 0
  %3152 = vmatprep.subr.bf16.mxu0 0
  %3153 = vmatpush1.bf16.msra.mxu0 0
  %3154 = vmatprep.subr.bf16.mxu0 0
  %3155 = vmatpush1.bf16.msra.mxu0 0
  %3156 = vmatprep.subr.bf16.mxu0 0
  %3157 = vmatpush1.bf16.msra.mxu0 0
  %3158 = vmatprep.subr.bf16.mxu0 0
  %3159 = vmatpush1.bf16.msra.mxu0 0
  %3160 = vmatprep.subr.bf16.mxu0 0
  %3161 = vmatpush1.bf16.msra.mxu0 0
  %3162 = vmatprep.subr.bf16.mxu0 0
  %3163 = vmatpush1.bf16.msra.mxu0 0
  %3164 = vmatprep.subr.bf16.mxu0 0
  %3165 = vmatpush1.bf16.msra.mxu0 0
  %3166 = vmatprep.subr.bf16.mxu0 0
  %3167 = vmatpush1.bf16.msra.mxu0 0
  %3168 = vmatprep.subr.bf16.mxu0 0
  %3169 = vmatpush1.bf16.msra.mxu0 0
  %3170 = vmatprep.mubr.bf16.mxu0 0
  %3171 = vmatmul.mubr.bf16.gmra.mrb[0].mxu0 %v3074
  %v3172 = vpop.f32.mrb[0].mxu0
  %v3173 = vadd.f32 0.0, %v3172
  %v3174 = vpop.f32.mrb[0].mxu0
  %v3175 = vadd.f32 0.0, %v3174
  %v3176 = vpop.f32.mrb[0].mxu0
  %v3177 = vpop.f32.mrb[0].mxu0
  %3178 = vdwg.mxu0
  %3179 = vmatprep.subr.bf16.mxu0 %v3092
  %3180 = vmatpush1.bf16.msra.mxu0 %v3089
  %3181 = vmatprep.subr.bf16.mxu0 0
  %3182 = vmatpush1.bf16.msra.mxu0 0
  %3183 = vmatprep.subr.bf16.mxu0 0
  %3184 = vmatpush1.bf16.msra.mxu0 0
  %3185 = vmatprep.subr.bf16.mxu0 0
  %3186 = vmatpush1.bf16.msra.mxu0 0
  %3187 = vmatprep.subr.bf16.mxu0 0
  %3188 = vmatpush1.bf16.msra.mxu0 0
  %3189 = vmatprep.subr.bf16.mxu0 0
  %3190 = vmatpush1.bf16.msra.mxu0 0
  %3191 = vmatprep.subr.bf16.mxu0 0
  %3192 = vmatpush1.bf16.msra.mxu0 0
  %3193 = vmatprep.subr.bf16.mxu0 0
  %3194 = vmatpush1.bf16.msra.mxu0 0
  %3195 = vmatprep.subr.bf16.mxu0 0
  %3196 = vmatpush1.bf16.msra.mxu0 0
  %3197 = vmatprep.subr.bf16.mxu0 0
  %3198 = vmatpush1.bf16.msra.mxu0 0
  %3199 = vmatprep.subr.bf16.mxu0 0
  %3200 = vmatpush1.bf16.msra.mxu0 0
  %3201 = vmatprep.subr.bf16.mxu0 0
  %3202 = vmatpush1.bf16.msra.mxu0 0
  %3203 = vmatprep.subr.bf16.mxu0 0
  %3204 = vmatpush1.bf16.msra.mxu0 0
  %3205 = vmatprep.subr.bf16.mxu0 0
  %3206 = vmatpush1.bf16.msra.mxu0 0
  %3207 = vmatprep.subr.bf16.mxu0 0
  %3208 = vmatpush1.bf16.msra.mxu0 0
  %3209 = vmatprep.subr.bf16.mxu0 0
  %3210 = vmatpush1.bf16.msra.mxu0 0
  %3211 = vmatprep.mubr.bf16.mxu0 0
  %3212 = vmatmul.mubr.bf16.gmra.mrb[0].mxu0 %v3074
  %v3213 = vpop.f32.mrb[0].mxu0
  %v3214 = vadd.f32 0.0, %v3213
  %v3215 = vpop.f32.mrb[0].mxu0
  %v3216 = vadd.f32 0.0, %v3215
  %v3217 = vpop.f32.mrb[0].mxu0
  %v3218 = vpop.f32.mrb[0].mxu0
  %3219 = vdwg.mxu0
  %3220 = vmatprep.subr.bf16.mxu0 0
  %3221 = vmatpush1.bf16.msra.mxu0 %v3095
  %3222 = vmatprep.subr.bf16.mxu0 0
  %3223 = vmatpush1.bf16.msra.mxu0 0
  %3224 = vmatprep.subr.bf16.mxu0 0
  %3225 = vmatpush1.bf16.msra.mxu0 0
  %3226 = vmatprep.subr.bf16.mxu0 0
  %3227 = vmatpush1.bf16.msra.mxu0 0
  %3228 = vmatprep.subr.bf16.mxu0 0
  %3229 = vmatpush1.bf16.msra.mxu0 0
  %3230 = vmatprep.subr.bf16.mxu0 0
  %3231 = vmatpush1.bf16.msra.mxu0 0
  %3232 = vmatprep.subr.bf16.mxu0 0
  %3233 = vmatpush1.bf16.msra.mxu0 0
  %3234 = vmatprep.subr.bf16.mxu0 0
  %3235 = vmatpush1.bf16.msra.mxu0 0
  %3236 = vmatprep.subr.bf16.mxu0 0
  %3237 = vmatpush1.bf16.msra.mxu0 0
  %3238 = vmatprep.subr.bf16.mxu0 0
  %3239 = vmatpush1.bf16.msra.mxu0 0
  %3240 = vmatprep.subr.bf16.mxu0 0
  %3241 = vmatpush1.bf16.msra.mxu0 0
  %3242 = vmatprep.subr.bf16.mxu0 0
  %3243 = vmatpush1.bf16.msra.mxu0 0
  %3244 = vmatprep.subr.bf16.mxu0 0
  %3245 = vmatpush1.bf16.msra.mxu0 0
  %3246 = vmatprep.subr.bf16.mxu0 0
  %3247 = vmatpush1.bf16.msra.mxu0 0
  %3248 = vmatprep.subr.bf16.mxu0 0
  %3249 = vmatpush1.bf16.msra.mxu0 0
  %3250 = vmatprep.subr.bf16.mxu0 0
  %3251 = vmatpush1.bf16.msra.mxu0 0
  %3252 = vmatprep.mubr.bf16.mxu0 0
  %3253 = vmatmul.mubr.bf16.gmra.mrb[0].mxu0 %v3074
  %v3254 = vpop.f32.mrb[0].mxu0
  %v3255 = vadd.f32 0.0, %v3254
  %v3256 = vpop.f32.mrb[0].mxu0
  %v3257 = vpop.f32.mrb[0].mxu0
  %v3258 = vpop.f32.mrb[0].mxu0
  %3259 = vdwg.mxu0
  %v3260 = vadd.f32 %v3043, %v3132
  %v3261 = vadd.f32 %v3044, %v3134
  %v3262 = vadd.f32 %v3045, %v3173
  %v3263 = vadd.f32 %v3046, %v3175
  %v3264 = vadd.f32 %v3047, %v3214
  %v3265 = vadd.f32 %v3048, %v3216
  %v3266 = vadd.f32 %v3049, %v3255
  %s3267 = scalar_lea.vmem %s1, 60
  %v3268 = vld [vmem:[%s3267] sm:$0xf]
  %3269 = vrot.lane.b32.xlu0 %v42, 68
  %v3270 = vpop.permute.xlu0 %3269
  %3271 = vrot.lane.b32.xlu0 %v43, 68
  %v3272 = vpop.permute.xlu0 %3271
  %3273 = vrot.lane.b32.xlu0 %v44, 68
  %v3274 = vpop.permute.xlu0 %3273
  %3275 = vrot.lane.b32.xlu0 %v45, 68
  %v3276 = vpop.permute.xlu0 %3275
  %3277 = vrot.lane.b32.xlu0 %v46, 68
  %v3278 = vpop.permute.xlu0 %3277
  %3279 = vrot.lane.b32.xlu0 %v47, 68
  %v3280 = vpop.permute.xlu0 %3279
  %3281 = vrot.lane.b32.xlu0 %v48, 68
  %v3282 = vpop.permute.xlu0 %3281
  %vm3283 = vcmask 556032
  %v3284 = vsel %vm3283, %v3270, %v3272
  %v3285 = vsel %vm3283, %v3272, %v3274
  %v3286 = vsel %vm3283, %v3274, %v3276
  %v3287 = vsel %vm3283, %v3276, %v3278
  %v3288 = vsel %vm3283, %v3278, %v3280
  %v3289 = vsel %vm3283, %v3280, %v3282
  %v3291 = vsel %vm70, %v3268, 0
  %v3294 = vsel %vm74, %v3284, 0
  %v3297 = vsel %vm74, %v3285, 0
  %v3300 = vsel %vm74, %v3286, 0
  %v3303 = vsel %vm74, %v3287, 0
  %v3306 = vsel %vm74, %v3288, 0
  %v3309 = vsel %vm74, %v3289, 0
  %v3312 = vsel %vm74, %v3282, 0
  %3314 = vmatprep.subr.bf16.mxu0 %v3297
  %3315 = vmatpush1.bf16.msra.mxu0 %v3294
  %3316 = vmatprep.subr.bf16.mxu0 0
  %3317 = vmatpush1.bf16.msra.mxu0 0
  %3318 = vmatprep.subr.bf16.mxu0 0
  %3319 = vmatpush1.bf16.msra.mxu0 0
  %3320 = vmatprep.subr.bf16.mxu0 0
  %3321 = vmatpush1.bf16.msra.mxu0 0
  %3322 = vmatprep.subr.bf16.mxu0 0
  %3323 = vmatpush1.bf16.msra.mxu0 0
  %3324 = vmatprep.subr.bf16.mxu0 0
  %3325 = vmatpush1.bf16.msra.mxu0 0
  %3326 = vmatprep.subr.bf16.mxu0 0
  %3327 = vmatpush1.bf16.msra.mxu0 0
  %3328 = vmatprep.subr.bf16.mxu0 0
  %3329 = vmatpush1.bf16.msra.mxu0 0
  %3330 = vmatprep.subr.bf16.mxu0 0
  %3331 = vmatpush1.bf16.msra.mxu0 0
  %3332 = vmatprep.subr.bf16.mxu0 0
  %3333 = vmatpush1.bf16.msra.mxu0 0
  %3334 = vmatprep.subr.bf16.mxu0 0
  %3335 = vmatpush1.bf16.msra.mxu0 0
  %3336 = vmatprep.subr.bf16.mxu0 0
  %3337 = vmatpush1.bf16.msra.mxu0 0
  %3338 = vmatprep.subr.bf16.mxu0 0
  %3339 = vmatpush1.bf16.msra.mxu0 0
  %3340 = vmatprep.subr.bf16.mxu0 0
  %3341 = vmatpush1.bf16.msra.mxu0 0
  %3342 = vmatprep.subr.bf16.mxu0 0
  %3343 = vmatpush1.bf16.msra.mxu0 0
  %3344 = vmatprep.subr.bf16.mxu0 0
  %3345 = vmatpush1.bf16.msra.mxu0 0
  %3346 = vmatprep.mubr.bf16.mxu0 0
  %3347 = vmatmul.mubr.bf16.gmra.mrb[0].mxu0 %v3291
  %v3348 = vpop.f32.mrb[0].mxu0
  %v3349 = vadd.f32 0.0, %v3348
  %v3350 = vpop.f32.mrb[0].mxu0
  %v3351 = vadd.f32 0.0, %v3350
  %v3352 = vpop.f32.mrb[0].mxu0
  %v3353 = vpop.f32.mrb[0].mxu0
  %3354 = vdwg.mxu0
  %3355 = vmatprep.subr.bf16.mxu0 %v3303
  %3356 = vmatpush1.bf16.msra.mxu0 %v3300
  %3357 = vmatprep.subr.bf16.mxu0 0
  %3358 = vmatpush1.bf16.msra.mxu0 0
  %3359 = vmatprep.subr.bf16.mxu0 0
  %3360 = vmatpush1.bf16.msra.mxu0 0
  %3361 = vmatprep.subr.bf16.mxu0 0
  %3362 = vmatpush1.bf16.msra.mxu0 0
  %3363 = vmatprep.subr.bf16.mxu0 0
  %3364 = vmatpush1.bf16.msra.mxu0 0
  %3365 = vmatprep.subr.bf16.mxu0 0
  %3366 = vmatpush1.bf16.msra.mxu0 0
  %3367 = vmatprep.subr.bf16.mxu0 0
  %3368 = vmatpush1.bf16.msra.mxu0 0
  %3369 = vmatprep.subr.bf16.mxu0 0
  %3370 = vmatpush1.bf16.msra.mxu0 0
  %3371 = vmatprep.subr.bf16.mxu0 0
  %3372 = vmatpush1.bf16.msra.mxu0 0
  %3373 = vmatprep.subr.bf16.mxu0 0
  %3374 = vmatpush1.bf16.msra.mxu0 0
  %3375 = vmatprep.subr.bf16.mxu0 0
  %3376 = vmatpush1.bf16.msra.mxu0 0
  %3377 = vmatprep.subr.bf16.mxu0 0
  %3378 = vmatpush1.bf16.msra.mxu0 0
  %3379 = vmatprep.subr.bf16.mxu0 0
  %3380 = vmatpush1.bf16.msra.mxu0 0
  %3381 = vmatprep.subr.bf16.mxu0 0
  %3382 = vmatpush1.bf16.msra.mxu0 0
  %3383 = vmatprep.subr.bf16.mxu0 0
  %3384 = vmatpush1.bf16.msra.mxu0 0
  %3385 = vmatprep.subr.bf16.mxu0 0
  %3386 = vmatpush1.bf16.msra.mxu0 0
  %3387 = vmatprep.mubr.bf16.mxu0 0
  %3388 = vmatmul.mubr.bf16.gmra.mrb[0].mxu0 %v3291
  %v3389 = vpop.f32.mrb[0].mxu0
  %v3390 = vadd.f32 0.0, %v3389
  %v3391 = vpop.f32.mrb[0].mxu0
  %v3392 = vadd.f32 0.0, %v3391
  %v3393 = vpop.f32.mrb[0].mxu0
  %v3394 = vpop.f32.mrb[0].mxu0
  %3395 = vdwg.mxu0
  %3396 = vmatprep.subr.bf16.mxu0 %v3309
  %3397 = vmatpush1.bf16.msra.mxu0 %v3306
  %3398 = vmatprep.subr.bf16.mxu0 0
  %3399 = vmatpush1.bf16.msra.mxu0 0
  %3400 = vmatprep.subr.bf16.mxu0 0
  %3401 = vmatpush1.bf16.msra.mxu0 0
  %3402 = vmatprep.subr.bf16.mxu0 0
  %3403 = vmatpush1.bf16.msra.mxu0 0
  %3404 = vmatprep.subr.bf16.mxu0 0
  %3405 = vmatpush1.bf16.msra.mxu0 0
  %3406 = vmatprep.subr.bf16.mxu0 0
  %3407 = vmatpush1.bf16.msra.mxu0 0
  %3408 = vmatprep.subr.bf16.mxu0 0
  %3409 = vmatpush1.bf16.msra.mxu0 0
  %3410 = vmatprep.subr.bf16.mxu0 0
  %3411 = vmatpush1.bf16.msra.mxu0 0
  %3412 = vmatprep.subr.bf16.mxu0 0
  %3413 = vmatpush1.bf16.msra.mxu0 0
  %3414 = vmatprep.subr.bf16.mxu0 0
  %3415 = vmatpush1.bf16.msra.mxu0 0
  %3416 = vmatprep.subr.bf16.mxu0 0
  %3417 = vmatpush1.bf16.msra.mxu0 0
  %3418 = vmatprep.subr.bf16.mxu0 0
  %3419 = vmatpush1.bf16.msra.mxu0 0
  %3420 = vmatprep.subr.bf16.mxu0 0
  %3421 = vmatpush1.bf16.msra.mxu0 0
  %3422 = vmatprep.subr.bf16.mxu0 0
  %3423 = vmatpush1.bf16.msra.mxu0 0
  %3424 = vmatprep.subr.bf16.mxu0 0
  %3425 = vmatpush1.bf16.msra.mxu0 0
  %3426 = vmatprep.subr.bf16.mxu0 0
  %3427 = vmatpush1.bf16.msra.mxu0 0
  %3428 = vmatprep.mubr.bf16.mxu0 0
  %3429 = vmatmul.mubr.bf16.gmra.mrb[0].mxu0 %v3291
  %v3430 = vpop.f32.mrb[0].mxu0
  %v3431 = vadd.f32 0.0, %v3430
  %v3432 = vpop.f32.mrb[0].mxu0
  %v3433 = vadd.f32 0.0, %v3432
  %v3434 = vpop.f32.mrb[0].mxu0
  %v3435 = vpop.f32.mrb[0].mxu0
  %3436 = vdwg.mxu0
  %3437 = vmatprep.subr.bf16.mxu0 0
  %3438 = vmatpush1.bf16.msra.mxu0 %v3312
  %3439 = vmatprep.subr.bf16.mxu0 0
  %3440 = vmatpush1.bf16.msra.mxu0 0
  %3441 = vmatprep.subr.bf16.mxu0 0
  %3442 = vmatpush1.bf16.msra.mxu0 0
  %3443 = vmatprep.subr.bf16.mxu0 0
  %3444 = vmatpush1.bf16.msra.mxu0 0
  %3445 = vmatprep.subr.bf16.mxu0 0
  %3446 = vmatpush1.bf16.msra.mxu0 0
  %3447 = vmatprep.subr.bf16.mxu0 0
  %3448 = vmatpush1.bf16.msra.mxu0 0
  %3449 = vmatprep.subr.bf16.mxu0 0
  %3450 = vmatpush1.bf16.msra.mxu0 0
  %3451 = vmatprep.subr.bf16.mxu0 0
  %3452 = vmatpush1.bf16.msra.mxu0 0
  %3453 = vmatprep.subr.bf16.mxu0 0
  %3454 = vmatpush1.bf16.msra.mxu0 0
  %3455 = vmatprep.subr.bf16.mxu0 0
  %3456 = vmatpush1.bf16.msra.mxu0 0
  %3457 = vmatprep.subr.bf16.mxu0 0
  %3458 = vmatpush1.bf16.msra.mxu0 0
  %3459 = vmatprep.subr.bf16.mxu0 0
  %3460 = vmatpush1.bf16.msra.mxu0 0
  %3461 = vmatprep.subr.bf16.mxu0 0
  %3462 = vmatpush1.bf16.msra.mxu0 0
  %3463 = vmatprep.subr.bf16.mxu0 0
  %3464 = vmatpush1.bf16.msra.mxu0 0
  %3465 = vmatprep.subr.bf16.mxu0 0
  %3466 = vmatpush1.bf16.msra.mxu0 0
  %3467 = vmatprep.subr.bf16.mxu0 0
  %3468 = vmatpush1.bf16.msra.mxu0 0
  %3469 = vmatprep.mubr.bf16.mxu0 0
  %3470 = vmatmul.mubr.bf16.gmra.mrb[0].mxu0 %v3291
  %v3471 = vpop.f32.mrb[0].mxu0
  %v3472 = vadd.f32 0.0, %v3471
  %v3473 = vpop.f32.mrb[0].mxu0
  %v3474 = vpop.f32.mrb[0].mxu0
  %v3475 = vpop.f32.mrb[0].mxu0
  %3476 = vdwg.mxu0
  %v3477 = vadd.f32 %v3260, %v3349
  %v3478 = vadd.f32 %v3261, %v3351
  %v3479 = vadd.f32 %v3262, %v3390
  %v3480 = vadd.f32 %v3263, %v3392
  %v3481 = vadd.f32 %v3264, %v3431
  %v3482 = vadd.f32 %v3265, %v3433
  %v3483 = vadd.f32 %v3266, %v3472
  %s3484 = scalar_lea.vmem %s1, 64
  %v3485 = vld [vmem:[%s3484] sm:$0xf]
  %3486 = vrot.lane.b32.xlu0 %v42, 67
  %v3487 = vpop.permute.xlu0 %3486
  %3488 = vrot.lane.b32.xlu0 %v43, 67
  %v3489 = vpop.permute.xlu0 %3488
  %3490 = vrot.lane.b32.xlu0 %v44, 67
  %v3491 = vpop.permute.xlu0 %3490
  %3492 = vrot.lane.b32.xlu0 %v45, 67
  %v3493 = vpop.permute.xlu0 %3492
  %3494 = vrot.lane.b32.xlu0 %v46, 67
  %v3495 = vpop.permute.xlu0 %3494
  %3496 = vrot.lane.b32.xlu0 %v47, 67
  %v3497 = vpop.permute.xlu0 %3496
  %3498 = vrot.lane.b32.xlu0 %v48, 67
  %v3499 = vpop.permute.xlu0 %3498
  %vm3500 = vcmask 547840
  %v3501 = vsel %vm3500, %v3487, %v3489
  %v3502 = vsel %vm3500, %v3489, %v3491
  %v3503 = vsel %vm3500, %v3491, %v3493
  %v3504 = vsel %vm3500, %v3493, %v3495
  %v3505 = vsel %vm3500, %v3495, %v3497
  %v3506 = vsel %vm3500, %v3497, %v3499
  %v3508 = vsel %vm70, %v3485, 0
  %v3511 = vsel %vm74, %v3501, 0
  %v3514 = vsel %vm74, %v3502, 0
  %v3517 = vsel %vm74, %v3503, 0
  %v3520 = vsel %vm74, %v3504, 0
  %v3523 = vsel %vm74, %v3505, 0
  %v3526 = vsel %vm74, %v3506, 0
  %v3529 = vsel %vm74, %v3499, 0
  %3531 = vmatprep.subr.bf16.mxu0 %v3514
  %3532 = vmatpush1.bf16.msra.mxu0 %v3511
  %3533 = vmatprep.subr.bf16.mxu0 0
  %3534 = vmatpush1.bf16.msra.mxu0 0
  %3535 = vmatprep.subr.bf16.mxu0 0
  %3536 = vmatpush1.bf16.msra.mxu0 0
  %3537 = vmatprep.subr.bf16.mxu0 0
  %3538 = vmatpush1.bf16.msra.mxu0 0
  %3539 = vmatprep.subr.bf16.mxu0 0
  %3540 = vmatpush1.bf16.msra.mxu0 0
  %3541 = vmatprep.subr.bf16.mxu0 0
  %3542 = vmatpush1.bf16.msra.mxu0 0
  %3543 = vmatprep.subr.bf16.mxu0 0
  %3544 = vmatpush1.bf16.msra.mxu0 0
  %3545 = vmatprep.subr.bf16.mxu0 0
  %3546 = vmatpush1.bf16.msra.mxu0 0
  %3547 = vmatprep.subr.bf16.mxu0 0
  %3548 = vmatpush1.bf16.msra.mxu0 0
  %3549 = vmatprep.subr.bf16.mxu0 0
  %3550 = vmatpush1.bf16.msra.mxu0 0
  %3551 = vmatprep.subr.bf16.mxu0 0
  %3552 = vmatpush1.bf16.msra.mxu0 0
  %3553 = vmatprep.subr.bf16.mxu0 0
  %3554 = vmatpush1.bf16.msra.mxu0 0
  %3555 = vmatprep.subr.bf16.mxu0 0
  %3556 = vmatpush1.bf16.msra.mxu0 0
  %3557 = vmatprep.subr.bf16.mxu0 0
  %3558 = vmatpush1.bf16.msra.mxu0 0
  %3559 = vmatprep.subr.bf16.mxu0 0
  %3560 = vmatpush1.bf16.msra.mxu0 0
  %3561 = vmatprep.subr.bf16.mxu0 0
  %3562 = vmatpush1.bf16.msra.mxu0 0
  %3563 = vmatprep.mubr.bf16.mxu0 0
  %3564 = vmatmul.mubr.bf16.gmra.mrb[0].mxu0 %v3508
  %v3565 = vpop.f32.mrb[0].mxu0
  %v3566 = vadd.f32 0.0, %v3565
  %v3567 = vpop.f32.mrb[0].mxu0
  %v3568 = vadd.f32 0.0, %v3567
  %v3569 = vpop.f32.mrb[0].mxu0
  %v3570 = vpop.f32.mrb[0].mxu0
  %3571 = vdwg.mxu0
  %3572 = vmatprep.subr.bf16.mxu0 %v3520
  %3573 = vmatpush1.bf16.msra.mxu0 %v3517
  %3574 = vmatprep.subr.bf16.mxu0 0
  %3575 = vmatpush1.bf16.msra.mxu0 0
  %3576 = vmatprep.subr.bf16.mxu0 0
  %3577 = vmatpush1.bf16.msra.mxu0 0
  %3578 = vmatprep.subr.bf16.mxu0 0
  %3579 = vmatpush1.bf16.msra.mxu0 0
  %3580 = vmatprep.subr.bf16.mxu0 0
  %3581 = vmatpush1.bf16.msra.mxu0 0
  %3582 = vmatprep.subr.bf16.mxu0 0
  %3583 = vmatpush1.bf16.msra.mxu0 0
  %3584 = vmatprep.subr.bf16.mxu0 0
  %3585 = vmatpush1.bf16.msra.mxu0 0
  %3586 = vmatprep.subr.bf16.mxu0 0
  %3587 = vmatpush1.bf16.msra.mxu0 0
  %3588 = vmatprep.subr.bf16.mxu0 0
  %3589 = vmatpush1.bf16.msra.mxu0 0
  %3590 = vmatprep.subr.bf16.mxu0 0
  %3591 = vmatpush1.bf16.msra.mxu0 0
  %3592 = vmatprep.subr.bf16.mxu0 0
  %3593 = vmatpush1.bf16.msra.mxu0 0
  %3594 = vmatprep.subr.bf16.mxu0 0
  %3595 = vmatpush1.bf16.msra.mxu0 0
  %3596 = vmatprep.subr.bf16.mxu0 0
  %3597 = vmatpush1.bf16.msra.mxu0 0
  %3598 = vmatprep.subr.bf16.mxu0 0
  %3599 = vmatpush1.bf16.msra.mxu0 0
  %3600 = vmatprep.subr.bf16.mxu0 0
  %3601 = vmatpush1.bf16.msra.mxu0 0
  %3602 = vmatprep.subr.bf16.mxu0 0
  %3603 = vmatpush1.bf16.msra.mxu0 0
  %3604 = vmatprep.mubr.bf16.mxu0 0
  %3605 = vmatmul.mubr.bf16.gmra.mrb[0].mxu0 %v3508
  %v3606 = vpop.f32.mrb[0].mxu0
  %v3607 = vadd.f32 0.0, %v3606
  %v3608 = vpop.f32.mrb[0].mxu0
  %v3609 = vadd.f32 0.0, %v3608
  %v3610 = vpop.f32.mrb[0].mxu0
  %v3611 = vpop.f32.mrb[0].mxu0
  %3612 = vdwg.mxu0
  %3613 = vmatprep.subr.bf16.mxu0 %v3526
  %3614 = vmatpush1.bf16.msra.mxu0 %v3523
  %3615 = vmatprep.subr.bf16.mxu0 0
  %3616 = vmatpush1.bf16.msra.mxu0 0
  %3617 = vmatprep.subr.bf16.mxu0 0
  %3618 = vmatpush1.bf16.msra.mxu0 0
  %3619 = vmatprep.subr.bf16.mxu0 0
  %3620 = vmatpush1.bf16.msra.mxu0 0
  %3621 = vmatprep.subr.bf16.mxu0 0
  %3622 = vmatpush1.bf16.msra.mxu0 0
  %3623 = vmatprep.subr.bf16.mxu0 0
  %3624 = vmatpush1.bf16.msra.mxu0 0
  %3625 = vmatprep.subr.bf16.mxu0 0
  %3626 = vmatpush1.bf16.msra.mxu0 0
  %3627 = vmatprep.subr.bf16.mxu0 0
  %3628 = vmatpush1.bf16.msra.mxu0 0
  %3629 = vmatprep.subr.bf16.mxu0 0
  %3630 = vmatpush1.bf16.msra.mxu0 0
  %3631 = vmatprep.subr.bf16.mxu0 0
  %3632 = vmatpush1.bf16.msra.mxu0 0
  %3633 = vmatprep.subr.bf16.mxu0 0
  %3634 = vmatpush1.bf16.msra.mxu0 0
  %3635 = vmatprep.subr.bf16.mxu0 0
  %3636 = vmatpush1.bf16.msra.mxu0 0
  %3637 = vmatprep.subr.bf16.mxu0 0
  %3638 = vmatpush1.bf16.msra.mxu0 0
  %3639 = vmatprep.subr.bf16.mxu0 0
  %3640 = vmatpush1.bf16.msra.mxu0 0
  %3641 = vmatprep.subr.bf16.mxu0 0
  %3642 = vmatpush1.bf16.msra.mxu0 0
  %3643 = vmatprep.subr.bf16.mxu0 0
  %3644 = vmatpush1.bf16.msra.mxu0 0
  %3645 = vmatprep.mubr.bf16.mxu0 0
  %3646 = vmatmul.mubr.bf16.gmra.mrb[0].mxu0 %v3508
  %v3647 = vpop.f32.mrb[0].mxu0
  %v3648 = vadd.f32 0.0, %v3647
  %v3649 = vpop.f32.mrb[0].mxu0
  %v3650 = vadd.f32 0.0, %v3649
  %v3651 = vpop.f32.mrb[0].mxu0
  %v3652 = vpop.f32.mrb[0].mxu0
  %3653 = vdwg.mxu0
  %3654 = vmatprep.subr.bf16.mxu0 0
  %3655 = vmatpush1.bf16.msra.mxu0 %v3529
  %3656 = vmatprep.subr.bf16.mxu0 0
  %3657 = vmatpush1.bf16.msra.mxu0 0
  %3658 = vmatprep.subr.bf16.mxu0 0
  %3659 = vmatpush1.bf16.msra.mxu0 0
  %3660 = vmatprep.subr.bf16.mxu0 0
  %3661 = vmatpush1.bf16.msra.mxu0 0
  %3662 = vmatprep.subr.bf16.mxu0 0
  %3663 = vmatpush1.bf16.msra.mxu0 0
  %3664 = vmatprep.subr.bf16.mxu0 0
  %3665 = vmatpush1.bf16.msra.mxu0 0
  %3666 = vmatprep.subr.bf16.mxu0 0
  %3667 = vmatpush1.bf16.msra.mxu0 0
  %3668 = vmatprep.subr.bf16.mxu0 0
  %3669 = vmatpush1.bf16.msra.mxu0 0
  %3670 = vmatprep.subr.bf16.mxu0 0
  %3671 = vmatpush1.bf16.msra.mxu0 0
  %3672 = vmatprep.subr.bf16.mxu0 0
  %3673 = vmatpush1.bf16.msra.mxu0 0
  %3674 = vmatprep.subr.bf16.mxu0 0
  %3675 = vmatpush1.bf16.msra.mxu0 0
  %3676 = vmatprep.subr.bf16.mxu0 0
  %3677 = vmatpush1.bf16.msra.mxu0 0
  %3678 = vmatprep.subr.bf16.mxu0 0
  %3679 = vmatpush1.bf16.msra.mxu0 0
  %3680 = vmatprep.subr.bf16.mxu0 0
  %3681 = vmatpush1.bf16.msra.mxu0 0
  %3682 = vmatprep.subr.bf16.mxu0 0
  %3683 = vmatpush1.bf16.msra.mxu0 0
  %3684 = vmatprep.subr.bf16.mxu0 0
  %3685 = vmatpush1.bf16.msra.mxu0 0
  %3686 = vmatprep.mubr.bf16.mxu0 0
  %3687 = vmatmul.mubr.bf16.gmra.mrb[0].mxu0 %v3508
  %v3688 = vpop.f32.mrb[0].mxu0
  %v3689 = vadd.f32 0.0, %v3688
  %v3690 = vpop.f32.mrb[0].mxu0
  %v3691 = vpop.f32.mrb[0].mxu0
  %v3692 = vpop.f32.mrb[0].mxu0
  %3693 = vdwg.mxu0
  %v3694 = vadd.f32 %v3477, %v3566
  %v3695 = vadd.f32 %v3478, %v3568
  %v3696 = vadd.f32 %v3479, %v3607
  %v3697 = vadd.f32 %v3480, %v3609
  %v3698 = vadd.f32 %v3481, %v3648
  %v3699 = vadd.f32 %v3482, %v3650
  %v3700 = vadd.f32 %v3483, %v3689
  %s3701 = scalar_lea.vmem %s1, 68
  %v3702 = vld [vmem:[%s3701] sm:$0xf]
  %3703 = vrot.lane.b32.xlu0 %v42, 66
  %v3704 = vpop.permute.xlu0 %3703
  %3705 = vrot.lane.b32.xlu0 %v43, 66
  %v3706 = vpop.permute.xlu0 %3705
  %3707 = vrot.lane.b32.xlu0 %v44, 66
  %v3708 = vpop.permute.xlu0 %3707
  %3709 = vrot.lane.b32.xlu0 %v45, 66
  %v3710 = vpop.permute.xlu0 %3709
  %3711 = vrot.lane.b32.xlu0 %v46, 66
  %v3712 = vpop.permute.xlu0 %3711
  %3713 = vrot.lane.b32.xlu0 %v47, 66
  %v3714 = vpop.permute.xlu0 %3713
  %3715 = vrot.lane.b32.xlu0 %v48, 66
  %v3716 = vpop.permute.xlu0 %3715
  %vm3717 = vcmask 539648
  %v3718 = vsel %vm3717, %v3704, %v3706
  %v3719 = vsel %vm3717, %v3706, %v3708
  %v3720 = vsel %vm3717, %v3708, %v3710
  %v3721 = vsel %vm3717, %v3710, %v3712
  %v3722 = vsel %vm3717, %v3712, %v3714
  %v3723 = vsel %vm3717, %v3714, %v3716
  %v3725 = vsel %vm70, %v3702, 0
  %v3728 = vsel %vm74, %v3718, 0
  %v3731 = vsel %vm74, %v3719, 0
  %v3734 = vsel %vm74, %v3720, 0
  %v3737 = vsel %vm74, %v3721, 0
  %v3740 = vsel %vm74, %v3722, 0
  %v3743 = vsel %vm74, %v3723, 0
  %v3746 = vsel %vm74, %v3716, 0
  %3748 = vmatprep.subr.bf16.mxu0 %v3731
  %3749 = vmatpush1.bf16.msra.mxu0 %v3728
  %3750 = vmatprep.subr.bf16.mxu0 0
  %3751 = vmatpush1.bf16.msra.mxu0 0
  %3752 = vmatprep.subr.bf16.mxu0 0
  %3753 = vmatpush1.bf16.msra.mxu0 0
  %3754 = vmatprep.subr.bf16.mxu0 0
  %3755 = vmatpush1.bf16.msra.mxu0 0
  %3756 = vmatprep.subr.bf16.mxu0 0
  %3757 = vmatpush1.bf16.msra.mxu0 0
  %3758 = vmatprep.subr.bf16.mxu0 0
  %3759 = vmatpush1.bf16.msra.mxu0 0
  %3760 = vmatprep.subr.bf16.mxu0 0
  %3761 = vmatpush1.bf16.msra.mxu0 0
  %3762 = vmatprep.subr.bf16.mxu0 0
  %3763 = vmatpush1.bf16.msra.mxu0 0
  %3764 = vmatprep.subr.bf16.mxu0 0
  %3765 = vmatpush1.bf16.msra.mxu0 0
  %3766 = vmatprep.subr.bf16.mxu0 0
  %3767 = vmatpush1.bf16.msra.mxu0 0
  %3768 = vmatprep.subr.bf16.mxu0 0
  %3769 = vmatpush1.bf16.msra.mxu0 0
  %3770 = vmatprep.subr.bf16.mxu0 0
  %3771 = vmatpush1.bf16.msra.mxu0 0
  %3772 = vmatprep.subr.bf16.mxu0 0
  %3773 = vmatpush1.bf16.msra.mxu0 0
  %3774 = vmatprep.subr.bf16.mxu0 0
  %3775 = vmatpush1.bf16.msra.mxu0 0
  %3776 = vmatprep.subr.bf16.mxu0 0
  %3777 = vmatpush1.bf16.msra.mxu0 0
  %3778 = vmatprep.subr.bf16.mxu0 0
  %3779 = vmatpush1.bf16.msra.mxu0 0
  %3780 = vmatprep.mubr.bf16.mxu0 0
  %3781 = vmatmul.mubr.bf16.gmra.mrb[0].mxu0 %v3725
  %v3782 = vpop.f32.mrb[0].mxu0
  %v3783 = vadd.f32 0.0, %v3782
  %v3784 = vpop.f32.mrb[0].mxu0
  %v3785 = vadd.f32 0.0, %v3784
  %v3786 = vpop.f32.mrb[0].mxu0
  %v3787 = vpop.f32.mrb[0].mxu0
  %3788 = vdwg.mxu0
  %3789 = vmatprep.subr.bf16.mxu0 %v3737
  %3790 = vmatpush1.bf16.msra.mxu0 %v3734
  %3791 = vmatprep.subr.bf16.mxu0 0
  %3792 = vmatpush1.bf16.msra.mxu0 0
  %3793 = vmatprep.subr.bf16.mxu0 0
  %3794 = vmatpush1.bf16.msra.mxu0 0
  %3795 = vmatprep.subr.bf16.mxu0 0
  %3796 = vmatpush1.bf16.msra.mxu0 0
  %3797 = vmatprep.subr.bf16.mxu0 0
  %3798 = vmatpush1.bf16.msra.mxu0 0
  %3799 = vmatprep.subr.bf16.mxu0 0
  %3800 = vmatpush1.bf16.msra.mxu0 0
  %3801 = vmatprep.subr.bf16.mxu0 0
  %3802 = vmatpush1.bf16.msra.mxu0 0
  %3803 = vmatprep.subr.bf16.mxu0 0
  %3804 = vmatpush1.bf16.msra.mxu0 0
  %3805 = vmatprep.subr.bf16.mxu0 0
  %3806 = vmatpush1.bf16.msra.mxu0 0
  %3807 = vmatprep.subr.bf16.mxu0 0
  %3808 = vmatpush1.bf16.msra.mxu0 0
  %3809 = vmatprep.subr.bf16.mxu0 0
  %3810 = vmatpush1.bf16.msra.mxu0 0
  %3811 = vmatprep.subr.bf16.mxu0 0
  %3812 = vmatpush1.bf16.msra.mxu0 0
  %3813 = vmatprep.subr.bf16.mxu0 0
  %3814 = vmatpush1.bf16.msra.mxu0 0
  %3815 = vmatprep.subr.bf16.mxu0 0
  %3816 = vmatpush1.bf16.msra.mxu0 0
  %3817 = vmatprep.subr.bf16.mxu0 0
  %3818 = vmatpush1.bf16.msra.mxu0 0
  %3819 = vmatprep.subr.bf16.mxu0 0
  %3820 = vmatpush1.bf16.msra.mxu0 0
  %3821 = vmatprep.mubr.bf16.mxu0 0
  %3822 = vmatmul.mubr.bf16.gmra.mrb[0].mxu0 %v3725
  %v3823 = vpop.f32.mrb[0].mxu0
  %v3824 = vadd.f32 0.0, %v3823
  %v3825 = vpop.f32.mrb[0].mxu0
  %v3826 = vadd.f32 0.0, %v3825
  %v3827 = vpop.f32.mrb[0].mxu0
  %v3828 = vpop.f32.mrb[0].mxu0
  %3829 = vdwg.mxu0
  %3830 = vmatprep.subr.bf16.mxu0 %v3743
  %3831 = vmatpush1.bf16.msra.mxu0 %v3740
  %3832 = vmatprep.subr.bf16.mxu0 0
  %3833 = vmatpush1.bf16.msra.mxu0 0
  %3834 = vmatprep.subr.bf16.mxu0 0
  %3835 = vmatpush1.bf16.msra.mxu0 0
  %3836 = vmatprep.subr.bf16.mxu0 0
  %3837 = vmatpush1.bf16.msra.mxu0 0
  %3838 = vmatprep.subr.bf16.mxu0 0
  %3839 = vmatpush1.bf16.msra.mxu0 0
  %3840 = vmatprep.subr.bf16.mxu0 0
  %3841 = vmatpush1.bf16.msra.mxu0 0
  %3842 = vmatprep.subr.bf16.mxu0 0
  %3843 = vmatpush1.bf16.msra.mxu0 0
  %3844 = vmatprep.subr.bf16.mxu0 0
  %3845 = vmatpush1.bf16.msra.mxu0 0
  %3846 = vmatprep.subr.bf16.mxu0 0
  %3847 = vmatpush1.bf16.msra.mxu0 0
  %3848 = vmatprep.subr.bf16.mxu0 0
  %3849 = vmatpush1.bf16.msra.mxu0 0
  %3850 = vmatprep.subr.bf16.mxu0 0
  %3851 = vmatpush1.bf16.msra.mxu0 0
  %3852 = vmatprep.subr.bf16.mxu0 0
  %3853 = vmatpush1.bf16.msra.mxu0 0
  %3854 = vmatprep.subr.bf16.mxu0 0
  %3855 = vmatpush1.bf16.msra.mxu0 0
  %3856 = vmatprep.subr.bf16.mxu0 0
  %3857 = vmatpush1.bf16.msra.mxu0 0
  %3858 = vmatprep.subr.bf16.mxu0 0
  %3859 = vmatpush1.bf16.msra.mxu0 0
  %3860 = vmatprep.subr.bf16.mxu0 0
  %3861 = vmatpush1.bf16.msra.mxu0 0
  %3862 = vmatprep.mubr.bf16.mxu0 0
  %3863 = vmatmul.mubr.bf16.gmra.mrb[0].mxu0 %v3725
  %v3864 = vpop.f32.mrb[0].mxu0
  %v3865 = vadd.f32 0.0, %v3864
  %v3866 = vpop.f32.mrb[0].mxu0
  %v3867 = vadd.f32 0.0, %v3866
  %v3868 = vpop.f32.mrb[0].mxu0
  %v3869 = vpop.f32.mrb[0].mxu0
  %3870 = vdwg.mxu0
  %3871 = vmatprep.subr.bf16.mxu0 0
  %3872 = vmatpush1.bf16.msra.mxu0 %v3746
  %3873 = vmatprep.subr.bf16.mxu0 0
  %3874 = vmatpush1.bf16.msra.mxu0 0
  %3875 = vmatprep.subr.bf16.mxu0 0
  %3876 = vmatpush1.bf16.msra.mxu0 0
  %3877 = vmatprep.subr.bf16.mxu0 0
  %3878 = vmatpush1.bf16.msra.mxu0 0
  %3879 = vmatprep.subr.bf16.mxu0 0
  %3880 = vmatpush1.bf16.msra.mxu0 0
  %3881 = vmatprep.subr.bf16.mxu0 0
  %3882 = vmatpush1.bf16.msra.mxu0 0
  %3883 = vmatprep.subr.bf16.mxu0 0
  %3884 = vmatpush1.bf16.msra.mxu0 0
  %3885 = vmatprep.subr.bf16.mxu0 0
  %3886 = vmatpush1.bf16.msra.mxu0 0
  %3887 = vmatprep.subr.bf16.mxu0 0
  %3888 = vmatpush1.bf16.msra.mxu0 0
  %3889 = vmatprep.subr.bf16.mxu0 0
  %3890 = vmatpush1.bf16.msra.mxu0 0
  %3891 = vmatprep.subr.bf16.mxu0 0
  %3892 = vmatpush1.bf16.msra.mxu0 0
  %3893 = vmatprep.subr.bf16.mxu0 0
  %3894 = vmatpush1.bf16.msra.mxu0 0
  %3895 = vmatprep.subr.bf16.mxu0 0
  %3896 = vmatpush1.bf16.msra.mxu0 0
  %3897 = vmatprep.subr.bf16.mxu0 0
  %3898 = vmatpush1.bf16.msra.mxu0 0
  %3899 = vmatprep.subr.bf16.mxu0 0
  %3900 = vmatpush1.bf16.msra.mxu0 0
  %3901 = vmatprep.subr.bf16.mxu0 0
  %3902 = vmatpush1.bf16.msra.mxu0 0
  %3903 = vmatprep.mubr.bf16.mxu0 0
  %3904 = vmatmul.mubr.bf16.gmra.mrb[0].mxu0 %v3725
  %v3905 = vpop.f32.mrb[0].mxu0
  %v3906 = vadd.f32 0.0, %v3905
  %v3907 = vpop.f32.mrb[0].mxu0
  %v3908 = vpop.f32.mrb[0].mxu0
  %v3909 = vpop.f32.mrb[0].mxu0
  %3910 = vdwg.mxu0
  %v3911 = vadd.f32 %v3694, %v3783
  %v3912 = vadd.f32 %v3695, %v3785
  %v3913 = vadd.f32 %v3696, %v3824
  %v3914 = vadd.f32 %v3697, %v3826
  %v3915 = vadd.f32 %v3698, %v3865
  %v3916 = vadd.f32 %v3699, %v3867
  %v3917 = vadd.f32 %v3700, %v3906
  %s3918 = scalar_lea.vmem %s1, 72
  %v3919 = vld [vmem:[%s3918] sm:$0xf]
  %3920 = vrot.lane.b32.xlu0 %v42, 65
  %v3921 = vpop.permute.xlu0 %3920
  %3922 = vrot.lane.b32.xlu0 %v43, 65
  %v3923 = vpop.permute.xlu0 %3922
  %3924 = vrot.lane.b32.xlu0 %v44, 65
  %v3925 = vpop.permute.xlu0 %3924
  %3926 = vrot.lane.b32.xlu0 %v45, 65
  %v3927 = vpop.permute.xlu0 %3926
  %3928 = vrot.lane.b32.xlu0 %v46, 65
  %v3929 = vpop.permute.xlu0 %3928
  %3930 = vrot.lane.b32.xlu0 %v47, 65
  %v3931 = vpop.permute.xlu0 %3930
  %3932 = vrot.lane.b32.xlu0 %v48, 65
  %v3933 = vpop.permute.xlu0 %3932
  %vm3934 = vcmask 531456
  %v3935 = vsel %vm3934, %v3921, %v3923
  %v3936 = vsel %vm3934, %v3923, %v3925
  %v3937 = vsel %vm3934, %v3925, %v3927
  %v3938 = vsel %vm3934, %v3927, %v3929
  %v3939 = vsel %vm3934, %v3929, %v3931
  %v3940 = vsel %vm3934, %v3931, %v3933
  %v3942 = vsel %vm70, %v3919, 0
  %v3945 = vsel %vm74, %v3935, 0
  %v3948 = vsel %vm74, %v3936, 0
  %v3951 = vsel %vm74, %v3937, 0
  %v3954 = vsel %vm74, %v3938, 0
  %v3957 = vsel %vm74, %v3939, 0
  %v3960 = vsel %vm74, %v3940, 0
  %v3963 = vsel %vm74, %v3933, 0
  %3965 = vmatprep.subr.bf16.mxu0 %v3948
  %3966 = vmatpush1.bf16.msra.mxu0 %v3945
  %3967 = vmatprep.subr.bf16.mxu0 0
  %3968 = vmatpush1.bf16.msra.mxu0 0
  %3969 = vmatprep.subr.bf16.mxu0 0
  %3970 = vmatpush1.bf16.msra.mxu0 0
  %3971 = vmatprep.subr.bf16.mxu0 0
  %3972 = vmatpush1.bf16.msra.mxu0 0
  %3973 = vmatprep.subr.bf16.mxu0 0
  %3974 = vmatpush1.bf16.msra.mxu0 0
  %3975 = vmatprep.subr.bf16.mxu0 0
  %3976 = vmatpush1.bf16.msra.mxu0 0
  %3977 = vmatprep.subr.bf16.mxu0 0
  %3978 = vmatpush1.bf16.msra.mxu0 0
  %3979 = vmatprep.subr.bf16.mxu0 0
  %3980 = vmatpush1.bf16.msra.mxu0 0
  %3981 = vmatprep.subr.bf16.mxu0 0
  %3982 = vmatpush1.bf16.msra.mxu0 0
  %3983 = vmatprep.subr.bf16.mxu0 0
  %3984 = vmatpush1.bf16.msra.mxu0 0
  %3985 = vmatprep.subr.bf16.mxu0 0
  %3986 = vmatpush1.bf16.msra.mxu0 0
  %3987 = vmatprep.subr.bf16.mxu0 0
  %3988 = vmatpush1.bf16.msra.mxu0 0
  %3989 = vmatprep.subr.bf16.mxu0 0
  %3990 = vmatpush1.bf16.msra.mxu0 0
  %3991 = vmatprep.subr.bf16.mxu0 0
  %3992 = vmatpush1.bf16.msra.mxu0 0
  %3993 = vmatprep.subr.bf16.mxu0 0
  %3994 = vmatpush1.bf16.msra.mxu0 0
  %3995 = vmatprep.subr.bf16.mxu0 0
  %3996 = vmatpush1.bf16.msra.mxu0 0
  %3997 = vmatprep.mubr.bf16.mxu0 0
  %3998 = vmatmul.mubr.bf16.gmra.mrb[0].mxu0 %v3942
  %v3999 = vpop.f32.mrb[0].mxu0
  %v4000 = vadd.f32 0.0, %v3999
  %v4001 = vpop.f32.mrb[0].mxu0
  %v4002 = vadd.f32 0.0, %v4001
  %v4003 = vpop.f32.mrb[0].mxu0
  %v4004 = vpop.f32.mrb[0].mxu0
  %4005 = vdwg.mxu0
  %4006 = vmatprep.subr.bf16.mxu0 %v3954
  %4007 = vmatpush1.bf16.msra.mxu0 %v3951
  %4008 = vmatprep.subr.bf16.mxu0 0
  %4009 = vmatpush1.bf16.msra.mxu0 0
  %4010 = vmatprep.subr.bf16.mxu0 0
  %4011 = vmatpush1.bf16.msra.mxu0 0
  %4012 = vmatprep.subr.bf16.mxu0 0
  %4013 = vmatpush1.bf16.msra.mxu0 0
  %4014 = vmatprep.subr.bf16.mxu0 0
  %4015 = vmatpush1.bf16.msra.mxu0 0
  %4016 = vmatprep.subr.bf16.mxu0 0
  %4017 = vmatpush1.bf16.msra.mxu0 0
  %4018 = vmatprep.subr.bf16.mxu0 0
  %4019 = vmatpush1.bf16.msra.mxu0 0
  %4020 = vmatprep.subr.bf16.mxu0 0
  %4021 = vmatpush1.bf16.msra.mxu0 0
  %4022 = vmatprep.subr.bf16.mxu0 0
  %4023 = vmatpush1.bf16.msra.mxu0 0
  %4024 = vmatprep.subr.bf16.mxu0 0
  %4025 = vmatpush1.bf16.msra.mxu0 0
  %4026 = vmatprep.subr.bf16.mxu0 0
  %4027 = vmatpush1.bf16.msra.mxu0 0
  %4028 = vmatprep.subr.bf16.mxu0 0
  %4029 = vmatpush1.bf16.msra.mxu0 0
  %4030 = vmatprep.subr.bf16.mxu0 0
  %4031 = vmatpush1.bf16.msra.mxu0 0
  %4032 = vmatprep.subr.bf16.mxu0 0
  %4033 = vmatpush1.bf16.msra.mxu0 0
  %4034 = vmatprep.subr.bf16.mxu0 0
  %4035 = vmatpush1.bf16.msra.mxu0 0
  %4036 = vmatprep.subr.bf16.mxu0 0
  %4037 = vmatpush1.bf16.msra.mxu0 0
  %4038 = vmatprep.mubr.bf16.mxu0 0
  %4039 = vmatmul.mubr.bf16.gmra.mrb[0].mxu0 %v3942
  %v4040 = vpop.f32.mrb[0].mxu0
  %v4041 = vadd.f32 0.0, %v4040
  %v4042 = vpop.f32.mrb[0].mxu0
  %v4043 = vadd.f32 0.0, %v4042
  %v4044 = vpop.f32.mrb[0].mxu0
  %v4045 = vpop.f32.mrb[0].mxu0
  %4046 = vdwg.mxu0
  %4047 = vmatprep.subr.bf16.mxu0 %v3960
  %4048 = vmatpush1.bf16.msra.mxu0 %v3957
  %4049 = vmatprep.subr.bf16.mxu0 0
  %4050 = vmatpush1.bf16.msra.mxu0 0
  %4051 = vmatprep.subr.bf16.mxu0 0
  %4052 = vmatpush1.bf16.msra.mxu0 0
  %4053 = vmatprep.subr.bf16.mxu0 0
  %4054 = vmatpush1.bf16.msra.mxu0 0
  %4055 = vmatprep.subr.bf16.mxu0 0
  %4056 = vmatpush1.bf16.msra.mxu0 0
  %4057 = vmatprep.subr.bf16.mxu0 0
  %4058 = vmatpush1.bf16.msra.mxu0 0
  %4059 = vmatprep.subr.bf16.mxu0 0
  %4060 = vmatpush1.bf16.msra.mxu0 0
  %4061 = vmatprep.subr.bf16.mxu0 0
  %4062 = vmatpush1.bf16.msra.mxu0 0
  %4063 = vmatprep.subr.bf16.mxu0 0
  %4064 = vmatpush1.bf16.msra.mxu0 0
  %4065 = vmatprep.subr.bf16.mxu0 0
  %4066 = vmatpush1.bf16.msra.mxu0 0
  %4067 = vmatprep.subr.bf16.mxu0 0
  %4068 = vmatpush1.bf16.msra.mxu0 0
  %4069 = vmatprep.subr.bf16.mxu0 0
  %4070 = vmatpush1.bf16.msra.mxu0 0
  %4071 = vmatprep.subr.bf16.mxu0 0
  %4072 = vmatpush1.bf16.msra.mxu0 0
  %4073 = vmatprep.subr.bf16.mxu0 0
  %4074 = vmatpush1.bf16.msra.mxu0 0
  %4075 = vmatprep.subr.bf16.mxu0 0
  %4076 = vmatpush1.bf16.msra.mxu0 0
  %4077 = vmatprep.subr.bf16.mxu0 0
  %4078 = vmatpush1.bf16.msra.mxu0 0
  %4079 = vmatprep.mubr.bf16.mxu0 0
  %4080 = vmatmul.mubr.bf16.gmra.mrb[0].mxu0 %v3942
  %v4081 = vpop.f32.mrb[0].mxu0
  %v4082 = vadd.f32 0.0, %v4081
  %v4083 = vpop.f32.mrb[0].mxu0
  %v4084 = vadd.f32 0.0, %v4083
  %v4085 = vpop.f32.mrb[0].mxu0
  %v4086 = vpop.f32.mrb[0].mxu0
  %4087 = vdwg.mxu0
  %4088 = vmatprep.subr.bf16.mxu0 0
  %4089 = vmatpush1.bf16.msra.mxu0 %v3963
  %4090 = vmatprep.subr.bf16.mxu0 0
  %4091 = vmatpush1.bf16.msra.mxu0 0
  %4092 = vmatprep.subr.bf16.mxu0 0
  %4093 = vmatpush1.bf16.msra.mxu0 0
  %4094 = vmatprep.subr.bf16.mxu0 0
  %4095 = vmatpush1.bf16.msra.mxu0 0
  %4096 = vmatprep.subr.bf16.mxu0 0
  %4097 = vmatpush1.bf16.msra.mxu0 0
  %4098 = vmatprep.subr.bf16.mxu0 0
  %4099 = vmatpush1.bf16.msra.mxu0 0
  %4100 = vmatprep.subr.bf16.mxu0 0
  %4101 = vmatpush1.bf16.msra.mxu0 0
  %4102 = vmatprep.subr.bf16.mxu0 0
  %4103 = vmatpush1.bf16.msra.mxu0 0
  %4104 = vmatprep.subr.bf16.mxu0 0
  %4105 = vmatpush1.bf16.msra.mxu0 0
  %4106 = vmatprep.subr.bf16.mxu0 0
  %4107 = vmatpush1.bf16.msra.mxu0 0
  %4108 = vmatprep.subr.bf16.mxu0 0
  %4109 = vmatpush1.bf16.msra.mxu0 0
  %4110 = vmatprep.subr.bf16.mxu0 0
  %4111 = vmatpush1.bf16.msra.mxu0 0
  %4112 = vmatprep.subr.bf16.mxu0 0
  %4113 = vmatpush1.bf16.msra.mxu0 0
  %4114 = vmatprep.subr.bf16.mxu0 0
  %4115 = vmatpush1.bf16.msra.mxu0 0
  %4116 = vmatprep.subr.bf16.mxu0 0
  %4117 = vmatpush1.bf16.msra.mxu0 0
  %4118 = vmatprep.subr.bf16.mxu0 0
  %4119 = vmatpush1.bf16.msra.mxu0 0
  %4120 = vmatprep.mubr.bf16.mxu0 0
  %4121 = vmatmul.mubr.bf16.gmra.mrb[0].mxu0 %v3942
  %v4122 = vpop.f32.mrb[0].mxu0
  %v4123 = vadd.f32 0.0, %v4122
  %v4124 = vpop.f32.mrb[0].mxu0
  %v4125 = vpop.f32.mrb[0].mxu0
  %v4126 = vpop.f32.mrb[0].mxu0
  %4127 = vdwg.mxu0
  %v4128 = vadd.f32 %v3911, %v4000
  %v4129 = vadd.f32 %v3912, %v4002
  %v4130 = vadd.f32 %v3913, %v4041
  %v4131 = vadd.f32 %v3914, %v4043
  %v4132 = vadd.f32 %v3915, %v4082
  %v4133 = vadd.f32 %v3916, %v4084
  %v4134 = vadd.f32 %v3917, %v4123
  %s4135 = scalar_lea.vmem %s1, 76
  %v4136 = vld [vmem:[%s4135] sm:$0xf]
  %4137 = vrot.lane.b32.xlu0 %v42, 64
  %v4138 = vpop.permute.xlu0 %4137
  %4139 = vrot.lane.b32.xlu0 %v43, 64
  %v4140 = vpop.permute.xlu0 %4139
  %4141 = vrot.lane.b32.xlu0 %v44, 64
  %v4142 = vpop.permute.xlu0 %4141
  %4143 = vrot.lane.b32.xlu0 %v45, 64
  %v4144 = vpop.permute.xlu0 %4143
  %4145 = vrot.lane.b32.xlu0 %v46, 64
  %v4146 = vpop.permute.xlu0 %4145
  %4147 = vrot.lane.b32.xlu0 %v47, 64
  %v4148 = vpop.permute.xlu0 %4147
  %4149 = vrot.lane.b32.xlu0 %v48, 64
  %v4150 = vpop.permute.xlu0 %4149
  %vm4151 = vcmask 523264
  %v4152 = vsel %vm4151, %v4138, %v4140
  %v4153 = vsel %vm4151, %v4140, %v4142
  %v4154 = vsel %vm4151, %v4142, %v4144
  %v4155 = vsel %vm4151, %v4144, %v4146
  %v4156 = vsel %vm4151, %v4146, %v4148
  %v4157 = vsel %vm4151, %v4148, %v4150
  %v4159 = vsel %vm70, %v4136, 0
  %v4162 = vsel %vm74, %v4152, 0
  %v4165 = vsel %vm74, %v4153, 0
  %v4168 = vsel %vm74, %v4154, 0
  %v4171 = vsel %vm74, %v4155, 0
  %v4174 = vsel %vm74, %v4156, 0
  %v4177 = vsel %vm74, %v4157, 0
  %v4180 = vsel %vm74, %v4150, 0
  %4182 = vmatprep.subr.bf16.mxu0 %v4165
  %4183 = vmatpush1.bf16.msra.mxu0 %v4162
  %4184 = vmatprep.subr.bf16.mxu0 0
  %4185 = vmatpush1.bf16.msra.mxu0 0
  %4186 = vmatprep.subr.bf16.mxu0 0
  %4187 = vmatpush1.bf16.msra.mxu0 0
  %4188 = vmatprep.subr.bf16.mxu0 0
  %4189 = vmatpush1.bf16.msra.mxu0 0
  %4190 = vmatprep.subr.bf16.mxu0 0
  %4191 = vmatpush1.bf16.msra.mxu0 0
  %4192 = vmatprep.subr.bf16.mxu0 0
  %4193 = vmatpush1.bf16.msra.mxu0 0
  %4194 = vmatprep.subr.bf16.mxu0 0
  %4195 = vmatpush1.bf16.msra.mxu0 0
  %4196 = vmatprep.subr.bf16.mxu0 0
  %4197 = vmatpush1.bf16.msra.mxu0 0
  %4198 = vmatprep.subr.bf16.mxu0 0
  %4199 = vmatpush1.bf16.msra.mxu0 0
  %4200 = vmatprep.subr.bf16.mxu0 0
  %4201 = vmatpush1.bf16.msra.mxu0 0
  %4202 = vmatprep.subr.bf16.mxu0 0
  %4203 = vmatpush1.bf16.msra.mxu0 0
  %4204 = vmatprep.subr.bf16.mxu0 0
  %4205 = vmatpush1.bf16.msra.mxu0 0
  %4206 = vmatprep.subr.bf16.mxu0 0
  %4207 = vmatpush1.bf16.msra.mxu0 0
  %4208 = vmatprep.subr.bf16.mxu0 0
  %4209 = vmatpush1.bf16.msra.mxu0 0
  %4210 = vmatprep.subr.bf16.mxu0 0
  %4211 = vmatpush1.bf16.msra.mxu0 0
  %4212 = vmatprep.subr.bf16.mxu0 0
  %4213 = vmatpush1.bf16.msra.mxu0 0
  %4214 = vmatprep.mubr.bf16.mxu0 0
  %4215 = vmatmul.mubr.bf16.gmra.mrb[0].mxu0 %v4159
  %v4216 = vpop.f32.mrb[0].mxu0
  %v4217 = vadd.f32 0.0, %v4216
  %v4218 = vpop.f32.mrb[0].mxu0
  %v4219 = vadd.f32 0.0, %v4218
  %v4220 = vpop.f32.mrb[0].mxu0
  %v4221 = vpop.f32.mrb[0].mxu0
  %4222 = vdwg.mxu0
  %4223 = vmatprep.subr.bf16.mxu0 %v4171
  %4224 = vmatpush1.bf16.msra.mxu0 %v4168
  %4225 = vmatprep.subr.bf16.mxu0 0
  %4226 = vmatpush1.bf16.msra.mxu0 0
  %4227 = vmatprep.subr.bf16.mxu0 0
  %4228 = vmatpush1.bf16.msra.mxu0 0
  %4229 = vmatprep.subr.bf16.mxu0 0
  %4230 = vmatpush1.bf16.msra.mxu0 0
  %4231 = vmatprep.subr.bf16.mxu0 0
  %4232 = vmatpush1.bf16.msra.mxu0 0
  %4233 = vmatprep.subr.bf16.mxu0 0
  %4234 = vmatpush1.bf16.msra.mxu0 0
  %4235 = vmatprep.subr.bf16.mxu0 0
  %4236 = vmatpush1.bf16.msra.mxu0 0
  %4237 = vmatprep.subr.bf16.mxu0 0
  %4238 = vmatpush1.bf16.msra.mxu0 0
  %4239 = vmatprep.subr.bf16.mxu0 0
  %4240 = vmatpush1.bf16.msra.mxu0 0
  %4241 = vmatprep.subr.bf16.mxu0 0
  %4242 = vmatpush1.bf16.msra.mxu0 0
  %4243 = vmatprep.subr.bf16.mxu0 0
  %4244 = vmatpush1.bf16.msra.mxu0 0
  %4245 = vmatprep.subr.bf16.mxu0 0
  %4246 = vmatpush1.bf16.msra.mxu0 0
  %4247 = vmatprep.subr.bf16.mxu0 0
  %4248 = vmatpush1.bf16.msra.mxu0 0
  %4249 = vmatprep.subr.bf16.mxu0 0
  %4250 = vmatpush1.bf16.msra.mxu0 0
  %4251 = vmatprep.subr.bf16.mxu0 0
  %4252 = vmatpush1.bf16.msra.mxu0 0
  %4253 = vmatprep.subr.bf16.mxu0 0
  %4254 = vmatpush1.bf16.msra.mxu0 0
  %4255 = vmatprep.mubr.bf16.mxu0 0
  %4256 = vmatmul.mubr.bf16.gmra.mrb[0].mxu0 %v4159
  %v4257 = vpop.f32.mrb[0].mxu0
  %v4258 = vadd.f32 0.0, %v4257
  %v4259 = vpop.f32.mrb[0].mxu0
  %v4260 = vadd.f32 0.0, %v4259
  %v4261 = vpop.f32.mrb[0].mxu0
  %v4262 = vpop.f32.mrb[0].mxu0
  %4263 = vdwg.mxu0
  %4264 = vmatprep.subr.bf16.mxu0 %v4177
  %4265 = vmatpush1.bf16.msra.mxu0 %v4174
  %4266 = vmatprep.subr.bf16.mxu0 0
  %4267 = vmatpush1.bf16.msra.mxu0 0
  %4268 = vmatprep.subr.bf16.mxu0 0
  %4269 = vmatpush1.bf16.msra.mxu0 0
  %4270 = vmatprep.subr.bf16.mxu0 0
  %4271 = vmatpush1.bf16.msra.mxu0 0
  %4272 = vmatprep.subr.bf16.mxu0 0
  %4273 = vmatpush1.bf16.msra.mxu0 0
  %4274 = vmatprep.subr.bf16.mxu0 0
  %4275 = vmatpush1.bf16.msra.mxu0 0
  %4276 = vmatprep.subr.bf16.mxu0 0
  %4277 = vmatpush1.bf16.msra.mxu0 0
  %4278 = vmatprep.subr.bf16.mxu0 0
  %4279 = vmatpush1.bf16.msra.mxu0 0
  %4280 = vmatprep.subr.bf16.mxu0 0
  %4281 = vmatpush1.bf16.msra.mxu0 0
  %4282 = vmatprep.subr.bf16.mxu0 0
  %4283 = vmatpush1.bf16.msra.mxu0 0
  %4284 = vmatprep.subr.bf16.mxu0 0
  %4285 = vmatpush1.bf16.msra.mxu0 0
  %4286 = vmatprep.subr.bf16.mxu0 0
  %4287 = vmatpush1.bf16.msra.mxu0 0
  %4288 = vmatprep.subr.bf16.mxu0 0
  %4289 = vmatpush1.bf16.msra.mxu0 0
  %4290 = vmatprep.subr.bf16.mxu0 0
  %4291 = vmatpush1.bf16.msra.mxu0 0
  %4292 = vmatprep.subr.bf16.mxu0 0
  %4293 = vmatpush1.bf16.msra.mxu0 0
  %4294 = vmatprep.subr.bf16.mxu0 0
  %4295 = vmatpush1.bf16.msra.mxu0 0
  %4296 = vmatprep.mubr.bf16.mxu0 0
  %4297 = vmatmul.mubr.bf16.gmra.mrb[0].mxu0 %v4159
  %v4298 = vpop.f32.mrb[0].mxu0
  %v4299 = vadd.f32 0.0, %v4298
  %v4300 = vpop.f32.mrb[0].mxu0
  %v4301 = vadd.f32 0.0, %v4300
  %v4302 = vpop.f32.mrb[0].mxu0
  %v4303 = vpop.f32.mrb[0].mxu0
  %4304 = vdwg.mxu0
  %4305 = vmatprep.subr.bf16.mxu0 0
  %4306 = vmatpush1.bf16.msra.mxu0 %v4180
  %4307 = vmatprep.subr.bf16.mxu0 0
  %4308 = vmatpush1.bf16.msra.mxu0 0
  %4309 = vmatprep.subr.bf16.mxu0 0
  %4310 = vmatpush1.bf16.msra.mxu0 0
  %4311 = vmatprep.subr.bf16.mxu0 0
  %4312 = vmatpush1.bf16.msra.mxu0 0
  %4313 = vmatprep.subr.bf16.mxu0 0
  %4314 = vmatpush1.bf16.msra.mxu0 0
  %4315 = vmatprep.subr.bf16.mxu0 0
  %4316 = vmatpush1.bf16.msra.mxu0 0
  %4317 = vmatprep.subr.bf16.mxu0 0
  %4318 = vmatpush1.bf16.msra.mxu0 0
  %4319 = vmatprep.subr.bf16.mxu0 0
  %4320 = vmatpush1.bf16.msra.mxu0 0
  %4321 = vmatprep.subr.bf16.mxu0 0
  %4322 = vmatpush1.bf16.msra.mxu0 0
  %4323 = vmatprep.subr.bf16.mxu0 0
  %4324 = vmatpush1.bf16.msra.mxu0 0
  %4325 = vmatprep.subr.bf16.mxu0 0
  %4326 = vmatpush1.bf16.msra.mxu0 0
  %4327 = vmatprep.subr.bf16.mxu0 0
  %4328 = vmatpush1.bf16.msra.mxu0 0
  %4329 = vmatprep.subr.bf16.mxu0 0
  %4330 = vmatpush1.bf16.msra.mxu0 0
  %4331 = vmatprep.subr.bf16.mxu0 0
  %4332 = vmatpush1.bf16.msra.mxu0 0
  %4333 = vmatprep.subr.bf16.mxu0 0
  %4334 = vmatpush1.bf16.msra.mxu0 0
  %4335 = vmatprep.subr.bf16.mxu0 0
  %4336 = vmatpush1.bf16.msra.mxu0 0
  %4337 = vmatprep.mubr.bf16.mxu0 0
  %4338 = vmatmul.mubr.bf16.gmra.mrb[0].mxu0 %v4159
  %v4339 = vpop.f32.mrb[0].mxu0
  %v4340 = vadd.f32 0.0, %v4339
  %v4341 = vpop.f32.mrb[0].mxu0
  %v4342 = vpop.f32.mrb[0].mxu0
  %v4343 = vpop.f32.mrb[0].mxu0
  %4344 = vdwg.mxu0
  %v4345 = vadd.f32 %v4128, %v4217
  %v4346 = vadd.f32 %v4129, %v4219
  %v4347 = vadd.f32 %v4130, %v4258
  %v4348 = vadd.f32 %v4131, %v4260
  %v4349 = vadd.f32 %v4132, %v4299
  %v4350 = vadd.f32 %v4133, %v4301
  %v4351 = vadd.f32 %v4134, %v4340
  %s4352 = scalar_lea.vmem %s1, 80
  %v4353 = vld [vmem:[%s4352] sm:$0xf]
  %4354 = vrot.lane.b32.xlu0 %v42, 48
  %v4355 = vpop.permute.xlu0 %4354
  %4356 = vrot.lane.b32.xlu0 %v43, 48
  %v4357 = vpop.permute.xlu0 %4356
  %4358 = vrot.lane.b32.xlu0 %v44, 48
  %v4359 = vpop.permute.xlu0 %4358
  %4360 = vrot.lane.b32.xlu0 %v45, 48
  %v4361 = vpop.permute.xlu0 %4360
  %4362 = vrot.lane.b32.xlu0 %v46, 48
  %v4363 = vpop.permute.xlu0 %4362
  %4364 = vrot.lane.b32.xlu0 %v47, 48
  %v4365 = vpop.permute.xlu0 %4364
  %4366 = vrot.lane.b32.xlu0 %v48, 48
  %v4367 = vpop.permute.xlu0 %4366
  %vm4368 = vcmask 392192
  %v4369 = vsel %vm4368, %v4355, %v4357
  %v4370 = vsel %vm4368, %v4357, %v4359
  %v4371 = vsel %vm4368, %v4359, %v4361
  %v4372 = vsel %vm4368, %v4361, %v4363
  %v4373 = vsel %vm4368, %v4363, %v4365
  %v4374 = vsel %vm4368, %v4365, %v4367
  %v4376 = vsel %vm70, %v4353, 0
  %v4379 = vsel %vm74, %v4369, 0
  %v4382 = vsel %vm74, %v4370, 0
  %v4385 = vsel %vm74, %v4371, 0
  %v4388 = vsel %vm74, %v4372, 0
  %v4391 = vsel %vm74, %v4373, 0
  %v4394 = vsel %vm74, %v4374, 0
  %v4397 = vsel %vm74, %v4367, 0
  %4399 = vmatprep.subr.bf16.mxu0 %v4382
  %4400 = vmatpush1.bf16.msra.mxu0 %v4379
  %4401 = vmatprep.subr.bf16.mxu0 0
  %4402 = vmatpush1.bf16.msra.mxu0 0
  %4403 = vmatprep.subr.bf16.mxu0 0
  %4404 = vmatpush1.bf16.msra.mxu0 0
  %4405 = vmatprep.subr.bf16.mxu0 0
  %4406 = vmatpush1.bf16.msra.mxu0 0
  %4407 = vmatprep.subr.bf16.mxu0 0
  %4408 = vmatpush1.bf16.msra.mxu0 0
  %4409 = vmatprep.subr.bf16.mxu0 0
  %4410 = vmatpush1.bf16.msra.mxu0 0
  %4411 = vmatprep.subr.bf16.mxu0 0
  %4412 = vmatpush1.bf16.msra.mxu0 0
  %4413 = vmatprep.subr.bf16.mxu0 0
  %4414 = vmatpush1.bf16.msra.mxu0 0
  %4415 = vmatprep.subr.bf16.mxu0 0
  %4416 = vmatpush1.bf16.msra.mxu0 0
  %4417 = vmatprep.subr.bf16.mxu0 0
  %4418 = vmatpush1.bf16.msra.mxu0 0
  %4419 = vmatprep.subr.bf16.mxu0 0
  %4420 = vmatpush1.bf16.msra.mxu0 0
  %4421 = vmatprep.subr.bf16.mxu0 0
  %4422 = vmatpush1.bf16.msra.mxu0 0
  %4423 = vmatprep.subr.bf16.mxu0 0
  %4424 = vmatpush1.bf16.msra.mxu0 0
  %4425 = vmatprep.subr.bf16.mxu0 0
  %4426 = vmatpush1.bf16.msra.mxu0 0
  %4427 = vmatprep.subr.bf16.mxu0 0
  %4428 = vmatpush1.bf16.msra.mxu0 0
  %4429 = vmatprep.subr.bf16.mxu0 0
  %4430 = vmatpush1.bf16.msra.mxu0 0
  %4431 = vmatprep.mubr.bf16.mxu0 0
  %4432 = vmatmul.mubr.bf16.gmra.mrb[0].mxu0 %v4376
  %v4433 = vpop.f32.mrb[0].mxu0
  %v4434 = vadd.f32 0.0, %v4433
  %v4435 = vpop.f32.mrb[0].mxu0
  %v4436 = vadd.f32 0.0, %v4435
  %v4437 = vpop.f32.mrb[0].mxu0
  %v4438 = vpop.f32.mrb[0].mxu0
  %4439 = vdwg.mxu0
  %4440 = vmatprep.subr.bf16.mxu0 %v4388
  %4441 = vmatpush1.bf16.msra.mxu0 %v4385
  %4442 = vmatprep.subr.bf16.mxu0 0
  %4443 = vmatpush1.bf16.msra.mxu0 0
  %4444 = vmatprep.subr.bf16.mxu0 0
  %4445 = vmatpush1.bf16.msra.mxu0 0
  %4446 = vmatprep.subr.bf16.mxu0 0
  %4447 = vmatpush1.bf16.msra.mxu0 0
  %4448 = vmatprep.subr.bf16.mxu0 0
  %4449 = vmatpush1.bf16.msra.mxu0 0
  %4450 = vmatprep.subr.bf16.mxu0 0
  %4451 = vmatpush1.bf16.msra.mxu0 0
  %4452 = vmatprep.subr.bf16.mxu0 0
  %4453 = vmatpush1.bf16.msra.mxu0 0
  %4454 = vmatprep.subr.bf16.mxu0 0
  %4455 = vmatpush1.bf16.msra.mxu0 0
  %4456 = vmatprep.subr.bf16.mxu0 0
  %4457 = vmatpush1.bf16.msra.mxu0 0
  %4458 = vmatprep.subr.bf16.mxu0 0
  %4459 = vmatpush1.bf16.msra.mxu0 0
  %4460 = vmatprep.subr.bf16.mxu0 0
  %4461 = vmatpush1.bf16.msra.mxu0 0
  %4462 = vmatprep.subr.bf16.mxu0 0
  %4463 = vmatpush1.bf16.msra.mxu0 0
  %4464 = vmatprep.subr.bf16.mxu0 0
  %4465 = vmatpush1.bf16.msra.mxu0 0
  %4466 = vmatprep.subr.bf16.mxu0 0
  %4467 = vmatpush1.bf16.msra.mxu0 0
  %4468 = vmatprep.subr.bf16.mxu0 0
  %4469 = vmatpush1.bf16.msra.mxu0 0
  %4470 = vmatprep.subr.bf16.mxu0 0
  %4471 = vmatpush1.bf16.msra.mxu0 0
  %4472 = vmatprep.mubr.bf16.mxu0 0
  %4473 = vmatmul.mubr.bf16.gmra.mrb[0].mxu0 %v4376
  %v4474 = vpop.f32.mrb[0].mxu0
  %v4475 = vadd.f32 0.0, %v4474
  %v4476 = vpop.f32.mrb[0].mxu0
  %v4477 = vadd.f32 0.0, %v4476
  %v4478 = vpop.f32.mrb[0].mxu0
  %v4479 = vpop.f32.mrb[0].mxu0
  %4480 = vdwg.mxu0
  %4481 = vmatprep.subr.bf16.mxu0 %v4394
  %4482 = vmatpush1.bf16.msra.mxu0 %v4391
  %4483 = vmatprep.subr.bf16.mxu0 0
  %4484 = vmatpush1.bf16.msra.mxu0 0
  %4485 = vmatprep.subr.bf16.mxu0 0
  %4486 = vmatpush1.bf16.msra.mxu0 0
  %4487 = vmatprep.subr.bf16.mxu0 0
  %4488 = vmatpush1.bf16.msra.mxu0 0
  %4489 = vmatprep.subr.bf16.mxu0 0
  %4490 = vmatpush1.bf16.msra.mxu0 0
  %4491 = vmatprep.subr.bf16.mxu0 0
  %4492 = vmatpush1.bf16.msra.mxu0 0
  %4493 = vmatprep.subr.bf16.mxu0 0
  %4494 = vmatpush1.bf16.msra.mxu0 0
  %4495 = vmatprep.subr.bf16.mxu0 0
  %4496 = vmatpush1.bf16.msra.mxu0 0
  %4497 = vmatprep.subr.bf16.mxu0 0
  %4498 = vmatpush1.bf16.msra.mxu0 0
  %4499 = vmatprep.subr.bf16.mxu0 0
  %4500 = vmatpush1.bf16.msra.mxu0 0
  %4501 = vmatprep.subr.bf16.mxu0 0
  %4502 = vmatpush1.bf16.msra.mxu0 0
  %4503 = vmatprep.subr.bf16.mxu0 0
  %4504 = vmatpush1.bf16.msra.mxu0 0
  %4505 = vmatprep.subr.bf16.mxu0 0
  %4506 = vmatpush1.bf16.msra.mxu0 0
  %4507 = vmatprep.subr.bf16.mxu0 0
  %4508 = vmatpush1.bf16.msra.mxu0 0
  %4509 = vmatprep.subr.bf16.mxu0 0
  %4510 = vmatpush1.bf16.msra.mxu0 0
  %4511 = vmatprep.subr.bf16.mxu0 0
  %4512 = vmatpush1.bf16.msra.mxu0 0
  %4513 = vmatprep.mubr.bf16.mxu0 0
  %4514 = vmatmul.mubr.bf16.gmra.mrb[0].mxu0 %v4376
  %v4515 = vpop.f32.mrb[0].mxu0
  %v4516 = vadd.f32 0.0, %v4515
  %v4517 = vpop.f32.mrb[0].mxu0
  %v4518 = vadd.f32 0.0, %v4517
  %v4519 = vpop.f32.mrb[0].mxu0
  %v4520 = vpop.f32.mrb[0].mxu0
  %4521 = vdwg.mxu0
  %4522 = vmatprep.subr.bf16.mxu0 0
  %4523 = vmatpush1.bf16.msra.mxu0 %v4397
  %4524 = vmatprep.subr.bf16.mxu0 0
  %4525 = vmatpush1.bf16.msra.mxu0 0
  %4526 = vmatprep.subr.bf16.mxu0 0
  %4527 = vmatpush1.bf16.msra.mxu0 0
  %4528 = vmatprep.subr.bf16.mxu0 0
  %4529 = vmatpush1.bf16.msra.mxu0 0
  %4530 = vmatprep.subr.bf16.mxu0 0
  %4531 = vmatpush1.bf16.msra.mxu0 0
  %4532 = vmatprep.subr.bf16.mxu0 0
  %4533 = vmatpush1.bf16.msra.mxu0 0
  %4534 = vmatprep.subr.bf16.mxu0 0
  %4535 = vmatpush1.bf16.msra.mxu0 0
  %4536 = vmatprep.subr.bf16.mxu0 0
  %4537 = vmatpush1.bf16.msra.mxu0 0
  %4538 = vmatprep.subr.bf16.mxu0 0
  %4539 = vmatpush1.bf16.msra.mxu0 0
  %4540 = vmatprep.subr.bf16.mxu0 0
  %4541 = vmatpush1.bf16.msra.mxu0 0
  %4542 = vmatprep.subr.bf16.mxu0 0
  %4543 = vmatpush1.bf16.msra.mxu0 0
  %4544 = vmatprep.subr.bf16.mxu0 0
  %4545 = vmatpush1.bf16.msra.mxu0 0
  %4546 = vmatprep.subr.bf16.mxu0 0
  %4547 = vmatpush1.bf16.msra.mxu0 0
  %4548 = vmatprep.subr.bf16.mxu0 0
  %4549 = vmatpush1.bf16.msra.mxu0 0
  %4550 = vmatprep.subr.bf16.mxu0 0
  %4551 = vmatpush1.bf16.msra.mxu0 0
  %4552 = vmatprep.subr.bf16.mxu0 0
  %4553 = vmatpush1.bf16.msra.mxu0 0
  %4554 = vmatprep.mubr.bf16.mxu0 0
  %4555 = vmatmul.mubr.bf16.gmra.mrb[0].mxu0 %v4376
  %v4556 = vpop.f32.mrb[0].mxu0
  %v4557 = vadd.f32 0.0, %v4556
  %v4558 = vpop.f32.mrb[0].mxu0
  %v4559 = vpop.f32.mrb[0].mxu0
  %v4560 = vpop.f32.mrb[0].mxu0
  %4561 = vdwg.mxu0
  %v4562 = vadd.f32 %v4345, %v4434
  %v4563 = vadd.f32 %v4346, %v4436
  %v4564 = vadd.f32 %v4347, %v4475
  %v4565 = vadd.f32 %v4348, %v4477
  %v4566 = vadd.f32 %v4349, %v4516
  %v4567 = vadd.f32 %v4350, %v4518
  %v4568 = vadd.f32 %v4351, %v4557
  %s4569 = scalar_lea.vmem %s1, 84
  %v4570 = vld [vmem:[%s4569] sm:$0xf]
  %4571 = vrot.lane.b32.xlu0 %v42, 47
  %v4572 = vpop.permute.xlu0 %4571
  %4573 = vrot.lane.b32.xlu0 %v43, 47
  %v4574 = vpop.permute.xlu0 %4573
  %4575 = vrot.lane.b32.xlu0 %v44, 47
  %v4576 = vpop.permute.xlu0 %4575
  %4577 = vrot.lane.b32.xlu0 %v45, 47
  %v4578 = vpop.permute.xlu0 %4577
  %4579 = vrot.lane.b32.xlu0 %v46, 47
  %v4580 = vpop.permute.xlu0 %4579
  %4581 = vrot.lane.b32.xlu0 %v47, 47
  %v4582 = vpop.permute.xlu0 %4581
  %4583 = vrot.lane.b32.xlu0 %v48, 47
  %v4584 = vpop.permute.xlu0 %4583
  %vm4585 = vcmask 384000
  %v4586 = vsel %vm4585, %v4572, %v4574
  %v4587 = vsel %vm4585, %v4574, %v4576
  %v4588 = vsel %vm4585, %v4576, %v4578
  %v4589 = vsel %vm4585, %v4578, %v4580
  %v4590 = vsel %vm4585, %v4580, %v4582
  %v4591 = vsel %vm4585, %v4582, %v4584
  %v4593 = vsel %vm70, %v4570, 0
  %v4596 = vsel %vm74, %v4586, 0
  %v4599 = vsel %vm74, %v4587, 0
  %v4602 = vsel %vm74, %v4588, 0
  %v4605 = vsel %vm74, %v4589, 0
  %v4608 = vsel %vm74, %v4590, 0
  %v4611 = vsel %vm74, %v4591, 0
  %v4614 = vsel %vm74, %v4584, 0
  %4616 = vmatprep.subr.bf16.mxu0 %v4599
  %4617 = vmatpush1.bf16.msra.mxu0 %v4596
  %4618 = vmatprep.subr.bf16.mxu0 0
  %4619 = vmatpush1.bf16.msra.mxu0 0
  %4620 = vmatprep.subr.bf16.mxu0 0
  %4621 = vmatpush1.bf16.msra.mxu0 0
  %4622 = vmatprep.subr.bf16.mxu0 0
  %4623 = vmatpush1.bf16.msra.mxu0 0
  %4624 = vmatprep.subr.bf16.mxu0 0
  %4625 = vmatpush1.bf16.msra.mxu0 0
  %4626 = vmatprep.subr.bf16.mxu0 0
  %4627 = vmatpush1.bf16.msra.mxu0 0
  %4628 = vmatprep.subr.bf16.mxu0 0
  %4629 = vmatpush1.bf16.msra.mxu0 0
  %4630 = vmatprep.subr.bf16.mxu0 0
  %4631 = vmatpush1.bf16.msra.mxu0 0
  %4632 = vmatprep.subr.bf16.mxu0 0
  %4633 = vmatpush1.bf16.msra.mxu0 0
  %4634 = vmatprep.subr.bf16.mxu0 0
  %4635 = vmatpush1.bf16.msra.mxu0 0
  %4636 = vmatprep.subr.bf16.mxu0 0
  %4637 = vmatpush1.bf16.msra.mxu0 0
  %4638 = vmatprep.subr.bf16.mxu0 0
  %4639 = vmatpush1.bf16.msra.mxu0 0
  %4640 = vmatprep.subr.bf16.mxu0 0
  %4641 = vmatpush1.bf16.msra.mxu0 0
  %4642 = vmatprep.subr.bf16.mxu0 0
  %4643 = vmatpush1.bf16.msra.mxu0 0
  %4644 = vmatprep.subr.bf16.mxu0 0
  %4645 = vmatpush1.bf16.msra.mxu0 0
  %4646 = vmatprep.subr.bf16.mxu0 0
  %4647 = vmatpush1.bf16.msra.mxu0 0
  %4648 = vmatprep.mubr.bf16.mxu0 0
  %4649 = vmatmul.mubr.bf16.gmra.mrb[0].mxu0 %v4593
  %v4650 = vpop.f32.mrb[0].mxu0
  %v4651 = vadd.f32 0.0, %v4650
  %v4652 = vpop.f32.mrb[0].mxu0
  %v4653 = vadd.f32 0.0, %v4652
  %v4654 = vpop.f32.mrb[0].mxu0
  %v4655 = vpop.f32.mrb[0].mxu0
  %4656 = vdwg.mxu0
  %4657 = vmatprep.subr.bf16.mxu0 %v4605
  %4658 = vmatpush1.bf16.msra.mxu0 %v4602
  %4659 = vmatprep.subr.bf16.mxu0 0
  %4660 = vmatpush1.bf16.msra.mxu0 0
  %4661 = vmatprep.subr.bf16.mxu0 0
  %4662 = vmatpush1.bf16.msra.mxu0 0
  %4663 = vmatprep.subr.bf16.mxu0 0
  %4664 = vmatpush1.bf16.msra.mxu0 0
  %4665 = vmatprep.subr.bf16.mxu0 0
  %4666 = vmatpush1.bf16.msra.mxu0 0
  %4667 = vmatprep.subr.bf16.mxu0 0
  %4668 = vmatpush1.bf16.msra.mxu0 0
  %4669 = vmatprep.subr.bf16.mxu0 0
  %4670 = vmatpush1.bf16.msra.mxu0 0
  %4671 = vmatprep.subr.bf16.mxu0 0
  %4672 = vmatpush1.bf16.msra.mxu0 0
  %4673 = vmatprep.subr.bf16.mxu0 0
  %4674 = vmatpush1.bf16.msra.mxu0 0
  %4675 = vmatprep.subr.bf16.mxu0 0
  %4676 = vmatpush1.bf16.msra.mxu0 0
  %4677 = vmatprep.subr.bf16.mxu0 0
  %4678 = vmatpush1.bf16.msra.mxu0 0
  %4679 = vmatprep.subr.bf16.mxu0 0
  %4680 = vmatpush1.bf16.msra.mxu0 0
  %4681 = vmatprep.subr.bf16.mxu0 0
  %4682 = vmatpush1.bf16.msra.mxu0 0
  %4683 = vmatprep.subr.bf16.mxu0 0
  %4684 = vmatpush1.bf16.msra.mxu0 0
  %4685 = vmatprep.subr.bf16.mxu0 0
  %4686 = vmatpush1.bf16.msra.mxu0 0
  %4687 = vmatprep.subr.bf16.mxu0 0
  %4688 = vmatpush1.bf16.msra.mxu0 0
  %4689 = vmatprep.mubr.bf16.mxu0 0
  %4690 = vmatmul.mubr.bf16.gmra.mrb[0].mxu0 %v4593
  %v4691 = vpop.f32.mrb[0].mxu0
  %v4692 = vadd.f32 0.0, %v4691
  %v4693 = vpop.f32.mrb[0].mxu0
  %v4694 = vadd.f32 0.0, %v4693
  %v4695 = vpop.f32.mrb[0].mxu0
  %v4696 = vpop.f32.mrb[0].mxu0
  %4697 = vdwg.mxu0
  %4698 = vmatprep.subr.bf16.mxu0 %v4611
  %4699 = vmatpush1.bf16.msra.mxu0 %v4608
  %4700 = vmatprep.subr.bf16.mxu0 0
  %4701 = vmatpush1.bf16.msra.mxu0 0
  %4702 = vmatprep.subr.bf16.mxu0 0
  %4703 = vmatpush1.bf16.msra.mxu0 0
  %4704 = vmatprep.subr.bf16.mxu0 0
  %4705 = vmatpush1.bf16.msra.mxu0 0
  %4706 = vmatprep.subr.bf16.mxu0 0
  %4707 = vmatpush1.bf16.msra.mxu0 0
  %4708 = vmatprep.subr.bf16.mxu0 0
  %4709 = vmatpush1.bf16.msra.mxu0 0
  %4710 = vmatprep.subr.bf16.mxu0 0
  %4711 = vmatpush1.bf16.msra.mxu0 0
  %4712 = vmatprep.subr.bf16.mxu0 0
  %4713 = vmatpush1.bf16.msra.mxu0 0
  %4714 = vmatprep.subr.bf16.mxu0 0
  %4715 = vmatpush1.bf16.msra.mxu0 0
  %4716 = vmatprep.subr.bf16.mxu0 0
  %4717 = vmatpush1.bf16.msra.mxu0 0
  %4718 = vmatprep.subr.bf16.mxu0 0
  %4719 = vmatpush1.bf16.msra.mxu0 0
  %4720 = vmatprep.subr.bf16.mxu0 0
  %4721 = vmatpush1.bf16.msra.mxu0 0
  %4722 = vmatprep.subr.bf16.mxu0 0
  %4723 = vmatpush1.bf16.msra.mxu0 0
  %4724 = vmatprep.subr.bf16.mxu0 0
  %4725 = vmatpush1.bf16.msra.mxu0 0
  %4726 = vmatprep.subr.bf16.mxu0 0
  %4727 = vmatpush1.bf16.msra.mxu0 0
  %4728 = vmatprep.subr.bf16.mxu0 0
  %4729 = vmatpush1.bf16.msra.mxu0 0
  %4730 = vmatprep.mubr.bf16.mxu0 0
  %4731 = vmatmul.mubr.bf16.gmra.mrb[0].mxu0 %v4593
  %v4732 = vpop.f32.mrb[0].mxu0
  %v4733 = vadd.f32 0.0, %v4732
  %v4734 = vpop.f32.mrb[0].mxu0
  %v4735 = vadd.f32 0.0, %v4734
  %v4736 = vpop.f32.mrb[0].mxu0
  %v4737 = vpop.f32.mrb[0].mxu0
  %4738 = vdwg.mxu0
  %4739 = vmatprep.subr.bf16.mxu0 0
  %4740 = vmatpush1.bf16.msra.mxu0 %v4614
  %4741 = vmatprep.subr.bf16.mxu0 0
  %4742 = vmatpush1.bf16.msra.mxu0 0
  %4743 = vmatprep.subr.bf16.mxu0 0
  %4744 = vmatpush1.bf16.msra.mxu0 0
  %4745 = vmatprep.subr.bf16.mxu0 0
  %4746 = vmatpush1.bf16.msra.mxu0 0
  %4747 = vmatprep.subr.bf16.mxu0 0
  %4748 = vmatpush1.bf16.msra.mxu0 0
  %4749 = vmatprep.subr.bf16.mxu0 0
  %4750 = vmatpush1.bf16.msra.mxu0 0
  %4751 = vmatprep.subr.bf16.mxu0 0
  %4752 = vmatpush1.bf16.msra.mxu0 0
  %4753 = vmatprep.subr.bf16.mxu0 0
  %4754 = vmatpush1.bf16.msra.mxu0 0
  %4755 = vmatprep.subr.bf16.mxu0 0
  %4756 = vmatpush1.bf16.msra.mxu0 0
  %4757 = vmatprep.subr.bf16.mxu0 0
  %4758 = vmatpush1.bf16.msra.mxu0 0
  %4759 = vmatprep.subr.bf16.mxu0 0
  %4760 = vmatpush1.bf16.msra.mxu0 0
  %4761 = vmatprep.subr.bf16.mxu0 0
  %4762 = vmatpush1.bf16.msra.mxu0 0
  %4763 = vmatprep.subr.bf16.mxu0 0
  %4764 = vmatpush1.bf16.msra.mxu0 0
  %4765 = vmatprep.subr.bf16.mxu0 0
  %4766 = vmatpush1.bf16.msra.mxu0 0
  %4767 = vmatprep.subr.bf16.mxu0 0
  %4768 = vmatpush1.bf16.msra.mxu0 0
  %4769 = vmatprep.subr.bf16.mxu0 0
  %4770 = vmatpush1.bf16.msra.mxu0 0
  %4771 = vmatprep.mubr.bf16.mxu0 0
  %4772 = vmatmul.mubr.bf16.gmra.mrb[0].mxu0 %v4593
  %v4773 = vpop.f32.mrb[0].mxu0
  %v4774 = vadd.f32 0.0, %v4773
  %v4775 = vpop.f32.mrb[0].mxu0
  %v4776 = vpop.f32.mrb[0].mxu0
  %v4777 = vpop.f32.mrb[0].mxu0
  %4778 = vdwg.mxu0
  %v4779 = vadd.f32 %v4562, %v4651
  %v4780 = vadd.f32 %v4563, %v4653
  %v4781 = vadd.f32 %v4564, %v4692
  %v4782 = vadd.f32 %v4565, %v4694
  %v4783 = vadd.f32 %v4566, %v4733
  %v4784 = vadd.f32 %v4567, %v4735
  %v4785 = vadd.f32 %v4568, %v4774
  %s4786 = scalar_lea.vmem %s1, 88
  %v4787 = vld [vmem:[%s4786] sm:$0xf]
  %4788 = vrot.lane.b32.xlu0 %v42, 46
  %v4789 = vpop.permute.xlu0 %4788
  %4790 = vrot.lane.b32.xlu0 %v43, 46
  %v4791 = vpop.permute.xlu0 %4790
  %4792 = vrot.lane.b32.xlu0 %v44, 46
  %v4793 = vpop.permute.xlu0 %4792
  %4794 = vrot.lane.b32.xlu0 %v45, 46
  %v4795 = vpop.permute.xlu0 %4794
  %4796 = vrot.lane.b32.xlu0 %v46, 46
  %v4797 = vpop.permute.xlu0 %4796
  %4798 = vrot.lane.b32.xlu0 %v47, 46
  %v4799 = vpop.permute.xlu0 %4798
  %4800 = vrot.lane.b32.xlu0 %v48, 46
  %v4801 = vpop.permute.xlu0 %4800
  %vm4802 = vcmask 375808
  %v4803 = vsel %vm4802, %v4789, %v4791
  %v4804 = vsel %vm4802, %v4791, %v4793
  %v4805 = vsel %vm4802, %v4793, %v4795
  %v4806 = vsel %vm4802, %v4795, %v4797
  %v4807 = vsel %vm4802, %v4797, %v4799
  %v4808 = vsel %vm4802, %v4799, %v4801
  %v4810 = vsel %vm70, %v4787, 0
  %v4813 = vsel %vm74, %v4803, 0
  %v4816 = vsel %vm74, %v4804, 0
  %v4819 = vsel %vm74, %v4805, 0
  %v4822 = vsel %vm74, %v4806, 0
  %v4825 = vsel %vm74, %v4807, 0
  %v4828 = vsel %vm74, %v4808, 0
  %v4831 = vsel %vm74, %v4801, 0
  %4833 = vmatprep.subr.bf16.mxu0 %v4816
  %4834 = vmatpush1.bf16.msra.mxu0 %v4813
  %4835 = vmatprep.subr.bf16.mxu0 0
  %4836 = vmatpush1.bf16.msra.mxu0 0
  %4837 = vmatprep.subr.bf16.mxu0 0
  %4838 = vmatpush1.bf16.msra.mxu0 0
  %4839 = vmatprep.subr.bf16.mxu0 0
  %4840 = vmatpush1.bf16.msra.mxu0 0
  %4841 = vmatprep.subr.bf16.mxu0 0
  %4842 = vmatpush1.bf16.msra.mxu0 0
  %4843 = vmatprep.subr.bf16.mxu0 0
  %4844 = vmatpush1.bf16.msra.mxu0 0
  %4845 = vmatprep.subr.bf16.mxu0 0
  %4846 = vmatpush1.bf16.msra.mxu0 0
  %4847 = vmatprep.subr.bf16.mxu0 0
  %4848 = vmatpush1.bf16.msra.mxu0 0
  %4849 = vmatprep.subr.bf16.mxu0 0
  %4850 = vmatpush1.bf16.msra.mxu0 0
  %4851 = vmatprep.subr.bf16.mxu0 0
  %4852 = vmatpush1.bf16.msra.mxu0 0
  %4853 = vmatprep.subr.bf16.mxu0 0
  %4854 = vmatpush1.bf16.msra.mxu0 0
  %4855 = vmatprep.subr.bf16.mxu0 0
  %4856 = vmatpush1.bf16.msra.mxu0 0
  %4857 = vmatprep.subr.bf16.mxu0 0
  %4858 = vmatpush1.bf16.msra.mxu0 0
  %4859 = vmatprep.subr.bf16.mxu0 0
  %4860 = vmatpush1.bf16.msra.mxu0 0
  %4861 = vmatprep.subr.bf16.mxu0 0
  %4862 = vmatpush1.bf16.msra.mxu0 0
  %4863 = vmatprep.subr.bf16.mxu0 0
  %4864 = vmatpush1.bf16.msra.mxu0 0
  %4865 = vmatprep.mubr.bf16.mxu0 0
  %4866 = vmatmul.mubr.bf16.gmra.mrb[0].mxu0 %v4810
  %v4867 = vpop.f32.mrb[0].mxu0
  %v4868 = vadd.f32 0.0, %v4867
  %v4869 = vpop.f32.mrb[0].mxu0
  %v4870 = vadd.f32 0.0, %v4869
  %v4871 = vpop.f32.mrb[0].mxu0
  %v4872 = vpop.f32.mrb[0].mxu0
  %4873 = vdwg.mxu0
  %4874 = vmatprep.subr.bf16.mxu0 %v4822
  %4875 = vmatpush1.bf16.msra.mxu0 %v4819
  %4876 = vmatprep.subr.bf16.mxu0 0
  %4877 = vmatpush1.bf16.msra.mxu0 0
  %4878 = vmatprep.subr.bf16.mxu0 0
  %4879 = vmatpush1.bf16.msra.mxu0 0
  %4880 = vmatprep.subr.bf16.mxu0 0
  %4881 = vmatpush1.bf16.msra.mxu0 0
  %4882 = vmatprep.subr.bf16.mxu0 0
  %4883 = vmatpush1.bf16.msra.mxu0 0
  %4884 = vmatprep.subr.bf16.mxu0 0
  %4885 = vmatpush1.bf16.msra.mxu0 0
  %4886 = vmatprep.subr.bf16.mxu0 0
  %4887 = vmatpush1.bf16.msra.mxu0 0
  %4888 = vmatprep.subr.bf16.mxu0 0
  %4889 = vmatpush1.bf16.msra.mxu0 0
  %4890 = vmatprep.subr.bf16.mxu0 0
  %4891 = vmatpush1.bf16.msra.mxu0 0
  %4892 = vmatprep.subr.bf16.mxu0 0
  %4893 = vmatpush1.bf16.msra.mxu0 0
  %4894 = vmatprep.subr.bf16.mxu0 0
  %4895 = vmatpush1.bf16.msra.mxu0 0
  %4896 = vmatprep.subr.bf16.mxu0 0
  %4897 = vmatpush1.bf16.msra.mxu0 0
  %4898 = vmatprep.subr.bf16.mxu0 0
  %4899 = vmatpush1.bf16.msra.mxu0 0
  %4900 = vmatprep.subr.bf16.mxu0 0
  %4901 = vmatpush1.bf16.msra.mxu0 0
  %4902 = vmatprep.subr.bf16.mxu0 0
  %4903 = vmatpush1.bf16.msra.mxu0 0
  %4904 = vmatprep.subr.bf16.mxu0 0
  %4905 = vmatpush1.bf16.msra.mxu0 0
  %4906 = vmatprep.mubr.bf16.mxu0 0
  %4907 = vmatmul.mubr.bf16.gmra.mrb[0].mxu0 %v4810
  %v4908 = vpop.f32.mrb[0].mxu0
  %v4909 = vadd.f32 0.0, %v4908
  %v4910 = vpop.f32.mrb[0].mxu0
  %v4911 = vadd.f32 0.0, %v4910
  %v4912 = vpop.f32.mrb[0].mxu0
  %v4913 = vpop.f32.mrb[0].mxu0
  %4914 = vdwg.mxu0
  %4915 = vmatprep.subr.bf16.mxu0 %v4828
  %4916 = vmatpush1.bf16.msra.mxu0 %v4825
  %4917 = vmatprep.subr.bf16.mxu0 0
  %4918 = vmatpush1.bf16.msra.mxu0 0
  %4919 = vmatprep.subr.bf16.mxu0 0
  %4920 = vmatpush1.bf16.msra.mxu0 0
  %4921 = vmatprep.subr.bf16.mxu0 0
  %4922 = vmatpush1.bf16.msra.mxu0 0
  %4923 = vmatprep.subr.bf16.mxu0 0
  %4924 = vmatpush1.bf16.msra.mxu0 0
  %4925 = vmatprep.subr.bf16.mxu0 0
  %4926 = vmatpush1.bf16.msra.mxu0 0
  %4927 = vmatprep.subr.bf16.mxu0 0
  %4928 = vmatpush1.bf16.msra.mxu0 0
  %4929 = vmatprep.subr.bf16.mxu0 0
  %4930 = vmatpush1.bf16.msra.mxu0 0
  %4931 = vmatprep.subr.bf16.mxu0 0
  %4932 = vmatpush1.bf16.msra.mxu0 0
  %4933 = vmatprep.subr.bf16.mxu0 0
  %4934 = vmatpush1.bf16.msra.mxu0 0
  %4935 = vmatprep.subr.bf16.mxu0 0
  %4936 = vmatpush1.bf16.msra.mxu0 0
  %4937 = vmatprep.subr.bf16.mxu0 0
  %4938 = vmatpush1.bf16.msra.mxu0 0
  %4939 = vmatprep.subr.bf16.mxu0 0
  %4940 = vmatpush1.bf16.msra.mxu0 0
  %4941 = vmatprep.subr.bf16.mxu0 0
  %4942 = vmatpush1.bf16.msra.mxu0 0
  %4943 = vmatprep.subr.bf16.mxu0 0
  %4944 = vmatpush1.bf16.msra.mxu0 0
  %4945 = vmatprep.subr.bf16.mxu0 0
  %4946 = vmatpush1.bf16.msra.mxu0 0
  %4947 = vmatprep.mubr.bf16.mxu0 0
  %4948 = vmatmul.mubr.bf16.gmra.mrb[0].mxu0 %v4810
  %v4949 = vpop.f32.mrb[0].mxu0
  %v4950 = vadd.f32 0.0, %v4949
  %v4951 = vpop.f32.mrb[0].mxu0
  %v4952 = vadd.f32 0.0, %v4951
  %v4953 = vpop.f32.mrb[0].mxu0
  %v4954 = vpop.f32.mrb[0].mxu0
  %4955 = vdwg.mxu0
  %4956 = vmatprep.subr.bf16.mxu0 0
  %4957 = vmatpush1.bf16.msra.mxu0 %v4831
  %4958 = vmatprep.subr.bf16.mxu0 0
  %4959 = vmatpush1.bf16.msra.mxu0 0
  %4960 = vmatprep.subr.bf16.mxu0 0
  %4961 = vmatpush1.bf16.msra.mxu0 0
  %4962 = vmatprep.subr.bf16.mxu0 0
  %4963 = vmatpush1.bf16.msra.mxu0 0
  %4964 = vmatprep.subr.bf16.mxu0 0
  %4965 = vmatpush1.bf16.msra.mxu0 0
  %4966 = vmatprep.subr.bf16.mxu0 0
  %4967 = vmatpush1.bf16.msra.mxu0 0
  %4968 = vmatprep.subr.bf16.mxu0 0
  %4969 = vmatpush1.bf16.msra.mxu0 0
  %4970 = vmatprep.subr.bf16.mxu0 0
  %4971 = vmatpush1.bf16.msra.mxu0 0
  %4972 = vmatprep.subr.bf16.mxu0 0
  %4973 = vmatpush1.bf16.msra.mxu0 0
  %4974 = vmatprep.subr.bf16.mxu0 0
  %4975 = vmatpush1.bf16.msra.mxu0 0
  %4976 = vmatprep.subr.bf16.mxu0 0
  %4977 = vmatpush1.bf16.msra.mxu0 0
  %4978 = vmatprep.subr.bf16.mxu0 0
  %4979 = vmatpush1.bf16.msra.mxu0 0
  %4980 = vmatprep.subr.bf16.mxu0 0
  %4981 = vmatpush1.bf16.msra.mxu0 0
  %4982 = vmatprep.subr.bf16.mxu0 0
  %4983 = vmatpush1.bf16.msra.mxu0 0
  %4984 = vmatprep.subr.bf16.mxu0 0
  %4985 = vmatpush1.bf16.msra.mxu0 0
  %4986 = vmatprep.subr.bf16.mxu0 0
  %4987 = vmatpush1.bf16.msra.mxu0 0
  %4988 = vmatprep.mubr.bf16.mxu0 0
  %4989 = vmatmul.mubr.bf16.gmra.mrb[0].mxu0 %v4810
  %v4990 = vpop.f32.mrb[0].mxu0
  %v4991 = vadd.f32 0.0, %v4990
  %v4992 = vpop.f32.mrb[0].mxu0
  %v4993 = vpop.f32.mrb[0].mxu0
  %v4994 = vpop.f32.mrb[0].mxu0
  %4995 = vdwg.mxu0
  %v4996 = vadd.f32 %v4779, %v4868
  %v4997 = vadd.f32 %v4780, %v4870
  %v4998 = vadd.f32 %v4781, %v4909
  %v4999 = vadd.f32 %v4782, %v4911
  %v5000 = vadd.f32 %v4783, %v4950
  %v5001 = vadd.f32 %v4784, %v4952
  %v5002 = vadd.f32 %v4785, %v4991
  %s5003 = scalar_lea.vmem %s1, 92
  %v5004 = vld [vmem:[%s5003] sm:$0xf]
  %5005 = vrot.lane.b32.xlu0 %v42, 45
  %v5006 = vpop.permute.xlu0 %5005
  %5007 = vrot.lane.b32.xlu0 %v43, 45
  %v5008 = vpop.permute.xlu0 %5007
  %5009 = vrot.lane.b32.xlu0 %v44, 45
  %v5010 = vpop.permute.xlu0 %5009
  %5011 = vrot.lane.b32.xlu0 %v45, 45
  %v5012 = vpop.permute.xlu0 %5011
  %5013 = vrot.lane.b32.xlu0 %v46, 45
  %v5014 = vpop.permute.xlu0 %5013
  %5015 = vrot.lane.b32.xlu0 %v47, 45
  %v5016 = vpop.permute.xlu0 %5015
  %5017 = vrot.lane.b32.xlu0 %v48, 45
  %v5018 = vpop.permute.xlu0 %5017
  %vm5019 = vcmask 367616
  %v5020 = vsel %vm5019, %v5006, %v5008
  %v5021 = vsel %vm5019, %v5008, %v5010
  %v5022 = vsel %vm5019, %v5010, %v5012
  %v5023 = vsel %vm5019, %v5012, %v5014
  %v5024 = vsel %vm5019, %v5014, %v5016
  %v5025 = vsel %vm5019, %v5016, %v5018
  %v5027 = vsel %vm70, %v5004, 0
  %v5030 = vsel %vm74, %v5020, 0
  %v5033 = vsel %vm74, %v5021, 0
  %v5036 = vsel %vm74, %v5022, 0
  %v5039 = vsel %vm74, %v5023, 0
  %v5042 = vsel %vm74, %v5024, 0
  %v5045 = vsel %vm74, %v5025, 0
  %v5048 = vsel %vm74, %v5018, 0
  %5050 = vmatprep.subr.bf16.mxu0 %v5033
  %5051 = vmatpush1.bf16.msra.mxu0 %v5030
  %5052 = vmatprep.subr.bf16.mxu0 0
  %5053 = vmatpush1.bf16.msra.mxu0 0
  %5054 = vmatprep.subr.bf16.mxu0 0
  %5055 = vmatpush1.bf16.msra.mxu0 0
  %5056 = vmatprep.subr.bf16.mxu0 0
  %5057 = vmatpush1.bf16.msra.mxu0 0
  %5058 = vmatprep.subr.bf16.mxu0 0
  %5059 = vmatpush1.bf16.msra.mxu0 0
  %5060 = vmatprep.subr.bf16.mxu0 0
  %5061 = vmatpush1.bf16.msra.mxu0 0
  %5062 = vmatprep.subr.bf16.mxu0 0
  %5063 = vmatpush1.bf16.msra.mxu0 0
  %5064 = vmatprep.subr.bf16.mxu0 0
  %5065 = vmatpush1.bf16.msra.mxu0 0
  %5066 = vmatprep.subr.bf16.mxu0 0
  %5067 = vmatpush1.bf16.msra.mxu0 0
  %5068 = vmatprep.subr.bf16.mxu0 0
  %5069 = vmatpush1.bf16.msra.mxu0 0
  %5070 = vmatprep.subr.bf16.mxu0 0
  %5071 = vmatpush1.bf16.msra.mxu0 0
  %5072 = vmatprep.subr.bf16.mxu0 0
  %5073 = vmatpush1.bf16.msra.mxu0 0
  %5074 = vmatprep.subr.bf16.mxu0 0
  %5075 = vmatpush1.bf16.msra.mxu0 0
  %5076 = vmatprep.subr.bf16.mxu0 0
  %5077 = vmatpush1.bf16.msra.mxu0 0
  %5078 = vmatprep.subr.bf16.mxu0 0
  %5079 = vmatpush1.bf16.msra.mxu0 0
  %5080 = vmatprep.subr.bf16.mxu0 0
  %5081 = vmatpush1.bf16.msra.mxu0 0
  %5082 = vmatprep.mubr.bf16.mxu0 0
  %5083 = vmatmul.mubr.bf16.gmra.mrb[0].mxu0 %v5027
  %v5084 = vpop.f32.mrb[0].mxu0
  %v5085 = vadd.f32 0.0, %v5084
  %v5086 = vpop.f32.mrb[0].mxu0
  %v5087 = vadd.f32 0.0, %v5086
  %v5088 = vpop.f32.mrb[0].mxu0
  %v5089 = vpop.f32.mrb[0].mxu0
  %5090 = vdwg.mxu0
  %5091 = vmatprep.subr.bf16.mxu0 %v5039
  %5092 = vmatpush1.bf16.msra.mxu0 %v5036
  %5093 = vmatprep.subr.bf16.mxu0 0
  %5094 = vmatpush1.bf16.msra.mxu0 0
  %5095 = vmatprep.subr.bf16.mxu0 0
  %5096 = vmatpush1.bf16.msra.mxu0 0
  %5097 = vmatprep.subr.bf16.mxu0 0
  %5098 = vmatpush1.bf16.msra.mxu0 0
  %5099 = vmatprep.subr.bf16.mxu0 0
  %5100 = vmatpush1.bf16.msra.mxu0 0
  %5101 = vmatprep.subr.bf16.mxu0 0
  %5102 = vmatpush1.bf16.msra.mxu0 0
  %5103 = vmatprep.subr.bf16.mxu0 0
  %5104 = vmatpush1.bf16.msra.mxu0 0
  %5105 = vmatprep.subr.bf16.mxu0 0
  %5106 = vmatpush1.bf16.msra.mxu0 0
  %5107 = vmatprep.subr.bf16.mxu0 0
  %5108 = vmatpush1.bf16.msra.mxu0 0
  %5109 = vmatprep.subr.bf16.mxu0 0
  %5110 = vmatpush1.bf16.msra.mxu0 0
  %5111 = vmatprep.subr.bf16.mxu0 0
  %5112 = vmatpush1.bf16.msra.mxu0 0
  %5113 = vmatprep.subr.bf16.mxu0 0
  %5114 = vmatpush1.bf16.msra.mxu0 0
  %5115 = vmatprep.subr.bf16.mxu0 0
  %5116 = vmatpush1.bf16.msra.mxu0 0
  %5117 = vmatprep.subr.bf16.mxu0 0
  %5118 = vmatpush1.bf16.msra.mxu0 0
  %5119 = vmatprep.subr.bf16.mxu0 0
  %5120 = vmatpush1.bf16.msra.mxu0 0
  %5121 = vmatprep.subr.bf16.mxu0 0
  %5122 = vmatpush1.bf16.msra.mxu0 0
  %5123 = vmatprep.mubr.bf16.mxu0 0
  %5124 = vmatmul.mubr.bf16.gmra.mrb[0].mxu0 %v5027
  %v5125 = vpop.f32.mrb[0].mxu0
  %v5126 = vadd.f32 0.0, %v5125
  %v5127 = vpop.f32.mrb[0].mxu0
  %v5128 = vadd.f32 0.0, %v5127
  %v5129 = vpop.f32.mrb[0].mxu0
  %v5130 = vpop.f32.mrb[0].mxu0
  %5131 = vdwg.mxu0
  %5132 = vmatprep.subr.bf16.mxu0 %v5045
  %5133 = vmatpush1.bf16.msra.mxu0 %v5042
  %5134 = vmatprep.subr.bf16.mxu0 0
  %5135 = vmatpush1.bf16.msra.mxu0 0
  %5136 = vmatprep.subr.bf16.mxu0 0
  %5137 = vmatpush1.bf16.msra.mxu0 0
  %5138 = vmatprep.subr.bf16.mxu0 0
  %5139 = vmatpush1.bf16.msra.mxu0 0
  %5140 = vmatprep.subr.bf16.mxu0 0
  %5141 = vmatpush1.bf16.msra.mxu0 0
  %5142 = vmatprep.subr.bf16.mxu0 0
  %5143 = vmatpush1.bf16.msra.mxu0 0
  %5144 = vmatprep.subr.bf16.mxu0 0
  %5145 = vmatpush1.bf16.msra.mxu0 0
  %5146 = vmatprep.subr.bf16.mxu0 0
  %5147 = vmatpush1.bf16.msra.mxu0 0
  %5148 = vmatprep.subr.bf16.mxu0 0
  %5149 = vmatpush1.bf16.msra.mxu0 0
  %5150 = vmatprep.subr.bf16.mxu0 0
  %5151 = vmatpush1.bf16.msra.mxu0 0
  %5152 = vmatprep.subr.bf16.mxu0 0
  %5153 = vmatpush1.bf16.msra.mxu0 0
  %5154 = vmatprep.subr.bf16.mxu0 0
  %5155 = vmatpush1.bf16.msra.mxu0 0
  %5156 = vmatprep.subr.bf16.mxu0 0
  %5157 = vmatpush1.bf16.msra.mxu0 0
  %5158 = vmatprep.subr.bf16.mxu0 0
  %5159 = vmatpush1.bf16.msra.mxu0 0
  %5160 = vmatprep.subr.bf16.mxu0 0
  %5161 = vmatpush1.bf16.msra.mxu0 0
  %5162 = vmatprep.subr.bf16.mxu0 0
  %5163 = vmatpush1.bf16.msra.mxu0 0
  %5164 = vmatprep.mubr.bf16.mxu0 0
  %5165 = vmatmul.mubr.bf16.gmra.mrb[0].mxu0 %v5027
  %v5166 = vpop.f32.mrb[0].mxu0
  %v5167 = vadd.f32 0.0, %v5166
  %v5168 = vpop.f32.mrb[0].mxu0
  %v5169 = vadd.f32 0.0, %v5168
  %v5170 = vpop.f32.mrb[0].mxu0
  %v5171 = vpop.f32.mrb[0].mxu0
  %5172 = vdwg.mxu0
  %5173 = vmatprep.subr.bf16.mxu0 0
  %5174 = vmatpush1.bf16.msra.mxu0 %v5048
  %5175 = vmatprep.subr.bf16.mxu0 0
  %5176 = vmatpush1.bf16.msra.mxu0 0
  %5177 = vmatprep.subr.bf16.mxu0 0
  %5178 = vmatpush1.bf16.msra.mxu0 0
  %5179 = vmatprep.subr.bf16.mxu0 0
  %5180 = vmatpush1.bf16.msra.mxu0 0
  %5181 = vmatprep.subr.bf16.mxu0 0
  %5182 = vmatpush1.bf16.msra.mxu0 0
  %5183 = vmatprep.subr.bf16.mxu0 0
  %5184 = vmatpush1.bf16.msra.mxu0 0
  %5185 = vmatprep.subr.bf16.mxu0 0
  %5186 = vmatpush1.bf16.msra.mxu0 0
  %5187 = vmatprep.subr.bf16.mxu0 0
  %5188 = vmatpush1.bf16.msra.mxu0 0
  %5189 = vmatprep.subr.bf16.mxu0 0
  %5190 = vmatpush1.bf16.msra.mxu0 0
  %5191 = vmatprep.subr.bf16.mxu0 0
  %5192 = vmatpush1.bf16.msra.mxu0 0
  %5193 = vmatprep.subr.bf16.mxu0 0
  %5194 = vmatpush1.bf16.msra.mxu0 0
  %5195 = vmatprep.subr.bf16.mxu0 0
  %5196 = vmatpush1.bf16.msra.mxu0 0
  %5197 = vmatprep.subr.bf16.mxu0 0
  %5198 = vmatpush1.bf16.msra.mxu0 0
  %5199 = vmatprep.subr.bf16.mxu0 0
  %5200 = vmatpush1.bf16.msra.mxu0 0
  %5201 = vmatprep.subr.bf16.mxu0 0
  %5202 = vmatpush1.bf16.msra.mxu0 0
  %5203 = vmatprep.subr.bf16.mxu0 0
  %5204 = vmatpush1.bf16.msra.mxu0 0
  %5205 = vmatprep.mubr.bf16.mxu0 0
  %5206 = vmatmul.mubr.bf16.gmra.mrb[0].mxu0 %v5027
  %v5207 = vpop.f32.mrb[0].mxu0
  %v5208 = vadd.f32 0.0, %v5207
  %v5209 = vpop.f32.mrb[0].mxu0
  %v5210 = vpop.f32.mrb[0].mxu0
  %v5211 = vpop.f32.mrb[0].mxu0
  %5212 = vdwg.mxu0
  %v5213 = vadd.f32 %v4996, %v5085
  %v5214 = vadd.f32 %v4997, %v5087
  %v5215 = vadd.f32 %v4998, %v5126
  %v5216 = vadd.f32 %v4999, %v5128
  %v5217 = vadd.f32 %v5000, %v5167
  %v5218 = vadd.f32 %v5001, %v5169
  %v5219 = vadd.f32 %v5002, %v5208
  %s5220 = scalar_lea.vmem %s1, 96
  %v5221 = vld [vmem:[%s5220] sm:$0xf]
  %5222 = vrot.lane.b32.xlu0 %v42, 44
  %v5223 = vpop.permute.xlu0 %5222
  %5224 = vrot.lane.b32.xlu0 %v43, 44
  %v5225 = vpop.permute.xlu0 %5224
  %5226 = vrot.lane.b32.xlu0 %v44, 44
  %v5227 = vpop.permute.xlu0 %5226
  %5228 = vrot.lane.b32.xlu0 %v45, 44
  %v5229 = vpop.permute.xlu0 %5228
  %5230 = vrot.lane.b32.xlu0 %v46, 44
  %v5231 = vpop.permute.xlu0 %5230
  %5232 = vrot.lane.b32.xlu0 %v47, 44
  %v5233 = vpop.permute.xlu0 %5232
  %5234 = vrot.lane.b32.xlu0 %v48, 44
  %v5235 = vpop.permute.xlu0 %5234
  %vm5236 = vcmask 359424
  %v5237 = vsel %vm5236, %v5223, %v5225
  %v5238 = vsel %vm5236, %v5225, %v5227
  %v5239 = vsel %vm5236, %v5227, %v5229
  %v5240 = vsel %vm5236, %v5229, %v5231
  %v5241 = vsel %vm5236, %v5231, %v5233
  %v5242 = vsel %vm5236, %v5233, %v5235
  %v5244 = vsel %vm70, %v5221, 0
  %v5247 = vsel %vm74, %v5237, 0
  %v5250 = vsel %vm74, %v5238, 0
  %v5253 = vsel %vm74, %v5239, 0
  %v5256 = vsel %vm74, %v5240, 0
  %v5259 = vsel %vm74, %v5241, 0
  %v5262 = vsel %vm74, %v5242, 0
  %v5265 = vsel %vm74, %v5235, 0
  %5267 = vmatprep.subr.bf16.mxu0 %v5250
  %5268 = vmatpush1.bf16.msra.mxu0 %v5247
  %5269 = vmatprep.subr.bf16.mxu0 0
  %5270 = vmatpush1.bf16.msra.mxu0 0
  %5271 = vmatprep.subr.bf16.mxu0 0
  %5272 = vmatpush1.bf16.msra.mxu0 0
  %5273 = vmatprep.subr.bf16.mxu0 0
  %5274 = vmatpush1.bf16.msra.mxu0 0
  %5275 = vmatprep.subr.bf16.mxu0 0
  %5276 = vmatpush1.bf16.msra.mxu0 0
  %5277 = vmatprep.subr.bf16.mxu0 0
  %5278 = vmatpush1.bf16.msra.mxu0 0
  %5279 = vmatprep.subr.bf16.mxu0 0
  %5280 = vmatpush1.bf16.msra.mxu0 0
  %5281 = vmatprep.subr.bf16.mxu0 0
  %5282 = vmatpush1.bf16.msra.mxu0 0
  %5283 = vmatprep.subr.bf16.mxu0 0
  %5284 = vmatpush1.bf16.msra.mxu0 0
  %5285 = vmatprep.subr.bf16.mxu0 0
  %5286 = vmatpush1.bf16.msra.mxu0 0
  %5287 = vmatprep.subr.bf16.mxu0 0
  %5288 = vmatpush1.bf16.msra.mxu0 0
  %5289 = vmatprep.subr.bf16.mxu0 0
  %5290 = vmatpush1.bf16.msra.mxu0 0
  %5291 = vmatprep.subr.bf16.mxu0 0
  %5292 = vmatpush1.bf16.msra.mxu0 0
  %5293 = vmatprep.subr.bf16.mxu0 0
  %5294 = vmatpush1.bf16.msra.mxu0 0
  %5295 = vmatprep.subr.bf16.mxu0 0
  %5296 = vmatpush1.bf16.msra.mxu0 0
  %5297 = vmatprep.subr.bf16.mxu0 0
  %5298 = vmatpush1.bf16.msra.mxu0 0
  %5299 = vmatprep.mubr.bf16.mxu0 0
  %5300 = vmatmul.mubr.bf16.gmra.mrb[0].mxu0 %v5244
  %v5301 = vpop.f32.mrb[0].mxu0
  %v5302 = vadd.f32 0.0, %v5301
  %v5303 = vpop.f32.mrb[0].mxu0
  %v5304 = vadd.f32 0.0, %v5303
  %v5305 = vpop.f32.mrb[0].mxu0
  %v5306 = vpop.f32.mrb[0].mxu0
  %5307 = vdwg.mxu0
  %5308 = vmatprep.subr.bf16.mxu0 %v5256
  %5309 = vmatpush1.bf16.msra.mxu0 %v5253
  %5310 = vmatprep.subr.bf16.mxu0 0
  %5311 = vmatpush1.bf16.msra.mxu0 0
  %5312 = vmatprep.subr.bf16.mxu0 0
  %5313 = vmatpush1.bf16.msra.mxu0 0
  %5314 = vmatprep.subr.bf16.mxu0 0
  %5315 = vmatpush1.bf16.msra.mxu0 0
  %5316 = vmatprep.subr.bf16.mxu0 0
  %5317 = vmatpush1.bf16.msra.mxu0 0
  %5318 = vmatprep.subr.bf16.mxu0 0
  %5319 = vmatpush1.bf16.msra.mxu0 0
  %5320 = vmatprep.subr.bf16.mxu0 0
  %5321 = vmatpush1.bf16.msra.mxu0 0
  %5322 = vmatprep.subr.bf16.mxu0 0
  %5323 = vmatpush1.bf16.msra.mxu0 0
  %5324 = vmatprep.subr.bf16.mxu0 0
  %5325 = vmatpush1.bf16.msra.mxu0 0
  %5326 = vmatprep.subr.bf16.mxu0 0
  %5327 = vmatpush1.bf16.msra.mxu0 0
  %5328 = vmatprep.subr.bf16.mxu0 0
  %5329 = vmatpush1.bf16.msra.mxu0 0
  %5330 = vmatprep.subr.bf16.mxu0 0
  %5331 = vmatpush1.bf16.msra.mxu0 0
  %5332 = vmatprep.subr.bf16.mxu0 0
  %5333 = vmatpush1.bf16.msra.mxu0 0
  %5334 = vmatprep.subr.bf16.mxu0 0
  %5335 = vmatpush1.bf16.msra.mxu0 0
  %5336 = vmatprep.subr.bf16.mxu0 0
  %5337 = vmatpush1.bf16.msra.mxu0 0
  %5338 = vmatprep.subr.bf16.mxu0 0
  %5339 = vmatpush1.bf16.msra.mxu0 0
  %5340 = vmatprep.mubr.bf16.mxu0 0
  %5341 = vmatmul.mubr.bf16.gmra.mrb[0].mxu0 %v5244
  %v5342 = vpop.f32.mrb[0].mxu0
  %v5343 = vadd.f32 0.0, %v5342
  %v5344 = vpop.f32.mrb[0].mxu0
  %v5345 = vadd.f32 0.0, %v5344
  %v5346 = vpop.f32.mrb[0].mxu0
  %v5347 = vpop.f32.mrb[0].mxu0
  %5348 = vdwg.mxu0
  %5349 = vmatprep.subr.bf16.mxu0 %v5262
  %5350 = vmatpush1.bf16.msra.mxu0 %v5259
  %5351 = vmatprep.subr.bf16.mxu0 0
  %5352 = vmatpush1.bf16.msra.mxu0 0
  %5353 = vmatprep.subr.bf16.mxu0 0
  %5354 = vmatpush1.bf16.msra.mxu0 0
  %5355 = vmatprep.subr.bf16.mxu0 0
  %5356 = vmatpush1.bf16.msra.mxu0 0
  %5357 = vmatprep.subr.bf16.mxu0 0
  %5358 = vmatpush1.bf16.msra.mxu0 0
  %5359 = vmatprep.subr.bf16.mxu0 0
  %5360 = vmatpush1.bf16.msra.mxu0 0
  %5361 = vmatprep.subr.bf16.mxu0 0
  %5362 = vmatpush1.bf16.msra.mxu0 0
  %5363 = vmatprep.subr.bf16.mxu0 0
  %5364 = vmatpush1.bf16.msra.mxu0 0
  %5365 = vmatprep.subr.bf16.mxu0 0
  %5366 = vmatpush1.bf16.msra.mxu0 0
  %5367 = vmatprep.subr.bf16.mxu0 0
  %5368 = vmatpush1.bf16.msra.mxu0 0
  %5369 = vmatprep.subr.bf16.mxu0 0
  %5370 = vmatpush1.bf16.msra.mxu0 0
  %5371 = vmatprep.subr.bf16.mxu0 0
  %5372 = vmatpush1.bf16.msra.mxu0 0
  %5373 = vmatprep.subr.bf16.mxu0 0
  %5374 = vmatpush1.bf16.msra.mxu0 0
  %5375 = vmatprep.subr.bf16.mxu0 0
  %5376 = vmatpush1.bf16.msra.mxu0 0
  %5377 = vmatprep.subr.bf16.mxu0 0
  %5378 = vmatpush1.bf16.msra.mxu0 0
  %5379 = vmatprep.subr.bf16.mxu0 0
  %5380 = vmatpush1.bf16.msra.mxu0 0
  %5381 = vmatprep.mubr.bf16.mxu0 0
  %5382 = vmatmul.mubr.bf16.gmra.mrb[0].mxu0 %v5244
  %v5383 = vpop.f32.mrb[0].mxu0
  %v5384 = vadd.f32 0.0, %v5383
  %v5385 = vpop.f32.mrb[0].mxu0
  %v5386 = vadd.f32 0.0, %v5385
  %v5387 = vpop.f32.mrb[0].mxu0
  %v5388 = vpop.f32.mrb[0].mxu0
  %5389 = vdwg.mxu0
  %5390 = vmatprep.subr.bf16.mxu0 0
  %5391 = vmatpush1.bf16.msra.mxu0 %v5265
  %5392 = vmatprep.subr.bf16.mxu0 0
  %5393 = vmatpush1.bf16.msra.mxu0 0
  %5394 = vmatprep.subr.bf16.mxu0 0
  %5395 = vmatpush1.bf16.msra.mxu0 0
  %5396 = vmatprep.subr.bf16.mxu0 0
  %5397 = vmatpush1.bf16.msra.mxu0 0
  %5398 = vmatprep.subr.bf16.mxu0 0
  %5399 = vmatpush1.bf16.msra.mxu0 0
  %5400 = vmatprep.subr.bf16.mxu0 0
  %5401 = vmatpush1.bf16.msra.mxu0 0
  %5402 = vmatprep.subr.bf16.mxu0 0
  %5403 = vmatpush1.bf16.msra.mxu0 0
  %5404 = vmatprep.subr.bf16.mxu0 0
  %5405 = vmatpush1.bf16.msra.mxu0 0
  %5406 = vmatprep.subr.bf16.mxu0 0
  %5407 = vmatpush1.bf16.msra.mxu0 0
  %5408 = vmatprep.subr.bf16.mxu0 0
  %5409 = vmatpush1.bf16.msra.mxu0 0
  %5410 = vmatprep.subr.bf16.mxu0 0
  %5411 = vmatpush1.bf16.msra.mxu0 0
  %5412 = vmatprep.subr.bf16.mxu0 0
  %5413 = vmatpush1.bf16.msra.mxu0 0
  %5414 = vmatprep.subr.bf16.mxu0 0
  %5415 = vmatpush1.bf16.msra.mxu0 0
  %5416 = vmatprep.subr.bf16.mxu0 0
  %5417 = vmatpush1.bf16.msra.mxu0 0
  %5418 = vmatprep.subr.bf16.mxu0 0
  %5419 = vmatpush1.bf16.msra.mxu0 0
  %5420 = vmatprep.subr.bf16.mxu0 0
  %5421 = vmatpush1.bf16.msra.mxu0 0
  %5422 = vmatprep.mubr.bf16.mxu0 0
  %5423 = vmatmul.mubr.bf16.gmra.mrb[0].mxu0 %v5244
  %v5424 = vpop.f32.mrb[0].mxu0
  %v5425 = vadd.f32 0.0, %v5424
  %v5426 = vpop.f32.mrb[0].mxu0
  %v5427 = vpop.f32.mrb[0].mxu0
  %v5428 = vpop.f32.mrb[0].mxu0
  %5429 = vdwg.mxu0
  %v5430 = vadd.f32 %v5213, %v5302
  %v5431 = vadd.f32 %v5214, %v5304
  %v5432 = vadd.f32 %v5215, %v5343
  %v5433 = vadd.f32 %v5216, %v5345
  %v5434 = vadd.f32 %v5217, %v5384
  %v5435 = vadd.f32 %v5218, %v5386
  %v5436 = vadd.f32 %v5219, %v5425
  %vm5437 = vcmp.gt.f32.partialorder %v5430, 10.0
  %vm5438 = vcmp.gt.f32.partialorder %v5431, 10.0
  %vm5439 = vcmp.gt.f32.partialorder %v5432, 10.0
  %vm5440 = vcmp.gt.f32.partialorder %v5433, 10.0
  %vm5441 = vcmp.gt.f32.partialorder %v5434, 10.0
  %vm5442 = vcmp.gt.f32.partialorder %v5435, 10.0
  %vm5443 = vcmp.gt.f32.partialorder %v5436, 10.0
  %v5444 = vsel %vm5437, 1.0, 0.0
  %v5445 = vsel %vm5438, 1.0, 0.0
  %v5446 = vsel %vm5439, 1.0, 0.0
  %v5447 = vsel %vm5440, 1.0, 0.0
  %v5448 = vsel %vm5441, 1.0, 0.0
  %v5449 = vsel %vm5442, 1.0, 0.0
  %v5450 = vsel %vm5443, 1.0, 0.0
  %v5451 = vpack.c.bf16 %v5444, %v5444
  %v5452 = vpack.c.bf16 %v5445, %v5445
  %v5453 = vpack.c.bf16 %v5446, %v5446
  %v5454 = vpack.c.bf16 %v5447, %v5447
  %v5455 = vpack.c.bf16 %v5448, %v5448
  %v5456 = vpack.c.bf16 %v5449, %v5449
  %v5457 = vpack.c.bf16 %v5450, %v5450
  %v5458 = vld [vmem:[%s3] sm:$0xff]
  %v5459 = vld [vmem:[%s3 + $0x8] sm:$0xff]
  %v5460 = vld [vmem:[%s3 + $0x10] sm:$0xff]
  %v5461 = vld [vmem:[%s3 + $0x18] sm:$0xff]
  %v5462 = vld [vmem:[%s3 + $0x20] sm:$0xff]
  %v5463 = vld [vmem:[%s3 + $0x28] sm:$0xff]
  %v5464 = vld [vmem:[%s3 + $0x30] sm:$0xff]
  %v5465 = vld [vmem:[%s3 + $0x38] sm:$0xff]
  %v5466 = vld [vmem:[%s3 + $0x40] sm:$0xff]
  %v5467 = vld [vmem:[%s3 + $0x48] sm:$0xff]
  %v5468 = vld [vmem:[%s3 + $0x50] sm:$0xff]
  %v5469 = vld [vmem:[%s3 + $0x58] sm:$0xff]
  %v5470 = vld [vmem:[%s3 + $0x60] sm:$0xff]
  %v5471 = vld [vmem:[%s3 + $0x68] sm:$0xff]
  %v5472 = vld [vmem:[%s3 + $0x70] sm:$0xff]
  %v5473 = vld [vmem:[%s3 + $0x78] sm:$0xff]
  %v5474 = vld [vmem:[%s3 + $0x80] sm:$0xff]
  %v5475 = vld [vmem:[%s3 + $0x88] sm:$0xff]
  %v5476 = vld [vmem:[%s3 + $0x90] sm:$0xff]
  %v5477 = vld [vmem:[%s3 + $0x98] sm:$0xff]
  %v5478 = vld [vmem:[%s3 + $0xa0] sm:$0xff]
  %v5479 = vld [vmem:[%s3 + $0xa8] sm:$0xff]
  %v5480 = vld [vmem:[%s3 + $0xb0] sm:$0xff]
  %v5481 = vld [vmem:[%s3 + $0xb8] sm:$0xff]
  %v5482 = vld [vmem:[%s3 + $0xc0] sm:$0xff]
  %v5483 = vld [vmem:[%s3 + $0xc8] sm:$0xff]
  %v5484 = vld [vmem:[%s3 + $0xd0] sm:$0xff]
  %v5485 = vld [vmem:[%s3 + $0xd8] sm:$0xff]
  %v5486 = vld [vmem:[%s3 + $0xe0] sm:$0xff]
  %v5487 = vld [vmem:[%s3 + $0xe8] sm:$0xff]
  %v5488 = vld [vmem:[%s3 + $0xf0] sm:$0xff]
  %v5489 = vld [vmem:[%s3 + $0xf8] sm:$0xff]
  %v5490 = vld [vmem:[%s3 + $0x100] sm:$0xff]
  %v5491 = vld [vmem:[%s3 + $0x108] sm:$0xff]
  %v5492 = vld [vmem:[%s3 + $0x110] sm:$0xff]
  %v5493 = vld [vmem:[%s3 + $0x118] sm:$0xff]
  %v5494 = vld [vmem:[%s3 + $0x120] sm:$0xff]
  %v5495 = vld [vmem:[%s3 + $0x128] sm:$0xff]
  %v5496 = vld [vmem:[%s3 + $0x130] sm:$0xff]
  %v5497 = vld [vmem:[%s3 + $0x138] sm:$0xff]
  %v5498 = vld [vmem:[%s3 + $0x140] sm:$0xff]
  %v5499 = vld [vmem:[%s3 + $0x148] sm:$0xff]
  %v5500 = vld [vmem:[%s3 + $0x150] sm:$0xff]
  %v5501 = vld [vmem:[%s3 + $0x158] sm:$0xff]
  %v5502 = vld [vmem:[%s3 + $0x160] sm:$0xff]
  %v5503 = vld [vmem:[%s3 + $0x168] sm:$0xff]
  %v5504 = vld [vmem:[%s3 + $0x170] sm:$0xff]
  %v5505 = vld [vmem:[%s3 + $0x178] sm:$0xff]
  %v5506 = vld [vmem:[%s3 + $0x180] sm:$0xff]
  %v5507 = vld [vmem:[%s3 + $0x188] sm:$0xff]
  %v5508 = vld [vmem:[%s3 + $0x190] sm:$0xff]
  %v5509 = vld [vmem:[%s3 + $0x198] sm:$0xff]
  %v5510 = vld [vmem:[%s3 + $0x1a0] sm:$0xff]
  %v5511 = vld [vmem:[%s3 + $0x1a8] sm:$0xff]
  %v5512 = vld [vmem:[%s3 + $0x1b0] sm:$0xff]
  %v5513 = vld [vmem:[%s3 + $0x1b8] sm:$0xff]
  %v5514 = vld [vmem:[%s3 + $0x1c0] sm:$0xff]
  %v5515 = vld [vmem:[%s3 + $0x1c8] sm:$0xff]
  %v5516 = vld [vmem:[%s3 + $0x1d0] sm:$0xff]
  %v5517 = vld [vmem:[%s3 + $0x1d8] sm:$0xff]
  %v5518 = vld [vmem:[%s3 + $0x1e0] sm:$0xff]
  %v5519 = vld [vmem:[%s3 + $0x1e8] sm:$0xff]
  %v5520 = vld [vmem:[%s3 + $0x1f0] sm:$0xff]
  %v5521 = vld [vmem:[%s3 + $0x1f8] sm:$0xff]
  %v5522 = vld [vmem:[%s3 + $0x200] sm:$0xff]
  %v5523 = vld [vmem:[%s3 + $0x208] sm:$0xff]
  %v5524 = vld [vmem:[%s3 + $0x210] sm:$0xff]
  %v5525 = vld [vmem:[%s3 + $0x218] sm:$0xff]
  %v5526 = vld [vmem:[%s3 + $0x220] sm:$0xff]
  %v5527 = vld [vmem:[%s3 + $0x228] sm:$0xff]
  %v5528 = vld [vmem:[%s3 + $0x230] sm:$0xff]
  %v5529 = vld [vmem:[%s3 + $0x238] sm:$0xff]
  %v5530 = vld [vmem:[%s3 + $0x240] sm:$0xff]
  %v5531 = vld [vmem:[%s3 + $0x248] sm:$0xff]
  %v5532 = vld [vmem:[%s3 + $0x250] sm:$0xff]
  %v5533 = vld [vmem:[%s3 + $0x258] sm:$0xff]
  %v5534 = vld [vmem:[%s3 + $0x260] sm:$0xff]
  %v5535 = vld [vmem:[%s3 + $0x268] sm:$0xff]
  %v5536 = vld [vmem:[%s3 + $0x270] sm:$0xff]
  %v5537 = vld [vmem:[%s3 + $0x278] sm:$0xff]
  %v5538 = vld [vmem:[%s3 + $0x280] sm:$0xff]
  %v5539 = vld [vmem:[%s3 + $0x288] sm:$0xff]
  %v5540 = vld [vmem:[%s3 + $0x290] sm:$0xff]
  %v5541 = vld [vmem:[%s3 + $0x298] sm:$0xff]
  %v5542 = vld [vmem:[%s3 + $0x2a0] sm:$0xff]
  %v5543 = vld [vmem:[%s3 + $0x2a8] sm:$0xff]
  %v5544 = vld [vmem:[%s3 + $0x2b0] sm:$0xff]
  %v5545 = vld [vmem:[%s3 + $0x2b8] sm:$0xff]
  %v5546 = vld [vmem:[%s3 + $0x2c0] sm:$0xff]
  %v5547 = vld [vmem:[%s3 + $0x2c8] sm:$0xff]
  %v5548 = vld [vmem:[%s3 + $0x2d0] sm:$0xff]
  %v5549 = vld [vmem:[%s3 + $0x2d8] sm:$0xff]
  %v5550 = vld [vmem:[%s3 + $0x2e0] sm:$0xff]
  %v5551 = vld [vmem:[%s3 + $0x2e8] sm:$0xff]
  %v5552 = vld [vmem:[%s3 + $0x2f0] sm:$0xff]
  %v5553 = vld [vmem:[%s3 + $0x2f8] sm:$0xff]
  %v5554 = vld [vmem:[%s3 + $0x300] sm:$0xff]
  %v5555 = vld [vmem:[%s3 + $0x308] sm:$0xff]
  %v5556 = vld [vmem:[%s3 + $0x310] sm:$0xff]
  %v5557 = vld [vmem:[%s3 + $0x318] sm:$0xff]
  %v5658 = vunpack.c.l.b16 %v5458
  %v5659 = vunpack.c.h.b16 %v5458
  %v5660 = vunpack.c.l.b16 %v5459
  %v5661 = vunpack.c.h.b16 %v5459
  %v5662 = vunpack.c.l.b16 %v5460
  %v5663 = vunpack.c.h.b16 %v5460
  %v5664 = vunpack.c.l.b16 %v5461
  %v5665 = vunpack.c.h.b16 %v5461
  %v5666 = vunpack.c.l.b16 %v5462
  %v5667 = vunpack.c.h.b16 %v5462
  %v5668 = vunpack.c.l.b16 %v5463
  %v5669 = vunpack.c.h.b16 %v5463
  %v5670 = vunpack.c.l.b16 %v5464
  %v5671 = vunpack.c.h.b16 %v5464
  %v5672 = vunpack.c.l.b16 %v5465
  %v5673 = vunpack.c.h.b16 %v5465
  %v5674 = vunpack.c.l.b16 %v5466
  %v5675 = vunpack.c.h.b16 %v5466
  %v5676 = vunpack.c.l.b16 %v5467
  %v5677 = vunpack.c.h.b16 %v5467
  %v5678 = vunpack.c.l.b16 %v5468
  %v5679 = vunpack.c.h.b16 %v5468
  %v5680 = vunpack.c.l.b16 %v5469
  %v5681 = vunpack.c.h.b16 %v5469
  %v5682 = vunpack.c.l.b16 %v5470
  %v5683 = vunpack.c.h.b16 %v5470
  %v5684 = vunpack.c.l.b16 %v5471
  %v5685 = vunpack.c.h.b16 %v5471
  %v5686 = vunpack.c.l.b16 %v5472
  %v5687 = vunpack.c.h.b16 %v5472
  %v5688 = vunpack.c.l.b16 %v5473
  %v5689 = vunpack.c.h.b16 %v5473
  %v5690 = vunpack.c.l.b16 %v5474
  %v5691 = vunpack.c.h.b16 %v5474
  %v5692 = vunpack.c.l.b16 %v5475
  %v5693 = vunpack.c.h.b16 %v5475
  %v5694 = vunpack.c.l.b16 %v5476
  %v5695 = vunpack.c.h.b16 %v5476
  %v5696 = vunpack.c.l.b16 %v5477
  %v5697 = vunpack.c.h.b16 %v5477
  %v5698 = vunpack.c.l.b16 %v5478
  %v5699 = vunpack.c.h.b16 %v5478
  %v5700 = vunpack.c.l.b16 %v5479
  %v5701 = vunpack.c.h.b16 %v5479
  %v5702 = vunpack.c.l.b16 %v5480
  %v5703 = vunpack.c.h.b16 %v5480
  %v5704 = vunpack.c.l.b16 %v5481
  %v5705 = vunpack.c.h.b16 %v5481
  %v5706 = vunpack.c.l.b16 %v5482
  %v5707 = vunpack.c.h.b16 %v5482
  %v5708 = vunpack.c.l.b16 %v5483
  %v5709 = vunpack.c.h.b16 %v5483
  %v5710 = vunpack.c.l.b16 %v5484
  %v5711 = vunpack.c.h.b16 %v5484
  %v5712 = vunpack.c.l.b16 %v5485
  %v5713 = vunpack.c.h.b16 %v5485
  %v5714 = vunpack.c.l.b16 %v5486
  %v5715 = vunpack.c.h.b16 %v5486
  %v5716 = vunpack.c.l.b16 %v5487
  %v5717 = vunpack.c.h.b16 %v5487
  %v5718 = vunpack.c.l.b16 %v5488
  %v5719 = vunpack.c.h.b16 %v5488
  %v5720 = vunpack.c.l.b16 %v5489
  %v5721 = vunpack.c.h.b16 %v5489
  %v5722 = vunpack.c.l.b16 %v5490
  %v5723 = vunpack.c.h.b16 %v5490
  %v5724 = vunpack.c.l.b16 %v5491
  %v5725 = vunpack.c.h.b16 %v5491
  %v5726 = vunpack.c.l.b16 %v5492
  %v5727 = vunpack.c.h.b16 %v5492
  %v5728 = vunpack.c.l.b16 %v5493
  %v5729 = vunpack.c.h.b16 %v5493
  %v5730 = vunpack.c.l.b16 %v5494
  %v5731 = vunpack.c.h.b16 %v5494
  %v5732 = vunpack.c.l.b16 %v5495
  %v5733 = vunpack.c.h.b16 %v5495
  %v5734 = vunpack.c.l.b16 %v5496
  %v5735 = vunpack.c.h.b16 %v5496
  %v5736 = vunpack.c.l.b16 %v5497
  %v5737 = vunpack.c.h.b16 %v5497
  %v5738 = vunpack.c.l.b16 %v5498
  %v5739 = vunpack.c.h.b16 %v5498
  %v5740 = vunpack.c.l.b16 %v5499
  %v5741 = vunpack.c.h.b16 %v5499
  %v5742 = vunpack.c.l.b16 %v5500
  %v5743 = vunpack.c.h.b16 %v5500
  %v5744 = vunpack.c.l.b16 %v5501
  %v5745 = vunpack.c.h.b16 %v5501
  %v5746 = vunpack.c.l.b16 %v5502
  %v5747 = vunpack.c.h.b16 %v5502
  %v5748 = vunpack.c.l.b16 %v5503
  %v5749 = vunpack.c.h.b16 %v5503
  %v5750 = vunpack.c.l.b16 %v5504
  %v5751 = vunpack.c.h.b16 %v5504
  %v5752 = vunpack.c.l.b16 %v5505
  %v5753 = vunpack.c.h.b16 %v5505
  %v5754 = vunpack.c.l.b16 %v5506
  %v5755 = vunpack.c.h.b16 %v5506
  %v5756 = vunpack.c.l.b16 %v5507
  %v5757 = vunpack.c.h.b16 %v5507
  %v5758 = vunpack.c.l.b16 %v5508
  %v5759 = vunpack.c.h.b16 %v5508
  %v5760 = vunpack.c.l.b16 %v5509
  %v5761 = vunpack.c.h.b16 %v5509
  %v5762 = vunpack.c.l.b16 %v5510
  %v5763 = vunpack.c.h.b16 %v5510
  %v5764 = vunpack.c.l.b16 %v5511
  %v5765 = vunpack.c.h.b16 %v5511
  %v5766 = vunpack.c.l.b16 %v5512
  %v5767 = vunpack.c.h.b16 %v5512
  %v5768 = vunpack.c.l.b16 %v5513
  %v5769 = vunpack.c.h.b16 %v5513
  %v5770 = vunpack.c.l.b16 %v5514
  %v5771 = vunpack.c.h.b16 %v5514
  %v5772 = vunpack.c.l.b16 %v5515
  %v5773 = vunpack.c.h.b16 %v5515
  %v5774 = vunpack.c.l.b16 %v5516
  %v5775 = vunpack.c.h.b16 %v5516
  %v5776 = vunpack.c.l.b16 %v5517
  %v5777 = vunpack.c.h.b16 %v5517
  %v5778 = vunpack.c.l.b16 %v5518
  %v5779 = vunpack.c.h.b16 %v5518
  %v5780 = vunpack.c.l.b16 %v5519
  %v5781 = vunpack.c.h.b16 %v5519
  %v5782 = vunpack.c.l.b16 %v5520
  %v5783 = vunpack.c.h.b16 %v5520
  %v5784 = vunpack.c.l.b16 %v5521
  %v5785 = vunpack.c.h.b16 %v5521
  %v5786 = vunpack.c.l.b16 %v5522
  %v5787 = vunpack.c.h.b16 %v5522
  %v5788 = vunpack.c.l.b16 %v5523
  %v5789 = vunpack.c.h.b16 %v5523
  %v5790 = vunpack.c.l.b16 %v5524
  %v5791 = vunpack.c.h.b16 %v5524
  %v5792 = vunpack.c.l.b16 %v5525
  %v5793 = vunpack.c.h.b16 %v5525
  %v5794 = vunpack.c.l.b16 %v5526
  %v5795 = vunpack.c.h.b16 %v5526
  %v5796 = vunpack.c.l.b16 %v5527
  %v5797 = vunpack.c.h.b16 %v5527
  %v5798 = vunpack.c.l.b16 %v5528
  %v5799 = vunpack.c.h.b16 %v5528
  %v5800 = vunpack.c.l.b16 %v5529
  %v5801 = vunpack.c.h.b16 %v5529
  %v5802 = vunpack.c.l.b16 %v5530
  %v5803 = vunpack.c.h.b16 %v5530
  %v5804 = vunpack.c.l.b16 %v5531
  %v5805 = vunpack.c.h.b16 %v5531
  %v5806 = vunpack.c.l.b16 %v5532
  %v5807 = vunpack.c.h.b16 %v5532
  %v5808 = vunpack.c.l.b16 %v5533
  %v5809 = vunpack.c.h.b16 %v5533
  %v5810 = vunpack.c.l.b16 %v5534
  %v5811 = vunpack.c.h.b16 %v5534
  %v5812 = vunpack.c.l.b16 %v5535
  %v5813 = vunpack.c.h.b16 %v5535
  %v5814 = vunpack.c.l.b16 %v5536
  %v5815 = vunpack.c.h.b16 %v5536
  %v5816 = vunpack.c.l.b16 %v5537
  %v5817 = vunpack.c.h.b16 %v5537
  %v5818 = vunpack.c.l.b16 %v5538
  %v5819 = vunpack.c.h.b16 %v5538
  %v5820 = vunpack.c.l.b16 %v5539
  %v5821 = vunpack.c.h.b16 %v5539
  %v5822 = vunpack.c.l.b16 %v5540
  %v5823 = vunpack.c.h.b16 %v5540
  %v5824 = vunpack.c.l.b16 %v5541
  %v5825 = vunpack.c.h.b16 %v5541
  %v5826 = vunpack.c.l.b16 %v5542
  %v5827 = vunpack.c.h.b16 %v5542
  %v5828 = vunpack.c.l.b16 %v5543
  %v5829 = vunpack.c.h.b16 %v5543
  %v5830 = vunpack.c.l.b16 %v5544
  %v5831 = vunpack.c.h.b16 %v5544
  %v5832 = vunpack.c.l.b16 %v5545
  %v5833 = vunpack.c.h.b16 %v5545
  %v5834 = vunpack.c.l.b16 %v5546
  %v5835 = vunpack.c.h.b16 %v5546
  %v5836 = vunpack.c.l.b16 %v5547
  %v5837 = vunpack.c.h.b16 %v5547
  %v5838 = vunpack.c.l.b16 %v5548
  %v5839 = vunpack.c.h.b16 %v5548
  %v5840 = vunpack.c.l.b16 %v5549
  %v5841 = vunpack.c.h.b16 %v5549
  %v5842 = vunpack.c.l.b16 %v5550
  %v5843 = vunpack.c.h.b16 %v5550
  %v5844 = vunpack.c.l.b16 %v5551
  %v5845 = vunpack.c.h.b16 %v5551
  %v5846 = vunpack.c.l.b16 %v5552
  %v5847 = vunpack.c.h.b16 %v5552
  %v5848 = vunpack.c.l.b16 %v5553
  %v5849 = vunpack.c.h.b16 %v5553
  %v5850 = vunpack.c.l.b16 %v5554
  %v5851 = vunpack.c.h.b16 %v5554
  %v5852 = vunpack.c.l.b16 %v5555
  %v5853 = vunpack.c.h.b16 %v5555
  %v5854 = vunpack.c.l.b16 %v5556
  %v5855 = vunpack.c.h.b16 %v5556
  %v5856 = vunpack.c.l.b16 %v5557
  %v5857 = vunpack.c.h.b16 %v5557
  %v5858 = vpack.c.b16 %v5660, %v5658
  %v5859 = vpack.c.b16 %v5661, %v5659
  %v5860 = vpack.c.b16 %v5664, %v5662
  %v5861 = vpack.c.b16 %v5665, %v5663
  %v5862 = vpack.c.b16 %v5668, %v5666
  %v5863 = vpack.c.b16 %v5669, %v5667
  %v5864 = vpack.c.b16 %v5672, %v5670
  %v5865 = vpack.c.b16 %v5673, %v5671
  %v5866 = vpack.c.b16 %v5676, %v5674
  %v5867 = vpack.c.b16 %v5677, %v5675
  %v5868 = vpack.c.b16 %v5680, %v5678
  %v5869 = vpack.c.b16 %v5681, %v5679
  %v5870 = vpack.c.b16 %v5684, %v5682
  %v5871 = vpack.c.b16 %v5685, %v5683
  %v5872 = vpack.c.b16 %v5688, %v5686
  %v5873 = vpack.c.b16 %v5689, %v5687
  %v5874 = vpack.c.b16 %v5692, %v5690
  %v5875 = vpack.c.b16 %v5693, %v5691
  %v5876 = vpack.c.b16 %v5696, %v5694
  %v5877 = vpack.c.b16 %v5697, %v5695
  %v5878 = vpack.c.b16 %v5700, %v5698
  %v5879 = vpack.c.b16 %v5701, %v5699
  %v5880 = vpack.c.b16 %v5704, %v5702
  %v5881 = vpack.c.b16 %v5705, %v5703
  %v5882 = vpack.c.b16 %v5708, %v5706
  %v5883 = vpack.c.b16 %v5709, %v5707
  %v5884 = vpack.c.b16 %v5712, %v5710
  %v5885 = vpack.c.b16 %v5713, %v5711
  %v5886 = vpack.c.b16 %v5716, %v5714
  %v5887 = vpack.c.b16 %v5717, %v5715
  %v5888 = vpack.c.b16 %v5720, %v5718
  %v5889 = vpack.c.b16 %v5721, %v5719
  %v5890 = vpack.c.b16 %v5724, %v5722
  %v5891 = vpack.c.b16 %v5725, %v5723
  %v5892 = vpack.c.b16 %v5728, %v5726
  %v5893 = vpack.c.b16 %v5729, %v5727
  %v5894 = vpack.c.b16 %v5732, %v5730
  %v5895 = vpack.c.b16 %v5733, %v5731
  %v5896 = vpack.c.b16 %v5736, %v5734
  %v5897 = vpack.c.b16 %v5737, %v5735
  %v5898 = vpack.c.b16 %v5740, %v5738
  %v5899 = vpack.c.b16 %v5741, %v5739
  %v5900 = vpack.c.b16 %v5744, %v5742
  %v5901 = vpack.c.b16 %v5745, %v5743
  %v5902 = vpack.c.b16 %v5748, %v5746
  %v5903 = vpack.c.b16 %v5749, %v5747
  %v5904 = vpack.c.b16 %v5752, %v5750
  %v5905 = vpack.c.b16 %v5753, %v5751
  %v5906 = vpack.c.b16 %v5756, %v5754
  %v5907 = vpack.c.b16 %v5757, %v5755
  %v5908 = vpack.c.b16 %v5760, %v5758
  %v5909 = vpack.c.b16 %v5761, %v5759
  %v5910 = vpack.c.b16 %v5764, %v5762
  %v5911 = vpack.c.b16 %v5765, %v5763
  %v5912 = vpack.c.b16 %v5768, %v5766
  %v5913 = vpack.c.b16 %v5769, %v5767
  %v5914 = vpack.c.b16 %v5772, %v5770
  %v5915 = vpack.c.b16 %v5773, %v5771
  %v5916 = vpack.c.b16 %v5776, %v5774
  %v5917 = vpack.c.b16 %v5777, %v5775
  %v5918 = vpack.c.b16 %v5780, %v5778
  %v5919 = vpack.c.b16 %v5781, %v5779
  %v5920 = vpack.c.b16 %v5784, %v5782
  %v5921 = vpack.c.b16 %v5785, %v5783
  %v5922 = vpack.c.b16 %v5788, %v5786
  %v5923 = vpack.c.b16 %v5789, %v5787
  %v5924 = vpack.c.b16 %v5792, %v5790
  %v5925 = vpack.c.b16 %v5793, %v5791
  %v5926 = vpack.c.b16 %v5796, %v5794
  %v5927 = vpack.c.b16 %v5797, %v5795
  %v5928 = vpack.c.b16 %v5800, %v5798
  %v5929 = vpack.c.b16 %v5801, %v5799
  %v5930 = vpack.c.b16 %v5804, %v5802
  %v5931 = vpack.c.b16 %v5805, %v5803
  %v5932 = vpack.c.b16 %v5808, %v5806
  %v5933 = vpack.c.b16 %v5809, %v5807
  %v5934 = vpack.c.b16 %v5812, %v5810
  %v5935 = vpack.c.b16 %v5813, %v5811
  %v5936 = vpack.c.b16 %v5816, %v5814
  %v5937 = vpack.c.b16 %v5817, %v5815
  %v5938 = vpack.c.b16 %v5820, %v5818
  %v5939 = vpack.c.b16 %v5821, %v5819
  %v5940 = vpack.c.b16 %v5824, %v5822
  %v5941 = vpack.c.b16 %v5825, %v5823
  %v5942 = vpack.c.b16 %v5828, %v5826
  %v5943 = vpack.c.b16 %v5829, %v5827
  %v5944 = vpack.c.b16 %v5832, %v5830
  %v5945 = vpack.c.b16 %v5833, %v5831
  %v5946 = vpack.c.b16 %v5836, %v5834
  %v5947 = vpack.c.b16 %v5837, %v5835
  %v5948 = vpack.c.b16 %v5840, %v5838
  %v5949 = vpack.c.b16 %v5841, %v5839
  %v5950 = vpack.c.b16 %v5844, %v5842
  %v5951 = vpack.c.b16 %v5845, %v5843
  %v5952 = vpack.c.b16 %v5848, %v5846
  %v5953 = vpack.c.b16 %v5849, %v5847
  %v5954 = vpack.c.b16 %v5852, %v5850
  %v5955 = vpack.c.b16 %v5853, %v5851
  %v5956 = vpack.c.b16 %v5856, %v5854
  %v5957 = vpack.c.b16 %v5857, %v5855
  %vm6058 = vcmask 261120
  %v6060 = vsel %vm6058, %v5457, 0
  %6062 = vmatprep.subr.bf16.mxu0 %v5859
  %6063 = vmatpush1.bf16.msra.mxu0 %v5858
  %6064 = vmatprep.subr.bf16.mxu0 %v5861
  %6065 = vmatpush1.bf16.msra.mxu0 %v5860
  %6066 = vmatprep.subr.bf16.mxu0 %v5863
  %6067 = vmatpush1.bf16.msra.mxu0 %v5862
  %6068 = vmatprep.subr.bf16.mxu0 %v5865
  %6069 = vmatpush1.bf16.msra.mxu0 %v5864
  %6070 = vmatprep.subr.bf16.mxu0 %v5867
  %6071 = vmatpush1.bf16.msra.mxu0 %v5866
  %6072 = vmatprep.subr.bf16.mxu0 %v5869
  %6073 = vmatpush1.bf16.msra.mxu0 %v5868
  %6074 = vmatprep.subr.bf16.mxu0 %v5871
  %6075 = vmatpush1.bf16.msra.mxu0 %v5870
  %6076 = vmatprep.subr.bf16.mxu0 %v5873
  %6077 = vmatpush1.bf16.msra.mxu0 %v5872
  %6078 = vmatprep.subr.bf16.mxu0 %v5875
  %6079 = vmatpush1.bf16.msra.mxu0 %v5874
  %6080 = vmatprep.subr.bf16.mxu0 %v5877
  %6081 = vmatpush1.bf16.msra.mxu0 %v5876
  %6082 = vmatprep.subr.bf16.mxu0 %v5879
  %6083 = vmatpush1.bf16.msra.mxu0 %v5878
  %6084 = vmatprep.subr.bf16.mxu0 %v5881
  %6085 = vmatpush1.bf16.msra.mxu0 %v5880
  %6086 = vmatprep.subr.bf16.mxu0 %v5883
  %6087 = vmatpush1.bf16.msra.mxu0 %v5882
  %6088 = vmatprep.subr.bf16.mxu0 %v5885
  %6089 = vmatpush1.bf16.msra.mxu0 %v5884
  %6090 = vmatprep.subr.bf16.mxu0 %v5887
  %6091 = vmatpush1.bf16.msra.mxu0 %v5886
  %6092 = vmatprep.subr.bf16.mxu0 %v5889
  %6093 = vmatpush1.bf16.msra.mxu0 %v5888
  %6094 = vmatprep.mubr.bf16.mxu0 %v5452
  %6095 = vmatmul.mubr.bf16.gmra.mrb[0].mxu0 %v5451
  %v6096 = vpop.f32.mrb[0].mxu0
  %v6097 = vadd.f32 0.0, %v6096
  %v6098 = vpop.f32.mrb[0].mxu0
  %v6099 = vadd.f32 0.0, %v6098
  %v6100 = vpop.f32.mrb[0].mxu0
  %v6101 = vpop.f32.mrb[0].mxu0
  %6102 = vdwg.mxu0
  %6103 = vmatprep.subr.bf16.mxu0 %v5891
  %6104 = vmatpush1.bf16.msra.mxu0 %v5890
  %6105 = vmatprep.subr.bf16.mxu0 %v5893
  %6106 = vmatpush1.bf16.msra.mxu0 %v5892
  %6107 = vmatprep.subr.bf16.mxu0 %v5895
  %6108 = vmatpush1.bf16.msra.mxu0 %v5894
  %6109 = vmatprep.subr.bf16.mxu0 %v5897
  %6110 = vmatpush1.bf16.msra.mxu0 %v5896
  %6111 = vmatprep.subr.bf16.mxu0 %v5899
  %6112 = vmatpush1.bf16.msra.mxu0 %v5898
  %6113 = vmatprep.subr.bf16.mxu0 %v5901
  %6114 = vmatpush1.bf16.msra.mxu0 %v5900
  %6115 = vmatprep.subr.bf16.mxu0 %v5903
  %6116 = vmatpush1.bf16.msra.mxu0 %v5902
  %6117 = vmatprep.subr.bf16.mxu0 %v5905
  %6118 = vmatpush1.bf16.msra.mxu0 %v5904
  %6119 = vmatprep.subr.bf16.mxu0 %v5907
  %6120 = vmatpush1.bf16.msra.mxu0 %v5906
  %6121 = vmatprep.subr.bf16.mxu0 %v5909
  %6122 = vmatpush1.bf16.msra.mxu0 %v5908
  %6123 = vmatprep.subr.bf16.mxu0 %v5911
  %6124 = vmatpush1.bf16.msra.mxu0 %v5910
  %6125 = vmatprep.subr.bf16.mxu0 %v5913
  %6126 = vmatpush1.bf16.msra.mxu0 %v5912
  %6127 = vmatprep.subr.bf16.mxu0 %v5915
  %6128 = vmatpush1.bf16.msra.mxu0 %v5914
  %6129 = vmatprep.subr.bf16.mxu0 %v5917
  %6130 = vmatpush1.bf16.msra.mxu0 %v5916
  %6131 = vmatprep.subr.bf16.mxu0 %v5919
  %6132 = vmatpush1.bf16.msra.mxu0 %v5918
  %6133 = vmatprep.subr.bf16.mxu0 %v5921
  %6134 = vmatpush1.bf16.msra.mxu0 %v5920
  %6135 = vmatprep.mubr.bf16.mxu0 %v5454
  %6136 = vmatmul.mubr.bf16.gmra.mrb[0].mxu0 %v5453
  %v6137 = vpop.f32.mrb[0].mxu0
  %v6138 = vadd.f32 %v6097, %v6137
  %v6139 = vpop.f32.mrb[0].mxu0
  %v6140 = vadd.f32 %v6099, %v6139
  %v6141 = vpop.f32.mrb[0].mxu0
  %v6142 = vpop.f32.mrb[0].mxu0
  %6143 = vdwg.mxu0
  %6144 = vmatprep.subr.bf16.mxu0 %v5923
  %6145 = vmatpush1.bf16.msra.mxu0 %v5922
  %6146 = vmatprep.subr.bf16.mxu0 %v5925
  %6147 = vmatpush1.bf16.msra.mxu0 %v5924
  %6148 = vmatprep.subr.bf16.mxu0 %v5927
  %6149 = vmatpush1.bf16.msra.mxu0 %v5926
  %6150 = vmatprep.subr.bf16.mxu0 %v5929
  %6151 = vmatpush1.bf16.msra.mxu0 %v5928
  %6152 = vmatprep.subr.bf16.mxu0 %v5931
  %6153 = vmatpush1.bf16.msra.mxu0 %v5930
  %6154 = vmatprep.subr.bf16.mxu0 %v5933
  %6155 = vmatpush1.bf16.msra.mxu0 %v5932
  %6156 = vmatprep.subr.bf16.mxu0 %v5935
  %6157 = vmatpush1.bf16.msra.mxu0 %v5934
  %6158 = vmatprep.subr.bf16.mxu0 %v5937
  %6159 = vmatpush1.bf16.msra.mxu0 %v5936
  %6160 = vmatprep.subr.bf16.mxu0 %v5939
  %6161 = vmatpush1.bf16.msra.mxu0 %v5938
  %6162 = vmatprep.subr.bf16.mxu0 %v5941
  %6163 = vmatpush1.bf16.msra.mxu0 %v5940
  %6164 = vmatprep.subr.bf16.mxu0 %v5943
  %6165 = vmatpush1.bf16.msra.mxu0 %v5942
  %6166 = vmatprep.subr.bf16.mxu0 %v5945
  %6167 = vmatpush1.bf16.msra.mxu0 %v5944
  %6168 = vmatprep.subr.bf16.mxu0 %v5947
  %6169 = vmatpush1.bf16.msra.mxu0 %v5946
  %6170 = vmatprep.subr.bf16.mxu0 %v5949
  %6171 = vmatpush1.bf16.msra.mxu0 %v5948
  %6172 = vmatprep.subr.bf16.mxu0 %v5951
  %6173 = vmatpush1.bf16.msra.mxu0 %v5950
  %6174 = vmatprep.subr.bf16.mxu0 %v5953
  %6175 = vmatpush1.bf16.msra.mxu0 %v5952
  %6176 = vmatprep.mubr.bf16.mxu0 %v5456
  %6177 = vmatmul.mubr.bf16.gmra.mrb[0].mxu0 %v5455
  %v6178 = vpop.f32.mrb[0].mxu0
  %v6179 = vadd.f32 %v6138, %v6178
  %v6180 = vpop.f32.mrb[0].mxu0
  %v6181 = vadd.f32 %v6140, %v6180
  %v6182 = vpop.f32.mrb[0].mxu0
  %v6183 = vpop.f32.mrb[0].mxu0
  %6184 = vdwg.mxu0
  %6185 = vmatprep.subr.bf16.mxu0 %v5955
  %6186 = vmatpush1.bf16.msra.mxu0 %v5954
  %6187 = vmatprep.subr.bf16.mxu0 %v5957
  %6188 = vmatpush1.bf16.msra.mxu0 %v5956
  %6189 = vmatprep.subr.bf16.mxu0 0
  %6190 = vmatpush1.bf16.msra.mxu0 0
  %6191 = vmatprep.subr.bf16.mxu0 0
  %6192 = vmatpush1.bf16.msra.mxu0 0
  %6193 = vmatprep.subr.bf16.mxu0 0
  %6194 = vmatpush1.bf16.msra.mxu0 0
  %6195 = vmatprep.subr.bf16.mxu0 0
  %6196 = vmatpush1.bf16.msra.mxu0 0
  %6197 = vmatprep.subr.bf16.mxu0 0
  %6198 = vmatpush1.bf16.msra.mxu0 0
  %6199 = vmatprep.subr.bf16.mxu0 0
  %6200 = vmatpush1.bf16.msra.mxu0 0
  %6201 = vmatprep.subr.bf16.mxu0 0
  %6202 = vmatpush1.bf16.msra.mxu0 0
  %6203 = vmatprep.subr.bf16.mxu0 0
  %6204 = vmatpush1.bf16.msra.mxu0 0
  %6205 = vmatprep.subr.bf16.mxu0 0
  %6206 = vmatpush1.bf16.msra.mxu0 0
  %6207 = vmatprep.subr.bf16.mxu0 0
  %6208 = vmatpush1.bf16.msra.mxu0 0
  %6209 = vmatprep.subr.bf16.mxu0 0
  %6210 = vmatpush1.bf16.msra.mxu0 0
  %6211 = vmatprep.subr.bf16.mxu0 0
  %6212 = vmatpush1.bf16.msra.mxu0 0
  %6213 = vmatprep.subr.bf16.mxu0 0
  %6214 = vmatpush1.bf16.msra.mxu0 0
  %6215 = vmatprep.subr.bf16.mxu0 0
  %6216 = vmatpush1.bf16.msra.mxu0 0
  %6217 = vmatprep.mubr.bf16.mxu0 0
  %6218 = vmatmul.mubr.bf16.gmra.mrb[0].mxu0 %v6060
  %v6219 = vpop.f32.mrb[0].mxu0
  %v6220 = vadd.f32 %v6179, %v6219
  %v6221 = vpop.f32.mrb[0].mxu0
  %v6222 = vadd.f32 %v6181, %v6221
  %v6223 = vpop.f32.mrb[0].mxu0
  %v6224 = vpop.f32.mrb[0].mxu0
  %6225 = vdwg.mxu0
  %vm6226 = vcmp.gt.f32.partialorder %v6220, 0.5
  %vm6227 = vcmp.gt.f32.partialorder %v6222, 0.5
  %v6228 = vsel %vm6226, 1.0, 0.0
  %v6229 = vsel %vm6227, 1.0, 0.0
  %v6230 = vpack.c.bf16 %v6228, %v6228
  %v6231 = vpack.c.bf16 %v6229, %v6229
  %v6232 = vld [vmem:[%s4] sm:$0xff]
  %v6233 = vld [vmem:[%s4 + $0x8] sm:$0xff]
  %v6234 = vld [vmem:[%s4 + $0x10] sm:$0xff]
  %v6235 = vld [vmem:[%s4 + $0x18] sm:$0xff]
  %v6236 = vld [vmem:[%s4 + $0x20] sm:$0xff]
  %v6237 = vld [vmem:[%s4 + $0x28] sm:$0xff]
  %v6238 = vld [vmem:[%s4 + $0x30] sm:$0xff]
  %v6239 = vld [vmem:[%s4 + $0x38] sm:$0xff]
  %v6240 = vld [vmem:[%s4 + $0x40] sm:$0xff]
  %v6241 = vld [vmem:[%s4 + $0x48] sm:$0xff]
  %v6242 = vld [vmem:[%s4 + $0x50] sm:$0xff]
  %v6243 = vld [vmem:[%s4 + $0x58] sm:$0xff]
  %v6244 = vld [vmem:[%s4 + $0x60] sm:$0xff]
  %v6245 = vld [vmem:[%s4 + $0x68] sm:$0xff]
  %v6246 = vld [vmem:[%s4 + $0x70] sm:$0xff]
  %v6247 = vld [vmem:[%s4 + $0x78] sm:$0xff]
  %v6248 = vld [vmem:[%s4 + $0x80] sm:$0xff]
  %v6249 = vld [vmem:[%s4 + $0x88] sm:$0xff]
  %v6250 = vld [vmem:[%s4 + $0x90] sm:$0xff]
  %v6251 = vld [vmem:[%s4 + $0x98] sm:$0xff]
  %v6252 = vld [vmem:[%s4 + $0xa0] sm:$0x11]
  %v6274 = vunpack.c.l.b16 %v6232
  %v6275 = vunpack.c.h.b16 %v6232
  %v6276 = vunpack.c.l.b16 %v6233
  %v6277 = vunpack.c.h.b16 %v6233
  %v6278 = vunpack.c.l.b16 %v6234
  %v6279 = vunpack.c.h.b16 %v6234
  %v6280 = vunpack.c.l.b16 %v6235
  %v6281 = vunpack.c.h.b16 %v6235
  %v6282 = vunpack.c.l.b16 %v6236
  %v6283 = vunpack.c.h.b16 %v6236
  %v6284 = vunpack.c.l.b16 %v6237
  %v6285 = vunpack.c.h.b16 %v6237
  %v6286 = vunpack.c.l.b16 %v6238
  %v6287 = vunpack.c.h.b16 %v6238
  %v6288 = vunpack.c.l.b16 %v6239
  %v6289 = vunpack.c.h.b16 %v6239
  %v6290 = vunpack.c.l.b16 %v6240
  %v6291 = vunpack.c.h.b16 %v6240
  %v6292 = vunpack.c.l.b16 %v6241
  %v6293 = vunpack.c.h.b16 %v6241
  %v6294 = vunpack.c.l.b16 %v6242
  %v6295 = vunpack.c.h.b16 %v6242
  %v6296 = vunpack.c.l.b16 %v6243
  %v6297 = vunpack.c.h.b16 %v6243
  %v6298 = vunpack.c.l.b16 %v6244
  %v6299 = vunpack.c.h.b16 %v6244
  %v6300 = vunpack.c.l.b16 %v6245
  %v6301 = vunpack.c.h.b16 %v6245
  %v6302 = vunpack.c.l.b16 %v6246
  %v6303 = vunpack.c.h.b16 %v6246
  %v6304 = vunpack.c.l.b16 %v6247
  %v6305 = vunpack.c.h.b16 %v6247
  %v6306 = vunpack.c.l.b16 %v6248
  %v6307 = vunpack.c.h.b16 %v6248
  %v6308 = vunpack.c.l.b16 %v6249
  %v6309 = vunpack.c.h.b16 %v6249
  %v6310 = vunpack.c.l.b16 %v6250
  %v6311 = vunpack.c.h.b16 %v6250
  %v6312 = vunpack.c.l.b16 %v6251
  %v6313 = vunpack.c.h.b16 %v6251
  %v6314 = vunpack.c.l.b16 %v6252
  %v6315 = vunpack.c.h.b16 %v6252
  %v6316 = vpack.c.b16 %v6276, %v6274
  %v6317 = vpack.c.b16 %v6277, %v6275
  %v6318 = vpack.c.b16 %v6280, %v6278
  %v6319 = vpack.c.b16 %v6281, %v6279
  %v6320 = vpack.c.b16 %v6284, %v6282
  %v6321 = vpack.c.b16 %v6285, %v6283
  %v6322 = vpack.c.b16 %v6288, %v6286
  %v6323 = vpack.c.b16 %v6289, %v6287
  %v6324 = vpack.c.b16 %v6292, %v6290
  %v6325 = vpack.c.b16 %v6293, %v6291
  %v6326 = vpack.c.b16 %v6296, %v6294
  %v6327 = vpack.c.b16 %v6297, %v6295
  %v6328 = vpack.c.b16 %v6300, %v6298
  %v6329 = vpack.c.b16 %v6301, %v6299
  %v6330 = vpack.c.b16 %v6304, %v6302
  %v6331 = vpack.c.b16 %v6305, %v6303
  %v6332 = vpack.c.b16 %v6308, %v6306
  %v6333 = vpack.c.b16 %v6309, %v6307
  %v6334 = vpack.c.b16 %v6312, %v6310
  %v6335 = vpack.c.b16 %v6313, %v6311
  %v6336 = vpack.c.b16 %v6314, %v6314
  %v6337 = vpack.c.b16 %v6315, %v6315
  %vm6358 = vcmask 277504
  %v6360 = vsel %vm6358, %v6231, 0
  %vm6362 = vcmask 1040384
  %v6364 = vsel %vm6362, %v6336, 0
  %v6367 = vsel %vm6362, %v6337, 0
  %6369 = vmatprep.subr.bf16.mxu0 %v6317
  %6370 = vmatpush1.bf16.msra.mxu0 %v6316
  %6371 = vmatprep.subr.bf16.mxu0 %v6319
  %6372 = vmatpush1.bf16.msra.mxu0 %v6318
  %6373 = vmatprep.subr.bf16.mxu0 %v6321
  %6374 = vmatpush1.bf16.msra.mxu0 %v6320
  %6375 = vmatprep.subr.bf16.mxu0 %v6323
  %6376 = vmatpush1.bf16.msra.mxu0 %v6322
  %6377 = vmatprep.subr.bf16.mxu0 %v6325
  %6378 = vmatpush1.bf16.msra.mxu0 %v6324
  %6379 = vmatprep.subr.bf16.mxu0 %v6327
  %6380 = vmatpush1.bf16.msra.mxu0 %v6326
  %6381 = vmatprep.subr.bf16.mxu0 %v6329
  %6382 = vmatpush1.bf16.msra.mxu0 %v6328
  %6383 = vmatprep.subr.bf16.mxu0 %v6331
  %6384 = vmatpush1.bf16.msra.mxu0 %v6330
  %6385 = vmatprep.subr.bf16.mxu0 %v6333
  %6386 = vmatpush1.bf16.msra.mxu0 %v6332
  %6387 = vmatprep.subr.bf16.mxu0 %v6335
  %6388 = vmatpush1.bf16.msra.mxu0 %v6334
  %6389 = vmatprep.subr.bf16.mxu0 %v6367
  %6390 = vmatpush1.bf16.msra.mxu0 %v6364
  %6391 = vmatprep.subr.bf16.mxu0 0
  %6392 = vmatpush1.bf16.msra.mxu0 0
  %6393 = vmatprep.subr.bf16.mxu0 0
  %6394 = vmatpush1.bf16.msra.mxu0 0
  %6395 = vmatprep.subr.bf16.mxu0 0
  %6396 = vmatpush1.bf16.msra.mxu0 0
  %6397 = vmatprep.subr.bf16.mxu0 0
  %6398 = vmatpush1.bf16.msra.mxu0 0
  %6399 = vmatprep.subr.bf16.mxu0 0
  %6400 = vmatpush1.bf16.msra.mxu0 0
  %6401 = vmatprep.mubr.bf16.mxu0 %v6360
  %6402 = vmatmul.mubr.bf16.gmra.mrb[0].mxu0 %v6230
  %v6403 = vpop.f32.mrb[0].mxu0
  %v6404 = vadd.f32 0.0, %v6403
  %v6405 = vpop.f32.mrb[0].mxu0
  %v6406 = vadd.f32 0.0, %v6405
  %v6407 = vpop.f32.mrb[0].mxu0
  %v6408 = vpop.f32.mrb[0].mxu0
  %6409 = vdwg.mxu0
  %v6410 = vpack.c.bf16 %v6404, %v6404
  %v6411 = vpack.c.bf16 %v6406, %v6406
  %v6412 = vld [vmem:[%s2] sm:$0xf]
  %v6413 = vld [vmem:[%s2 + $0x4] sm:$0xf]
  %s6414 = scalar_lea.vmem %s4, 168
  %v6415 = vld [vmem:[%s6414] sm:$0xff]
  %v6416 = vld [vmem:[%s6414 + $0x8] sm:$0xff]
  %v6417 = vld [vmem:[%s6414 + $0x10] sm:$0xff]
  %v6418 = vld [vmem:[%s6414 + $0x18] sm:$0xff]
  %v6419 = vld [vmem:[%s6414 + $0x20] sm:$0xff]
  %v6420 = vld [vmem:[%s6414 + $0x28] sm:$0xff]
  %v6421 = vld [vmem:[%s6414 + $0x30] sm:$0xff]
  %v6422 = vld [vmem:[%s6414 + $0x38] sm:$0xff]
  %v6423 = vld [vmem:[%s6414 + $0x40] sm:$0xff]
  %v6424 = vld [vmem:[%s6414 + $0x48] sm:$0xff]
  %v6425 = vld [vmem:[%s6414 + $0x50] sm:$0xff]
  %v6426 = vld [vmem:[%s6414 + $0x58] sm:$0xff]
  %v6427 = vld [vmem:[%s6414 + $0x60] sm:$0xff]
  %v6428 = vld [vmem:[%s6414 + $0x68] sm:$0xff]
  %v6429 = vld [vmem:[%s6414 + $0x70] sm:$0xff]
  %v6430 = vld [vmem:[%s6414 + $0x78] sm:$0xff]
  %v6431 = vld [vmem:[%s6414 + $0x80] sm:$0xff]
  %v6432 = vld [vmem:[%s6414 + $0x88] sm:$0xff]
  %v6433 = vld [vmem:[%s6414 + $0x90] sm:$0xff]
  %v6434 = vld [vmem:[%s6414 + $0x98] sm:$0xff]
  %v6435 = vld [vmem:[%s6414 + $0xa0] sm:$0x11]
  %v6457 = vunpack.c.l.b16 %v6415
  %v6458 = vunpack.c.h.b16 %v6415
  %v6459 = vunpack.c.l.b16 %v6416
  %v6460 = vunpack.c.h.b16 %v6416
  %v6461 = vunpack.c.l.b16 %v6417
  %v6462 = vunpack.c.h.b16 %v6417
  %v6463 = vunpack.c.l.b16 %v6418
  %v6464 = vunpack.c.h.b16 %v6418
  %v6465 = vunpack.c.l.b16 %v6419
  %v6466 = vunpack.c.h.b16 %v6419
  %v6467 = vunpack.c.l.b16 %v6420
  %v6468 = vunpack.c.h.b16 %v6420
  %v6469 = vunpack.c.l.b16 %v6421
  %v6470 = vunpack.c.h.b16 %v6421
  %v6471 = vunpack.c.l.b16 %v6422
  %v6472 = vunpack.c.h.b16 %v6422
  %v6473 = vunpack.c.l.b16 %v6423
  %v6474 = vunpack.c.h.b16 %v6423
  %v6475 = vunpack.c.l.b16 %v6424
  %v6476 = vunpack.c.h.b16 %v6424
  %v6477 = vunpack.c.l.b16 %v6425
  %v6478 = vunpack.c.h.b16 %v6425
  %v6479 = vunpack.c.l.b16 %v6426
  %v6480 = vunpack.c.h.b16 %v6426
  %v6481 = vunpack.c.l.b16 %v6427
  %v6482 = vunpack.c.h.b16 %v6427
  %v6483 = vunpack.c.l.b16 %v6428
  %v6484 = vunpack.c.h.b16 %v6428
  %v6485 = vunpack.c.l.b16 %v6429
  %v6486 = vunpack.c.h.b16 %v6429
  %v6487 = vunpack.c.l.b16 %v6430
  %v6488 = vunpack.c.h.b16 %v6430
  %v6489 = vunpack.c.l.b16 %v6431
  %v6490 = vunpack.c.h.b16 %v6431
  %v6491 = vunpack.c.l.b16 %v6432
  %v6492 = vunpack.c.h.b16 %v6432
  %v6493 = vunpack.c.l.b16 %v6433
  %v6494 = vunpack.c.h.b16 %v6433
  %v6495 = vunpack.c.l.b16 %v6434
  %v6496 = vunpack.c.h.b16 %v6434
  %v6497 = vunpack.c.l.b16 %v6435
  %v6498 = vunpack.c.h.b16 %v6435
  %v6499 = vpack.c.b16 %v6459, %v6457
  %v6500 = vpack.c.b16 %v6460, %v6458
  %v6501 = vpack.c.b16 %v6463, %v6461
  %v6502 = vpack.c.b16 %v6464, %v6462
  %v6503 = vpack.c.b16 %v6467, %v6465
  %v6504 = vpack.c.b16 %v6468, %v6466
  %v6505 = vpack.c.b16 %v6471, %v6469
  %v6506 = vpack.c.b16 %v6472, %v6470
  %v6507 = vpack.c.b16 %v6475, %v6473
  %v6508 = vpack.c.b16 %v6476, %v6474
  %v6509 = vpack.c.b16 %v6479, %v6477
  %v6510 = vpack.c.b16 %v6480, %v6478
  %v6511 = vpack.c.b16 %v6483, %v6481
  %v6512 = vpack.c.b16 %v6484, %v6482
  %v6513 = vpack.c.b16 %v6487, %v6485
  %v6514 = vpack.c.b16 %v6488, %v6486
  %v6515 = vpack.c.b16 %v6491, %v6489
  %v6516 = vpack.c.b16 %v6492, %v6490
  %v6517 = vpack.c.b16 %v6495, %v6493
  %v6518 = vpack.c.b16 %v6496, %v6494
  %v6519 = vpack.c.b16 %v6497, %v6497
  %v6520 = vpack.c.b16 %v6498, %v6498
  %v6542 = vsel %vm6362, %v6519, 0
  %v6545 = vsel %vm6362, %v6520, 0
  %6547 = vmatprep.subr.bf16.mxu0 %v6500
  %6548 = vmatpush1.bf16.msra.mxu0 %v6499
  %6549 = vmatprep.subr.bf16.mxu0 %v6502
  %6550 = vmatpush1.bf16.msra.mxu0 %v6501
  %6551 = vmatprep.subr.bf16.mxu0 %v6504
  %6552 = vmatpush1.bf16.msra.mxu0 %v6503
  %6553 = vmatprep.subr.bf16.mxu0 %v6506
  %6554 = vmatpush1.bf16.msra.mxu0 %v6505
  %6555 = vmatprep.subr.bf16.mxu0 %v6508
  %6556 = vmatpush1.bf16.msra.mxu0 %v6507
  %6557 = vmatprep.subr.bf16.mxu0 %v6510
  %6558 = vmatpush1.bf16.msra.mxu0 %v6509
  %6559 = vmatprep.subr.bf16.mxu0 %v6512
  %6560 = vmatpush1.bf16.msra.mxu0 %v6511
  %6561 = vmatprep.subr.bf16.mxu0 %v6514
  %6562 = vmatpush1.bf16.msra.mxu0 %v6513
  %6563 = vmatprep.subr.bf16.mxu0 %v6516
  %6564 = vmatpush1.bf16.msra.mxu0 %v6515
  %6565 = vmatprep.subr.bf16.mxu0 %v6518
  %6566 = vmatpush1.bf16.msra.mxu0 %v6517
  %6567 = vmatprep.subr.bf16.mxu0 %v6545
  %6568 = vmatpush1.bf16.msra.mxu0 %v6542
  %6569 = vmatprep.subr.bf16.mxu0 0
  %6570 = vmatpush1.bf16.msra.mxu0 0
  %6571 = vmatprep.subr.bf16.mxu0 0
  %6572 = vmatpush1.bf16.msra.mxu0 0
  %6573 = vmatprep.subr.bf16.mxu0 0
  %6574 = vmatpush1.bf16.msra.mxu0 0
  %6575 = vmatprep.subr.bf16.mxu0 0
  %6576 = vmatpush1.bf16.msra.mxu0 0
  %6577 = vmatprep.subr.bf16.mxu0 0
  %6578 = vmatpush1.bf16.msra.mxu0 0
  %6579 = vmatprep.mubr.bf16.mxu0 %v6360
  %6580 = vmatmul.mubr.bf16.gmra.mrb[0].mxu0 %v6230
  %v6581 = vpop.f32.mrb[0].mxu0
  %v6582 = vadd.f32 0.0, %v6581
  %v6583 = vpop.f32.mrb[0].mxu0
  %v6584 = vadd.f32 0.0, %v6583
  %v6585 = vpop.f32.mrb[0].mxu0
  %v6586 = vpop.f32.mrb[0].mxu0
  %6587 = vdwg.mxu0
  %v6588 = vpack.c.bf16 %v6582, %v6582
  %v6589 = vpack.c.bf16 %v6584, %v6584
  %s6590 = scalar_lea.vmem %s2, 8
  %v6591 = vld [vmem:[%s6590] sm:$0xf]
  %v6592 = vld [vmem:[%s6590 + $0x4] sm:$0xf]
  %v6595 = vunpack.c.l.b16 %v6591
  %v6596 = vunpack.c.l.b16 %v6592
  %v6597 = vpack.c.b16 %v6596, %v6595
  %v6599 = vsel %vm70, %v6597, 0
  %v6602 = vsel %vm74, %v6588, 0
  %v6605 = vsel %vm74, %v6589, 0
  %6607 = vmatprep.subr.bf16.mxu0 %v6605
  %6608 = vmatpush1.bf16.msra.mxu0 %v6602
  %6609 = vmatprep.subr.bf16.mxu0 0
  %6610 = vmatpush1.bf16.msra.mxu0 0
  %6611 = vmatprep.subr.bf16.mxu0 0
  %6612 = vmatpush1.bf16.msra.mxu0 0
  %6613 = vmatprep.subr.bf16.mxu0 0
  %6614 = vmatpush1.bf16.msra.mxu0 0
  %6615 = vmatprep.subr.bf16.mxu0 0
  %6616 = vmatpush1.bf16.msra.mxu0 0
  %6617 = vmatprep.subr.bf16.mxu0 0
  %6618 = vmatpush1.bf16.msra.mxu0 0
  %6619 = vmatprep.subr.bf16.mxu0 0
  %6620 = vmatpush1.bf16.msra.mxu0 0
  %6621 = vmatprep.subr.bf16.mxu0 0
  %6622 = vmatpush1.bf16.msra.mxu0 0
  %6623 = vmatprep.subr.bf16.mxu0 0
  %6624 = vmatpush1.bf16.msra.mxu0 0
  %6625 = vmatprep.subr.bf16.mxu0 0
  %6626 = vmatpush1.bf16.msra.mxu0 0
  %6627 = vmatprep.subr.bf16.mxu0 0
  %6628 = vmatpush1.bf16.msra.mxu0 0
  %6629 = vmatprep.subr.bf16.mxu0 0
  %6630 = vmatpush1.bf16.msra.mxu0 0
  %6631 = vmatprep.subr.bf16.mxu0 0
  %6632 = vmatpush1.bf16.msra.mxu0 0
  %6633 = vmatprep.subr.bf16.mxu0 0
  %6634 = vmatpush1.bf16.msra.mxu0 0
  %6635 = vmatprep.subr.bf16.mxu0 0
  %6636 = vmatpush1.bf16.msra.mxu0 0
  %6637 = vmatprep.subr.bf16.mxu0 0
  %6638 = vmatpush1.bf16.msra.mxu0 0
  %6639 = vmatprep.mubr.bf16.mxu0 0
  %6640 = vmatmul.mubr.bf16.gmra.mrb[0].mxu0 %v6599
  %v6641 = vpop.f32.mrb[0].mxu0
  %v6642 = vadd.f32 0.0, %v6641
  %v6643 = vpop.f32.mrb[0].mxu0
  %v6644 = vadd.f32 0.0, %v6643
  %v6645 = vpop.f32.mrb[0].mxu0
  %v6646 = vadd.f32 0.0, %v6645
  %v6647 = vpop.f32.mrb[0].mxu0
  %v6648 = vadd.f32 0.0, %v6647
  %6649 = vdwg.mxu0
  %v6652 = vunpack.c.l.b16 %v6412
  %v6653 = vunpack.c.l.b16 %v6413
  %v6654 = vpack.c.b16 %v6653, %v6652
  %v6656 = vsel %vm70, %v6654, 0
  %v6659 = vsel %vm74, %v6410, 0
  %v6662 = vsel %vm74, %v6411, 0
  %6664 = vmatprep.subr.bf16.mxu0 %v6662
  %6665 = vmatpush1.bf16.msra.mxu0 %v6659
  %6666 = vmatprep.subr.bf16.mxu0 0
  %6667 = vmatpush1.bf16.msra.mxu0 0
  %6668 = vmatprep.subr.bf16.mxu0 0
  %6669 = vmatpush1.bf16.msra.mxu0 0
  %6670 = vmatprep.subr.bf16.mxu0 0
  %6671 = vmatpush1.bf16.msra.mxu0 0
  %6672 = vmatprep.subr.bf16.mxu0 0
  %6673 = vmatpush1.bf16.msra.mxu0 0
  %6674 = vmatprep.subr.bf16.mxu0 0
  %6675 = vmatpush1.bf16.msra.mxu0 0
  %6676 = vmatprep.subr.bf16.mxu0 0
  %6677 = vmatpush1.bf16.msra.mxu0 0
  %6678 = vmatprep.subr.bf16.mxu0 0
  %6679 = vmatpush1.bf16.msra.mxu0 0
  %6680 = vmatprep.subr.bf16.mxu0 0
  %6681 = vmatpush1.bf16.msra.mxu0 0
  %6682 = vmatprep.subr.bf16.mxu0 0
  %6683 = vmatpush1.bf16.msra.mxu0 0
  %6684 = vmatprep.subr.bf16.mxu0 0
  %6685 = vmatpush1.bf16.msra.mxu0 0
  %6686 = vmatprep.subr.bf16.mxu0 0
  %6687 = vmatpush1.bf16.msra.mxu0 0
  %6688 = vmatprep.subr.bf16.mxu0 0
  %6689 = vmatpush1.bf16.msra.mxu0 0
  %6690 = vmatprep.subr.bf16.mxu0 0
  %6691 = vmatpush1.bf16.msra.mxu0 0
  %6692 = vmatprep.subr.bf16.mxu0 0
  %6693 = vmatpush1.bf16.msra.mxu0 0
  %6694 = vmatprep.subr.bf16.mxu0 0
  %6695 = vmatpush1.bf16.msra.mxu0 0
  %6696 = vmatprep.mubr.bf16.mxu0 0
  %6697 = vmatmul.mubr.bf16.gmra.mrb[0].mxu0 %v6656
  %v6698 = vpop.f32.mrb[0].mxu0
  %v6699 = vadd.f32 %v6642, %v6698
  %v6700 = vpop.f32.mrb[0].mxu0
  %v6701 = vadd.f32 %v6644, %v6700
  %v6702 = vpop.f32.mrb[0].mxu0
  %v6703 = vadd.f32 %v6646, %v6702
  %v6704 = vpop.f32.mrb[0].mxu0
  %v6705 = vadd.f32 %v6648, %v6704
  %6706 = vdwg.mxu0
  %s6707 = scalar_lea.vmem %s4, 336
  %v6708 = vld [vmem:[%s6707] sm:$0xff]
  %v6709 = vld [vmem:[%s6707 + $0x8] sm:$0xff]
  %v6710 = vld [vmem:[%s6707 + $0x10] sm:$0xff]
  %v6711 = vld [vmem:[%s6707 + $0x18] sm:$0xff]
  %v6712 = vld [vmem:[%s6707 + $0x20] sm:$0xff]
  %v6713 = vld [vmem:[%s6707 + $0x28] sm:$0xff]
  %v6714 = vld [vmem:[%s6707 + $0x30] sm:$0xff]
  %v6715 = vld [vmem:[%s6707 + $0x38] sm:$0xff]
  %v6716 = vld [vmem:[%s6707 + $0x40] sm:$0xff]
  %v6717 = vld [vmem:[%s6707 + $0x48] sm:$0xff]
  %v6718 = vld [vmem:[%s6707 + $0x50] sm:$0xff]
  %v6719 = vld [vmem:[%s6707 + $0x58] sm:$0xff]
  %v6720 = vld [vmem:[%s6707 + $0x60] sm:$0xff]
  %v6721 = vld [vmem:[%s6707 + $0x68] sm:$0xff]
  %v6722 = vld [vmem:[%s6707 + $0x70] sm:$0xff]
  %v6723 = vld [vmem:[%s6707 + $0x78] sm:$0xff]
  %v6724 = vld [vmem:[%s6707 + $0x80] sm:$0xff]
  %v6725 = vld [vmem:[%s6707 + $0x88] sm:$0xff]
  %v6726 = vld [vmem:[%s6707 + $0x90] sm:$0xff]
  %v6727 = vld [vmem:[%s6707 + $0x98] sm:$0xff]
  %v6728 = vld [vmem:[%s6707 + $0xa0] sm:$0x11]
  %v6750 = vunpack.c.l.b16 %v6708
  %v6751 = vunpack.c.h.b16 %v6708
  %v6752 = vunpack.c.l.b16 %v6709
  %v6753 = vunpack.c.h.b16 %v6709
  %v6754 = vunpack.c.l.b16 %v6710
  %v6755 = vunpack.c.h.b16 %v6710
  %v6756 = vunpack.c.l.b16 %v6711
  %v6757 = vunpack.c.h.b16 %v6711
  %v6758 = vunpack.c.l.b16 %v6712
  %v6759 = vunpack.c.h.b16 %v6712
  %v6760 = vunpack.c.l.b16 %v6713
  %v6761 = vunpack.c.h.b16 %v6713
  %v6762 = vunpack.c.l.b16 %v6714
  %v6763 = vunpack.c.h.b16 %v6714
  %v6764 = vunpack.c.l.b16 %v6715
  %v6765 = vunpack.c.h.b16 %v6715
  %v6766 = vunpack.c.l.b16 %v6716
  %v6767 = vunpack.c.h.b16 %v6716
  %v6768 = vunpack.c.l.b16 %v6717
  %v6769 = vunpack.c.h.b16 %v6717
  %v6770 = vunpack.c.l.b16 %v6718
  %v6771 = vunpack.c.h.b16 %v6718
  %v6772 = vunpack.c.l.b16 %v6719
  %v6773 = vunpack.c.h.b16 %v6719
  %v6774 = vunpack.c.l.b16 %v6720
  %v6775 = vunpack.c.h.b16 %v6720
  %v6776 = vunpack.c.l.b16 %v6721
  %v6777 = vunpack.c.h.b16 %v6721
  %v6778 = vunpack.c.l.b16 %v6722
  %v6779 = vunpack.c.h.b16 %v6722
  %v6780 = vunpack.c.l.b16 %v6723
  %v6781 = vunpack.c.h.b16 %v6723
  %v6782 = vunpack.c.l.b16 %v6724
  %v6783 = vunpack.c.h.b16 %v6724
  %v6784 = vunpack.c.l.b16 %v6725
  %v6785 = vunpack.c.h.b16 %v6725
  %v6786 = vunpack.c.l.b16 %v6726
  %v6787 = vunpack.c.h.b16 %v6726
  %v6788 = vunpack.c.l.b16 %v6727
  %v6789 = vunpack.c.h.b16 %v6727
  %v6790 = vunpack.c.l.b16 %v6728
  %v6791 = vunpack.c.h.b16 %v6728
  %v6792 = vpack.c.b16 %v6752, %v6750
  %v6793 = vpack.c.b16 %v6753, %v6751
  %v6794 = vpack.c.b16 %v6756, %v6754
  %v6795 = vpack.c.b16 %v6757, %v6755
  %v6796 = vpack.c.b16 %v6760, %v6758
  %v6797 = vpack.c.b16 %v6761, %v6759
  %v6798 = vpack.c.b16 %v6764, %v6762
  %v6799 = vpack.c.b16 %v6765, %v6763
  %v6800 = vpack.c.b16 %v6768, %v6766
  %v6801 = vpack.c.b16 %v6769, %v6767
  %v6802 = vpack.c.b16 %v6772, %v6770
  %v6803 = vpack.c.b16 %v6773, %v6771
  %v6804 = vpack.c.b16 %v6776, %v6774
  %v6805 = vpack.c.b16 %v6777, %v6775
  %v6806 = vpack.c.b16 %v6780, %v6778
  %v6807 = vpack.c.b16 %v6781, %v6779
  %v6808 = vpack.c.b16 %v6784, %v6782
  %v6809 = vpack.c.b16 %v6785, %v6783
  %v6810 = vpack.c.b16 %v6788, %v6786
  %v6811 = vpack.c.b16 %v6789, %v6787
  %v6812 = vpack.c.b16 %v6790, %v6790
  %v6813 = vpack.c.b16 %v6791, %v6791
  %v6835 = vsel %vm6362, %v6812, 0
  %v6838 = vsel %vm6362, %v6813, 0
  %6840 = vmatprep.subr.bf16.mxu0 %v6793
  %6841 = vmatpush1.bf16.msra.mxu0 %v6792
  %6842 = vmatprep.subr.bf16.mxu0 %v6795
  %6843 = vmatpush1.bf16.msra.mxu0 %v6794
  %6844 = vmatprep.subr.bf16.mxu0 %v6797
  %6845 = vmatpush1.bf16.msra.mxu0 %v6796
  %6846 = vmatprep.subr.bf16.mxu0 %v6799
  %6847 = vmatpush1.bf16.msra.mxu0 %v6798
  %6848 = vmatprep.subr.bf16.mxu0 %v6801
  %6849 = vmatpush1.bf16.msra.mxu0 %v6800
  %6850 = vmatprep.subr.bf16.mxu0 %v6803
  %6851 = vmatpush1.bf16.msra.mxu0 %v6802
  %6852 = vmatprep.subr.bf16.mxu0 %v6805
  %6853 = vmatpush1.bf16.msra.mxu0 %v6804
  %6854 = vmatprep.subr.bf16.mxu0 %v6807
  %6855 = vmatpush1.bf16.msra.mxu0 %v6806
  %6856 = vmatprep.subr.bf16.mxu0 %v6809
  %6857 = vmatpush1.bf16.msra.mxu0 %v6808
  %6858 = vmatprep.subr.bf16.mxu0 %v6811
  %6859 = vmatpush1.bf16.msra.mxu0 %v6810
  %6860 = vmatprep.subr.bf16.mxu0 %v6838
  %6861 = vmatpush1.bf16.msra.mxu0 %v6835
  %6862 = vmatprep.subr.bf16.mxu0 0
  %6863 = vmatpush1.bf16.msra.mxu0 0
  %6864 = vmatprep.subr.bf16.mxu0 0
  %6865 = vmatpush1.bf16.msra.mxu0 0
  %6866 = vmatprep.subr.bf16.mxu0 0
  %6867 = vmatpush1.bf16.msra.mxu0 0
  %6868 = vmatprep.subr.bf16.mxu0 0
  %6869 = vmatpush1.bf16.msra.mxu0 0
  %6870 = vmatprep.subr.bf16.mxu0 0
  %6871 = vmatpush1.bf16.msra.mxu0 0
  %6872 = vmatprep.mubr.bf16.mxu0 %v6360
  %6873 = vmatmul.mubr.bf16.gmra.mrb[0].mxu0 %v6230
  %v6874 = vpop.f32.mrb[0].mxu0
  %v6875 = vadd.f32 0.0, %v6874
  %v6876 = vpop.f32.mrb[0].mxu0
  %v6877 = vadd.f32 0.0, %v6876
  %v6878 = vpop.f32.mrb[0].mxu0
  %v6879 = vpop.f32.mrb[0].mxu0
  %6880 = vdwg.mxu0
  %v6881 = vpack.c.bf16 %v6875, %v6875
  %v6882 = vpack.c.bf16 %v6877, %v6877
  %s6883 = scalar_lea.vmem %s2, 16
  %v6884 = vld [vmem:[%s6883] sm:$0xf]
  %v6885 = vld [vmem:[%s6883 + $0x4] sm:$0xf]
  %v6888 = vunpack.c.l.b16 %v6884
  %v6889 = vunpack.c.l.b16 %v6885
  %v6890 = vpack.c.b16 %v6889, %v6888
  %v6892 = vsel %vm70, %v6890, 0
  %v6895 = vsel %vm74, %v6881, 0
  %v6898 = vsel %vm74, %v6882, 0
  %6900 = vmatprep.subr.bf16.mxu0 %v6898
  %6901 = vmatpush1.bf16.msra.mxu0 %v6895
  %6902 = vmatprep.subr.bf16.mxu0 0
  %6903 = vmatpush1.bf16.msra.mxu0 0
  %6904 = vmatprep.subr.bf16.mxu0 0
  %6905 = vmatpush1.bf16.msra.mxu0 0
  %6906 = vmatprep.subr.bf16.mxu0 0
  %6907 = vmatpush1.bf16.msra.mxu0 0
  %6908 = vmatprep.subr.bf16.mxu0 0
  %6909 = vmatpush1.bf16.msra.mxu0 0
  %6910 = vmatprep.subr.bf16.mxu0 0
  %6911 = vmatpush1.bf16.msra.mxu0 0
  %6912 = vmatprep.subr.bf16.mxu0 0
  %6913 = vmatpush1.bf16.msra.mxu0 0
  %6914 = vmatprep.subr.bf16.mxu0 0
  %6915 = vmatpush1.bf16.msra.mxu0 0
  %6916 = vmatprep.subr.bf16.mxu0 0
  %6917 = vmatpush1.bf16.msra.mxu0 0
  %6918 = vmatprep.subr.bf16.mxu0 0
  %6919 = vmatpush1.bf16.msra.mxu0 0
  %6920 = vmatprep.subr.bf16.mxu0 0
  %6921 = vmatpush1.bf16.msra.mxu0 0
  %6922 = vmatprep.subr.bf16.mxu0 0
  %6923 = vmatpush1.bf16.msra.mxu0 0
  %6924 = vmatprep.subr.bf16.mxu0 0
  %6925 = vmatpush1.bf16.msra.mxu0 0
  %6926 = vmatprep.subr.bf16.mxu0 0
  %6927 = vmatpush1.bf16.msra.mxu0 0
  %6928 = vmatprep.subr.bf16.mxu0 0
  %6929 = vmatpush1.bf16.msra.mxu0 0
  %6930 = vmatprep.subr.bf16.mxu0 0
  %6931 = vmatpush1.bf16.msra.mxu0 0
  %6932 = vmatprep.mubr.bf16.mxu0 0
  %6933 = vmatmul.mubr.bf16.gmra.mrb[0].mxu0 %v6892
  %v6934 = vpop.f32.mrb[0].mxu0
  %v6935 = vadd.f32 0.0, %v6934
  %v6936 = vpop.f32.mrb[0].mxu0
  %v6937 = vadd.f32 0.0, %v6936
  %v6938 = vpop.f32.mrb[0].mxu0
  %v6939 = vadd.f32 0.0, %v6938
  %v6940 = vpop.f32.mrb[0].mxu0
  %v6941 = vadd.f32 0.0, %v6940
  %6942 = vdwg.mxu0
  %v6943 = vadd.f32 %v6699, %v6935
  %v6944 = vadd.f32 %v6701, %v6937
  %v6945 = vadd.f32 %v6703, %v6939
  %v6946 = vadd.f32 %v6705, %v6941
  %s6947 = scalar_lea.vmem %s4, 504
  %v6948 = vld [vmem:[%s6947] sm:$0xff]
  %v6949 = vld [vmem:[%s6947 + $0x8] sm:$0xff]
  %v6950 = vld [vmem:[%s6947 + $0x10] sm:$0xff]
  %v6951 = vld [vmem:[%s6947 + $0x18] sm:$0xff]
  %v6952 = vld [vmem:[%s6947 + $0x20] sm:$0xff]
  %v6953 = vld [vmem:[%s6947 + $0x28] sm:$0xff]
  %v6954 = vld [vmem:[%s6947 + $0x30] sm:$0xff]
  %v6955 = vld [vmem:[%s6947 + $0x38] sm:$0xff]
  %v6956 = vld [vmem:[%s6947 + $0x40] sm:$0xff]
  %v6957 = vld [vmem:[%s6947 + $0x48] sm:$0xff]
  %v6958 = vld [vmem:[%s6947 + $0x50] sm:$0xff]
  %v6959 = vld [vmem:[%s6947 + $0x58] sm:$0xff]
  %v6960 = vld [vmem:[%s6947 + $0x60] sm:$0xff]
  %v6961 = vld [vmem:[%s6947 + $0x68] sm:$0xff]
  %v6962 = vld [vmem:[%s6947 + $0x70] sm:$0xff]
  %v6963 = vld [vmem:[%s6947 + $0x78] sm:$0xff]
  %v6964 = vld [vmem:[%s6947 + $0x80] sm:$0xff]
  %v6965 = vld [vmem:[%s6947 + $0x88] sm:$0xff]
  %v6966 = vld [vmem:[%s6947 + $0x90] sm:$0xff]
  %v6967 = vld [vmem:[%s6947 + $0x98] sm:$0xff]
  %v6968 = vld [vmem:[%s6947 + $0xa0] sm:$0x11]
  %v6990 = vunpack.c.l.b16 %v6948
  %v6991 = vunpack.c.h.b16 %v6948
  %v6992 = vunpack.c.l.b16 %v6949
  %v6993 = vunpack.c.h.b16 %v6949
  %v6994 = vunpack.c.l.b16 %v6950
  %v6995 = vunpack.c.h.b16 %v6950
  %v6996 = vunpack.c.l.b16 %v6951
  %v6997 = vunpack.c.h.b16 %v6951
  %v6998 = vunpack.c.l.b16 %v6952
  %v6999 = vunpack.c.h.b16 %v6952
  %v7000 = vunpack.c.l.b16 %v6953
  %v7001 = vunpack.c.h.b16 %v6953
  %v7002 = vunpack.c.l.b16 %v6954
  %v7003 = vunpack.c.h.b16 %v6954
  %v7004 = vunpack.c.l.b16 %v6955
  %v7005 = vunpack.c.h.b16 %v6955
  %v7006 = vunpack.c.l.b16 %v6956
  %v7007 = vunpack.c.h.b16 %v6956
  %v7008 = vunpack.c.l.b16 %v6957
  %v7009 = vunpack.c.h.b16 %v6957
  %v7010 = vunpack.c.l.b16 %v6958
  %v7011 = vunpack.c.h.b16 %v6958
  %v7012 = vunpack.c.l.b16 %v6959
  %v7013 = vunpack.c.h.b16 %v6959
  %v7014 = vunpack.c.l.b16 %v6960
  %v7015 = vunpack.c.h.b16 %v6960
  %v7016 = vunpack.c.l.b16 %v6961
  %v7017 = vunpack.c.h.b16 %v6961
  %v7018 = vunpack.c.l.b16 %v6962
  %v7019 = vunpack.c.h.b16 %v6962
  %v7020 = vunpack.c.l.b16 %v6963
  %v7021 = vunpack.c.h.b16 %v6963
  %v7022 = vunpack.c.l.b16 %v6964
  %v7023 = vunpack.c.h.b16 %v6964
  %v7024 = vunpack.c.l.b16 %v6965
  %v7025 = vunpack.c.h.b16 %v6965
  %v7026 = vunpack.c.l.b16 %v6966
  %v7027 = vunpack.c.h.b16 %v6966
  %v7028 = vunpack.c.l.b16 %v6967
  %v7029 = vunpack.c.h.b16 %v6967
  %v7030 = vunpack.c.l.b16 %v6968
  %v7031 = vunpack.c.h.b16 %v6968
  %v7032 = vpack.c.b16 %v6992, %v6990
  %v7033 = vpack.c.b16 %v6993, %v6991
  %v7034 = vpack.c.b16 %v6996, %v6994
  %v7035 = vpack.c.b16 %v6997, %v6995
  %v7036 = vpack.c.b16 %v7000, %v6998
  %v7037 = vpack.c.b16 %v7001, %v6999
  %v7038 = vpack.c.b16 %v7004, %v7002
  %v7039 = vpack.c.b16 %v7005, %v7003
  %v7040 = vpack.c.b16 %v7008, %v7006
  %v7041 = vpack.c.b16 %v7009, %v7007
  %v7042 = vpack.c.b16 %v7012, %v7010
  %v7043 = vpack.c.b16 %v7013, %v7011
  %v7044 = vpack.c.b16 %v7016, %v7014
  %v7045 = vpack.c.b16 %v7017, %v7015
  %v7046 = vpack.c.b16 %v7020, %v7018
  %v7047 = vpack.c.b16 %v7021, %v7019
  %v7048 = vpack.c.b16 %v7024, %v7022
  %v7049 = vpack.c.b16 %v7025, %v7023
  %v7050 = vpack.c.b16 %v7028, %v7026
  %v7051 = vpack.c.b16 %v7029, %v7027
  %v7052 = vpack.c.b16 %v7030, %v7030
  %v7053 = vpack.c.b16 %v7031, %v7031
  %v7075 = vsel %vm6362, %v7052, 0
  %v7078 = vsel %vm6362, %v7053, 0
  %7080 = vmatprep.subr.bf16.mxu0 %v7033
  %7081 = vmatpush1.bf16.msra.mxu0 %v7032
  %7082 = vmatprep.subr.bf16.mxu0 %v7035
  %7083 = vmatpush1.bf16.msra.mxu0 %v7034
  %7084 = vmatprep.subr.bf16.mxu0 %v7037
  %7085 = vmatpush1.bf16.msra.mxu0 %v7036
  %7086 = vmatprep.subr.bf16.mxu0 %v7039
  %7087 = vmatpush1.bf16.msra.mxu0 %v7038
  %7088 = vmatprep.subr.bf16.mxu0 %v7041
  %7089 = vmatpush1.bf16.msra.mxu0 %v7040
  %7090 = vmatprep.subr.bf16.mxu0 %v7043
  %7091 = vmatpush1.bf16.msra.mxu0 %v7042
  %7092 = vmatprep.subr.bf16.mxu0 %v7045
  %7093 = vmatpush1.bf16.msra.mxu0 %v7044
  %7094 = vmatprep.subr.bf16.mxu0 %v7047
  %7095 = vmatpush1.bf16.msra.mxu0 %v7046
  %7096 = vmatprep.subr.bf16.mxu0 %v7049
  %7097 = vmatpush1.bf16.msra.mxu0 %v7048
  %7098 = vmatprep.subr.bf16.mxu0 %v7051
  %7099 = vmatpush1.bf16.msra.mxu0 %v7050
  %7100 = vmatprep.subr.bf16.mxu0 %v7078
  %7101 = vmatpush1.bf16.msra.mxu0 %v7075
  %7102 = vmatprep.subr.bf16.mxu0 0
  %7103 = vmatpush1.bf16.msra.mxu0 0
  %7104 = vmatprep.subr.bf16.mxu0 0
  %7105 = vmatpush1.bf16.msra.mxu0 0
  %7106 = vmatprep.subr.bf16.mxu0 0
  %7107 = vmatpush1.bf16.msra.mxu0 0
  %7108 = vmatprep.subr.bf16.mxu0 0
  %7109 = vmatpush1.bf16.msra.mxu0 0
  %7110 = vmatprep.subr.bf16.mxu0 0
  %7111 = vmatpush1.bf16.msra.mxu0 0
  %7112 = vmatprep.mubr.bf16.mxu0 %v6360
  %7113 = vmatmul.mubr.bf16.gmra.mrb[0].mxu0 %v6230
  %v7114 = vpop.f32.mrb[0].mxu0
  %v7115 = vadd.f32 0.0, %v7114
  %v7116 = vpop.f32.mrb[0].mxu0
  %v7117 = vadd.f32 0.0, %v7116
  %v7118 = vpop.f32.mrb[0].mxu0
  %v7119 = vpop.f32.mrb[0].mxu0
  %7120 = vdwg.mxu0
  %v7121 = vpack.c.bf16 %v7115, %v7115
  %v7122 = vpack.c.bf16 %v7117, %v7117
  %s7123 = scalar_lea.vmem %s2, 24
  %v7124 = vld [vmem:[%s7123] sm:$0xf]
  %v7125 = vld [vmem:[%s7123 + $0x4] sm:$0xf]
  %v7128 = vunpack.c.l.b16 %v7124
  %v7129 = vunpack.c.l.b16 %v7125
  %v7130 = vpack.c.b16 %v7129, %v7128
  %v7132 = vsel %vm70, %v7130, 0
  %v7135 = vsel %vm74, %v7121, 0
  %v7138 = vsel %vm74, %v7122, 0
  %7140 = vmatprep.subr.bf16.mxu0 %v7138
  %7141 = vmatpush1.bf16.msra.mxu0 %v7135
  %7142 = vmatprep.subr.bf16.mxu0 0
  %7143 = vmatpush1.bf16.msra.mxu0 0
  %7144 = vmatprep.subr.bf16.mxu0 0
  %7145 = vmatpush1.bf16.msra.mxu0 0
  %7146 = vmatprep.subr.bf16.mxu0 0
  %7147 = vmatpush1.bf16.msra.mxu0 0
  %7148 = vmatprep.subr.bf16.mxu0 0
  %7149 = vmatpush1.bf16.msra.mxu0 0
  %7150 = vmatprep.subr.bf16.mxu0 0
  %7151 = vmatpush1.bf16.msra.mxu0 0
  %7152 = vmatprep.subr.bf16.mxu0 0
  %7153 = vmatpush1.bf16.msra.mxu0 0
  %7154 = vmatprep.subr.bf16.mxu0 0
  %7155 = vmatpush1.bf16.msra.mxu0 0
  %7156 = vmatprep.subr.bf16.mxu0 0
  %7157 = vmatpush1.bf16.msra.mxu0 0
  %7158 = vmatprep.subr.bf16.mxu0 0
  %7159 = vmatpush1.bf16.msra.mxu0 0
  %7160 = vmatprep.subr.bf16.mxu0 0
  %7161 = vmatpush1.bf16.msra.mxu0 0
  %7162 = vmatprep.subr.bf16.mxu0 0
  %7163 = vmatpush1.bf16.msra.mxu0 0
  %7164 = vmatprep.subr.bf16.mxu0 0
  %7165 = vmatpush1.bf16.msra.mxu0 0
  %7166 = vmatprep.subr.bf16.mxu0 0
  %7167 = vmatpush1.bf16.msra.mxu0 0
  %7168 = vmatprep.subr.bf16.mxu0 0
  %7169 = vmatpush1.bf16.msra.mxu0 0
  %7170 = vmatprep.subr.bf16.mxu0 0
  %7171 = vmatpush1.bf16.msra.mxu0 0
  %7172 = vmatprep.mubr.bf16.mxu0 0
  %7173 = vmatmul.mubr.bf16.gmra.mrb[0].mxu0 %v7132
  %v7174 = vpop.f32.mrb[0].mxu0
  %v7175 = vadd.f32 0.0, %v7174
  %v7176 = vpop.f32.mrb[0].mxu0
  %v7177 = vadd.f32 0.0, %v7176
  %v7178 = vpop.f32.mrb[0].mxu0
  %v7179 = vadd.f32 0.0, %v7178
  %v7180 = vpop.f32.mrb[0].mxu0
  %v7181 = vadd.f32 0.0, %v7180
  %7182 = vdwg.mxu0
  %v7183 = vadd.f32 %v6943, %v7175
  %v7184 = vadd.f32 %v6944, %v7177
  %v7185 = vadd.f32 %v6945, %v7179
  %v7186 = vadd.f32 %v6946, %v7181
  %vm7187 = vcmp.gt.f32.partialorder %v7183, 1.0
  %vm7188 = vcmp.gt.f32.partialorder %v7184, 1.0
  %vm7189 = vcmp.gt.f32.partialorder %v7185, 1.0
  %vm7190 = vcmp.gt.f32.partialorder %v7186, 1.0
  %v7191 = vsel %vm7187, 1.0, 0.0
  %v7192 = vsel %vm7188, 1.0, 0.0
  %v7193 = vsel %vm7189, 1.0, 0.0
  %v7194 = vsel %vm7190, 1.0, 0.0
  %v7195 = vpack.c.bf16 %v7193, %v7191
  %v7196 = vpack.c.bf16 %v7194, %v7192
  %v7197 = vld [vmem:[%s5] sm:$0xf]
  %v7198 = vld [vmem:[%s5 + $0x4] sm:$0xf]
  %v7199 = vld [vmem:[%s5 + $0x8] sm:$0xf]
  %v7200 = vld [vmem:[%s5 + $0xc] sm:$0xf]
  %v7201 = vld [vmem:[%s5 + $0x10] sm:$0xf]
  %v7202 = vld [vmem:[%s5 + $0x14] sm:$0xf]
  %v7203 = vld [vmem:[%s5 + $0x18] sm:$0xf]
  %v7204 = vld [vmem:[%s5 + $0x1c] sm:$0xf]
  %v7205 = vld [vmem:[%s5 + $0x20] sm:$0xf]
  %v7206 = vld [vmem:[%s5 + $0x24] sm:$0xf]
  %v7207 = vld [vmem:[%s5 + $0x28] sm:$0xf]
  %v7208 = vld [vmem:[%s5 + $0x2c] sm:$0xf]
  %v7209 = vld [vmem:[%s5 + $0x30] sm:$0xf]
  %v7210 = vld [vmem:[%s5 + $0x34] sm:$0xf]
  %v7211 = vld [vmem:[%s5 + $0x38] sm:$0xf]
  %v7212 = vld [vmem:[%s5 + $0x3c] sm:$0xf]
  %v7213 = vld [vmem:[%s5 + $0x40] sm:$0xf]
  %v7214 = vld [vmem:[%s5 + $0x44] sm:$0xf]
  %v7215 = vld [vmem:[%s5 + $0x48] sm:$0xf]
  %v7216 = vld [vmem:[%s5 + $0x4c] sm:$0xf]
  %v7217 = vld [vmem:[%s5 + $0x50] sm:$0xf]
  %v7218 = vld [vmem:[%s5 + $0x54] sm:$0xf]
  %v7219 = vld [vmem:[%s5 + $0x58] sm:$0xf]
  %v7220 = vld [vmem:[%s5 + $0x5c] sm:$0xf]
  %v7221 = vld [vmem:[%s5 + $0x60] sm:$0xf]
  %v7247 = vunpack.c.l.b16 %v7197
  %v7248 = vunpack.c.l.b16 %v7198
  %v7249 = vunpack.c.l.b16 %v7199
  %v7250 = vunpack.c.l.b16 %v7200
  %v7251 = vunpack.c.l.b16 %v7201
  %v7252 = vunpack.c.l.b16 %v7202
  %v7253 = vunpack.c.l.b16 %v7203
  %v7254 = vunpack.c.l.b16 %v7204
  %v7255 = vunpack.c.l.b16 %v7205
  %v7256 = vunpack.c.l.b16 %v7206
  %v7257 = vunpack.c.l.b16 %v7207
  %v7258 = vunpack.c.l.b16 %v7208
  %v7259 = vunpack.c.l.b16 %v7209
  %v7260 = vunpack.c.l.b16 %v7210
  %v7261 = vunpack.c.l.b16 %v7211
  %v7262 = vunpack.c.l.b16 %v7212
  %v7263 = vunpack.c.l.b16 %v7213
  %v7264 = vunpack.c.l.b16 %v7214
  %v7265 = vunpack.c.l.b16 %v7215
  %v7266 = vunpack.c.l.b16 %v7216
  %v7267 = vunpack.c.l.b16 %v7217
  %v7268 = vunpack.c.l.b16 %v7218
  %v7269 = vunpack.c.l.b16 %v7219
  %v7270 = vunpack.c.l.b16 %v7220
  %v7271 = vunpack.c.l.b16 %v7221
  %v7272 = vpack.c.b16 %v7248, %v7247
  %v7273 = vpack.c.b16 %v7250, %v7249
  %v7274 = vpack.c.b16 %v7252, %v7251
  %v7275 = vpack.c.b16 %v7254, %v7253
  %v7276 = vpack.c.b16 %v7256, %v7255
  %v7277 = vpack.c.b16 %v7258, %v7257
  %v7278 = vpack.c.b16 %v7260, %v7259
  %v7279 = vpack.c.b16 %v7262, %v7261
  %v7280 = vpack.c.b16 %v7264, %v7263
  %v7281 = vpack.c.b16 %v7266, %v7265
  %v7282 = vpack.c.b16 %v7268, %v7267
  %v7283 = vpack.c.b16 %v7270, %v7269
  %v7284 = vpack.c.b16 %v7271, %v7271
  %vm7297 = vcmask 588800
  %v7299 = vsel %vm7297, %v7196, 0
  %v7302 = vsel %vm74, %v7284, 0
  %7304 = vmatprep.subr.bf16.mxu0 0
  %7305 = vmatpush1.bf16.msra.mxu0 %v7272
  %7306 = vmatprep.subr.bf16.mxu0 0
  %7307 = vmatpush1.bf16.msra.mxu0 %v7273
  %7308 = vmatprep.subr.bf16.mxu0 0
  %7309 = vmatpush1.bf16.msra.mxu0 %v7274
  %7310 = vmatprep.subr.bf16.mxu0 0
  %7311 = vmatpush1.bf16.msra.mxu0 %v7275
  %7312 = vmatprep.subr.bf16.mxu0 0
  %7313 = vmatpush1.bf16.msra.mxu0 %v7276
  %7314 = vmatprep.subr.bf16.mxu0 0
  %7315 = vmatpush1.bf16.msra.mxu0 %v7277
  %7316 = vmatprep.subr.bf16.mxu0 0
  %7317 = vmatpush1.bf16.msra.mxu0 %v7278
  %7318 = vmatprep.subr.bf16.mxu0 0
  %7319 = vmatpush1.bf16.msra.mxu0 %v7279
  %7320 = vmatprep.subr.bf16.mxu0 0
  %7321 = vmatpush1.bf16.msra.mxu0 %v7280
  %7322 = vmatprep.subr.bf16.mxu0 0
  %7323 = vmatpush1.bf16.msra.mxu0 %v7281
  %7324 = vmatprep.subr.bf16.mxu0 0
  %7325 = vmatpush1.bf16.msra.mxu0 %v7282
  %7326 = vmatprep.subr.bf16.mxu0 0
  %7327 = vmatpush1.bf16.msra.mxu0 %v7283
  %7328 = vmatprep.subr.bf16.mxu0 0
  %7329 = vmatpush1.bf16.msra.mxu0 %v7302
  %7330 = vmatprep.subr.bf16.mxu0 0
  %7331 = vmatpush1.bf16.msra.mxu0 0
  %7332 = vmatprep.subr.bf16.mxu0 0
  %7333 = vmatpush1.bf16.msra.mxu0 0
  %7334 = vmatprep.subr.bf16.mxu0 0
  %7335 = vmatpush1.bf16.msra.mxu0 0
  %7336 = vmatprep.mubr.bf16.mxu0 %v7299
  %7337 = vmatmul.mubr.bf16.gmra.mrb[0].mxu0 %v7195
  %v7338 = vpop.f32.mrb[0].mxu0
  %v7339 = vadd.f32 0.0, %v7338
  %v7340 = vpop.f32.mrb[0].mxu0
  %v7341 = vpop.f32.mrb[0].mxu0
  %v7342 = vadd.f32 0.0, %v7341
  %v7343 = vpop.f32.mrb[0].mxu0
  %7344 = vdwg.mxu0
  %vm7345 = vcmp.gt.f32.partialorder %v7339, 0.5
  %vm7346 = vcmp.gt.f32.partialorder %v7342, 0.5
  %v7347 = vsel %vm7345, 1.0, 0.0
  %v7348 = vsel %vm7346, 1.0, 0.0
  %7349 = vst.msk [vmem:[%s6] sm:$0xff] %vm7297, %v7347
  %7350 = vst.msk [vmem:[%s6 + $0x8] sm:$0xff] %vm7297, %v7348
  // Predicated region
  $region26: #{forward_eval.1} parent=0 // pred_check
    _
  $region27: #{forward_eval.1} parent=0 // pred_check_branch
    %7352 = sbr.rel (0) target = $region29
  $region28: #{forward_eval.1} parent=0 // pred_region
    _
  $region29: #{forward_eval.1} parent=0 // pred_fallthru
    _
  // Predicated region
  $region30: #{forward_eval.1} parent=0 // pred_check
    _
  $region31: #{forward_eval.1} parent=0 // pred_check_branch
    %7354 = sbr.rel (0) target = $region33
  $region32: #{forward_eval.1} parent=0 // pred_region
    _
  $region33: #{forward_eval.1} parent=0 // pred_fallthru
    _

</llo_original>
